<compile_context>
chip_gen: v7x
topology: tpu7x:2x2x1
jax: 0.10.0
libtpu: 0.0.40
codegen_flags: <defaults>
</compile_context>

<pallas_src>
import numpy as np

import jax
import jax.numpy as jnp
from jax.experimental import pallas as pl
from jax.experimental.pallas import tpu as pltpu

LEAKY_SLOPE = 0.2
BN_EPS = 1e-5


# ----------------------------------------------------------------------------
# Host-side helper: per-image, tap-stacked selection matrix (stride + zero pad)
# ----------------------------------------------------------------------------
def _build_selection_matrix(H, W, kh, kw, stride, pad):
    """S has shape (taps*OH*OW, H*W); row t*OH*OW + (oh*OW+ow) selects the input
    element hit by kernel tap t=(a,b) at output (oh,ow); all-zero row in pad."""
    OH = (H + 2 * pad - kh) // stride + 1
    OW = (W + 2 * pad - kw) // stride + 1
    M = OH * OW
    S = np.zeros((kh * kw * M, H * W), np.float32)
    for a in range(kh):
        for b in range(kw):
            t = a * kw + b
            for oh in range(OH):
                h = stride * oh + a - pad
                if h < 0 or h >= H:
                    continue
                for ow in range(OW):
                    w = stride * ow + b - pad
                    if w < 0 or w >= W:
                        continue
                    S[t * M + oh * OW + ow, h * W + w] = 1.0
    return S, OH, OW


# ----------------------------------------------------------------------------
# Fused whole-network kernel
# ----------------------------------------------------------------------------
def _make_network_kernel(metas, n_imgs):
    n_layers = len(metas)

    def kernel(*refs):
        x_ref, mask_ref = refs[0], refs[1]
        layer_refs = refs[2:2 + 3 * n_layers]
        o_ref = refs[2 + 3 * n_layers]
        scratch = refs[3 + 3 * n_layers:]

        # Training-mode dropout: pre-scaled bf16 mask, multiply in bf16.
        a_imgs = [x_ref[n] * mask_ref[n] for n in range(n_imgs)]   # (H*W, Cin)

        for li, meta in enumerate(metas):
            s_ref, w_ref, gb_ref = layer_refs[3 * li:3 * li + 3]
            p_scr, cat_scr, y_scr = scratch[3 * li:3 * li + 3]
            taps, m_img = meta["taps"], meta["m_img"]
            cin, co = meta["cin"], meta["co"]

            s_mat = s_ref[...]                     # (taps*m_img, hw)  bf16 0/1
            w_cat = w_ref[...]                     # (taps*cin, co)    bf16

            for n in range(n_imgs):
                # ONE MXU dot performs the strided+padded im2col gather of all
                # taps at once (exact: each S row has a single 1 or is zero).
                p_scr[...] = jnp.dot(s_mat, a_imgs[n],
                                     preferred_element_type=jnp.float32)
                # Relayout (taps*m_img, cin) tap-major -> (m_img, taps*cin)
                # via VMEM ref slice copies only (no value reshapes/concats).
                for t in range(taps):
                    cat_scr[:, t * cin:(t + 1) * cin] = (
                        p_scr[t * m_img:(t + 1) * m_img, :])
                # ONE MXU dot contracts all taps*cin rows at once.
                y_scr[n * m_img:(n + 1) * m_img, :] = jnp.dot(
                    cat_scr[...].astype(jnp.bfloat16), w_cat,
                    preferred_element_type=jnp.float32)

            y = y_scr[...]                         # (n_imgs*m_img, co) f32
            if meta["normalize"]:
                # Training-mode BatchNorm2d over (N, OH, OW); two-pass variance.
                mean = jnp.mean(y, axis=0, keepdims=True)
                d = y - mean
                var = jnp.mean(d * d, axis=0, keepdims=True)
                y = d * jax.lax.rsqrt(var + BN_EPS)
            gb = gb_ref[...]                       # (2, co): [gamma|1 ; beta|bias]
            y = y * gb[0:1, :] + gb[1:2, :]

            act = meta["act"]
            if act == "leaky_relu":
                y = jnp.where(y > 0, y, LEAKY_SLOPE * y)
            elif act == "relu":
                y = jnp.maximum(y, 0.0)
            elif act == "sigmoid":
                y = 1.0 / (1.0 + jnp.exp(-y))
            elif act == "tanh":
                y = jnp.tanh(y)

            if li == n_layers - 1:
                o_ref[...] = y.astype(o_ref.dtype)
            else:
                # Stage in VMEM and re-slice per image (ref slices only).
                y_scr[...] = y
                a_imgs = [y_scr[n * m_img:(n + 1) * m_img, :].astype(jnp.bfloat16)
                          for n in range(n_imgs)]

    return kernel


def _full_spec(shape):
    nd = len(shape)
    return pl.BlockSpec(tuple(shape), lambda i, _nd=nd: (0,) * _nd)


# ----------------------------------------------------------------------------
# Parameter / plan construction + forward
# ----------------------------------------------------------------------------
def build_discriminator(blocks, input_shape, key):
    N, C, H, W = input_shape
    layers = []
    h, w, cin = H, W, C
    keys = jax.random.split(key, len(blocks))
    for blk, k in zip(blocks, keys):
        assert blk["in_channels"] == cin, "block channel chaining mismatch"
        co, ks = blk["out_channels"], blk["kernel_size"]
        st, pad = blk["stride"], blk["padding"]
        norm, act = blk["normalize"], blk["activation"]
        S, oh, ow = _build_selection_matrix(h, w, ks, ks, st, pad)
        taps, m_img = ks * ks, oh * ow
        kw_, kb_ = jax.random.split(k)
        w_conv = 0.1 * jax.random.normal(kw_, (co, cin, ks, ks), jnp.float32)
        # W_cat[t*cin + c, co] = w_conv[co, c, a, b],  t = a*ks + b
        w_cat = jnp.transpose(w_conv, (2, 3, 1, 0)).reshape(taps * cin, co)
        if norm:
            gb = jnp.stack([jnp.ones((co,), jnp.float32),     # BN gamma
                            jnp.zeros((co,), jnp.float32)])   # BN beta
        else:
            bias = 0.1 * jax.random.normal(kb_, (co,), jnp.float32)
            gb = jnp.stack([jnp.ones((co,), jnp.float32), bias])  # y*1 + bias
        layers.append(dict(
            S=jnp.asarray(S, jnp.bfloat16),                 # exact 0/1 in bf16
            Wcat=w_cat.astype(jnp.bfloat16),
            gb=gb,
            meta=dict(taps=taps, m_img=m_img, cin=cin, co=co, oh=oh, ow=ow,
                      normalize=norm, act=act),
        ))
        h, w, cin = oh, ow, co

    metas = [l["meta"] for l in layers]
    last = metas[-1]
    out_struct = jax.ShapeDtypeStruct((N * last["m_img"], last["co"]),
                                      jnp.float32)
    kernel = _make_network_kernel(metas, N)

    layer_args = []
    scratch_shapes = []
    for l in layers:
        layer_args += [l["S"], l["Wcat"], l["gb"]]
        m = l["meta"]
        scratch_shapes += [
            pltpu.VMEM((m["taps"] * m["m_img"], m["cin"]), jnp.float32),  # P
            pltpu.VMEM((m["m_img"], m["taps"] * m["cin"]), jnp.float32),  # P_cat
            pltpu.VMEM((N * m["m_img"], m["co"]), jnp.float32),           # layer out
        ]
    layer_args = tuple(layer_args)

    @jax.jit
    def forward(x_nchw, dropout_mask):
        x = jnp.transpose(x_nchw, (0, 2, 3, 1)).reshape(N, H * W, C)
        args = (x.astype(jnp.bfloat16),
                dropout_mask.astype(jnp.bfloat16)) + layer_args
        y = pl.pallas_call(
            kernel,
            out_shape=out_struct,
            grid=(1,),
            in_specs=[_full_spec(a.shape) for a in args],
            out_specs=_full_spec(out_struct.shape),
            scratch_shapes=scratch_shapes,
            compiler_params=pltpu.CompilerParams(
                dimension_semantics=("arbitrary",),
                vmem_limit_bytes=32 * 1024 * 1024),
        )(*args)
        y = y.reshape(N, last["oh"], last["ow"], last["co"])
        return jnp.transpose(y, (0, 3, 1, 2))            # NHWC -> NCHW

    return layers, forward


if __name__ == "__main__":
    key = jax.random.PRNGKey(0)
    k_x, k_p, k_drop = jax.random.split(key, 3)

    N, C, H, W = 2, 4, 16, 16
    x = jax.random.normal(k_x, (N, C, H, W), jnp.float32)   # NCHW like PyTorch

    # Typical DCGAN-style discriminator config (kwargs of Conv2dBlock)
    blocks = [
        dict(in_channels=4, out_channels=16, kernel_size=4, stride=2, padding=1,
             normalize=False, activation="leaky_relu"),
        dict(in_channels=16, out_channels=32, kernel_size=4, stride=2, padding=1,
             normalize=True, activation="leaky_relu"),
        dict(in_channels=32, out_channels=64, kernel_size=4, stride=2, padding=1,
             normalize=True, activation="leaky_relu"),
        dict(in_channels=64, out_channels=1, kernel_size=4, stride=2, padding=1,
             normalize=False, activation="sigmoid"),
    ]
    p_drop = 0.3

    layers, forward = build_discriminator(blocks, (N, C, H, W), k_p)

    keep = 1.0 - p_drop   # training-mode Dropout: mask / (1 - p)
    mask = (jax.random.bernoulli(k_drop, keep, (N, H * W, C)).astype(jnp.float32)
            / keep)

    y = forward(x, mask)
    y = jax.block_until_ready(y)

    assert y.shape == (N, 1, 1, 1), y.shape
    assert y.dtype == jnp.float32
    assert bool(jnp.all(jnp.isfinite(y)))
    assert bool(jnp.all((y >= 0.0) & (y <= 1.0)))   # sigmoid output range
    print("KERNEL_OK")
</pallas_src>

<mosaic_0001>
module attributes {stable_mosaic.version = 11 : i64} {
  func.func @kernel(%arg0: i32, %arg1: memref<2x256x4xbf16, #tpu.memory_space<vmem>>, %arg2: memref<2x256x4xbf16, #tpu.memory_space<vmem>>, %arg3: memref<1024x256xbf16, #tpu.memory_space<vmem>>, %arg4: memref<64x16xbf16, #tpu.memory_space<vmem>>, %arg5: memref<2x16xf32, #tpu.memory_space<vmem>>, %arg6: memref<256x64xbf16, #tpu.memory_space<vmem>>, %arg7: memref<256x32xbf16, #tpu.memory_space<vmem>>, %arg8: memref<2x32xf32, #tpu.memory_space<vmem>>, %arg9: memref<64x16xbf16, #tpu.memory_space<vmem>>, %arg10: memref<512x64xbf16, #tpu.memory_space<vmem>>, %arg11: memref<2x64xf32, #tpu.memory_space<vmem>>, %arg12: memref<16x4xbf16, #tpu.memory_space<vmem>>, %arg13: memref<1024x1xbf16, #tpu.memory_space<vmem>>, %arg14: memref<2x1xf32, #tpu.memory_space<vmem>>, %arg15: memref<2x1xf32, #tpu.memory_space<vmem>>, %arg16: memref<1024x4xf32, #tpu.memory_space<vmem>>, %arg17: memref<64x64xf32, #tpu.memory_space<vmem>>, %arg18: memref<128x16xf32, #tpu.memory_space<vmem>>, %arg19: memref<256x16xf32, #tpu.memory_space<vmem>>, %arg20: memref<16x256xf32, #tpu.memory_space<vmem>>, %arg21: memref<32x32xf32, #tpu.memory_space<vmem>>, %arg22: memref<64x32xf32, #tpu.memory_space<vmem>>, %arg23: memref<4x512xf32, #tpu.memory_space<vmem>>, %arg24: memref<8x64xf32, #tpu.memory_space<vmem>>, %arg25: memref<16x64xf32, #tpu.memory_space<vmem>>, %arg26: memref<1x1024xf32, #tpu.memory_space<vmem>>, %arg27: memref<2x1xf32, #tpu.memory_space<vmem>>) attributes {dimension_semantics = [#tpu.dimension_semantics<arbitrary>], iteration_bounds = array<i64: 1>, scalar_prefetch = 0 : i64, scratch_operands = 12 : i64, tpu.core_type = #tpu.core_type<tc>, window_params = [{pipeline_mode = #tpu.pipeline_mode<synchronous>, transform_indices = @transform_0, window_bounds = array<i64: 2, 256, 4>}, {pipeline_mode = #tpu.pipeline_mode<synchronous>, transform_indices = @transform_1, window_bounds = array<i64: 2, 256, 4>}, {pipeline_mode = #tpu.pipeline_mode<synchronous>, transform_indices = @transform_2, window_bounds = array<i64: 1024, 256>}, {pipeline_mode = #tpu.pipeline_mode<synchronous>, transform_indices = @transform_3, window_bounds = array<i64: 64, 16>}, {pipeline_mode = #tpu.pipeline_mode<synchronous>, transform_indices = @transform_4, window_bounds = array<i64: 2, 16>}, {pipeline_mode = #tpu.pipeline_mode<synchronous>, transform_indices = @transform_5, window_bounds = array<i64: 256, 64>}, {pipeline_mode = #tpu.pipeline_mode<synchronous>, transform_indices = @transform_6, window_bounds = array<i64: 256, 32>}, {pipeline_mode = #tpu.pipeline_mode<synchronous>, transform_indices = @transform_7, window_bounds = array<i64: 2, 32>}, {pipeline_mode = #tpu.pipeline_mode<synchronous>, transform_indices = @transform_8, window_bounds = array<i64: 64, 16>}, {pipeline_mode = #tpu.pipeline_mode<synchronous>, transform_indices = @transform_9, window_bounds = array<i64: 512, 64>}, {pipeline_mode = #tpu.pipeline_mode<synchronous>, transform_indices = @transform_10, window_bounds = array<i64: 2, 64>}, {pipeline_mode = #tpu.pipeline_mode<synchronous>, transform_indices = @transform_11, window_bounds = array<i64: 16, 4>}, {pipeline_mode = #tpu.pipeline_mode<synchronous>, transform_indices = @transform_12, window_bounds = array<i64: 1024, 1>}, {pipeline_mode = #tpu.pipeline_mode<synchronous>, transform_indices = @transform_13, window_bounds = array<i64: 2, 1>}, {pipeline_mode = #tpu.pipeline_mode<synchronous>, transform_indices = @transform_14, window_bounds = array<i64: 2, 1>}]} {
    %c0 = arith.constant 0 : index
    %c0_0 = arith.constant 0 : index
    %c0_1 = arith.constant 0 : index
    %0 = vector.load %arg1[%c0, %c0_0, %c0_1] : memref<2x256x4xbf16, #tpu.memory_space<vmem>>, vector<1x256x4xbf16>
    %1 = vector.shape_cast %0 : vector<1x256x4xbf16> to vector<256x4xbf16>
    %c0_2 = arith.constant 0 : index
    %c0_3 = arith.constant 0 : index
    %c0_4 = arith.constant 0 : index
    %2 = vector.load %arg2[%c0_2, %c0_3, %c0_4] : memref<2x256x4xbf16, #tpu.memory_space<vmem>>, vector<1x256x4xbf16>
    %3 = vector.shape_cast %2 : vector<1x256x4xbf16> to vector<256x4xbf16>
    %4 = arith.mulf %1, %3 : vector<256x4xbf16>
    %c1 = arith.constant 1 : index
    %c0_5 = arith.constant 0 : index
    %c0_6 = arith.constant 0 : index
    %5 = vector.load %arg1[%c1, %c0_5, %c0_6] : memref<2x256x4xbf16, #tpu.memory_space<vmem>>, vector<1x256x4xbf16>
    %6 = vector.shape_cast %5 : vector<1x256x4xbf16> to vector<256x4xbf16>
    %c1_7 = arith.constant 1 : index
    %c0_8 = arith.constant 0 : index
    %c0_9 = arith.constant 0 : index
    %7 = vector.load %arg2[%c1_7, %c0_8, %c0_9] : memref<2x256x4xbf16, #tpu.memory_space<vmem>>, vector<1x256x4xbf16>
    %8 = vector.shape_cast %7 : vector<1x256x4xbf16> to vector<256x4xbf16>
    %9 = arith.mulf %6, %8 : vector<256x4xbf16>
    %c0_10 = arith.constant 0 : index
    %c0_11 = arith.constant 0 : index
    %10 = vector.load %arg3[%c0_10, %c0_11] : memref<1024x256xbf16, #tpu.memory_space<vmem>>, vector<1024x256xbf16>
    %c0_12 = arith.constant 0 : index
    %c0_13 = arith.constant 0 : index
    %11 = vector.load %arg4[%c0_12, %c0_13] : memref<64x16xbf16, #tpu.memory_space<vmem>>, vector<64x16xbf16>
    %cst = arith.constant dense<0.000000e+00> : vector<1024x4xf32>
    %12 = tpu.matmul %10, %4, %cst {dimension_numbers = #tpu.dot_dimension_numbers<[1], [0], [0], [1], [0, 0, 1, 1], [], []>} : vector<1024x256xbf16>, vector<256x4xbf16>, vector<1024x4xf32> -> vector<1024x4xf32>
    %c0_14 = arith.constant 0 : index
    %c0_15 = arith.constant 0 : index
    %13 = vector.load %arg16[%c0_14, %c0_15] : memref<1024x4xf32, #tpu.memory_space<vmem>>, vector<1024x4xf32>
    tpu.vector_store %arg16[%c0_14, %c0_15], %12 {strides = array<i32>} : memref<1024x4xf32, #tpu.memory_space<vmem>>, vector<1024x4xf32>,
    %c0_16 = arith.constant 0 : index
    %c0_17 = arith.constant 0 : index
    %14 = vector.load %arg16[%c0_16, %c0_17] : memref<1024x4xf32, #tpu.memory_space<vmem>>, vector<64x4xf32>
    %c0_18 = arith.constant 0 : index
    %c0_19 = arith.constant 0 : index
    %15 = vector.load %arg17[%c0_18, %c0_19] : memref<64x64xf32, #tpu.memory_space<vmem>>, vector<64x4xf32>
    tpu.vector_store %arg17[%c0_18, %c0_19], %14 {strides = array<i32>} : memref<64x64xf32, #tpu.memory_space<vmem>>, vector<64x4xf32>,
    %c64 = arith.constant 64 : index
    %c0_20 = arith.constant 0 : index
    %16 = vector.load %arg16[%c64, %c0_20] : memref<1024x4xf32, #tpu.memory_space<vmem>>, vector<64x4xf32>
    %c0_21 = arith.constant 0 : index
    %c4 = arith.constant 4 : index
    %17 = vector.load %arg17[%c0_21, %c4] : memref<64x64xf32, #tpu.memory_space<vmem>>, vector<64x4xf32>
    tpu.vector_store %arg17[%c0_21, %c4], %16 {strides = array<i32>} : memref<64x64xf32, #tpu.memory_space<vmem>>, vector<64x4xf32>,
    %c128 = arith.constant 128 : index
    %c0_22 = arith.constant 0 : index
    %18 = vector.load %arg16[%c128, %c0_22] : memref<1024x4xf32, #tpu.memory_space<vmem>>, vector<64x4xf32>
    %c0_23 = arith.constant 0 : index
    %c8 = arith.constant 8 : index
    %19 = vector.load %arg17[%c0_23, %c8] : memref<64x64xf32, #tpu.memory_space<vmem>>, vector<64x4xf32>
    tpu.vector_store %arg17[%c0_23, %c8], %18 {strides = array<i32>} : memref<64x64xf32, #tpu.memory_space<vmem>>, vector<64x4xf32>,
    %c192 = arith.constant 192 : index
    %c0_24 = arith.constant 0 : index
    %20 = vector.load %arg16[%c192, %c0_24] : memref<1024x4xf32, #tpu.memory_space<vmem>>, vector<64x4xf32>
    %c0_25 = arith.constant 0 : index
    %c12 = arith.constant 12 : index
    %21 = vector.load %arg17[%c0_25, %c12] : memref<64x64xf32, #tpu.memory_space<vmem>>, vector<64x4xf32>
    tpu.vector_store %arg17[%c0_25, %c12], %20 {strides = array<i32>} : memref<64x64xf32, #tpu.memory_space<vmem>>, vector<64x4xf32>,
    %c256 = arith.constant 256 : index
    %c0_26 = arith.constant 0 : index
    %22 = vector.load %arg16[%c256, %c0_26] : memref<1024x4xf32, #tpu.memory_space<vmem>>, vector<64x4xf32>
    %c0_27 = arith.constant 0 : index
    %c16 = arith.constant 16 : index
    %23 = vector.load %arg17[%c0_27, %c16] : memref<64x64xf32, #tpu.memory_space<vmem>>, vector<64x4xf32>
    tpu.vector_store %arg17[%c0_27, %c16], %22 {strides = array<i32>} : memref<64x64xf32, #tpu.memory_space<vmem>>, vector<64x4xf32>,
    %c320 = arith.constant 320 : index
    %c0_28 = arith.constant 0 : index
    %24 = vector.load %arg16[%c320, %c0_28] : memref<1024x4xf32, #tpu.memory_space<vmem>>, vector<64x4xf32>
    %c0_29 = arith.constant 0 : index
    %c20 = arith.constant 20 : index
    %25 = vector.load %arg17[%c0_29, %c20] : memref<64x64xf32, #tpu.memory_space<vmem>>, vector<64x4xf32>
    tpu.vector_store %arg17[%c0_29, %c20], %24 {strides = array<i32>} : memref<64x64xf32, #tpu.memory_space<vmem>>, vector<64x4xf32>,
    %c384 = arith.constant 384 : index
    %c0_30 = arith.constant 0 : index
    %26 = vector.load %arg16[%c384, %c0_30] : memref<1024x4xf32, #tpu.memory_space<vmem>>, vector<64x4xf32>
    %c0_31 = arith.constant 0 : index
    %c24 = arith.constant 24 : index
    %27 = vector.load %arg17[%c0_31, %c24] : memref<64x64xf32, #tpu.memory_space<vmem>>, vector<64x4xf32>
    tpu.vector_store %arg17[%c0_31, %c24], %26 {strides = array<i32>} : memref<64x64xf32, #tpu.memory_space<vmem>>, vector<64x4xf32>,
    %c448 = arith.constant 448 : index
    %c0_32 = arith.constant 0 : index
    %28 = vector.load %arg16[%c448, %c0_32] : memref<1024x4xf32, #tpu.memory_space<vmem>>, vector<64x4xf32>
    %c0_33 = arith.constant 0 : index
    %c28 = arith.constant 28 : index
    %29 = vector.load %arg17[%c0_33, %c28] : memref<64x64xf32, #tpu.memory_space<vmem>>, vector<64x4xf32>
    tpu.vector_store %arg17[%c0_33, %c28], %28 {strides = array<i32>} : memref<64x64xf32, #tpu.memory_space<vmem>>, vector<64x4xf32>,
    %c512 = arith.constant 512 : index
    %c0_34 = arith.constant 0 : index
    %30 = vector.load %arg16[%c512, %c0_34] : memref<1024x4xf32, #tpu.memory_space<vmem>>, vector<64x4xf32>
    %c0_35 = arith.constant 0 : index
    %c32 = arith.constant 32 : index
    %31 = vector.load %arg17[%c0_35, %c32] : memref<64x64xf32, #tpu.memory_space<vmem>>, vector<64x4xf32>
    tpu.vector_store %arg17[%c0_35, %c32], %30 {strides = array<i32>} : memref<64x64xf32, #tpu.memory_space<vmem>>, vector<64x4xf32>,
    %c576 = arith.constant 576 : index
    %c0_36 = arith.constant 0 : index
    %32 = vector.load %arg16[%c576, %c0_36] : memref<1024x4xf32, #tpu.memory_space<vmem>>, vector<64x4xf32>
    %c0_37 = arith.constant 0 : index
    %c36 = arith.constant 36 : index
    %33 = vector.load %arg17[%c0_37, %c36] : memref<64x64xf32, #tpu.memory_space<vmem>>, vector<64x4xf32>
    tpu.vector_store %arg17[%c0_37, %c36], %32 {strides = array<i32>} : memref<64x64xf32, #tpu.memory_space<vmem>>, vector<64x4xf32>,
    %c640 = arith.constant 640 : index
    %c0_38 = arith.constant 0 : index
    %34 = vector.load %arg16[%c640, %c0_38] : memref<1024x4xf32, #tpu.memory_space<vmem>>, vector<64x4xf32>
    %c0_39 = arith.constant 0 : index
    %c40 = arith.constant 40 : index
    %35 = vector.load %arg17[%c0_39, %c40] : memref<64x64xf32, #tpu.memory_space<vmem>>, vector<64x4xf32>
    tpu.vector_store %arg17[%c0_39, %c40], %34 {strides = array<i32>} : memref<64x64xf32, #tpu.memory_space<vmem>>, vector<64x4xf32>,
    %c704 = arith.constant 704 : index
    %c0_40 = arith.constant 0 : index
    %36 = vector.load %arg16[%c704, %c0_40] : memref<1024x4xf32, #tpu.memory_space<vmem>>, vector<64x4xf32>
    %c0_41 = arith.constant 0 : index
    %c44 = arith.constant 44 : index
    %37 = vector.load %arg17[%c0_41, %c44] : memref<64x64xf32, #tpu.memory_space<vmem>>, vector<64x4xf32>
    tpu.vector_store %arg17[%c0_41, %c44], %36 {strides = array<i32>} : memref<64x64xf32, #tpu.memory_space<vmem>>, vector<64x4xf32>,
    %c768 = arith.constant 768 : index
    %c0_42 = arith.constant 0 : index
    %38 = vector.load %arg16[%c768, %c0_42] : memref<1024x4xf32, #tpu.memory_space<vmem>>, vector<64x4xf32>
    %c0_43 = arith.constant 0 : index
    %c48 = arith.constant 48 : index
    %39 = vector.load %arg17[%c0_43, %c48] : memref<64x64xf32, #tpu.memory_space<vmem>>, vector<64x4xf32>
    tpu.vector_store %arg17[%c0_43, %c48], %38 {strides = array<i32>} : memref<64x64xf32, #tpu.memory_space<vmem>>, vector<64x4xf32>,
    %c832 = arith.constant 832 : index
    %c0_44 = arith.constant 0 : index
    %40 = vector.load %arg16[%c832, %c0_44] : memref<1024x4xf32, #tpu.memory_space<vmem>>, vector<64x4xf32>
    %c0_45 = arith.constant 0 : index
    %c52 = arith.constant 52 : index
    %41 = vector.load %arg17[%c0_45, %c52] : memref<64x64xf32, #tpu.memory_space<vmem>>, vector<64x4xf32>
    tpu.vector_store %arg17[%c0_45, %c52], %40 {strides = array<i32>} : memref<64x64xf32, #tpu.memory_space<vmem>>, vector<64x4xf32>,
    %c896 = arith.constant 896 : index
    %c0_46 = arith.constant 0 : index
    %42 = vector.load %arg16[%c896, %c0_46] : memref<1024x4xf32, #tpu.memory_space<vmem>>, vector<64x4xf32>
    %c0_47 = arith.constant 0 : index
    %c56 = arith.constant 56 : index
    %43 = vector.load %arg17[%c0_47, %c56] : memref<64x64xf32, #tpu.memory_space<vmem>>, vector<64x4xf32>
    tpu.vector_store %arg17[%c0_47, %c56], %42 {strides = array<i32>} : memref<64x64xf32, #tpu.memory_space<vmem>>, vector<64x4xf32>,
    %c960 = arith.constant 960 : index
    %c0_48 = arith.constant 0 : index
    %44 = vector.load %arg16[%c960, %c0_48] : memref<1024x4xf32, #tpu.memory_space<vmem>>, vector<64x4xf32>
    %c0_49 = arith.constant 0 : index
    %c60 = arith.constant 60 : index
    %45 = vector.load %arg17[%c0_49, %c60] : memref<64x64xf32, #tpu.memory_space<vmem>>, vector<64x4xf32>
    tpu.vector_store %arg17[%c0_49, %c60], %44 {strides = array<i32>} : memref<64x64xf32, #tpu.memory_space<vmem>>, vector<64x4xf32>,
    %c0_50 = arith.constant 0 : index
    %c0_51 = arith.constant 0 : index
    %46 = vector.load %arg17[%c0_50, %c0_51] : memref<64x64xf32, #tpu.memory_space<vmem>>, vector<64x64xf32>
    %47 = arith.truncf %46 : vector<64x64xf32> to vector<64x64xbf16>
    %cst_52 = arith.constant dense<0.000000e+00> : vector<64x16xf32>
    %48 = tpu.matmul %47, %11, %cst_52 {dimension_numbers = #tpu.dot_dimension_numbers<[1], [0], [0], [1], [0, 0, 1, 1], [], []>} : vector<64x64xbf16>, vector<64x16xbf16>, vector<64x16xf32> -> vector<64x16xf32>
    %c0_53 = arith.constant 0 : index
    %c0_54 = arith.constant 0 : index
    %49 = vector.load %arg18[%c0_53, %c0_54] : memref<128x16xf32, #tpu.memory_space<vmem>>, vector<64x16xf32>
    tpu.vector_store %arg18[%c0_53, %c0_54], %48 {strides = array<i32>} : memref<128x16xf32, #tpu.memory_space<vmem>>, vector<64x16xf32>,
    %cst_55 = arith.constant dense<0.000000e+00> : vector<1024x4xf32>
    %50 = tpu.matmul %10, %9, %cst_55 {dimension_numbers = #tpu.dot_dimension_numbers<[1], [0], [0], [1], [0, 0, 1, 1], [], []>} : vector<1024x256xbf16>, vector<256x4xbf16>, vector<1024x4xf32> -> vector<1024x4xf32>
    %c0_56 = arith.constant 0 : index
    %c0_57 = arith.constant 0 : index
    %51 = vector.load %arg16[%c0_56, %c0_57] : memref<1024x4xf32, #tpu.memory_space<vmem>>, vector<1024x4xf32>
    tpu.vector_store %arg16[%c0_56, %c0_57], %50 {strides = array<i32>} : memref<1024x4xf32, #tpu.memory_space<vmem>>, vector<1024x4xf32>,
    %c0_58 = arith.constant 0 : index
    %c0_59 = arith.constant 0 : index
    %52 = vector.load %arg16[%c0_58, %c0_59] : memref<1024x4xf32, #tpu.memory_space<vmem>>, vector<64x4xf32>
    %c0_60 = arith.constant 0 : index
    %c0_61 = arith.constant 0 : index
    %53 = vector.load %arg17[%c0_60, %c0_61] : memref<64x64xf32, #tpu.memory_space<vmem>>, vector<64x4xf32>
    tpu.vector_store %arg17[%c0_60, %c0_61], %52 {strides = array<i32>} : memref<64x64xf32, #tpu.memory_space<vmem>>, vector<64x4xf32>,
    %c64_62 = arith.constant 64 : index
    %c0_63 = arith.constant 0 : index
    %54 = vector.load %arg16[%c64_62, %c0_63] : memref<1024x4xf32, #tpu.memory_space<vmem>>, vector<64x4xf32>
    %c0_64 = arith.constant 0 : index
    %c4_65 = arith.constant 4 : index
    %55 = vector.load %arg17[%c0_64, %c4_65] : memref<64x64xf32, #tpu.memory_space<vmem>>, vector<64x4xf32>
    tpu.vector_store %arg17[%c0_64, %c4_65], %54 {strides = array<i32>} : memref<64x64xf32, #tpu.memory_space<vmem>>, vector<64x4xf32>,
    %c128_66 = arith.constant 128 : index
    %c0_67 = arith.constant 0 : index
    %56 = vector.load %arg16[%c128_66, %c0_67] : memref<1024x4xf32, #tpu.memory_space<vmem>>, vector<64x4xf32>
    %c0_68 = arith.constant 0 : index
    %c8_69 = arith.constant 8 : index
    %57 = vector.load %arg17[%c0_68, %c8_69] : memref<64x64xf32, #tpu.memory_space<vmem>>, vector<64x4xf32>
    tpu.vector_store %arg17[%c0_68, %c8_69], %56 {strides = array<i32>} : memref<64x64xf32, #tpu.memory_space<vmem>>, vector<64x4xf32>,
    %c192_70 = arith.constant 192 : index
    %c0_71 = arith.constant 0 : index
    %58 = vector.load %arg16[%c192_70, %c0_71] : memref<1024x4xf32, #tpu.memory_space<vmem>>, vector<64x4xf32>
    %c0_72 = arith.constant 0 : index
    %c12_73 = arith.constant 12 : index
    %59 = vector.load %arg17[%c0_72, %c12_73] : memref<64x64xf32, #tpu.memory_space<vmem>>, vector<64x4xf32>
    tpu.vector_store %arg17[%c0_72, %c12_73], %58 {strides = array<i32>} : memref<64x64xf32, #tpu.memory_space<vmem>>, vector<64x4xf32>,
    %c256_74 = arith.constant 256 : index
    %c0_75 = arith.constant 0 : index
    %60 = vector.load %arg16[%c256_74, %c0_75] : memref<1024x4xf32, #tpu.memory_space<vmem>>, vector<64x4xf32>
    %c0_76 = arith.constant 0 : index
    %c16_77 = arith.constant 16 : index
    %61 = vector.load %arg17[%c0_76, %c16_77] : memref<64x64xf32, #tpu.memory_space<vmem>>, vector<64x4xf32>
    tpu.vector_store %arg17[%c0_76, %c16_77], %60 {strides = array<i32>} : memref<64x64xf32, #tpu.memory_space<vmem>>, vector<64x4xf32>,
    %c320_78 = arith.constant 320 : index
    %c0_79 = arith.constant 0 : index
    %62 = vector.load %arg16[%c320_78, %c0_79] : memref<1024x4xf32, #tpu.memory_space<vmem>>, vector<64x4xf32>
    %c0_80 = arith.constant 0 : index
    %c20_81 = arith.constant 20 : index
    %63 = vector.load %arg17[%c0_80, %c20_81] : memref<64x64xf32, #tpu.memory_space<vmem>>, vector<64x4xf32>
    tpu.vector_store %arg17[%c0_80, %c20_81], %62 {strides = array<i32>} : memref<64x64xf32, #tpu.memory_space<vmem>>, vector<64x4xf32>,
    %c384_82 = arith.constant 384 : index
    %c0_83 = arith.constant 0 : index
    %64 = vector.load %arg16[%c384_82, %c0_83] : memref<1024x4xf32, #tpu.memory_space<vmem>>, vector<64x4xf32>
    %c0_84 = arith.constant 0 : index
    %c24_85 = arith.constant 24 : index
    %65 = vector.load %arg17[%c0_84, %c24_85] : memref<64x64xf32, #tpu.memory_space<vmem>>, vector<64x4xf32>
    tpu.vector_store %arg17[%c0_84, %c24_85], %64 {strides = array<i32>} : memref<64x64xf32, #tpu.memory_space<vmem>>, vector<64x4xf32>,
    %c448_86 = arith.constant 448 : index
    %c0_87 = arith.constant 0 : index
    %66 = vector.load %arg16[%c448_86, %c0_87] : memref<1024x4xf32, #tpu.memory_space<vmem>>, vector<64x4xf32>
    %c0_88 = arith.constant 0 : index
    %c28_89 = arith.constant 28 : index
    %67 = vector.load %arg17[%c0_88, %c28_89] : memref<64x64xf32, #tpu.memory_space<vmem>>, vector<64x4xf32>
    tpu.vector_store %arg17[%c0_88, %c28_89], %66 {strides = array<i32>} : memref<64x64xf32, #tpu.memory_space<vmem>>, vector<64x4xf32>,
    %c512_90 = arith.constant 512 : index
    %c0_91 = arith.constant 0 : index
    %68 = vector.load %arg16[%c512_90, %c0_91] : memref<1024x4xf32, #tpu.memory_space<vmem>>, vector<64x4xf32>
    %c0_92 = arith.constant 0 : index
    %c32_93 = arith.constant 32 : index
    %69 = vector.load %arg17[%c0_92, %c32_93] : memref<64x64xf32, #tpu.memory_space<vmem>>, vector<64x4xf32>
    tpu.vector_store %arg17[%c0_92, %c32_93], %68 {strides = array<i32>} : memref<64x64xf32, #tpu.memory_space<vmem>>, vector<64x4xf32>,
    %c576_94 = arith.constant 576 : index
    %c0_95 = arith.constant 0 : index
    %70 = vector.load %arg16[%c576_94, %c0_95] : memref<1024x4xf32, #tpu.memory_space<vmem>>, vector<64x4xf32>
    %c0_96 = arith.constant 0 : index
    %c36_97 = arith.constant 36 : index
    %71 = vector.load %arg17[%c0_96, %c36_97] : memref<64x64xf32, #tpu.memory_space<vmem>>, vector<64x4xf32>
    tpu.vector_store %arg17[%c0_96, %c36_97], %70 {strides = array<i32>} : memref<64x64xf32, #tpu.memory_space<vmem>>, vector<64x4xf32>,
    %c640_98 = arith.constant 640 : index
    %c0_99 = arith.constant 0 : index
    %72 = vector.load %arg16[%c640_98, %c0_99] : memref<1024x4xf32, #tpu.memory_space<vmem>>, vector<64x4xf32>
    %c0_100 = arith.constant 0 : index
    %c40_101 = arith.constant 40 : index
    %73 = vector.load %arg17[%c0_100, %c40_101] : memref<64x64xf32, #tpu.memory_space<vmem>>, vector<64x4xf32>
    tpu.vector_store %arg17[%c0_100, %c40_101], %72 {strides = array<i32>} : memref<64x64xf32, #tpu.memory_space<vmem>>, vector<64x4xf32>,
    %c704_102 = arith.constant 704 : index
    %c0_103 = arith.constant 0 : index
    %74 = vector.load %arg16[%c704_102, %c0_103] : memref<1024x4xf32, #tpu.memory_space<vmem>>, vector<64x4xf32>
    %c0_104 = arith.constant 0 : index
    %c44_105 = arith.constant 44 : index
    %75 = vector.load %arg17[%c0_104, %c44_105] : memref<64x64xf32, #tpu.memory_space<vmem>>, vector<64x4xf32>
    tpu.vector_store %arg17[%c0_104, %c44_105], %74 {strides = array<i32>} : memref<64x64xf32, #tpu.memory_space<vmem>>, vector<64x4xf32>,
    %c768_106 = arith.constant 768 : index
    %c0_107 = arith.constant 0 : index
    %76 = vector.load %arg16[%c768_106, %c0_107] : memref<1024x4xf32, #tpu.memory_space<vmem>>, vector<64x4xf32>
    %c0_108 = arith.constant 0 : index
    %c48_109 = arith.constant 48 : index
    %77 = vector.load %arg17[%c0_108, %c48_109] : memref<64x64xf32, #tpu.memory_space<vmem>>, vector<64x4xf32>
    tpu.vector_store %arg17[%c0_108, %c48_109], %76 {strides = array<i32>} : memref<64x64xf32, #tpu.memory_space<vmem>>, vector<64x4xf32>,
    %c832_110 = arith.constant 832 : index
    %c0_111 = arith.constant 0 : index
    %78 = vector.load %arg16[%c832_110, %c0_111] : memref<1024x4xf32, #tpu.memory_space<vmem>>, vector<64x4xf32>
    %c0_112 = arith.constant 0 : index
    %c52_113 = arith.constant 52 : index
    %79 = vector.load %arg17[%c0_112, %c52_113] : memref<64x64xf32, #tpu.memory_space<vmem>>, vector<64x4xf32>
    tpu.vector_store %arg17[%c0_112, %c52_113], %78 {strides = array<i32>} : memref<64x64xf32, #tpu.memory_space<vmem>>, vector<64x4xf32>,
    %c896_114 = arith.constant 896 : index
    %c0_115 = arith.constant 0 : index
    %80 = vector.load %arg16[%c896_114, %c0_115] : memref<1024x4xf32, #tpu.memory_space<vmem>>, vector<64x4xf32>
    %c0_116 = arith.constant 0 : index
    %c56_117 = arith.constant 56 : index
    %81 = vector.load %arg17[%c0_116, %c56_117] : memref<64x64xf32, #tpu.memory_space<vmem>>, vector<64x4xf32>
    tpu.vector_store %arg17[%c0_116, %c56_117], %80 {strides = array<i32>} : memref<64x64xf32, #tpu.memory_space<vmem>>, vector<64x4xf32>,
    %c960_118 = arith.constant 960 : index
    %c0_119 = arith.constant 0 : index
    %82 = vector.load %arg16[%c960_118, %c0_119] : memref<1024x4xf32, #tpu.memory_space<vmem>>, vector<64x4xf32>
    %c0_120 = arith.constant 0 : index
    %c60_121 = arith.constant 60 : index
    %83 = vector.load %arg17[%c0_120, %c60_121] : memref<64x64xf32, #tpu.memory_space<vmem>>, vector<64x4xf32>
    tpu.vector_store %arg17[%c0_120, %c60_121], %82 {strides = array<i32>} : memref<64x64xf32, #tpu.memory_space<vmem>>, vector<64x4xf32>,
    %c0_122 = arith.constant 0 : index
    %c0_123 = arith.constant 0 : index
    %84 = vector.load %arg17[%c0_122, %c0_123] : memref<64x64xf32, #tpu.memory_space<vmem>>, vector<64x64xf32>
    %85 = arith.truncf %84 : vector<64x64xf32> to vector<64x64xbf16>
    %cst_124 = arith.constant dense<0.000000e+00> : vector<64x16xf32>
    %86 = tpu.matmul %85, %11, %cst_124 {dimension_numbers = #tpu.dot_dimension_numbers<[1], [0], [0], [1], [0, 0, 1, 1], [], []>} : vector<64x64xbf16>, vector<64x16xbf16>, vector<64x16xf32> -> vector<64x16xf32>
    %c64_125 = arith.constant 64 : index
    %c0_126 = arith.constant 0 : index
    %87 = vector.load %arg18[%c64_125, %c0_126] : memref<128x16xf32, #tpu.memory_space<vmem>>, vector<64x16xf32>
    tpu.vector_store %arg18[%c64_125, %c0_126], %86 {strides = array<i32>} : memref<128x16xf32, #tpu.memory_space<vmem>>, vector<64x16xf32>,
    %c0_127 = arith.constant 0 : index
    %c0_128 = arith.constant 0 : index
    %88 = vector.load %arg18[%c0_127, %c0_128] : memref<128x16xf32, #tpu.memory_space<vmem>>, vector<128x16xf32>
    %c0_129 = arith.constant 0 : index
    %c0_130 = arith.constant 0 : index
    %89 = vector.load %arg5[%c0_129, %c0_130] : memref<2x16xf32, #tpu.memory_space<vmem>>, vector<2x16xf32>
    %90 = vector.extract_strided_slice %89 {offsets = [0, 0], sizes = [1, 16], strides = [1, 1]} : vector<2x16xf32> to vector<1x16xf32>
    %91 = vector.broadcast %90 : vector<1x16xf32> to vector<128x16xf32>
    %92 = arith.mulf %88, %91 : vector<128x16xf32>
    %93 = vector.extract_strided_slice %89 {offsets = [1, 0], sizes = [1, 16], strides = [1, 1]} : vector<2x16xf32> to vector<1x16xf32>
    %94 = vector.broadcast %93 : vector<1x16xf32> to vector<128x16xf32>
    %95 = arith.addf %92, %94 : vector<128x16xf32>
    %cst_131 = arith.constant 0.000000e+00 : f32
    %96 = vector.broadcast %cst_131 : f32 to vector<128x16xf32>
    %97 = arith.cmpf ogt, %95, %96 : vector<128x16xf32>
    %cst_132 = arith.constant 2.000000e-01 : f32
    %98 = vector.broadcast %cst_132 : f32 to vector<128x16xf32>
    %99 = arith.mulf %98, %95 : vector<128x16xf32>
    %100 = arith.select %97, %95, %99 : vector<128x16xi1>, vector<128x16xf32>
    %c0_133 = arith.constant 0 : index
    %c0_134 = arith.constant 0 : index
    %101 = vector.load %arg18[%c0_133, %c0_134] : memref<128x16xf32, #tpu.memory_space<vmem>>, vector<128x16xf32>
    tpu.vector_store %arg18[%c0_133, %c0_134], %100 {strides = array<i32>} : memref<128x16xf32, #tpu.memory_space<vmem>>, vector<128x16xf32>,
    %c0_135 = arith.constant 0 : index
    %c0_136 = arith.constant 0 : index
    %102 = vector.load %arg18[%c0_135, %c0_136] : memref<128x16xf32, #tpu.memory_space<vmem>>, vector<64x16xf32>
    %103 = arith.truncf %102 : vector<64x16xf32> to vector<64x16xbf16>
    %c64_137 = arith.constant 64 : index
    %c0_138 = arith.constant 0 : index
    %104 = vector.load %arg18[%c64_137, %c0_138] : memref<128x16xf32, #tpu.memory_space<vmem>>, vector<64x16xf32>
    %105 = arith.truncf %104 : vector<64x16xf32> to vector<64x16xbf16>
    %c0_139 = arith.constant 0 : index
    %c0_140 = arith.constant 0 : index
    %106 = vector.load %arg6[%c0_139, %c0_140] : memref<256x64xbf16, #tpu.memory_space<vmem>>, vector<256x64xbf16>
    %c0_141 = arith.constant 0 : index
    %c0_142 = arith.constant 0 : index
    %107 = vector.load %arg7[%c0_141, %c0_142] : memref<256x32xbf16, #tpu.memory_space<vmem>>, vector<256x32xbf16>
    %cst_143 = arith.constant dense<0.000000e+00> : vector<256x16xf32>
    %108 = tpu.matmul %106, %103, %cst_143 {dimension_numbers = #tpu.dot_dimension_numbers<[1], [0], [0], [1], [0, 0, 1, 1], [], []>} : vector<256x64xbf16>, vector<64x16xbf16>, vector<256x16xf32> -> vector<256x16xf32>
    %c0_144 = arith.constant 0 : index
    %c0_145 = arith.constant 0 : index
    %109 = vector.load %arg19[%c0_144, %c0_145] : memref<256x16xf32, #tpu.memory_space<vmem>>, vector<256x16xf32>
    tpu.vector_store %arg19[%c0_144, %c0_145], %108 {strides = array<i32>} : memref<256x16xf32, #tpu.memory_space<vmem>>, vector<256x16xf32>,
    %c0_146 = arith.constant 0 : index
    %c0_147 = arith.constant 0 : index
    %110 = vector.load %arg19[%c0_146, %c0_147] : memref<256x16xf32, #tpu.memory_space<vmem>>, vector<16x16xf32>
    %c0_148 = arith.constant 0 : index
    %c0_149 = arith.constant 0 : index
    %111 = vector.load %arg20[%c0_148, %c0_149] : memref<16x256xf32, #tpu.memory_space<vmem>>, vector<16x16xf32>
    tpu.vector_store %arg20[%c0_148, %c0_149], %110 {strides = array<i32>} : memref<16x256xf32, #tpu.memory_space<vmem>>, vector<16x16xf32>,
    %c16_150 = arith.constant 16 : index
    %c0_151 = arith.constant 0 : index
    %112 = vector.load %arg19[%c16_150, %c0_151] : memref<256x16xf32, #tpu.memory_space<vmem>>, vector<16x16xf32>
    %c0_152 = arith.constant 0 : index
    %c16_153 = arith.constant 16 : index
    %113 = vector.load %arg20[%c0_152, %c16_153] : memref<16x256xf32, #tpu.memory_space<vmem>>, vector<16x16xf32>
    tpu.vector_store %arg20[%c0_152, %c16_153], %112 {strides = array<i32>} : memref<16x256xf32, #tpu.memory_space<vmem>>, vector<16x16xf32>,
    %c32_154 = arith.constant 32 : index
    %c0_155 = arith.constant 0 : index
    %114 = vector.load %arg19[%c32_154, %c0_155] : memref<256x16xf32, #tpu.memory_space<vmem>>, vector<16x16xf32>
    %c0_156 = arith.constant 0 : index
    %c32_157 = arith.constant 32 : index
    %115 = vector.load %arg20[%c0_156, %c32_157] : memref<16x256xf32, #tpu.memory_space<vmem>>, vector<16x16xf32>
    tpu.vector_store %arg20[%c0_156, %c32_157], %114 {strides = array<i32>} : memref<16x256xf32, #tpu.memory_space<vmem>>, vector<16x16xf32>,
    %c48_158 = arith.constant 48 : index
    %c0_159 = arith.constant 0 : index
    %116 = vector.load %arg19[%c48_158, %c0_159] : memref<256x16xf32, #tpu.memory_space<vmem>>, vector<16x16xf32>
    %c0_160 = arith.constant 0 : index
    %c48_161 = arith.constant 48 : index
    %117 = vector.load %arg20[%c0_160, %c48_161] : memref<16x256xf32, #tpu.memory_space<vmem>>, vector<16x16xf32>
    tpu.vector_store %arg20[%c0_160, %c48_161], %116 {strides = array<i32>} : memref<16x256xf32, #tpu.memory_space<vmem>>, vector<16x16xf32>,
    %c64_162 = arith.constant 64 : index
    %c0_163 = arith.constant 0 : index
    %118 = vector.load %arg19[%c64_162, %c0_163] : memref<256x16xf32, #tpu.memory_space<vmem>>, vector<16x16xf32>
    %c0_164 = arith.constant 0 : index
    %c64_165 = arith.constant 64 : index
    %119 = vector.load %arg20[%c0_164, %c64_165] : memref<16x256xf32, #tpu.memory_space<vmem>>, vector<16x16xf32>
    tpu.vector_store %arg20[%c0_164, %c64_165], %118 {strides = array<i32>} : memref<16x256xf32, #tpu.memory_space<vmem>>, vector<16x16xf32>,
    %c80 = arith.constant 80 : index
    %c0_166 = arith.constant 0 : index
    %120 = vector.load %arg19[%c80, %c0_166] : memref<256x16xf32, #tpu.memory_space<vmem>>, vector<16x16xf32>
    %c0_167 = arith.constant 0 : index
    %c80_168 = arith.constant 80 : index
    %121 = vector.load %arg20[%c0_167, %c80_168] : memref<16x256xf32, #tpu.memory_space<vmem>>, vector<16x16xf32>
    tpu.vector_store %arg20[%c0_167, %c80_168], %120 {strides = array<i32>} : memref<16x256xf32, #tpu.memory_space<vmem>>, vector<16x16xf32>,
    %c96 = arith.constant 96 : index
    %c0_169 = arith.constant 0 : index
    %122 = vector.load %arg19[%c96, %c0_169] : memref<256x16xf32, #tpu.memory_space<vmem>>, vector<16x16xf32>
    %c0_170 = arith.constant 0 : index
    %c96_171 = arith.constant 96 : index
    %123 = vector.load %arg20[%c0_170, %c96_171] : memref<16x256xf32, #tpu.memory_space<vmem>>, vector<16x16xf32>
    tpu.vector_store %arg20[%c0_170, %c96_171], %122 {strides = array<i32>} : memref<16x256xf32, #tpu.memory_space<vmem>>, vector<16x16xf32>,
    %c112 = arith.constant 112 : index
    %c0_172 = arith.constant 0 : index
    %124 = vector.load %arg19[%c112, %c0_172] : memref<256x16xf32, #tpu.memory_space<vmem>>, vector<16x16xf32>
    %c0_173 = arith.constant 0 : index
    %c112_174 = arith.constant 112 : index
    %125 = vector.load %arg20[%c0_173, %c112_174] : memref<16x256xf32, #tpu.memory_space<vmem>>, vector<16x16xf32>
    tpu.vector_store %arg20[%c0_173, %c112_174], %124 {strides = array<i32>} : memref<16x256xf32, #tpu.memory_space<vmem>>, vector<16x16xf32>,
    %c128_175 = arith.constant 128 : index
    %c0_176 = arith.constant 0 : index
    %126 = vector.load %arg19[%c128_175, %c0_176] : memref<256x16xf32, #tpu.memory_space<vmem>>, vector<16x16xf32>
    %c0_177 = arith.constant 0 : index
    %c128_178 = arith.constant 128 : index
    %127 = vector.load %arg20[%c0_177, %c128_178] : memref<16x256xf32, #tpu.memory_space<vmem>>, vector<16x16xf32>
    tpu.vector_store %arg20[%c0_177, %c128_178], %126 {strides = array<i32>} : memref<16x256xf32, #tpu.memory_space<vmem>>, vector<16x16xf32>,
    %c144 = arith.constant 144 : index
    %c0_179 = arith.constant 0 : index
    %128 = vector.load %arg19[%c144, %c0_179] : memref<256x16xf32, #tpu.memory_space<vmem>>, vector<16x16xf32>
    %c0_180 = arith.constant 0 : index
    %c144_181 = arith.constant 144 : index
    %129 = vector.load %arg20[%c0_180, %c144_181] : memref<16x256xf32, #tpu.memory_space<vmem>>, vector<16x16xf32>
    tpu.vector_store %arg20[%c0_180, %c144_181], %128 {strides = array<i32>} : memref<16x256xf32, #tpu.memory_space<vmem>>, vector<16x16xf32>,
    %c160 = arith.constant 160 : index
    %c0_182 = arith.constant 0 : index
    %130 = vector.load %arg19[%c160, %c0_182] : memref<256x16xf32, #tpu.memory_space<vmem>>, vector<16x16xf32>
    %c0_183 = arith.constant 0 : index
    %c160_184 = arith.constant 160 : index
    %131 = vector.load %arg20[%c0_183, %c160_184] : memref<16x256xf32, #tpu.memory_space<vmem>>, vector<16x16xf32>
    tpu.vector_store %arg20[%c0_183, %c160_184], %130 {strides = array<i32>} : memref<16x256xf32, #tpu.memory_space<vmem>>, vector<16x16xf32>,
    %c176 = arith.constant 176 : index
    %c0_185 = arith.constant 0 : index
    %132 = vector.load %arg19[%c176, %c0_185] : memref<256x16xf32, #tpu.memory_space<vmem>>, vector<16x16xf32>
    %c0_186 = arith.constant 0 : index
    %c176_187 = arith.constant 176 : index
    %133 = vector.load %arg20[%c0_186, %c176_187] : memref<16x256xf32, #tpu.memory_space<vmem>>, vector<16x16xf32>
    tpu.vector_store %arg20[%c0_186, %c176_187], %132 {strides = array<i32>} : memref<16x256xf32, #tpu.memory_space<vmem>>, vector<16x16xf32>,
    %c192_188 = arith.constant 192 : index
    %c0_189 = arith.constant 0 : index
    %134 = vector.load %arg19[%c192_188, %c0_189] : memref<256x16xf32, #tpu.memory_space<vmem>>, vector<16x16xf32>
    %c0_190 = arith.constant 0 : index
    %c192_191 = arith.constant 192 : index
    %135 = vector.load %arg20[%c0_190, %c192_191] : memref<16x256xf32, #tpu.memory_space<vmem>>, vector<16x16xf32>
    tpu.vector_store %arg20[%c0_190, %c192_191], %134 {strides = array<i32>} : memref<16x256xf32, #tpu.memory_space<vmem>>, vector<16x16xf32>,
    %c208 = arith.constant 208 : index
    %c0_192 = arith.constant 0 : index
    %136 = vector.load %arg19[%c208, %c0_192] : memref<256x16xf32, #tpu.memory_space<vmem>>, vector<16x16xf32>
    %c0_193 = arith.constant 0 : index
    %c208_194 = arith.constant 208 : index
    %137 = vector.load %arg20[%c0_193, %c208_194] : memref<16x256xf32, #tpu.memory_space<vmem>>, vector<16x16xf32>
    tpu.vector_store %arg20[%c0_193, %c208_194], %136 {strides = array<i32>} : memref<16x256xf32, #tpu.memory_space<vmem>>, vector<16x16xf32>,
    %c224 = arith.constant 224 : index
    %c0_195 = arith.constant 0 : index
    %138 = vector.load %arg19[%c224, %c0_195] : memref<256x16xf32, #tpu.memory_space<vmem>>, vector<16x16xf32>
    %c0_196 = arith.constant 0 : index
    %c224_197 = arith.constant 224 : index
    %139 = vector.load %arg20[%c0_196, %c224_197] : memref<16x256xf32, #tpu.memory_space<vmem>>, vector<16x16xf32>
    tpu.vector_store %arg20[%c0_196, %c224_197], %138 {strides = array<i32>} : memref<16x256xf32, #tpu.memory_space<vmem>>, vector<16x16xf32>,
    %c240 = arith.constant 240 : index
    %c0_198 = arith.constant 0 : index
    %140 = vector.load %arg19[%c240, %c0_198] : memref<256x16xf32, #tpu.memory_space<vmem>>, vector<16x16xf32>
    %c0_199 = arith.constant 0 : index
    %c240_200 = arith.constant 240 : index
    %141 = vector.load %arg20[%c0_199, %c240_200] : memref<16x256xf32, #tpu.memory_space<vmem>>, vector<16x16xf32>
    tpu.vector_store %arg20[%c0_199, %c240_200], %140 {strides = array<i32>} : memref<16x256xf32, #tpu.memory_space<vmem>>, vector<16x16xf32>,
    %c0_201 = arith.constant 0 : index
    %c0_202 = arith.constant 0 : index
    %142 = vector.load %arg20[%c0_201, %c0_202] : memref<16x256xf32, #tpu.memory_space<vmem>>, vector<16x256xf32>
    %143 = arith.truncf %142 : vector<16x256xf32> to vector<16x256xbf16>
    %cst_203 = arith.constant dense<0.000000e+00> : vector<16x32xf32>
    %144 = tpu.matmul %143, %107, %cst_203 {dimension_numbers = #tpu.dot_dimension_numbers<[1], [0], [0], [1], [0, 0, 1, 1], [], []>} : vector<16x256xbf16>, vector<256x32xbf16>, vector<16x32xf32> -> vector<16x32xf32>
    %c0_204 = arith.constant 0 : index
    %c0_205 = arith.constant 0 : index
    %145 = vector.load %arg21[%c0_204, %c0_205] : memref<32x32xf32, #tpu.memory_space<vmem>>, vector<16x32xf32>
    tpu.vector_store %arg21[%c0_204, %c0_205], %144 {strides = array<i32>} : memref<32x32xf32, #tpu.memory_space<vmem>>, vector<16x32xf32>,
    %cst_206 = arith.constant dense<0.000000e+00> : vector<256x16xf32>
    %146 = tpu.matmul %106, %105, %cst_206 {dimension_numbers = #tpu.dot_dimension_numbers<[1], [0], [0], [1], [0, 0, 1, 1], [], []>} : vector<256x64xbf16>, vector<64x16xbf16>, vector<256x16xf32> -> vector<256x16xf32>
    %c0_207 = arith.constant 0 : index
    %c0_208 = arith.constant 0 : index
    %147 = vector.load %arg19[%c0_207, %c0_208] : memref<256x16xf32, #tpu.memory_space<vmem>>, vector<256x16xf32>
    tpu.vector_store %arg19[%c0_207, %c0_208], %146 {strides = array<i32>} : memref<256x16xf32, #tpu.memory_space<vmem>>, vector<256x16xf32>,
    %c0_209 = arith.constant 0 : index
    %c0_210 = arith.constant 0 : index
    %148 = vector.load %arg19[%c0_209, %c0_210] : memref<256x16xf32, #tpu.memory_space<vmem>>, vector<16x16xf32>
    %c0_211 = arith.constant 0 : index
    %c0_212 = arith.constant 0 : index
    %149 = vector.load %arg20[%c0_211, %c0_212] : memref<16x256xf32, #tpu.memory_space<vmem>>, vector<16x16xf32>
    tpu.vector_store %arg20[%c0_211, %c0_212], %148 {strides = array<i32>} : memref<16x256xf32, #tpu.memory_space<vmem>>, vector<16x16xf32>,
    %c16_213 = arith.constant 16 : index
    %c0_214 = arith.constant 0 : index
    %150 = vector.load %arg19[%c16_213, %c0_214] : memref<256x16xf32, #tpu.memory_space<vmem>>, vector<16x16xf32>
    %c0_215 = arith.constant 0 : index
    %c16_216 = arith.constant 16 : index
    %151 = vector.load %arg20[%c0_215, %c16_216] : memref<16x256xf32, #tpu.memory_space<vmem>>, vector<16x16xf32>
    tpu.vector_store %arg20[%c0_215, %c16_216], %150 {strides = array<i32>} : memref<16x256xf32, #tpu.memory_space<vmem>>, vector<16x16xf32>,
    %c32_217 = arith.constant 32 : index
    %c0_218 = arith.constant 0 : index
    %152 = vector.load %arg19[%c32_217, %c0_218] : memref<256x16xf32, #tpu.memory_space<vmem>>, vector<16x16xf32>
    %c0_219 = arith.constant 0 : index
    %c32_220 = arith.constant 32 : index
    %153 = vector.load %arg20[%c0_219, %c32_220] : memref<16x256xf32, #tpu.memory_space<vmem>>, vector<16x16xf32>
    tpu.vector_store %arg20[%c0_219, %c32_220], %152 {strides = array<i32>} : memref<16x256xf32, #tpu.memory_space<vmem>>, vector<16x16xf32>,
    %c48_221 = arith.constant 48 : index
    %c0_222 = arith.constant 0 : index
    %154 = vector.load %arg19[%c48_221, %c0_222] : memref<256x16xf32, #tpu.memory_space<vmem>>, vector<16x16xf32>
    %c0_223 = arith.constant 0 : index
    %c48_224 = arith.constant 48 : index
    %155 = vector.load %arg20[%c0_223, %c48_224] : memref<16x256xf32, #tpu.memory_space<vmem>>, vector<16x16xf32>
    tpu.vector_store %arg20[%c0_223, %c48_224], %154 {strides = array<i32>} : memref<16x256xf32, #tpu.memory_space<vmem>>, vector<16x16xf32>,
    %c64_225 = arith.constant 64 : index
    %c0_226 = arith.constant 0 : index
    %156 = vector.load %arg19[%c64_225, %c0_226] : memref<256x16xf32, #tpu.memory_space<vmem>>, vector<16x16xf32>
    %c0_227 = arith.constant 0 : index
    %c64_228 = arith.constant 64 : index
    %157 = vector.load %arg20[%c0_227, %c64_228] : memref<16x256xf32, #tpu.memory_space<vmem>>, vector<16x16xf32>
    tpu.vector_store %arg20[%c0_227, %c64_228], %156 {strides = array<i32>} : memref<16x256xf32, #tpu.memory_space<vmem>>, vector<16x16xf32>,
    %c80_229 = arith.constant 80 : index
    %c0_230 = arith.constant 0 : index
    %158 = vector.load %arg19[%c80_229, %c0_230] : memref<256x16xf32, #tpu.memory_space<vmem>>, vector<16x16xf32>
    %c0_231 = arith.constant 0 : index
    %c80_232 = arith.constant 80 : index
    %159 = vector.load %arg20[%c0_231, %c80_232] : memref<16x256xf32, #tpu.memory_space<vmem>>, vector<16x16xf32>
    tpu.vector_store %arg20[%c0_231, %c80_232], %158 {strides = array<i32>} : memref<16x256xf32, #tpu.memory_space<vmem>>, vector<16x16xf32>,
    %c96_233 = arith.constant 96 : index
    %c0_234 = arith.constant 0 : index
    %160 = vector.load %arg19[%c96_233, %c0_234] : memref<256x16xf32, #tpu.memory_space<vmem>>, vector<16x16xf32>
    %c0_235 = arith.constant 0 : index
    %c96_236 = arith.constant 96 : index
    %161 = vector.load %arg20[%c0_235, %c96_236] : memref<16x256xf32, #tpu.memory_space<vmem>>, vector<16x16xf32>
    tpu.vector_store %arg20[%c0_235, %c96_236], %160 {strides = array<i32>} : memref<16x256xf32, #tpu.memory_space<vmem>>, vector<16x16xf32>,
    %c112_237 = arith.constant 112 : index
    %c0_238 = arith.constant 0 : index
    %162 = vector.load %arg19[%c112_237, %c0_238] : memref<256x16xf32, #tpu.memory_space<vmem>>, vector<16x16xf32>
    %c0_239 = arith.constant 0 : index
    %c112_240 = arith.constant 112 : index
    %163 = vector.load %arg20[%c0_239, %c112_240] : memref<16x256xf32, #tpu.memory_space<vmem>>, vector<16x16xf32>
    tpu.vector_store %arg20[%c0_239, %c112_240], %162 {strides = array<i32>} : memref<16x256xf32, #tpu.memory_space<vmem>>, vector<16x16xf32>,
    %c128_241 = arith.constant 128 : index
    %c0_242 = arith.constant 0 : index
    %164 = vector.load %arg19[%c128_241, %c0_242] : memref<256x16xf32, #tpu.memory_space<vmem>>, vector<16x16xf32>
    %c0_243 = arith.constant 0 : index
    %c128_244 = arith.constant 128 : index
    %165 = vector.load %arg20[%c0_243, %c128_244] : memref<16x256xf32, #tpu.memory_space<vmem>>, vector<16x16xf32>
    tpu.vector_store %arg20[%c0_243, %c128_244], %164 {strides = array<i32>} : memref<16x256xf32, #tpu.memory_space<vmem>>, vector<16x16xf32>,
    %c144_245 = arith.constant 144 : index
    %c0_246 = arith.constant 0 : index
    %166 = vector.load %arg19[%c144_245, %c0_246] : memref<256x16xf32, #tpu.memory_space<vmem>>, vector<16x16xf32>
    %c0_247 = arith.constant 0 : index
    %c144_248 = arith.constant 144 : index
    %167 = vector.load %arg20[%c0_247, %c144_248] : memref<16x256xf32, #tpu.memory_space<vmem>>, vector<16x16xf32>
    tpu.vector_store %arg20[%c0_247, %c144_248], %166 {strides = array<i32>} : memref<16x256xf32, #tpu.memory_space<vmem>>, vector<16x16xf32>,
    %c160_249 = arith.constant 160 : index
    %c0_250 = arith.constant 0 : index
    %168 = vector.load %arg19[%c160_249, %c0_250] : memref<256x16xf32, #tpu.memory_space<vmem>>, vector<16x16xf32>
    %c0_251 = arith.constant 0 : index
    %c160_252 = arith.constant 160 : index
    %169 = vector.load %arg20[%c0_251, %c160_252] : memref<16x256xf32, #tpu.memory_space<vmem>>, vector<16x16xf32>
    tpu.vector_store %arg20[%c0_251, %c160_252], %168 {strides = array<i32>} : memref<16x256xf32, #tpu.memory_space<vmem>>, vector<16x16xf32>,
    %c176_253 = arith.constant 176 : index
    %c0_254 = arith.constant 0 : index
    %170 = vector.load %arg19[%c176_253, %c0_254] : memref<256x16xf32, #tpu.memory_space<vmem>>, vector<16x16xf32>
    %c0_255 = arith.constant 0 : index
    %c176_256 = arith.constant 176 : index
    %171 = vector.load %arg20[%c0_255, %c176_256] : memref<16x256xf32, #tpu.memory_space<vmem>>, vector<16x16xf32>
    tpu.vector_store %arg20[%c0_255, %c176_256], %170 {strides = array<i32>} : memref<16x256xf32, #tpu.memory_space<vmem>>, vector<16x16xf32>,
    %c192_257 = arith.constant 192 : index
    %c0_258 = arith.constant 0 : index
    %172 = vector.load %arg19[%c192_257, %c0_258] : memref<256x16xf32, #tpu.memory_space<vmem>>, vector<16x16xf32>
    %c0_259 = arith.constant 0 : index
    %c192_260 = arith.constant 192 : index
    %173 = vector.load %arg20[%c0_259, %c192_260] : memref<16x256xf32, #tpu.memory_space<vmem>>, vector<16x16xf32>
    tpu.vector_store %arg20[%c0_259, %c192_260], %172 {strides = array<i32>} : memref<16x256xf32, #tpu.memory_space<vmem>>, vector<16x16xf32>,
    %c208_261 = arith.constant 208 : index
    %c0_262 = arith.constant 0 : index
    %174 = vector.load %arg19[%c208_261, %c0_262] : memref<256x16xf32, #tpu.memory_space<vmem>>, vector<16x16xf32>
    %c0_263 = arith.constant 0 : index
    %c208_264 = arith.constant 208 : index
    %175 = vector.load %arg20[%c0_263, %c208_264] : memref<16x256xf32, #tpu.memory_space<vmem>>, vector<16x16xf32>
    tpu.vector_store %arg20[%c0_263, %c208_264], %174 {strides = array<i32>} : memref<16x256xf32, #tpu.memory_space<vmem>>, vector<16x16xf32>,
    %c224_265 = arith.constant 224 : index
    %c0_266 = arith.constant 0 : index
    %176 = vector.load %arg19[%c224_265, %c0_266] : memref<256x16xf32, #tpu.memory_space<vmem>>, vector<16x16xf32>
    %c0_267 = arith.constant 0 : index
    %c224_268 = arith.constant 224 : index
    %177 = vector.load %arg20[%c0_267, %c224_268] : memref<16x256xf32, #tpu.memory_space<vmem>>, vector<16x16xf32>
    tpu.vector_store %arg20[%c0_267, %c224_268], %176 {strides = array<i32>} : memref<16x256xf32, #tpu.memory_space<vmem>>, vector<16x16xf32>,
    %c240_269 = arith.constant 240 : index
    %c0_270 = arith.constant 0 : index
    %178 = vector.load %arg19[%c240_269, %c0_270] : memref<256x16xf32, #tpu.memory_space<vmem>>, vector<16x16xf32>
    %c0_271 = arith.constant 0 : index
    %c240_272 = arith.constant 240 : index
    %179 = vector.load %arg20[%c0_271, %c240_272] : memref<16x256xf32, #tpu.memory_space<vmem>>, vector<16x16xf32>
    tpu.vector_store %arg20[%c0_271, %c240_272], %178 {strides = array<i32>} : memref<16x256xf32, #tpu.memory_space<vmem>>, vector<16x16xf32>,
    %c0_273 = arith.constant 0 : index
    %c0_274 = arith.constant 0 : index
    %180 = vector.load %arg20[%c0_273, %c0_274] : memref<16x256xf32, #tpu.memory_space<vmem>>, vector<16x256xf32>
    %181 = arith.truncf %180 : vector<16x256xf32> to vector<16x256xbf16>
    %cst_275 = arith.constant dense<0.000000e+00> : vector<16x32xf32>
    %182 = tpu.matmul %181, %107, %cst_275 {dimension_numbers = #tpu.dot_dimension_numbers<[1], [0], [0], [1], [0, 0, 1, 1], [], []>} : vector<16x256xbf16>, vector<256x32xbf16>, vector<16x32xf32> -> vector<16x32xf32>
    %c16_276 = arith.constant 16 : index
    %c0_277 = arith.constant 0 : index
    %183 = vector.load %arg21[%c16_276, %c0_277] : memref<32x32xf32, #tpu.memory_space<vmem>>, vector<16x32xf32>
    tpu.vector_store %arg21[%c16_276, %c0_277], %182 {strides = array<i32>} : memref<32x32xf32, #tpu.memory_space<vmem>>, vector<16x32xf32>,
    %c0_278 = arith.constant 0 : index
    %c0_279 = arith.constant 0 : index
    %184 = vector.load %arg21[%c0_278, %c0_279] : memref<32x32xf32, #tpu.memory_space<vmem>>, vector<32x32xf32>
    %cst_280 = arith.constant dense<0.000000e+00> : vector<32xf32>
    %185 = vector.multi_reduction <add>, %184, %cst_280 [0] : vector<32x32xf32> to vector<32xf32>
    %186 = vector.shape_cast %185 : vector<32xf32> to vector<1x32xf32>
    %cst_281 = arith.constant 3.200000e+01 : f32
    %187 = vector.broadcast %cst_281 : f32 to vector<1x32xf32>
    %188 = arith.divf %186, %187 : vector<1x32xf32>
    %189 = vector.broadcast %188 : vector<1x32xf32> to vector<32x32xf32>
    %190 = arith.subf %184, %189 : vector<32x32xf32>
    %191 = arith.mulf %190, %190 : vector<32x32xf32>
    %cst_282 = arith.constant dense<0.000000e+00> : vector<32xf32>
    %192 = vector.multi_reduction <add>, %191, %cst_282 [0] : vector<32x32xf32> to vector<32xf32>
    %193 = vector.shape_cast %192 : vector<32xf32> to vector<1x32xf32>
    %cst_283 = arith.constant 3.200000e+01 : f32
    %194 = vector.broadcast %cst_283 : f32 to vector<1x32xf32>
    %195 = arith.divf %193, %194 : vector<1x32xf32>
    %cst_284 = arith.constant 9.99999974E-6 : f32
    %196 = vector.broadcast %cst_284 : f32 to vector<1x32xf32>
    %197 = arith.addf %195, %196 : vector<1x32xf32>
    %198 = math.rsqrt %197 : vector<1x32xf32>
    %199 = vector.broadcast %198 : vector<1x32xf32> to vector<32x32xf32>
    %200 = arith.mulf %190, %199 : vector<32x32xf32>
    %c0_285 = arith.constant 0 : index
    %c0_286 = arith.constant 0 : index
    %201 = vector.load %arg8[%c0_285, %c0_286] : memref<2x32xf32, #tpu.memory_space<vmem>>, vector<2x32xf32>
    %202 = vector.extract_strided_slice %201 {offsets = [0, 0], sizes = [1, 32], strides = [1, 1]} : vector<2x32xf32> to vector<1x32xf32>
    %203 = vector.broadcast %202 : vector<1x32xf32> to vector<32x32xf32>
    %204 = arith.mulf %200, %203 : vector<32x32xf32>
    %205 = vector.extract_strided_slice %201 {offsets = [1, 0], sizes = [1, 32], strides = [1, 1]} : vector<2x32xf32> to vector<1x32xf32>
    %206 = vector.broadcast %205 : vector<1x32xf32> to vector<32x32xf32>
    %207 = arith.addf %204, %206 : vector<32x32xf32>
    %cst_287 = arith.constant 0.000000e+00 : f32
    %208 = vector.broadcast %cst_287 : f32 to vector<32x32xf32>
    %209 = arith.cmpf ogt, %207, %208 : vector<32x32xf32>
    %cst_288 = arith.constant 2.000000e-01 : f32
    %210 = vector.broadcast %cst_288 : f32 to vector<32x32xf32>
    %211 = arith.mulf %210, %207 : vector<32x32xf32>
    %212 = arith.select %209, %207, %211 : vector<32x32xi1>, vector<32x32xf32>
    %c0_289 = arith.constant 0 : index
    %c0_290 = arith.constant 0 : index
    %213 = vector.load %arg21[%c0_289, %c0_290] : memref<32x32xf32, #tpu.memory_space<vmem>>, vector<32x32xf32>
    tpu.vector_store %arg21[%c0_289, %c0_290], %212 {strides = array<i32>} : memref<32x32xf32, #tpu.memory_space<vmem>>, vector<32x32xf32>,
    %c0_291 = arith.constant 0 : index
    %c0_292 = arith.constant 0 : index
    %214 = vector.load %arg21[%c0_291, %c0_292] : memref<32x32xf32, #tpu.memory_space<vmem>>, vector<16x32xf32>
    %215 = arith.truncf %214 : vector<16x32xf32> to vector<16x32xbf16>
    %c16_293 = arith.constant 16 : index
    %c0_294 = arith.constant 0 : index
    %216 = vector.load %arg21[%c16_293, %c0_294] : memref<32x32xf32, #tpu.memory_space<vmem>>, vector<16x32xf32>
    %217 = arith.truncf %216 : vector<16x32xf32> to vector<16x32xbf16>
    %c0_295 = arith.constant 0 : index
    %c0_296 = arith.constant 0 : index
    %218 = vector.load %arg9[%c0_295, %c0_296] : memref<64x16xbf16, #tpu.memory_space<vmem>>, vector<64x16xbf16>
    %c0_297 = arith.constant 0 : index
    %c0_298 = arith.constant 0 : index
    %219 = vector.load %arg10[%c0_297, %c0_298] : memref<512x64xbf16, #tpu.memory_space<vmem>>, vector<512x64xbf16>
    %cst_299 = arith.constant dense<0.000000e+00> : vector<64x32xf32>
    %220 = tpu.matmul %218, %215, %cst_299 {dimension_numbers = #tpu.dot_dimension_numbers<[1], [0], [0], [1], [0, 0, 1, 1], [], []>} : vector<64x16xbf16>, vector<16x32xbf16>, vector<64x32xf32> -> vector<64x32xf32>
    %c0_300 = arith.constant 0 : index
    %c0_301 = arith.constant 0 : index
    %221 = vector.load %arg22[%c0_300, %c0_301] : memref<64x32xf32, #tpu.memory_space<vmem>>, vector<64x32xf32>
    tpu.vector_store %arg22[%c0_300, %c0_301], %220 {strides = array<i32>} : memref<64x32xf32, #tpu.memory_space<vmem>>, vector<64x32xf32>,
    %c0_302 = arith.constant 0 : index
    %c0_303 = arith.constant 0 : index
    %222 = vector.load %arg22[%c0_302, %c0_303] : memref<64x32xf32, #tpu.memory_space<vmem>>, vector<4x32xf32>
    %c0_304 = arith.constant 0 : index
    %c0_305 = arith.constant 0 : index
    %223 = vector.load %arg23[%c0_304, %c0_305] : memref<4x512xf32, #tpu.memory_space<vmem>>, vector<4x32xf32>
    tpu.vector_store %arg23[%c0_304, %c0_305], %222 {strides = array<i32>} : memref<4x512xf32, #tpu.memory_space<vmem>>, vector<4x32xf32>,
    %c4_306 = arith.constant 4 : index
    %c0_307 = arith.constant 0 : index
    %224 = vector.load %arg22[%c4_306, %c0_307] : memref<64x32xf32, #tpu.memory_space<vmem>>, vector<4x32xf32>
    %c0_308 = arith.constant 0 : index
    %c32_309 = arith.constant 32 : index
    %225 = vector.load %arg23[%c0_308, %c32_309] : memref<4x512xf32, #tpu.memory_space<vmem>>, vector<4x32xf32>
    tpu.vector_store %arg23[%c0_308, %c32_309], %224 {strides = array<i32>} : memref<4x512xf32, #tpu.memory_space<vmem>>, vector<4x32xf32>,
    %c8_310 = arith.constant 8 : index
    %c0_311 = arith.constant 0 : index
    %226 = vector.load %arg22[%c8_310, %c0_311] : memref<64x32xf32, #tpu.memory_space<vmem>>, vector<4x32xf32>
    %c0_312 = arith.constant 0 : index
    %c64_313 = arith.constant 64 : index
    %227 = vector.load %arg23[%c0_312, %c64_313] : memref<4x512xf32, #tpu.memory_space<vmem>>, vector<4x32xf32>
    tpu.vector_store %arg23[%c0_312, %c64_313], %226 {strides = array<i32>} : memref<4x512xf32, #tpu.memory_space<vmem>>, vector<4x32xf32>,
    %c12_314 = arith.constant 12 : index
    %c0_315 = arith.constant 0 : index
    %228 = vector.load %arg22[%c12_314, %c0_315] : memref<64x32xf32, #tpu.memory_space<vmem>>, vector<4x32xf32>
    %c0_316 = arith.constant 0 : index
    %c96_317 = arith.constant 96 : index
    %229 = vector.load %arg23[%c0_316, %c96_317] : memref<4x512xf32, #tpu.memory_space<vmem>>, vector<4x32xf32>
    tpu.vector_store %arg23[%c0_316, %c96_317], %228 {strides = array<i32>} : memref<4x512xf32, #tpu.memory_space<vmem>>, vector<4x32xf32>,
    %c16_318 = arith.constant 16 : index
    %c0_319 = arith.constant 0 : index
    %230 = vector.load %arg22[%c16_318, %c0_319] : memref<64x32xf32, #tpu.memory_space<vmem>>, vector<4x32xf32>
    %c0_320 = arith.constant 0 : index
    %c128_321 = arith.constant 128 : index
    %231 = vector.load %arg23[%c0_320, %c128_321] : memref<4x512xf32, #tpu.memory_space<vmem>>, vector<4x32xf32>
    tpu.vector_store %arg23[%c0_320, %c128_321], %230 {strides = array<i32>} : memref<4x512xf32, #tpu.memory_space<vmem>>, vector<4x32xf32>,
    %c20_322 = arith.constant 20 : index
    %c0_323 = arith.constant 0 : index
    %232 = vector.load %arg22[%c20_322, %c0_323] : memref<64x32xf32, #tpu.memory_space<vmem>>, vector<4x32xf32>
    %c0_324 = arith.constant 0 : index
    %c160_325 = arith.constant 160 : index
    %233 = vector.load %arg23[%c0_324, %c160_325] : memref<4x512xf32, #tpu.memory_space<vmem>>, vector<4x32xf32>
    tpu.vector_store %arg23[%c0_324, %c160_325], %232 {strides = array<i32>} : memref<4x512xf32, #tpu.memory_space<vmem>>, vector<4x32xf32>,
    %c24_326 = arith.constant 24 : index
    %c0_327 = arith.constant 0 : index
    %234 = vector.load %arg22[%c24_326, %c0_327] : memref<64x32xf32, #tpu.memory_space<vmem>>, vector<4x32xf32>
    %c0_328 = arith.constant 0 : index
    %c192_329 = arith.constant 192 : index
    %235 = vector.load %arg23[%c0_328, %c192_329] : memref<4x512xf32, #tpu.memory_space<vmem>>, vector<4x32xf32>
    tpu.vector_store %arg23[%c0_328, %c192_329], %234 {strides = array<i32>} : memref<4x512xf32, #tpu.memory_space<vmem>>, vector<4x32xf32>,
    %c28_330 = arith.constant 28 : index
    %c0_331 = arith.constant 0 : index
    %236 = vector.load %arg22[%c28_330, %c0_331] : memref<64x32xf32, #tpu.memory_space<vmem>>, vector<4x32xf32>
    %c0_332 = arith.constant 0 : index
    %c224_333 = arith.constant 224 : index
    %237 = vector.load %arg23[%c0_332, %c224_333] : memref<4x512xf32, #tpu.memory_space<vmem>>, vector<4x32xf32>
    tpu.vector_store %arg23[%c0_332, %c224_333], %236 {strides = array<i32>} : memref<4x512xf32, #tpu.memory_space<vmem>>, vector<4x32xf32>,
    %c32_334 = arith.constant 32 : index
    %c0_335 = arith.constant 0 : index
    %238 = vector.load %arg22[%c32_334, %c0_335] : memref<64x32xf32, #tpu.memory_space<vmem>>, vector<4x32xf32>
    %c0_336 = arith.constant 0 : index
    %c256_337 = arith.constant 256 : index
    %239 = vector.load %arg23[%c0_336, %c256_337] : memref<4x512xf32, #tpu.memory_space<vmem>>, vector<4x32xf32>
    tpu.vector_store %arg23[%c0_336, %c256_337], %238 {strides = array<i32>} : memref<4x512xf32, #tpu.memory_space<vmem>>, vector<4x32xf32>,
    %c36_338 = arith.constant 36 : index
    %c0_339 = arith.constant 0 : index
    %240 = vector.load %arg22[%c36_338, %c0_339] : memref<64x32xf32, #tpu.memory_space<vmem>>, vector<4x32xf32>
    %c0_340 = arith.constant 0 : index
    %c288 = arith.constant 288 : index
    %241 = vector.load %arg23[%c0_340, %c288] : memref<4x512xf32, #tpu.memory_space<vmem>>, vector<4x32xf32>
    tpu.vector_store %arg23[%c0_340, %c288], %240 {strides = array<i32>} : memref<4x512xf32, #tpu.memory_space<vmem>>, vector<4x32xf32>,
    %c40_341 = arith.constant 40 : index
    %c0_342 = arith.constant 0 : index
    %242 = vector.load %arg22[%c40_341, %c0_342] : memref<64x32xf32, #tpu.memory_space<vmem>>, vector<4x32xf32>
    %c0_343 = arith.constant 0 : index
    %c320_344 = arith.constant 320 : index
    %243 = vector.load %arg23[%c0_343, %c320_344] : memref<4x512xf32, #tpu.memory_space<vmem>>, vector<4x32xf32>
    tpu.vector_store %arg23[%c0_343, %c320_344], %242 {strides = array<i32>} : memref<4x512xf32, #tpu.memory_space<vmem>>, vector<4x32xf32>,
    %c44_345 = arith.constant 44 : index
    %c0_346 = arith.constant 0 : index
    %244 = vector.load %arg22[%c44_345, %c0_346] : memref<64x32xf32, #tpu.memory_space<vmem>>, vector<4x32xf32>
    %c0_347 = arith.constant 0 : index
    %c352 = arith.constant 352 : index
    %245 = vector.load %arg23[%c0_347, %c352] : memref<4x512xf32, #tpu.memory_space<vmem>>, vector<4x32xf32>
    tpu.vector_store %arg23[%c0_347, %c352], %244 {strides = array<i32>} : memref<4x512xf32, #tpu.memory_space<vmem>>, vector<4x32xf32>,
    %c48_348 = arith.constant 48 : index
    %c0_349 = arith.constant 0 : index
    %246 = vector.load %arg22[%c48_348, %c0_349] : memref<64x32xf32, #tpu.memory_space<vmem>>, vector<4x32xf32>
    %c0_350 = arith.constant 0 : index
    %c384_351 = arith.constant 384 : index
    %247 = vector.load %arg23[%c0_350, %c384_351] : memref<4x512xf32, #tpu.memory_space<vmem>>, vector<4x32xf32>
    tpu.vector_store %arg23[%c0_350, %c384_351], %246 {strides = array<i32>} : memref<4x512xf32, #tpu.memory_space<vmem>>, vector<4x32xf32>,
    %c52_352 = arith.constant 52 : index
    %c0_353 = arith.constant 0 : index
    %248 = vector.load %arg22[%c52_352, %c0_353] : memref<64x32xf32, #tpu.memory_space<vmem>>, vector<4x32xf32>
    %c0_354 = arith.constant 0 : index
    %c416 = arith.constant 416 : index
    %249 = vector.load %arg23[%c0_354, %c416] : memref<4x512xf32, #tpu.memory_space<vmem>>, vector<4x32xf32>
    tpu.vector_store %arg23[%c0_354, %c416], %248 {strides = array<i32>} : memref<4x512xf32, #tpu.memory_space<vmem>>, vector<4x32xf32>,
    %c56_355 = arith.constant 56 : index
    %c0_356 = arith.constant 0 : index
    %250 = vector.load %arg22[%c56_355, %c0_356] : memref<64x32xf32, #tpu.memory_space<vmem>>, vector<4x32xf32>
    %c0_357 = arith.constant 0 : index
    %c448_358 = arith.constant 448 : index
    %251 = vector.load %arg23[%c0_357, %c448_358] : memref<4x512xf32, #tpu.memory_space<vmem>>, vector<4x32xf32>
    tpu.vector_store %arg23[%c0_357, %c448_358], %250 {strides = array<i32>} : memref<4x512xf32, #tpu.memory_space<vmem>>, vector<4x32xf32>,
    %c60_359 = arith.constant 60 : index
    %c0_360 = arith.constant 0 : index
    %252 = vector.load %arg22[%c60_359, %c0_360] : memref<64x32xf32, #tpu.memory_space<vmem>>, vector<4x32xf32>
    %c0_361 = arith.constant 0 : index
    %c480 = arith.constant 480 : index
    %253 = vector.load %arg23[%c0_361, %c480] : memref<4x512xf32, #tpu.memory_space<vmem>>, vector<4x32xf32>
    tpu.vector_store %arg23[%c0_361, %c480], %252 {strides = array<i32>} : memref<4x512xf32, #tpu.memory_space<vmem>>, vector<4x32xf32>,
    %c0_362 = arith.constant 0 : index
    %c0_363 = arith.constant 0 : index
    %254 = vector.load %arg23[%c0_362, %c0_363] : memref<4x512xf32, #tpu.memory_space<vmem>>, vector<4x512xf32>
    %255 = arith.truncf %254 : vector<4x512xf32> to vector<4x512xbf16>
    %cst_364 = arith.constant dense<0.000000e+00> : vector<4x64xf32>
    %256 = tpu.matmul %255, %219, %cst_364 {dimension_numbers = #tpu.dot_dimension_numbers<[1], [0], [0], [1], [0, 0, 1, 1], [], []>} : vector<4x512xbf16>, vector<512x64xbf16>, vector<4x64xf32> -> vector<4x64xf32>
    %c0_365 = arith.constant 0 : index
    %c0_366 = arith.constant 0 : index
    %257 = vector.load %arg24[%c0_365, %c0_366] : memref<8x64xf32, #tpu.memory_space<vmem>>, vector<4x64xf32>
    tpu.vector_store %arg24[%c0_365, %c0_366], %256 {strides = array<i32>} : memref<8x64xf32, #tpu.memory_space<vmem>>, vector<4x64xf32>,
    %cst_367 = arith.constant dense<0.000000e+00> : vector<64x32xf32>
    %258 = tpu.matmul %218, %217, %cst_367 {dimension_numbers = #tpu.dot_dimension_numbers<[1], [0], [0], [1], [0, 0, 1, 1], [], []>} : vector<64x16xbf16>, vector<16x32xbf16>, vector<64x32xf32> -> vector<64x32xf32>
    %c0_368 = arith.constant 0 : index
    %c0_369 = arith.constant 0 : index
    %259 = vector.load %arg22[%c0_368, %c0_369] : memref<64x32xf32, #tpu.memory_space<vmem>>, vector<64x32xf32>
    tpu.vector_store %arg22[%c0_368, %c0_369], %258 {strides = array<i32>} : memref<64x32xf32, #tpu.memory_space<vmem>>, vector<64x32xf32>,
    %c0_370 = arith.constant 0 : index
    %c0_371 = arith.constant 0 : index
    %260 = vector.load %arg22[%c0_370, %c0_371] : memref<64x32xf32, #tpu.memory_space<vmem>>, vector<4x32xf32>
    %c0_372 = arith.constant 0 : index
    %c0_373 = arith.constant 0 : index
    %261 = vector.load %arg23[%c0_372, %c0_373] : memref<4x512xf32, #tpu.memory_space<vmem>>, vector<4x32xf32>
    tpu.vector_store %arg23[%c0_372, %c0_373], %260 {strides = array<i32>} : memref<4x512xf32, #tpu.memory_space<vmem>>, vector<4x32xf32>,
    %c4_374 = arith.constant 4 : index
    %c0_375 = arith.constant 0 : index
    %262 = vector.load %arg22[%c4_374, %c0_375] : memref<64x32xf32, #tpu.memory_space<vmem>>, vector<4x32xf32>
    %c0_376 = arith.constant 0 : index
    %c32_377 = arith.constant 32 : index
    %263 = vector.load %arg23[%c0_376, %c32_377] : memref<4x512xf32, #tpu.memory_space<vmem>>, vector<4x32xf32>
    tpu.vector_store %arg23[%c0_376, %c32_377], %262 {strides = array<i32>} : memref<4x512xf32, #tpu.memory_space<vmem>>, vector<4x32xf32>,
    %c8_378 = arith.constant 8 : index
    %c0_379 = arith.constant 0 : index
    %264 = vector.load %arg22[%c8_378, %c0_379] : memref<64x32xf32, #tpu.memory_space<vmem>>, vector<4x32xf32>
    %c0_380 = arith.constant 0 : index
    %c64_381 = arith.constant 64 : index
    %265 = vector.load %arg23[%c0_380, %c64_381] : memref<4x512xf32, #tpu.memory_space<vmem>>, vector<4x32xf32>
    tpu.vector_store %arg23[%c0_380, %c64_381], %264 {strides = array<i32>} : memref<4x512xf32, #tpu.memory_space<vmem>>, vector<4x32xf32>,
    %c12_382 = arith.constant 12 : index
    %c0_383 = arith.constant 0 : index
    %266 = vector.load %arg22[%c12_382, %c0_383] : memref<64x32xf32, #tpu.memory_space<vmem>>, vector<4x32xf32>
    %c0_384 = arith.constant 0 : index
    %c96_385 = arith.constant 96 : index
    %267 = vector.load %arg23[%c0_384, %c96_385] : memref<4x512xf32, #tpu.memory_space<vmem>>, vector<4x32xf32>
    tpu.vector_store %arg23[%c0_384, %c96_385], %266 {strides = array<i32>} : memref<4x512xf32, #tpu.memory_space<vmem>>, vector<4x32xf32>,
    %c16_386 = arith.constant 16 : index
    %c0_387 = arith.constant 0 : index
    %268 = vector.load %arg22[%c16_386, %c0_387] : memref<64x32xf32, #tpu.memory_space<vmem>>, vector<4x32xf32>
    %c0_388 = arith.constant 0 : index
    %c128_389 = arith.constant 128 : index
    %269 = vector.load %arg23[%c0_388, %c128_389] : memref<4x512xf32, #tpu.memory_space<vmem>>, vector<4x32xf32>
    tpu.vector_store %arg23[%c0_388, %c128_389], %268 {strides = array<i32>} : memref<4x512xf32, #tpu.memory_space<vmem>>, vector<4x32xf32>,
    %c20_390 = arith.constant 20 : index
    %c0_391 = arith.constant 0 : index
    %270 = vector.load %arg22[%c20_390, %c0_391] : memref<64x32xf32, #tpu.memory_space<vmem>>, vector<4x32xf32>
    %c0_392 = arith.constant 0 : index
    %c160_393 = arith.constant 160 : index
    %271 = vector.load %arg23[%c0_392, %c160_393] : memref<4x512xf32, #tpu.memory_space<vmem>>, vector<4x32xf32>
    tpu.vector_store %arg23[%c0_392, %c160_393], %270 {strides = array<i32>} : memref<4x512xf32, #tpu.memory_space<vmem>>, vector<4x32xf32>,
    %c24_394 = arith.constant 24 : index
    %c0_395 = arith.constant 0 : index
    %272 = vector.load %arg22[%c24_394, %c0_395] : memref<64x32xf32, #tpu.memory_space<vmem>>, vector<4x32xf32>
    %c0_396 = arith.constant 0 : index
    %c192_397 = arith.constant 192 : index
    %273 = vector.load %arg23[%c0_396, %c192_397] : memref<4x512xf32, #tpu.memory_space<vmem>>, vector<4x32xf32>
    tpu.vector_store %arg23[%c0_396, %c192_397], %272 {strides = array<i32>} : memref<4x512xf32, #tpu.memory_space<vmem>>, vector<4x32xf32>,
    %c28_398 = arith.constant 28 : index
    %c0_399 = arith.constant 0 : index
    %274 = vector.load %arg22[%c28_398, %c0_399] : memref<64x32xf32, #tpu.memory_space<vmem>>, vector<4x32xf32>
    %c0_400 = arith.constant 0 : index
    %c224_401 = arith.constant 224 : index
    %275 = vector.load %arg23[%c0_400, %c224_401] : memref<4x512xf32, #tpu.memory_space<vmem>>, vector<4x32xf32>
    tpu.vector_store %arg23[%c0_400, %c224_401], %274 {strides = array<i32>} : memref<4x512xf32, #tpu.memory_space<vmem>>, vector<4x32xf32>,
    %c32_402 = arith.constant 32 : index
    %c0_403 = arith.constant 0 : index
    %276 = vector.load %arg22[%c32_402, %c0_403] : memref<64x32xf32, #tpu.memory_space<vmem>>, vector<4x32xf32>
    %c0_404 = arith.constant 0 : index
    %c256_405 = arith.constant 256 : index
    %277 = vector.load %arg23[%c0_404, %c256_405] : memref<4x512xf32, #tpu.memory_space<vmem>>, vector<4x32xf32>
    tpu.vector_store %arg23[%c0_404, %c256_405], %276 {strides = array<i32>} : memref<4x512xf32, #tpu.memory_space<vmem>>, vector<4x32xf32>,
    %c36_406 = arith.constant 36 : index
    %c0_407 = arith.constant 0 : index
    %278 = vector.load %arg22[%c36_406, %c0_407] : memref<64x32xf32, #tpu.memory_space<vmem>>, vector<4x32xf32>
    %c0_408 = arith.constant 0 : index
    %c288_409 = arith.constant 288 : index
    %279 = vector.load %arg23[%c0_408, %c288_409] : memref<4x512xf32, #tpu.memory_space<vmem>>, vector<4x32xf32>
    tpu.vector_store %arg23[%c0_408, %c288_409], %278 {strides = array<i32>} : memref<4x512xf32, #tpu.memory_space<vmem>>, vector<4x32xf32>,
    %c40_410 = arith.constant 40 : index
    %c0_411 = arith.constant 0 : index
    %280 = vector.load %arg22[%c40_410, %c0_411] : memref<64x32xf32, #tpu.memory_space<vmem>>, vector<4x32xf32>
    %c0_412 = arith.constant 0 : index
    %c320_413 = arith.constant 320 : index
    %281 = vector.load %arg23[%c0_412, %c320_413] : memref<4x512xf32, #tpu.memory_space<vmem>>, vector<4x32xf32>
    tpu.vector_store %arg23[%c0_412, %c320_413], %280 {strides = array<i32>} : memref<4x512xf32, #tpu.memory_space<vmem>>, vector<4x32xf32>,
    %c44_414 = arith.constant 44 : index
    %c0_415 = arith.constant 0 : index
    %282 = vector.load %arg22[%c44_414, %c0_415] : memref<64x32xf32, #tpu.memory_space<vmem>>, vector<4x32xf32>
    %c0_416 = arith.constant 0 : index
    %c352_417 = arith.constant 352 : index
    %283 = vector.load %arg23[%c0_416, %c352_417] : memref<4x512xf32, #tpu.memory_space<vmem>>, vector<4x32xf32>
    tpu.vector_store %arg23[%c0_416, %c352_417], %282 {strides = array<i32>} : memref<4x512xf32, #tpu.memory_space<vmem>>, vector<4x32xf32>,
    %c48_418 = arith.constant 48 : index
    %c0_419 = arith.constant 0 : index
    %284 = vector.load %arg22[%c48_418, %c0_419] : memref<64x32xf32, #tpu.memory_space<vmem>>, vector<4x32xf32>
    %c0_420 = arith.constant 0 : index
    %c384_421 = arith.constant 384 : index
    %285 = vector.load %arg23[%c0_420, %c384_421] : memref<4x512xf32, #tpu.memory_space<vmem>>, vector<4x32xf32>
    tpu.vector_store %arg23[%c0_420, %c384_421], %284 {strides = array<i32>} : memref<4x512xf32, #tpu.memory_space<vmem>>, vector<4x32xf32>,
    %c52_422 = arith.constant 52 : index
    %c0_423 = arith.constant 0 : index
    %286 = vector.load %arg22[%c52_422, %c0_423] : memref<64x32xf32, #tpu.memory_space<vmem>>, vector<4x32xf32>
    %c0_424 = arith.constant 0 : index
    %c416_425 = arith.constant 416 : index
    %287 = vector.load %arg23[%c0_424, %c416_425] : memref<4x512xf32, #tpu.memory_space<vmem>>, vector<4x32xf32>
    tpu.vector_store %arg23[%c0_424, %c416_425], %286 {strides = array<i32>} : memref<4x512xf32, #tpu.memory_space<vmem>>, vector<4x32xf32>,
    %c56_426 = arith.constant 56 : index
    %c0_427 = arith.constant 0 : index
    %288 = vector.load %arg22[%c56_426, %c0_427] : memref<64x32xf32, #tpu.memory_space<vmem>>, vector<4x32xf32>
    %c0_428 = arith.constant 0 : index
    %c448_429 = arith.constant 448 : index
    %289 = vector.load %arg23[%c0_428, %c448_429] : memref<4x512xf32, #tpu.memory_space<vmem>>, vector<4x32xf32>
    tpu.vector_store %arg23[%c0_428, %c448_429], %288 {strides = array<i32>} : memref<4x512xf32, #tpu.memory_space<vmem>>, vector<4x32xf32>,
    %c60_430 = arith.constant 60 : index
    %c0_431 = arith.constant 0 : index
    %290 = vector.load %arg22[%c60_430, %c0_431] : memref<64x32xf32, #tpu.memory_space<vmem>>, vector<4x32xf32>
    %c0_432 = arith.constant 0 : index
    %c480_433 = arith.constant 480 : index
    %291 = vector.load %arg23[%c0_432, %c480_433] : memref<4x512xf32, #tpu.memory_space<vmem>>, vector<4x32xf32>
    tpu.vector_store %arg23[%c0_432, %c480_433], %290 {strides = array<i32>} : memref<4x512xf32, #tpu.memory_space<vmem>>, vector<4x32xf32>,
    %c0_434 = arith.constant 0 : index
    %c0_435 = arith.constant 0 : index
    %292 = vector.load %arg23[%c0_434, %c0_435] : memref<4x512xf32, #tpu.memory_space<vmem>>, vector<4x512xf32>
    %293 = arith.truncf %292 : vector<4x512xf32> to vector<4x512xbf16>
    %cst_436 = arith.constant dense<0.000000e+00> : vector<4x64xf32>
    %294 = tpu.matmul %293, %219, %cst_436 {dimension_numbers = #tpu.dot_dimension_numbers<[1], [0], [0], [1], [0, 0, 1, 1], [], []>} : vector<4x512xbf16>, vector<512x64xbf16>, vector<4x64xf32> -> vector<4x64xf32>
    %c4_437 = arith.constant 4 : index
    %c0_438 = arith.constant 0 : index
    %295 = vector.load %arg24[%c4_437, %c0_438] : memref<8x64xf32, #tpu.memory_space<vmem>>, vector<4x64xf32>
    tpu.vector_store %arg24[%c4_437, %c0_438], %294 {strides = array<i32>} : memref<8x64xf32, #tpu.memory_space<vmem>>, vector<4x64xf32>,
    %c0_439 = arith.constant 0 : index
    %c0_440 = arith.constant 0 : index
    %296 = vector.load %arg24[%c0_439, %c0_440] : memref<8x64xf32, #tpu.memory_space<vmem>>, vector<8x64xf32>
    %cst_441 = arith.constant dense<0.000000e+00> : vector<64xf32>
    %297 = vector.multi_reduction <add>, %296, %cst_441 [0] : vector<8x64xf32> to vector<64xf32>
    %298 = vector.shape_cast %297 : vector<64xf32> to vector<1x64xf32>
    %cst_442 = arith.constant 8.000000e+00 : f32
    %299 = vector.broadcast %cst_442 : f32 to vector<1x64xf32>
    %300 = arith.divf %298, %299 : vector<1x64xf32>
    %301 = vector.broadcast %300 : vector<1x64xf32> to vector<8x64xf32>
    %302 = arith.subf %296, %301 : vector<8x64xf32>
    %303 = arith.mulf %302, %302 : vector<8x64xf32>
    %cst_443 = arith.constant dense<0.000000e+00> : vector<64xf32>
    %304 = vector.multi_reduction <add>, %303, %cst_443 [0] : vector<8x64xf32> to vector<64xf32>
    %305 = vector.shape_cast %304 : vector<64xf32> to vector<1x64xf32>
    %cst_444 = arith.constant 8.000000e+00 : f32
    %306 = vector.broadcast %cst_444 : f32 to vector<1x64xf32>
    %307 = arith.divf %305, %306 : vector<1x64xf32>
    %cst_445 = arith.constant 9.99999974E-6 : f32
    %308 = vector.broadcast %cst_445 : f32 to vector<1x64xf32>
    %309 = arith.addf %307, %308 : vector<1x64xf32>
    %310 = math.rsqrt %309 : vector<1x64xf32>
    %311 = vector.broadcast %310 : vector<1x64xf32> to vector<8x64xf32>
    %312 = arith.mulf %302, %311 : vector<8x64xf32>
    %c0_446 = arith.constant 0 : index
    %c0_447 = arith.constant 0 : index
    %313 = vector.load %arg11[%c0_446, %c0_447] : memref<2x64xf32, #tpu.memory_space<vmem>>, vector<2x64xf32>
    %314 = vector.extract_strided_slice %313 {offsets = [0, 0], sizes = [1, 64], strides = [1, 1]} : vector<2x64xf32> to vector<1x64xf32>
    %315 = vector.broadcast %314 : vector<1x64xf32> to vector<8x64xf32>
    %316 = arith.mulf %312, %315 : vector<8x64xf32>
    %317 = vector.extract_strided_slice %313 {offsets = [1, 0], sizes = [1, 64], strides = [1, 1]} : vector<2x64xf32> to vector<1x64xf32>
    %318 = vector.broadcast %317 : vector<1x64xf32> to vector<8x64xf32>
    %319 = arith.addf %316, %318 : vector<8x64xf32>
    %cst_448 = arith.constant 0.000000e+00 : f32
    %320 = vector.broadcast %cst_448 : f32 to vector<8x64xf32>
    %321 = arith.cmpf ogt, %319, %320 : vector<8x64xf32>
    %cst_449 = arith.constant 2.000000e-01 : f32
    %322 = vector.broadcast %cst_449 : f32 to vector<8x64xf32>
    %323 = arith.mulf %322, %319 : vector<8x64xf32>
    %324 = arith.select %321, %319, %323 : vector<8x64xi1>, vector<8x64xf32>
    %c0_450 = arith.constant 0 : index
    %c0_451 = arith.constant 0 : index
    %325 = vector.load %arg24[%c0_450, %c0_451] : memref<8x64xf32, #tpu.memory_space<vmem>>, vector<8x64xf32>
    tpu.vector_store %arg24[%c0_450, %c0_451], %324 {strides = array<i32>} : memref<8x64xf32, #tpu.memory_space<vmem>>, vector<8x64xf32>,
    %c0_452 = arith.constant 0 : index
    %c0_453 = arith.constant 0 : index
    %326 = vector.load %arg24[%c0_452, %c0_453] : memref<8x64xf32, #tpu.memory_space<vmem>>, vector<4x64xf32>
    %327 = arith.truncf %326 : vector<4x64xf32> to vector<4x64xbf16>
    %c4_454 = arith.constant 4 : index
    %c0_455 = arith.constant 0 : index
    %328 = vector.load %arg24[%c4_454, %c0_455] : memref<8x64xf32, #tpu.memory_space<vmem>>, vector<4x64xf32>
    %329 = arith.truncf %328 : vector<4x64xf32> to vector<4x64xbf16>
    %c0_456 = arith.constant 0 : index
    %c0_457 = arith.constant 0 : index
    %330 = vector.load %arg12[%c0_456, %c0_457] : memref<16x4xbf16, #tpu.memory_space<vmem>>, vector<16x4xbf16>
    %c0_458 = arith.constant 0 : index
    %c0_459 = arith.constant 0 : index
    %331 = vector.load %arg13[%c0_458, %c0_459] : memref<1024x1xbf16, #tpu.memory_space<vmem>>, vector<1024x1xbf16>
    %cst_460 = arith.constant dense<0.000000e+00> : vector<16x64xf32>
    %332 = tpu.matmul %330, %327, %cst_460 {dimension_numbers = #tpu.dot_dimension_numbers<[1], [0], [0], [1], [0, 0, 1, 1], [], []>} : vector<16x4xbf16>, vector<4x64xbf16>, vector<16x64xf32> -> vector<16x64xf32>
    %c0_461 = arith.constant 0 : index
    %c0_462 = arith.constant 0 : index
    %333 = vector.load %arg25[%c0_461, %c0_462] : memref<16x64xf32, #tpu.memory_space<vmem>>, vector<16x64xf32>
    tpu.vector_store %arg25[%c0_461, %c0_462], %332 {strides = array<i32>} : memref<16x64xf32, #tpu.memory_space<vmem>>, vector<16x64xf32>,
    %c0_463 = arith.constant 0 : index
    %c0_464 = arith.constant 0 : index
    %334 = vector.load %arg25[%c0_463, %c0_464] : memref<16x64xf32, #tpu.memory_space<vmem>>, vector<1x64xf32>
    %c0_465 = arith.constant 0 : index
    %c0_466 = arith.constant 0 : index
    %335 = vector.load %arg26[%c0_465, %c0_466] : memref<1x1024xf32, #tpu.memory_space<vmem>>, vector<1x64xf32>
    tpu.vector_store %arg26[%c0_465, %c0_466], %334 {strides = array<i32>} : memref<1x1024xf32, #tpu.memory_space<vmem>>, vector<1x64xf32>,
    %c1_467 = arith.constant 1 : index
    %c0_468 = arith.constant 0 : index
    %336 = vector.load %arg25[%c1_467, %c0_468] : memref<16x64xf32, #tpu.memory_space<vmem>>, vector<1x64xf32>
    %c0_469 = arith.constant 0 : index
    %c64_470 = arith.constant 64 : index
    %337 = vector.load %arg26[%c0_469, %c64_470] : memref<1x1024xf32, #tpu.memory_space<vmem>>, vector<1x64xf32>
    tpu.vector_store %arg26[%c0_469, %c64_470], %336 {strides = array<i32>} : memref<1x1024xf32, #tpu.memory_space<vmem>>, vector<1x64xf32>,
    %c2 = arith.constant 2 : index
    %c0_471 = arith.constant 0 : index
    %338 = vector.load %arg25[%c2, %c0_471] : memref<16x64xf32, #tpu.memory_space<vmem>>, vector<1x64xf32>
    %c0_472 = arith.constant 0 : index
    %c128_473 = arith.constant 128 : index
    %339 = vector.load %arg26[%c0_472, %c128_473] : memref<1x1024xf32, #tpu.memory_space<vmem>>, vector<1x64xf32>
    tpu.vector_store %arg26[%c0_472, %c128_473], %338 {strides = array<i32>} : memref<1x1024xf32, #tpu.memory_space<vmem>>, vector<1x64xf32>,
    %c3 = arith.constant 3 : index
    %c0_474 = arith.constant 0 : index
    %340 = vector.load %arg25[%c3, %c0_474] : memref<16x64xf32, #tpu.memory_space<vmem>>, vector<1x64xf32>
    %c0_475 = arith.constant 0 : index
    %c192_476 = arith.constant 192 : index
    %341 = vector.load %arg26[%c0_475, %c192_476] : memref<1x1024xf32, #tpu.memory_space<vmem>>, vector<1x64xf32>
    tpu.vector_store %arg26[%c0_475, %c192_476], %340 {strides = array<i32>} : memref<1x1024xf32, #tpu.memory_space<vmem>>, vector<1x64xf32>,
    %c4_477 = arith.constant 4 : index
    %c0_478 = arith.constant 0 : index
    %342 = vector.load %arg25[%c4_477, %c0_478] : memref<16x64xf32, #tpu.memory_space<vmem>>, vector<1x64xf32>
    %c0_479 = arith.constant 0 : index
    %c256_480 = arith.constant 256 : index
    %343 = vector.load %arg26[%c0_479, %c256_480] : memref<1x1024xf32, #tpu.memory_space<vmem>>, vector<1x64xf32>
    tpu.vector_store %arg26[%c0_479, %c256_480], %342 {strides = array<i32>} : memref<1x1024xf32, #tpu.memory_space<vmem>>, vector<1x64xf32>,
    %c5 = arith.constant 5 : index
    %c0_481 = arith.constant 0 : index
    %344 = vector.load %arg25[%c5, %c0_481] : memref<16x64xf32, #tpu.memory_space<vmem>>, vector<1x64xf32>
    %c0_482 = arith.constant 0 : index
    %c320_483 = arith.constant 320 : index
    %345 = vector.load %arg26[%c0_482, %c320_483] : memref<1x1024xf32, #tpu.memory_space<vmem>>, vector<1x64xf32>
    tpu.vector_store %arg26[%c0_482, %c320_483], %344 {strides = array<i32>} : memref<1x1024xf32, #tpu.memory_space<vmem>>, vector<1x64xf32>,
    %c6 = arith.constant 6 : index
    %c0_484 = arith.constant 0 : index
    %346 = vector.load %arg25[%c6, %c0_484] : memref<16x64xf32, #tpu.memory_space<vmem>>, vector<1x64xf32>
    %c0_485 = arith.constant 0 : index
    %c384_486 = arith.constant 384 : index
    %347 = vector.load %arg26[%c0_485, %c384_486] : memref<1x1024xf32, #tpu.memory_space<vmem>>, vector<1x64xf32>
    tpu.vector_store %arg26[%c0_485, %c384_486], %346 {strides = array<i32>} : memref<1x1024xf32, #tpu.memory_space<vmem>>, vector<1x64xf32>,
    %c7 = arith.constant 7 : index
    %c0_487 = arith.constant 0 : index
    %348 = vector.load %arg25[%c7, %c0_487] : memref<16x64xf32, #tpu.memory_space<vmem>>, vector<1x64xf32>
    %c0_488 = arith.constant 0 : index
    %c448_489 = arith.constant 448 : index
    %349 = vector.load %arg26[%c0_488, %c448_489] : memref<1x1024xf32, #tpu.memory_space<vmem>>, vector<1x64xf32>
    tpu.vector_store %arg26[%c0_488, %c448_489], %348 {strides = array<i32>} : memref<1x1024xf32, #tpu.memory_space<vmem>>, vector<1x64xf32>,
    %c8_490 = arith.constant 8 : index
    %c0_491 = arith.constant 0 : index
    %350 = vector.load %arg25[%c8_490, %c0_491] : memref<16x64xf32, #tpu.memory_space<vmem>>, vector<1x64xf32>
    %c0_492 = arith.constant 0 : index
    %c512_493 = arith.constant 512 : index
    %351 = vector.load %arg26[%c0_492, %c512_493] : memref<1x1024xf32, #tpu.memory_space<vmem>>, vector<1x64xf32>
    tpu.vector_store %arg26[%c0_492, %c512_493], %350 {strides = array<i32>} : memref<1x1024xf32, #tpu.memory_space<vmem>>, vector<1x64xf32>,
    %c9 = arith.constant 9 : index
    %c0_494 = arith.constant 0 : index
    %352 = vector.load %arg25[%c9, %c0_494] : memref<16x64xf32, #tpu.memory_space<vmem>>, vector<1x64xf32>
    %c0_495 = arith.constant 0 : index
    %c576_496 = arith.constant 576 : index
    %353 = vector.load %arg26[%c0_495, %c576_496] : memref<1x1024xf32, #tpu.memory_space<vmem>>, vector<1x64xf32>
    tpu.vector_store %arg26[%c0_495, %c576_496], %352 {strides = array<i32>} : memref<1x1024xf32, #tpu.memory_space<vmem>>, vector<1x64xf32>,
    %c10 = arith.constant 10 : index
    %c0_497 = arith.constant 0 : index
    %354 = vector.load %arg25[%c10, %c0_497] : memref<16x64xf32, #tpu.memory_space<vmem>>, vector<1x64xf32>
    %c0_498 = arith.constant 0 : index
    %c640_499 = arith.constant 640 : index
    %355 = vector.load %arg26[%c0_498, %c640_499] : memref<1x1024xf32, #tpu.memory_space<vmem>>, vector<1x64xf32>
    tpu.vector_store %arg26[%c0_498, %c640_499], %354 {strides = array<i32>} : memref<1x1024xf32, #tpu.memory_space<vmem>>, vector<1x64xf32>,
    %c11 = arith.constant 11 : index
    %c0_500 = arith.constant 0 : index
    %356 = vector.load %arg25[%c11, %c0_500] : memref<16x64xf32, #tpu.memory_space<vmem>>, vector<1x64xf32>
    %c0_501 = arith.constant 0 : index
    %c704_502 = arith.constant 704 : index
    %357 = vector.load %arg26[%c0_501, %c704_502] : memref<1x1024xf32, #tpu.memory_space<vmem>>, vector<1x64xf32>
    tpu.vector_store %arg26[%c0_501, %c704_502], %356 {strides = array<i32>} : memref<1x1024xf32, #tpu.memory_space<vmem>>, vector<1x64xf32>,
    %c12_503 = arith.constant 12 : index
    %c0_504 = arith.constant 0 : index
    %358 = vector.load %arg25[%c12_503, %c0_504] : memref<16x64xf32, #tpu.memory_space<vmem>>, vector<1x64xf32>
    %c0_505 = arith.constant 0 : index
    %c768_506 = arith.constant 768 : index
    %359 = vector.load %arg26[%c0_505, %c768_506] : memref<1x1024xf32, #tpu.memory_space<vmem>>, vector<1x64xf32>
    tpu.vector_store %arg26[%c0_505, %c768_506], %358 {strides = array<i32>} : memref<1x1024xf32, #tpu.memory_space<vmem>>, vector<1x64xf32>,
    %c13 = arith.constant 13 : index
    %c0_507 = arith.constant 0 : index
    %360 = vector.load %arg25[%c13, %c0_507] : memref<16x64xf32, #tpu.memory_space<vmem>>, vector<1x64xf32>
    %c0_508 = arith.constant 0 : index
    %c832_509 = arith.constant 832 : index
    %361 = vector.load %arg26[%c0_508, %c832_509] : memref<1x1024xf32, #tpu.memory_space<vmem>>, vector<1x64xf32>
    tpu.vector_store %arg26[%c0_508, %c832_509], %360 {strides = array<i32>} : memref<1x1024xf32, #tpu.memory_space<vmem>>, vector<1x64xf32>,
    %c14 = arith.constant 14 : index
    %c0_510 = arith.constant 0 : index
    %362 = vector.load %arg25[%c14, %c0_510] : memref<16x64xf32, #tpu.memory_space<vmem>>, vector<1x64xf32>
    %c0_511 = arith.constant 0 : index
    %c896_512 = arith.constant 896 : index
    %363 = vector.load %arg26[%c0_511, %c896_512] : memref<1x1024xf32, #tpu.memory_space<vmem>>, vector<1x64xf32>
    tpu.vector_store %arg26[%c0_511, %c896_512], %362 {strides = array<i32>} : memref<1x1024xf32, #tpu.memory_space<vmem>>, vector<1x64xf32>,
    %c15 = arith.constant 15 : index
    %c0_513 = arith.constant 0 : index
    %364 = vector.load %arg25[%c15, %c0_513] : memref<16x64xf32, #tpu.memory_space<vmem>>, vector<1x64xf32>
    %c0_514 = arith.constant 0 : index
    %c960_515 = arith.constant 960 : index
    %365 = vector.load %arg26[%c0_514, %c960_515] : memref<1x1024xf32, #tpu.memory_space<vmem>>, vector<1x64xf32>
    tpu.vector_store %arg26[%c0_514, %c960_515], %364 {strides = array<i32>} : memref<1x1024xf32, #tpu.memory_space<vmem>>, vector<1x64xf32>,
    %c0_516 = arith.constant 0 : index
    %c0_517 = arith.constant 0 : index
    %366 = vector.load %arg26[%c0_516, %c0_517] : memref<1x1024xf32, #tpu.memory_space<vmem>>, vector<1x1024xf32>
    %367 = arith.truncf %366 : vector<1x1024xf32> to vector<1x1024xbf16>
    %cst_518 = arith.constant dense<0.000000e+00> : vector<1x1xf32>
    %368 = tpu.matmul %367, %331, %cst_518 {dimension_numbers = #tpu.dot_dimension_numbers<[1], [0], [0], [1], [0, 0, 1, 1], [], []>} : vector<1x1024xbf16>, vector<1024x1xbf16>, vector<1x1xf32> -> vector<1x1xf32>
    %c0_519 = arith.constant 0 : index
    %c0_520 = arith.constant 0 : index
    %369 = vector.load %arg27[%c0_519, %c0_520] : memref<2x1xf32, #tpu.memory_space<vmem>>, vector<1x1xf32>
    tpu.vector_store %arg27[%c0_519, %c0_520], %368 {strides = array<i32>} : memref<2x1xf32, #tpu.memory_space<vmem>>, vector<1x1xf32>,
    %cst_521 = arith.constant dense<0.000000e+00> : vector<16x64xf32>
    %370 = tpu.matmul %330, %329, %cst_521 {dimension_numbers = #tpu.dot_dimension_numbers<[1], [0], [0], [1], [0, 0, 1, 1], [], []>} : vector<16x4xbf16>, vector<4x64xbf16>, vector<16x64xf32> -> vector<16x64xf32>
    %c0_522 = arith.constant 0 : index
    %c0_523 = arith.constant 0 : index
    %371 = vector.load %arg25[%c0_522, %c0_523] : memref<16x64xf32, #tpu.memory_space<vmem>>, vector<16x64xf32>
    tpu.vector_store %arg25[%c0_522, %c0_523], %370 {strides = array<i32>} : memref<16x64xf32, #tpu.memory_space<vmem>>, vector<16x64xf32>,
    %c0_524 = arith.constant 0 : index
    %c0_525 = arith.constant 0 : index
    %372 = vector.load %arg25[%c0_524, %c0_525] : memref<16x64xf32, #tpu.memory_space<vmem>>, vector<1x64xf32>
    %c0_526 = arith.constant 0 : index
    %c0_527 = arith.constant 0 : index
    %373 = vector.load %arg26[%c0_526, %c0_527] : memref<1x1024xf32, #tpu.memory_space<vmem>>, vector<1x64xf32>
    tpu.vector_store %arg26[%c0_526, %c0_527], %372 {strides = array<i32>} : memref<1x1024xf32, #tpu.memory_space<vmem>>, vector<1x64xf32>,
    %c1_528 = arith.constant 1 : index
    %c0_529 = arith.constant 0 : index
    %374 = vector.load %arg25[%c1_528, %c0_529] : memref<16x64xf32, #tpu.memory_space<vmem>>, vector<1x64xf32>
    %c0_530 = arith.constant 0 : index
    %c64_531 = arith.constant 64 : index
    %375 = vector.load %arg26[%c0_530, %c64_531] : memref<1x1024xf32, #tpu.memory_space<vmem>>, vector<1x64xf32>
    tpu.vector_store %arg26[%c0_530, %c64_531], %374 {strides = array<i32>} : memref<1x1024xf32, #tpu.memory_space<vmem>>, vector<1x64xf32>,
    %c2_532 = arith.constant 2 : index
    %c0_533 = arith.constant 0 : index
    %376 = vector.load %arg25[%c2_532, %c0_533] : memref<16x64xf32, #tpu.memory_space<vmem>>, vector<1x64xf32>
    %c0_534 = arith.constant 0 : index
    %c128_535 = arith.constant 128 : index
    %377 = vector.load %arg26[%c0_534, %c128_535] : memref<1x1024xf32, #tpu.memory_space<vmem>>, vector<1x64xf32>
    tpu.vector_store %arg26[%c0_534, %c128_535], %376 {strides = array<i32>} : memref<1x1024xf32, #tpu.memory_space<vmem>>, vector<1x64xf32>,
    %c3_536 = arith.constant 3 : index
    %c0_537 = arith.constant 0 : index
    %378 = vector.load %arg25[%c3_536, %c0_537] : memref<16x64xf32, #tpu.memory_space<vmem>>, vector<1x64xf32>
    %c0_538 = arith.constant 0 : index
    %c192_539 = arith.constant 192 : index
    %379 = vector.load %arg26[%c0_538, %c192_539] : memref<1x1024xf32, #tpu.memory_space<vmem>>, vector<1x64xf32>
    tpu.vector_store %arg26[%c0_538, %c192_539], %378 {strides = array<i32>} : memref<1x1024xf32, #tpu.memory_space<vmem>>, vector<1x64xf32>,
    %c4_540 = arith.constant 4 : index
    %c0_541 = arith.constant 0 : index
    %380 = vector.load %arg25[%c4_540, %c0_541] : memref<16x64xf32, #tpu.memory_space<vmem>>, vector<1x64xf32>
    %c0_542 = arith.constant 0 : index
    %c256_543 = arith.constant 256 : index
    %381 = vector.load %arg26[%c0_542, %c256_543] : memref<1x1024xf32, #tpu.memory_space<vmem>>, vector<1x64xf32>
    tpu.vector_store %arg26[%c0_542, %c256_543], %380 {strides = array<i32>} : memref<1x1024xf32, #tpu.memory_space<vmem>>, vector<1x64xf32>,
    %c5_544 = arith.constant 5 : index
    %c0_545 = arith.constant 0 : index
    %382 = vector.load %arg25[%c5_544, %c0_545] : memref<16x64xf32, #tpu.memory_space<vmem>>, vector<1x64xf32>
    %c0_546 = arith.constant 0 : index
    %c320_547 = arith.constant 320 : index
    %383 = vector.load %arg26[%c0_546, %c320_547] : memref<1x1024xf32, #tpu.memory_space<vmem>>, vector<1x64xf32>
    tpu.vector_store %arg26[%c0_546, %c320_547], %382 {strides = array<i32>} : memref<1x1024xf32, #tpu.memory_space<vmem>>, vector<1x64xf32>,
    %c6_548 = arith.constant 6 : index
    %c0_549 = arith.constant 0 : index
    %384 = vector.load %arg25[%c6_548, %c0_549] : memref<16x64xf32, #tpu.memory_space<vmem>>, vector<1x64xf32>
    %c0_550 = arith.constant 0 : index
    %c384_551 = arith.constant 384 : index
    %385 = vector.load %arg26[%c0_550, %c384_551] : memref<1x1024xf32, #tpu.memory_space<vmem>>, vector<1x64xf32>
    tpu.vector_store %arg26[%c0_550, %c384_551], %384 {strides = array<i32>} : memref<1x1024xf32, #tpu.memory_space<vmem>>, vector<1x64xf32>,
    %c7_552 = arith.constant 7 : index
    %c0_553 = arith.constant 0 : index
    %386 = vector.load %arg25[%c7_552, %c0_553] : memref<16x64xf32, #tpu.memory_space<vmem>>, vector<1x64xf32>
    %c0_554 = arith.constant 0 : index
    %c448_555 = arith.constant 448 : index
    %387 = vector.load %arg26[%c0_554, %c448_555] : memref<1x1024xf32, #tpu.memory_space<vmem>>, vector<1x64xf32>
    tpu.vector_store %arg26[%c0_554, %c448_555], %386 {strides = array<i32>} : memref<1x1024xf32, #tpu.memory_space<vmem>>, vector<1x64xf32>,
    %c8_556 = arith.constant 8 : index
    %c0_557 = arith.constant 0 : index
    %388 = vector.load %arg25[%c8_556, %c0_557] : memref<16x64xf32, #tpu.memory_space<vmem>>, vector<1x64xf32>
    %c0_558 = arith.constant 0 : index
    %c512_559 = arith.constant 512 : index
    %389 = vector.load %arg26[%c0_558, %c512_559] : memref<1x1024xf32, #tpu.memory_space<vmem>>, vector<1x64xf32>
    tpu.vector_store %arg26[%c0_558, %c512_559], %388 {strides = array<i32>} : memref<1x1024xf32, #tpu.memory_space<vmem>>, vector<1x64xf32>,
    %c9_560 = arith.constant 9 : index
    %c0_561 = arith.constant 0 : index
    %390 = vector.load %arg25[%c9_560, %c0_561] : memref<16x64xf32, #tpu.memory_space<vmem>>, vector<1x64xf32>
    %c0_562 = arith.constant 0 : index
    %c576_563 = arith.constant 576 : index
    %391 = vector.load %arg26[%c0_562, %c576_563] : memref<1x1024xf32, #tpu.memory_space<vmem>>, vector<1x64xf32>
    tpu.vector_store %arg26[%c0_562, %c576_563], %390 {strides = array<i32>} : memref<1x1024xf32, #tpu.memory_space<vmem>>, vector<1x64xf32>,
    %c10_564 = arith.constant 10 : index
    %c0_565 = arith.constant 0 : index
    %392 = vector.load %arg25[%c10_564, %c0_565] : memref<16x64xf32, #tpu.memory_space<vmem>>, vector<1x64xf32>
    %c0_566 = arith.constant 0 : index
    %c640_567 = arith.constant 640 : index
    %393 = vector.load %arg26[%c0_566, %c640_567] : memref<1x1024xf32, #tpu.memory_space<vmem>>, vector<1x64xf32>
    tpu.vector_store %arg26[%c0_566, %c640_567], %392 {strides = array<i32>} : memref<1x1024xf32, #tpu.memory_space<vmem>>, vector<1x64xf32>,
    %c11_568 = arith.constant 11 : index
    %c0_569 = arith.constant 0 : index
    %394 = vector.load %arg25[%c11_568, %c0_569] : memref<16x64xf32, #tpu.memory_space<vmem>>, vector<1x64xf32>
    %c0_570 = arith.constant 0 : index
    %c704_571 = arith.constant 704 : index
    %395 = vector.load %arg26[%c0_570, %c704_571] : memref<1x1024xf32, #tpu.memory_space<vmem>>, vector<1x64xf32>
    tpu.vector_store %arg26[%c0_570, %c704_571], %394 {strides = array<i32>} : memref<1x1024xf32, #tpu.memory_space<vmem>>, vector<1x64xf32>,
    %c12_572 = arith.constant 12 : index
    %c0_573 = arith.constant 0 : index
    %396 = vector.load %arg25[%c12_572, %c0_573] : memref<16x64xf32, #tpu.memory_space<vmem>>, vector<1x64xf32>
    %c0_574 = arith.constant 0 : index
    %c768_575 = arith.constant 768 : index
    %397 = vector.load %arg26[%c0_574, %c768_575] : memref<1x1024xf32, #tpu.memory_space<vmem>>, vector<1x64xf32>
    tpu.vector_store %arg26[%c0_574, %c768_575], %396 {strides = array<i32>} : memref<1x1024xf32, #tpu.memory_space<vmem>>, vector<1x64xf32>,
    %c13_576 = arith.constant 13 : index
    %c0_577 = arith.constant 0 : index
    %398 = vector.load %arg25[%c13_576, %c0_577] : memref<16x64xf32, #tpu.memory_space<vmem>>, vector<1x64xf32>
    %c0_578 = arith.constant 0 : index
    %c832_579 = arith.constant 832 : index
    %399 = vector.load %arg26[%c0_578, %c832_579] : memref<1x1024xf32, #tpu.memory_space<vmem>>, vector<1x64xf32>
    tpu.vector_store %arg26[%c0_578, %c832_579], %398 {strides = array<i32>} : memref<1x1024xf32, #tpu.memory_space<vmem>>, vector<1x64xf32>,
    %c14_580 = arith.constant 14 : index
    %c0_581 = arith.constant 0 : index
    %400 = vector.load %arg25[%c14_580, %c0_581] : memref<16x64xf32, #tpu.memory_space<vmem>>, vector<1x64xf32>
    %c0_582 = arith.constant 0 : index
    %c896_583 = arith.constant 896 : index
    %401 = vector.load %arg26[%c0_582, %c896_583] : memref<1x1024xf32, #tpu.memory_space<vmem>>, vector<1x64xf32>
    tpu.vector_store %arg26[%c0_582, %c896_583], %400 {strides = array<i32>} : memref<1x1024xf32, #tpu.memory_space<vmem>>, vector<1x64xf32>,
    %c15_584 = arith.constant 15 : index
    %c0_585 = arith.constant 0 : index
    %402 = vector.load %arg25[%c15_584, %c0_585] : memref<16x64xf32, #tpu.memory_space<vmem>>, vector<1x64xf32>
    %c0_586 = arith.constant 0 : index
    %c960_587 = arith.constant 960 : index
    %403 = vector.load %arg26[%c0_586, %c960_587] : memref<1x1024xf32, #tpu.memory_space<vmem>>, vector<1x64xf32>
    tpu.vector_store %arg26[%c0_586, %c960_587], %402 {strides = array<i32>} : memref<1x1024xf32, #tpu.memory_space<vmem>>, vector<1x64xf32>,
    %c0_588 = arith.constant 0 : index
    %c0_589 = arith.constant 0 : index
    %404 = vector.load %arg26[%c0_588, %c0_589] : memref<1x1024xf32, #tpu.memory_space<vmem>>, vector<1x1024xf32>
    %405 = arith.truncf %404 : vector<1x1024xf32> to vector<1x1024xbf16>
    %cst_590 = arith.constant dense<0.000000e+00> : vector<1x1xf32>
    %406 = tpu.matmul %405, %331, %cst_590 {dimension_numbers = #tpu.dot_dimension_numbers<[1], [0], [0], [1], [0, 0, 1, 1], [], []>} : vector<1x1024xbf16>, vector<1024x1xbf16>, vector<1x1xf32> -> vector<1x1xf32>
    %c1_591 = arith.constant 1 : index
    %c0_592 = arith.constant 0 : index
    %407 = vector.load %arg27[%c1_591, %c0_592] : memref<2x1xf32, #tpu.memory_space<vmem>>, vector<1x1xf32>
    tpu.vector_store %arg27[%c1_591, %c0_592], %406 {strides = array<i32>} : memref<2x1xf32, #tpu.memory_space<vmem>>, vector<1x1xf32>,
    %c0_593 = arith.constant 0 : index
    %c0_594 = arith.constant 0 : index
    %408 = vector.load %arg27[%c0_593, %c0_594] : memref<2x1xf32, #tpu.memory_space<vmem>>, vector<2x1xf32>
    %c0_595 = arith.constant 0 : index
    %c0_596 = arith.constant 0 : index
    %409 = vector.load %arg14[%c0_595, %c0_596] : memref<2x1xf32, #tpu.memory_space<vmem>>, vector<2x1xf32>
    %410 = vector.extract_strided_slice %409 {offsets = [0, 0], sizes = [1, 1], strides = [1, 1]} : vector<2x1xf32> to vector<1x1xf32>
    %411 = vector.broadcast %410 : vector<1x1xf32> to vector<2x1xf32>
    %412 = arith.mulf %408, %411 : vector<2x1xf32>
    %413 = vector.extract_strided_slice %409 {offsets = [1, 0], sizes = [1, 1], strides = [1, 1]} : vector<2x1xf32> to vector<1x1xf32>
    %414 = vector.broadcast %413 : vector<1x1xf32> to vector<2x1xf32>
    %415 = arith.addf %412, %414 : vector<2x1xf32>
    %cst_597 = arith.constant 0.000000e+00 : f32
    %416 = vector.broadcast %cst_597 : f32 to vector<2x1xf32>
    %417 = arith.subf %416, %415 : vector<2x1xf32>
    %418 = math.exp %417 : vector<2x1xf32>
    %cst_598 = arith.constant 1.000000e+00 : f32
    %419 = vector.broadcast %cst_598 : f32 to vector<2x1xf32>
    %420 = arith.addf %419, %418 : vector<2x1xf32>
    %cst_599 = arith.constant 1.000000e+00 : f32
    %421 = vector.broadcast %cst_599 : f32 to vector<2x1xf32>
    %422 = arith.divf %421, %420 : vector<2x1xf32>
    %c0_600 = arith.constant 0 : index
    %c0_601 = arith.constant 0 : index
    %423 = vector.load %arg15[%c0_600, %c0_601] : memref<2x1xf32, #tpu.memory_space<vmem>>, vector<2x1xf32>
    tpu.vector_store %arg15[%c0_600, %c0_601], %422 {strides = array<i32>} : memref<2x1xf32, #tpu.memory_space<vmem>>, vector<2x1xf32>,
    return
  }
  func.func @transform_0(%arg0: i32) -> (i32, i32, i32) {
    %c0_i32 = arith.constant 0 : i32
    %c0_i32_0 = arith.constant 0 : i32
    %c0_i32_1 = arith.constant 0 : i32
    %c0_i32_2 = arith.constant 0 : i32
    return %c0_i32, %c0_i32_0, %c0_i32_1 : i32, i32, i32
  }
  func.func @transform_1(%arg0: i32) -> (i32, i32, i32) {
    %c0_i32 = arith.constant 0 : i32
    %c0_i32_0 = arith.constant 0 : i32
    %c0_i32_1 = arith.constant 0 : i32
    %c0_i32_2 = arith.constant 0 : i32
    return %c0_i32, %c0_i32_0, %c0_i32_1 : i32, i32, i32
  }
  func.func @transform_2(%arg0: i32) -> (i32, i32) {
    %c0_i32 = arith.constant 0 : i32
    %c0_i32_0 = arith.constant 0 : i32
    %c0_i32_1 = arith.constant 0 : i32
    return %c0_i32, %c0_i32_0 : i32, i32
  }
  func.func @transform_3(%arg0: i32) -> (i32, i32) {
    %c0_i32 = arith.constant 0 : i32
    %c0_i32_0 = arith.constant 0 : i32
    %c0_i32_1 = arith.constant 0 : i32
    return %c0_i32, %c0_i32_0 : i32, i32
  }
  func.func @transform_4(%arg0: i32) -> (i32, i32) {
    %c0_i32 = arith.constant 0 : i32
    %c0_i32_0 = arith.constant 0 : i32
    %c0_i32_1 = arith.constant 0 : i32
    return %c0_i32, %c0_i32_0 : i32, i32
  }
  func.func @transform_5(%arg0: i32) -> (i32, i32) {
    %c0_i32 = arith.constant 0 : i32
    %c0_i32_0 = arith.constant 0 : i32
    %c0_i32_1 = arith.constant 0 : i32
    return %c0_i32, %c0_i32_0 : i32, i32
  }
  func.func @transform_6(%arg0: i32) -> (i32, i32) {
    %c0_i32 = arith.constant 0 : i32
    %c0_i32_0 = arith.constant 0 : i32
    %c0_i32_1 = arith.constant 0 : i32
    return %c0_i32, %c0_i32_0 : i32, i32
  }
  func.func @transform_7(%arg0: i32) -> (i32, i32) {
    %c0_i32 = arith.constant 0 : i32
    %c0_i32_0 = arith.constant 0 : i32
    %c0_i32_1 = arith.constant 0 : i32
    return %c0_i32, %c0_i32_0 : i32, i32
  }
  func.func @transform_8(%arg0: i32) -> (i32, i32) {
    %c0_i32 = arith.constant 0 : i32
    %c0_i32_0 = arith.constant 0 : i32
    %c0_i32_1 = arith.constant 0 : i32
    return %c0_i32, %c0_i32_0 : i32, i32
  }
  func.func @transform_9(%arg0: i32) -> (i32, i32) {
    %c0_i32 = arith.constant 0 : i32
    %c0_i32_0 = arith.constant 0 : i32
    %c0_i32_1 = arith.constant 0 : i32
    return %c0_i32, %c0_i32_0 : i32, i32
  }
  func.func @transform_10(%arg0: i32) -> (i32, i32) {
    %c0_i32 = arith.constant 0 : i32
    %c0_i32_0 = arith.constant 0 : i32
    %c0_i32_1 = arith.constant 0 : i32
    return %c0_i32, %c0_i32_0 : i32, i32
  }
  func.func @transform_11(%arg0: i32) -> (i32, i32) {
    %c0_i32 = arith.constant 0 : i32
    %c0_i32_0 = arith.constant 0 : i32
    %c0_i32_1 = arith.constant 0 : i32
    return %c0_i32, %c0_i32_0 : i32, i32
  }
  func.func @transform_12(%arg0: i32) -> (i32, i32) {
    %c0_i32 = arith.constant 0 : i32
    %c0_i32_0 = arith.constant 0 : i32
    %c0_i32_1 = arith.constant 0 : i32
    return %c0_i32, %c0_i32_0 : i32, i32
  }
  func.func @transform_13(%arg0: i32) -> (i32, i32) {
    %c0_i32 = arith.constant 0 : i32
    %c0_i32_0 = arith.constant 0 : i32
    %c0_i32_1 = arith.constant 0 : i32
    return %c0_i32, %c0_i32_0 : i32, i32
  }
  func.func @transform_14(%arg0: i32) -> (i32, i32) {
    %c0_i32 = arith.constant 0 : i32
    %c0_i32_0 = arith.constant 0 : i32
    %c0_i32_1 = arith.constant 0 : i32
    return %c0_i32, %c0_i32_0 : i32, i32
  }
}

</mosaic_0001>

<llo_original>
// kernel: forward.1
$region0: #{forward.1}
  #allocation0 [shape = 'u32[]', space=smem, size = 0x4, offset = 0x4, fixed_abs, tag = 'smem constant byte address 0x4 - core index']
  #allocation1 [shape = 'u32[144,128]{1,0:T(1,128)}', space=vmem, size = 0x12000, scoped, tag = 'internal scratch']
  #allocation2 [shape = 'f32[1024,4]{1,0:T(8,128)}', space=vmem, size = 0x80000, scoped, tag = 'scratch operand']
  #allocation3 [shape = 'f32[64,64]{1,0:T(8,128)}', space=vmem, size = 0x8000, scoped, tag = 'scratch operand']
  #allocation4 [shape = 'f32[128,16]{1,0:T(8,128)}', space=vmem, size = 0x10000, scoped, tag = 'scratch operand']
  #allocation5 [shape = 'f32[256,16]{1,0:T(8,128)}', space=vmem, size = 0x20000, scoped, tag = 'scratch operand']
  #allocation6 [shape = 'f32[16,256]{1,0:T(8,128)}', space=vmem, size = 0x4000, scoped, tag = 'scratch operand']
  #allocation7 [shape = 'f32[32,32]{1,0:T(8,128)}', space=vmem, size = 0x4000, scoped, tag = 'scratch operand']
  #allocation8 [shape = 'f32[64,32]{1,0:T(8,128)}', space=vmem, size = 0x8000, scoped, tag = 'scratch operand']
  #allocation9 [shape = 'f32[4,512]{1,0:T(4,128)}', space=vmem, size = 0x2000, scoped, tag = 'scratch operand']
  #allocation10 [shape = 'f32[8,64]{1,0:T(8,128)}', space=vmem, size = 0x1000, scoped, tag = 'scratch operand']
  #allocation11 [shape = 'f32[16,64]{1,0:T(8,128)}', space=vmem, size = 0x2000, scoped, tag = 'scratch operand']
  #allocation12 [shape = 'f32[1,1024]{1,0:T(1,128)}', space=vmem, size = 0x1000, scoped, tag = 'scratch operand']
  #allocation13 [shape = 'f32[2,1]{1,0:T(2,128)}', space=vmem, size = 0x400, scoped, tag = 'scratch operand']
  %s0 = inlined_call_operand.vmem [shape: bf16[2,256,4], index: 0, kind: input, shape index: {}]
  %s1 = inlined_call_operand.vmem [shape: bf16[2,256,4], index: 1, kind: input, shape index: {}]
  %s2 = inlined_call_operand.vmem [shape: bf16[1024,256], index: 2, kind: input, shape index: {}]
  %s3 = inlined_call_operand.vmem [shape: bf16[64,16], index: 3, kind: input, shape index: {}]
  %s4 = inlined_call_operand.vmem [shape: f32[2,16], index: 4, kind: input, shape index: {}]
  %s5 = inlined_call_operand.vmem [shape: bf16[256,64], index: 5, kind: input, shape index: {}]
  %s6 = inlined_call_operand.vmem [shape: bf16[256,32], index: 6, kind: input, shape index: {}]
  %s7 = inlined_call_operand.vmem [shape: f32[2,32], index: 7, kind: input, shape index: {}]
  %s8 = inlined_call_operand.vmem [shape: bf16[64,16], index: 8, kind: input, shape index: {}]
  %s9 = inlined_call_operand.vmem [shape: bf16[512,64], index: 9, kind: input, shape index: {}]
  %s10 = inlined_call_operand.vmem [shape: f32[2,64], index: 10, kind: input, shape index: {}]
  %s11 = inlined_call_operand.vmem [shape: bf16[16,4], index: 11, kind: input, shape index: {}]
  %s12 = inlined_call_operand.vmem [shape: bf16[1024,1], index: 12, kind: input, shape index: {}]
  %s13 = inlined_call_operand.vmem [shape: f32[2,1], index: 13, kind: input, shape index: {}]
  %s14 = inlined_call_operand.vmem [shape: f32[2,1], index: 14, kind: output, shape index: {}]
  %s15 = sld [smem:[#allocation0]]
  $region66: #{forward.1} parent=0
    _
  %s17 = ssub.s32 1, %s15
  %s18 = scalar_select 0, %s17, %s15
  // Predicated region
  $region2: #{forward.1} parent=0 // pred_check
    _
  $region3: #{forward.1} parent=0 // pred_check_branch
    %20 = sbr.rel (0) target = $region5
  $region4: #{forward.1} parent=0 // pred_region
    _
  $region5: #{forward.1} parent=0 // pred_fallthru
    _
  // Predicated region
  $region6: #{forward.1} parent=0 // pred_check
    _
  $region7: #{forward.1} parent=0 // pred_check_branch
    %22 = sbr.rel (0) target = $region9
  $region8: #{forward.1} parent=0 // pred_region
    _
  $region9: #{forward.1} parent=0 // pred_fallthru
    _
  // Predicated region
  $region10: #{forward.1} parent=0 // pred_check
    _
  $region11: #{forward.1} parent=0 // pred_check_branch
    %24 = sbr.rel (0) target = $region13
  $region12: #{forward.1} parent=0 // pred_region
    _
  $region13: #{forward.1} parent=0 // pred_fallthru
    _
  // Predicated region
  $region14: #{forward.1} parent=0 // pred_check
    _
  $region15: #{forward.1} parent=0 // pred_check_branch
    %26 = sbr.rel (0) target = $region17
  $region16: #{forward.1} parent=0 // pred_region
    _
  $region17: #{forward.1} parent=0 // pred_fallthru
    _
  // Predicated region
  $region18: #{forward.1} parent=0 // pred_check
    _
  $region19: #{forward.1} parent=0 // pred_check_branch
    %28 = sbr.rel (0) target = $region21
  $region20: #{forward.1} parent=0 // pred_region
    _
  $region21: #{forward.1} parent=0 // pred_fallthru
    _
  // Predicated region
  $region22: #{forward.1} parent=0 // pred_check
    _
  $region23: #{forward.1} parent=0 // pred_check_branch
    %30 = sbr.rel (0) target = $region25
  $region24: #{forward.1} parent=0 // pred_region
    _
  $region25: #{forward.1} parent=0 // pred_fallthru
    _
  // Predicated region
  $region26: #{forward.1} parent=0 // pred_check
    _
  $region27: #{forward.1} parent=0 // pred_check_branch
    %32 = sbr.rel (0) target = $region29
  $region28: #{forward.1} parent=0 // pred_region
    _
  $region29: #{forward.1} parent=0 // pred_fallthru
    _
  // Predicated region
  $region30: #{forward.1} parent=0 // pred_check
    _
  $region31: #{forward.1} parent=0 // pred_check_branch
    %34 = sbr.rel (0) target = $region33
  $region32: #{forward.1} parent=0 // pred_region
    _
  $region33: #{forward.1} parent=0 // pred_fallthru
    _
  // Predicated region
  $region34: #{forward.1} parent=0 // pred_check
    _
  $region35: #{forward.1} parent=0 // pred_check_branch
    %36 = sbr.rel (0) target = $region37
  $region36: #{forward.1} parent=0 // pred_region
    _
  $region37: #{forward.1} parent=0 // pred_fallthru
    _
  // Predicated region
  $region38: #{forward.1} parent=0 // pred_check
    _
  $region39: #{forward.1} parent=0 // pred_check_branch
    %38 = sbr.rel (0) target = $region41
  $region40: #{forward.1} parent=0 // pred_region
    _
  $region41: #{forward.1} parent=0 // pred_fallthru
    _
  // Predicated region
  $region42: #{forward.1} parent=0 // pred_check
    _
  $region43: #{forward.1} parent=0 // pred_check_branch
    %40 = sbr.rel (0) target = $region45
  $region44: #{forward.1} parent=0 // pred_region
    _
  $region45: #{forward.1} parent=0 // pred_fallthru
    _
  // Predicated region
  $region46: #{forward.1} parent=0 // pred_check
    _
  $region47: #{forward.1} parent=0 // pred_check_branch
    %42 = sbr.rel (0) target = $region49
  $region48: #{forward.1} parent=0 // pred_region
    _
  $region49: #{forward.1} parent=0 // pred_fallthru
    _
  // Predicated region
  $region50: #{forward.1} parent=0 // pred_check
    _
  $region51: #{forward.1} parent=0 // pred_check_branch
    %44 = sbr.rel (0) target = $region53
  $region52: #{forward.1} parent=0 // pred_region
    _
  $region53: #{forward.1} parent=0 // pred_fallthru
    _
  // Predicated region
  $region54: #{forward.1} parent=0 // pred_check
    _
  $region55: #{forward.1} parent=0 // pred_check_branch
    %46 = sbr.rel (0) target = $region57
  $region56: #{forward.1} parent=0 // pred_region
    _
  $region57: #{forward.1} parent=0 // pred_fallthru
    _
  %v48 = vld [vmem:[%s0] sm:$0xf]
  %v49 = vld [vmem:[%s0 + $0x4] sm:$0xf]
  %v50 = vld [vmem:[%s0 + $0x8] sm:$0xf]
  %v51 = vld [vmem:[%s0 + $0xc] sm:$0xf]
  %v52 = vld [vmem:[%s0 + $0x10] sm:$0xf]
  %v53 = vld [vmem:[%s0 + $0x14] sm:$0xf]
  %v54 = vld [vmem:[%s0 + $0x18] sm:$0xf]
  %v55 = vld [vmem:[%s0 + $0x1c] sm:$0xf]
  %v56 = vld [vmem:[%s0 + $0x20] sm:$0xf]
  %v57 = vld [vmem:[%s0 + $0x24] sm:$0xf]
  %v58 = vld [vmem:[%s0 + $0x28] sm:$0xf]
  %v59 = vld [vmem:[%s0 + $0x2c] sm:$0xf]
  %v60 = vld [vmem:[%s0 + $0x30] sm:$0xf]
  %v61 = vld [vmem:[%s0 + $0x34] sm:$0xf]
  %v62 = vld [vmem:[%s0 + $0x38] sm:$0xf]
  %v63 = vld [vmem:[%s0 + $0x3c] sm:$0xf]
  %v64 = vld [vmem:[%s0 + $0x40] sm:$0xf]
  %v65 = vld [vmem:[%s0 + $0x44] sm:$0xf]
  %v66 = vld [vmem:[%s0 + $0x48] sm:$0xf]
  %v67 = vld [vmem:[%s0 + $0x4c] sm:$0xf]
  %v68 = vld [vmem:[%s0 + $0x50] sm:$0xf]
  %v69 = vld [vmem:[%s0 + $0x54] sm:$0xf]
  %v70 = vld [vmem:[%s0 + $0x58] sm:$0xf]
  %v71 = vld [vmem:[%s0 + $0x5c] sm:$0xf]
  %v72 = vld [vmem:[%s0 + $0x60] sm:$0xf]
  %v73 = vld [vmem:[%s0 + $0x64] sm:$0xf]
  %v74 = vld [vmem:[%s0 + $0x68] sm:$0xf]
  %v75 = vld [vmem:[%s0 + $0x6c] sm:$0xf]
  %v76 = vld [vmem:[%s0 + $0x70] sm:$0xf]
  %v77 = vld [vmem:[%s0 + $0x74] sm:$0xf]
  %v78 = vld [vmem:[%s0 + $0x78] sm:$0xf]
  %v79 = vld [vmem:[%s0 + $0x7c] sm:$0xf]
  %v80 = vld [vmem:[%s1] sm:$0xf]
  %v81 = vld [vmem:[%s1 + $0x4] sm:$0xf]
  %v82 = vld [vmem:[%s1 + $0x8] sm:$0xf]
  %v83 = vld [vmem:[%s1 + $0xc] sm:$0xf]
  %v84 = vld [vmem:[%s1 + $0x10] sm:$0xf]
  %v85 = vld [vmem:[%s1 + $0x14] sm:$0xf]
  %v86 = vld [vmem:[%s1 + $0x18] sm:$0xf]
  %v87 = vld [vmem:[%s1 + $0x1c] sm:$0xf]
  %v88 = vld [vmem:[%s1 + $0x20] sm:$0xf]
  %v89 = vld [vmem:[%s1 + $0x24] sm:$0xf]
  %v90 = vld [vmem:[%s1 + $0x28] sm:$0xf]
  %v91 = vld [vmem:[%s1 + $0x2c] sm:$0xf]
  %v92 = vld [vmem:[%s1 + $0x30] sm:$0xf]
  %v93 = vld [vmem:[%s1 + $0x34] sm:$0xf]
  %v94 = vld [vmem:[%s1 + $0x38] sm:$0xf]
  %v95 = vld [vmem:[%s1 + $0x3c] sm:$0xf]
  %v96 = vld [vmem:[%s1 + $0x40] sm:$0xf]
  %v97 = vld [vmem:[%s1 + $0x44] sm:$0xf]
  %v98 = vld [vmem:[%s1 + $0x48] sm:$0xf]
  %v99 = vld [vmem:[%s1 + $0x4c] sm:$0xf]
  %v100 = vld [vmem:[%s1 + $0x50] sm:$0xf]
  %v101 = vld [vmem:[%s1 + $0x54] sm:$0xf]
  %v102 = vld [vmem:[%s1 + $0x58] sm:$0xf]
  %v103 = vld [vmem:[%s1 + $0x5c] sm:$0xf]
  %v104 = vld [vmem:[%s1 + $0x60] sm:$0xf]
  %v105 = vld [vmem:[%s1 + $0x64] sm:$0xf]
  %v106 = vld [vmem:[%s1 + $0x68] sm:$0xf]
  %v107 = vld [vmem:[%s1 + $0x6c] sm:$0xf]
  %v108 = vld [vmem:[%s1 + $0x70] sm:$0xf]
  %v109 = vld [vmem:[%s1 + $0x74] sm:$0xf]
  %v110 = vld [vmem:[%s1 + $0x78] sm:$0xf]
  %v111 = vld [vmem:[%s1 + $0x7c] sm:$0xf]
  %v112 = vmul.bf16 %v48, %v80
  %v113 = vmul.bf16 %v49, %v81
  %v114 = vmul.bf16 %v50, %v82
  %v115 = vmul.bf16 %v51, %v83
  %v116 = vmul.bf16 %v52, %v84
  %v117 = vmul.bf16 %v53, %v85
  %v118 = vmul.bf16 %v54, %v86
  %v119 = vmul.bf16 %v55, %v87
  %v120 = vmul.bf16 %v56, %v88
  %v121 = vmul.bf16 %v57, %v89
  %v122 = vmul.bf16 %v58, %v90
  %v123 = vmul.bf16 %v59, %v91
  %v124 = vmul.bf16 %v60, %v92
  %v125 = vmul.bf16 %v61, %v93
  %v126 = vmul.bf16 %v62, %v94
  %v127 = vmul.bf16 %v63, %v95
  %v128 = vmul.bf16 %v64, %v96
  %v129 = vmul.bf16 %v65, %v97
  %v130 = vmul.bf16 %v66, %v98
  %v131 = vmul.bf16 %v67, %v99
  %v132 = vmul.bf16 %v68, %v100
  %v133 = vmul.bf16 %v69, %v101
  %v134 = vmul.bf16 %v70, %v102
  %v135 = vmul.bf16 %v71, %v103
  %v136 = vmul.bf16 %v72, %v104
  %v137 = vmul.bf16 %v73, %v105
  %v138 = vmul.bf16 %v74, %v106
  %v139 = vmul.bf16 %v75, %v107
  %v140 = vmul.bf16 %v76, %v108
  %v141 = vmul.bf16 %v77, %v109
  %v142 = vmul.bf16 %v78, %v110
  %v143 = vmul.bf16 %v79, %v111
  %s144 = scalar_lea.vmem %s0, 128
  %v145 = vld [vmem:[%s144] sm:$0xf]
  %v146 = vld [vmem:[%s144 + $0x4] sm:$0xf]
  %v147 = vld [vmem:[%s144 + $0x8] sm:$0xf]
  %v148 = vld [vmem:[%s144 + $0xc] sm:$0xf]
  %v149 = vld [vmem:[%s144 + $0x10] sm:$0xf]
  %v150 = vld [vmem:[%s144 + $0x14] sm:$0xf]
  %v151 = vld [vmem:[%s144 + $0x18] sm:$0xf]
  %v152 = vld [vmem:[%s144 + $0x1c] sm:$0xf]
  %v153 = vld [vmem:[%s144 + $0x20] sm:$0xf]
  %v154 = vld [vmem:[%s144 + $0x24] sm:$0xf]
  %v155 = vld [vmem:[%s144 + $0x28] sm:$0xf]
  %v156 = vld [vmem:[%s144 + $0x2c] sm:$0xf]
  %v157 = vld [vmem:[%s144 + $0x30] sm:$0xf]
  %v158 = vld [vmem:[%s144 + $0x34] sm:$0xf]
  %v159 = vld [vmem:[%s144 + $0x38] sm:$0xf]
  %v160 = vld [vmem:[%s144 + $0x3c] sm:$0xf]
  %v161 = vld [vmem:[%s144 + $0x40] sm:$0xf]
  %v162 = vld [vmem:[%s144 + $0x44] sm:$0xf]
  %v163 = vld [vmem:[%s144 + $0x48] sm:$0xf]
  %v164 = vld [vmem:[%s144 + $0x4c] sm:$0xf]
  %v165 = vld [vmem:[%s144 + $0x50] sm:$0xf]
  %v166 = vld [vmem:[%s144 + $0x54] sm:$0xf]
  %v167 = vld [vmem:[%s144 + $0x58] sm:$0xf]
  %v168 = vld [vmem:[%s144 + $0x5c] sm:$0xf]
  %v169 = vld [vmem:[%s144 + $0x60] sm:$0xf]
  %v170 = vld [vmem:[%s144 + $0x64] sm:$0xf]
  %v171 = vld [vmem:[%s144 + $0x68] sm:$0xf]
  %v172 = vld [vmem:[%s144 + $0x6c] sm:$0xf]
  %v173 = vld [vmem:[%s144 + $0x70] sm:$0xf]
  %v174 = vld [vmem:[%s144 + $0x74] sm:$0xf]
  %v175 = vld [vmem:[%s144 + $0x78] sm:$0xf]
  %v176 = vld [vmem:[%s144 + $0x7c] sm:$0xf]
  %s177 = scalar_lea.vmem %s1, 128
  %v178 = vld [vmem:[%s177] sm:$0xf]
  %v179 = vld [vmem:[%s177 + $0x4] sm:$0xf]
  %v180 = vld [vmem:[%s177 + $0x8] sm:$0xf]
  %v181 = vld [vmem:[%s177 + $0xc] sm:$0xf]
  %v182 = vld [vmem:[%s177 + $0x10] sm:$0xf]
  %v183 = vld [vmem:[%s177 + $0x14] sm:$0xf]
  %v184 = vld [vmem:[%s177 + $0x18] sm:$0xf]
  %v185 = vld [vmem:[%s177 + $0x1c] sm:$0xf]
  %v186 = vld [vmem:[%s177 + $0x20] sm:$0xf]
  %v187 = vld [vmem:[%s177 + $0x24] sm:$0xf]
  %v188 = vld [vmem:[%s177 + $0x28] sm:$0xf]
  %v189 = vld [vmem:[%s177 + $0x2c] sm:$0xf]
  %v190 = vld [vmem:[%s177 + $0x30] sm:$0xf]
  %v191 = vld [vmem:[%s177 + $0x34] sm:$0xf]
  %v192 = vld [vmem:[%s177 + $0x38] sm:$0xf]
  %v193 = vld [vmem:[%s177 + $0x3c] sm:$0xf]
  %v194 = vld [vmem:[%s177 + $0x40] sm:$0xf]
  %v195 = vld [vmem:[%s177 + $0x44] sm:$0xf]
  %v196 = vld [vmem:[%s177 + $0x48] sm:$0xf]
  %v197 = vld [vmem:[%s177 + $0x4c] sm:$0xf]
  %v198 = vld [vmem:[%s177 + $0x50] sm:$0xf]
  %v199 = vld [vmem:[%s177 + $0x54] sm:$0xf]
  %v200 = vld [vmem:[%s177 + $0x58] sm:$0xf]
  %v201 = vld [vmem:[%s177 + $0x5c] sm:$0xf]
  %v202 = vld [vmem:[%s177 + $0x60] sm:$0xf]
  %v203 = vld [vmem:[%s177 + $0x64] sm:$0xf]
  %v204 = vld [vmem:[%s177 + $0x68] sm:$0xf]
  %v205 = vld [vmem:[%s177 + $0x6c] sm:$0xf]
  %v206 = vld [vmem:[%s177 + $0x70] sm:$0xf]
  %v207 = vld [vmem:[%s177 + $0x74] sm:$0xf]
  %v208 = vld [vmem:[%s177 + $0x78] sm:$0xf]
  %v209 = vld [vmem:[%s177 + $0x7c] sm:$0xf]
  %v210 = vmul.bf16 %v145, %v178
  %v211 = vmul.bf16 %v146, %v179
  %v212 = vmul.bf16 %v147, %v180
  %v213 = vmul.bf16 %v148, %v181
  %v214 = vmul.bf16 %v149, %v182
  %v215 = vmul.bf16 %v150, %v183
  %v216 = vmul.bf16 %v151, %v184
  %v217 = vmul.bf16 %v152, %v185
  %v218 = vmul.bf16 %v153, %v186
  %v219 = vmul.bf16 %v154, %v187
  %v220 = vmul.bf16 %v155, %v188
  %v221 = vmul.bf16 %v156, %v189
  %v222 = vmul.bf16 %v157, %v190
  %v223 = vmul.bf16 %v158, %v191
  %v224 = vmul.bf16 %v159, %v192
  %v225 = vmul.bf16 %v160, %v193
  %v226 = vmul.bf16 %v161, %v194
  %v227 = vmul.bf16 %v162, %v195
  %v228 = vmul.bf16 %v163, %v196
  %v229 = vmul.bf16 %v164, %v197
  %v230 = vmul.bf16 %v165, %v198
  %v231 = vmul.bf16 %v166, %v199
  %v232 = vmul.bf16 %v167, %v200
  %v233 = vmul.bf16 %v168, %v201
  %v234 = vmul.bf16 %v169, %v202
  %v235 = vmul.bf16 %v170, %v203
  %v236 = vmul.bf16 %v171, %v204
  %v237 = vmul.bf16 %v172, %v205
  %v238 = vmul.bf16 %v173, %v206
  %v239 = vmul.bf16 %v174, %v207
  %v240 = vmul.bf16 %v175, %v208
  %v241 = vmul.bf16 %v176, %v209
  %v242 = vld [vmem:[%s2] sm:$0xff]
  %v243 = vld [vmem:[%s2 + $0x8] sm:$0xff]
  %v244 = vld [vmem:[%s2 + $0x10] sm:$0xff]
  %v245 = vld [vmem:[%s2 + $0x18] sm:$0xff]
  %v246 = vld [vmem:[%s2 + $0x20] sm:$0xff]
  %v247 = vld [vmem:[%s2 + $0x28] sm:$0xff]
  %v248 = vld [vmem:[%s2 + $0x30] sm:$0xff]
  %v249 = vld [vmem:[%s2 + $0x38] sm:$0xff]
  %v250 = vld [vmem:[%s2 + $0x40] sm:$0xff]
  %v251 = vld [vmem:[%s2 + $0x48] sm:$0xff]
  %v252 = vld [vmem:[%s2 + $0x50] sm:$0xff]
  %v253 = vld [vmem:[%s2 + $0x58] sm:$0xff]
  %v254 = vld [vmem:[%s2 + $0x60] sm:$0xff]
  %v255 = vld [vmem:[%s2 + $0x68] sm:$0xff]
  %v256 = vld [vmem:[%s2 + $0x70] sm:$0xff]
  %v257 = vld [vmem:[%s2 + $0x78] sm:$0xff]
  %v258 = vld [vmem:[%s2 + $0x80] sm:$0xff]
  %v259 = vld [vmem:[%s2 + $0x88] sm:$0xff]
  %v260 = vld [vmem:[%s2 + $0x90] sm:$0xff]
  %v261 = vld [vmem:[%s2 + $0x98] sm:$0xff]
  %v262 = vld [vmem:[%s2 + $0xa0] sm:$0xff]
  %v263 = vld [vmem:[%s2 + $0xa8] sm:$0xff]
  %v264 = vld [vmem:[%s2 + $0xb0] sm:$0xff]
  %v265 = vld [vmem:[%s2 + $0xb8] sm:$0xff]
  %v266 = vld [vmem:[%s2 + $0xc0] sm:$0xff]
  %v267 = vld [vmem:[%s2 + $0xc8] sm:$0xff]
  %v268 = vld [vmem:[%s2 + $0xd0] sm:$0xff]
  %v269 = vld [vmem:[%s2 + $0xd8] sm:$0xff]
  %v270 = vld [vmem:[%s2 + $0xe0] sm:$0xff]
  %v271 = vld [vmem:[%s2 + $0xe8] sm:$0xff]
  %v272 = vld [vmem:[%s2 + $0xf0] sm:$0xff]
  %v273 = vld [vmem:[%s2 + $0xf8] sm:$0xff]
  %v274 = vld [vmem:[%s2 + $0x100] sm:$0xff]
  %v275 = vld [vmem:[%s2 + $0x108] sm:$0xff]
  %v276 = vld [vmem:[%s2 + $0x110] sm:$0xff]
  %v277 = vld [vmem:[%s2 + $0x118] sm:$0xff]
  %v278 = vld [vmem:[%s2 + $0x120] sm:$0xff]
  %v279 = vld [vmem:[%s2 + $0x128] sm:$0xff]
  %v280 = vld [vmem:[%s2 + $0x130] sm:$0xff]
  %v281 = vld [vmem:[%s2 + $0x138] sm:$0xff]
  %v282 = vld [vmem:[%s2 + $0x140] sm:$0xff]
  %v283 = vld [vmem:[%s2 + $0x148] sm:$0xff]
  %v284 = vld [vmem:[%s2 + $0x150] sm:$0xff]
  %v285 = vld [vmem:[%s2 + $0x158] sm:$0xff]
  %v286 = vld [vmem:[%s2 + $0x160] sm:$0xff]
  %v287 = vld [vmem:[%s2 + $0x168] sm:$0xff]
  %v288 = vld [vmem:[%s2 + $0x170] sm:$0xff]
  %v289 = vld [vmem:[%s2 + $0x178] sm:$0xff]
  %v290 = vld [vmem:[%s2 + $0x180] sm:$0xff]
  %v291 = vld [vmem:[%s2 + $0x188] sm:$0xff]
  %v292 = vld [vmem:[%s2 + $0x190] sm:$0xff]
  %v293 = vld [vmem:[%s2 + $0x198] sm:$0xff]
  %v294 = vld [vmem:[%s2 + $0x1a0] sm:$0xff]
  %v295 = vld [vmem:[%s2 + $0x1a8] sm:$0xff]
  %v296 = vld [vmem:[%s2 + $0x1b0] sm:$0xff]
  %v297 = vld [vmem:[%s2 + $0x1b8] sm:$0xff]
  %v298 = vld [vmem:[%s2 + $0x1c0] sm:$0xff]
  %v299 = vld [vmem:[%s2 + $0x1c8] sm:$0xff]
  %v300 = vld [vmem:[%s2 + $0x1d0] sm:$0xff]
  %v301 = vld [vmem:[%s2 + $0x1d8] sm:$0xff]
  %v302 = vld [vmem:[%s2 + $0x1e0] sm:$0xff]
  %v303 = vld [vmem:[%s2 + $0x1e8] sm:$0xff]
  %v304 = vld [vmem:[%s2 + $0x1f0] sm:$0xff]
  %v305 = vld [vmem:[%s2 + $0x1f8] sm:$0xff]
  %v306 = vld [vmem:[%s2 + $0x200] sm:$0xff]
  %v307 = vld [vmem:[%s2 + $0x208] sm:$0xff]
  %v308 = vld [vmem:[%s2 + $0x210] sm:$0xff]
  %v309 = vld [vmem:[%s2 + $0x218] sm:$0xff]
  %v310 = vld [vmem:[%s2 + $0x220] sm:$0xff]
  %v311 = vld [vmem:[%s2 + $0x228] sm:$0xff]
  %v312 = vld [vmem:[%s2 + $0x230] sm:$0xff]
  %v313 = vld [vmem:[%s2 + $0x238] sm:$0xff]
  %v314 = vld [vmem:[%s2 + $0x240] sm:$0xff]
  %v315 = vld [vmem:[%s2 + $0x248] sm:$0xff]
  %v316 = vld [vmem:[%s2 + $0x250] sm:$0xff]
  %v317 = vld [vmem:[%s2 + $0x258] sm:$0xff]
  %v318 = vld [vmem:[%s2 + $0x260] sm:$0xff]
  %v319 = vld [vmem:[%s2 + $0x268] sm:$0xff]
  %v320 = vld [vmem:[%s2 + $0x270] sm:$0xff]
  %v321 = vld [vmem:[%s2 + $0x278] sm:$0xff]
  %v322 = vld [vmem:[%s2 + $0x280] sm:$0xff]
  %v323 = vld [vmem:[%s2 + $0x288] sm:$0xff]
  %v324 = vld [vmem:[%s2 + $0x290] sm:$0xff]
  %v325 = vld [vmem:[%s2 + $0x298] sm:$0xff]
  %v326 = vld [vmem:[%s2 + $0x2a0] sm:$0xff]
  %v327 = vld [vmem:[%s2 + $0x2a8] sm:$0xff]
  %v328 = vld [vmem:[%s2 + $0x2b0] sm:$0xff]
  %v329 = vld [vmem:[%s2 + $0x2b8] sm:$0xff]
  %v330 = vld [vmem:[%s2 + $0x2c0] sm:$0xff]
  %v331 = vld [vmem:[%s2 + $0x2c8] sm:$0xff]
  %v332 = vld [vmem:[%s2 + $0x2d0] sm:$0xff]
  %v333 = vld [vmem:[%s2 + $0x2d8] sm:$0xff]
  %v334 = vld [vmem:[%s2 + $0x2e0] sm:$0xff]
  %v335 = vld [vmem:[%s2 + $0x2e8] sm:$0xff]
  %v336 = vld [vmem:[%s2 + $0x2f0] sm:$0xff]
  %v337 = vld [vmem:[%s2 + $0x2f8] sm:$0xff]
  %v338 = vld [vmem:[%s2 + $0x300] sm:$0xff]
  %v339 = vld [vmem:[%s2 + $0x308] sm:$0xff]
  %v340 = vld [vmem:[%s2 + $0x310] sm:$0xff]
  %v341 = vld [vmem:[%s2 + $0x318] sm:$0xff]
  %v342 = vld [vmem:[%s2 + $0x320] sm:$0xff]
  %v343 = vld [vmem:[%s2 + $0x328] sm:$0xff]
  %v344 = vld [vmem:[%s2 + $0x330] sm:$0xff]
  %v345 = vld [vmem:[%s2 + $0x338] sm:$0xff]
  %v346 = vld [vmem:[%s2 + $0x340] sm:$0xff]
  %v347 = vld [vmem:[%s2 + $0x348] sm:$0xff]
  %v348 = vld [vmem:[%s2 + $0x350] sm:$0xff]
  %v349 = vld [vmem:[%s2 + $0x358] sm:$0xff]
  %v350 = vld [vmem:[%s2 + $0x360] sm:$0xff]
  %v351 = vld [vmem:[%s2 + $0x368] sm:$0xff]
  %v352 = vld [vmem:[%s2 + $0x370] sm:$0xff]
  %v353 = vld [vmem:[%s2 + $0x378] sm:$0xff]
  %v354 = vld [vmem:[%s2 + $0x380] sm:$0xff]
  %v355 = vld [vmem:[%s2 + $0x388] sm:$0xff]
  %v356 = vld [vmem:[%s2 + $0x390] sm:$0xff]
  %v357 = vld [vmem:[%s2 + $0x398] sm:$0xff]
  %v358 = vld [vmem:[%s2 + $0x3a0] sm:$0xff]
  %v359 = vld [vmem:[%s2 + $0x3a8] sm:$0xff]
  %v360 = vld [vmem:[%s2 + $0x3b0] sm:$0xff]
  %v361 = vld [vmem:[%s2 + $0x3b8] sm:$0xff]
  %v362 = vld [vmem:[%s2 + $0x3c0] sm:$0xff]
  %v363 = vld [vmem:[%s2 + $0x3c8] sm:$0xff]
  %v364 = vld [vmem:[%s2 + $0x3d0] sm:$0xff]
  %v365 = vld [vmem:[%s2 + $0x3d8] sm:$0xff]
  %v366 = vld [vmem:[%s2 + $0x3e0] sm:$0xff]
  %v367 = vld [vmem:[%s2 + $0x3e8] sm:$0xff]
  %v368 = vld [vmem:[%s2 + $0x3f0] sm:$0xff]
  %v369 = vld [vmem:[%s2 + $0x3f8] sm:$0xff]
  %v370 = vld [vmem:[%s3] sm:$0xf]
  %v371 = vld [vmem:[%s3 + $0x4] sm:$0xf]
  %v372 = vld [vmem:[%s3 + $0x8] sm:$0xf]
  %v373 = vld [vmem:[%s3 + $0xc] sm:$0xf]
  %v374 = vld [vmem:[%s3 + $0x10] sm:$0xf]
  %v375 = vld [vmem:[%s3 + $0x14] sm:$0xf]
  %v376 = vld [vmem:[%s3 + $0x18] sm:$0xf]
  %v377 = vld [vmem:[%s3 + $0x1c] sm:$0xf]
  %v506 = vunpack.c.l.b16 %v242
  %v507 = vunpack.c.h.b16 %v242
  %v508 = vunpack.c.l.b16 %v243
  %v509 = vunpack.c.h.b16 %v243
  %v510 = vunpack.c.l.b16 %v244
  %v511 = vunpack.c.h.b16 %v244
  %v512 = vunpack.c.l.b16 %v245
  %v513 = vunpack.c.h.b16 %v245
  %v514 = vunpack.c.l.b16 %v246
  %v515 = vunpack.c.h.b16 %v246
  %v516 = vunpack.c.l.b16 %v247
  %v517 = vunpack.c.h.b16 %v247
  %v518 = vunpack.c.l.b16 %v248
  %v519 = vunpack.c.h.b16 %v248
  %v520 = vunpack.c.l.b16 %v249
  %v521 = vunpack.c.h.b16 %v249
  %v522 = vunpack.c.l.b16 %v250
  %v523 = vunpack.c.h.b16 %v250
  %v524 = vunpack.c.l.b16 %v251
  %v525 = vunpack.c.h.b16 %v251
  %v526 = vunpack.c.l.b16 %v252
  %v527 = vunpack.c.h.b16 %v252
  %v528 = vunpack.c.l.b16 %v253
  %v529 = vunpack.c.h.b16 %v253
  %v530 = vunpack.c.l.b16 %v254
  %v531 = vunpack.c.h.b16 %v254
  %v532 = vunpack.c.l.b16 %v255
  %v533 = vunpack.c.h.b16 %v255
  %v534 = vunpack.c.l.b16 %v256
  %v535 = vunpack.c.h.b16 %v256
  %v536 = vunpack.c.l.b16 %v257
  %v537 = vunpack.c.h.b16 %v257
  %v538 = vunpack.c.l.b16 %v258
  %v539 = vunpack.c.h.b16 %v258
  %v540 = vunpack.c.l.b16 %v259
  %v541 = vunpack.c.h.b16 %v259
  %v542 = vunpack.c.l.b16 %v260
  %v543 = vunpack.c.h.b16 %v260
  %v544 = vunpack.c.l.b16 %v261
  %v545 = vunpack.c.h.b16 %v261
  %v546 = vunpack.c.l.b16 %v262
  %v547 = vunpack.c.h.b16 %v262
  %v548 = vunpack.c.l.b16 %v263
  %v549 = vunpack.c.h.b16 %v263
  %v550 = vunpack.c.l.b16 %v264
  %v551 = vunpack.c.h.b16 %v264
  %v552 = vunpack.c.l.b16 %v265
  %v553 = vunpack.c.h.b16 %v265
  %v554 = vunpack.c.l.b16 %v266
  %v555 = vunpack.c.h.b16 %v266
  %v556 = vunpack.c.l.b16 %v267
  %v557 = vunpack.c.h.b16 %v267
  %v558 = vunpack.c.l.b16 %v268
  %v559 = vunpack.c.h.b16 %v268
  %v560 = vunpack.c.l.b16 %v269
  %v561 = vunpack.c.h.b16 %v269
  %v562 = vunpack.c.l.b16 %v270
  %v563 = vunpack.c.h.b16 %v270
  %v564 = vunpack.c.l.b16 %v271
  %v565 = vunpack.c.h.b16 %v271
  %v566 = vunpack.c.l.b16 %v272
  %v567 = vunpack.c.h.b16 %v272
  %v568 = vunpack.c.l.b16 %v273
  %v569 = vunpack.c.h.b16 %v273
  %v570 = vunpack.c.l.b16 %v274
  %v571 = vunpack.c.h.b16 %v274
  %v572 = vunpack.c.l.b16 %v275
  %v573 = vunpack.c.h.b16 %v275
  %v574 = vunpack.c.l.b16 %v276
  %v575 = vunpack.c.h.b16 %v276
  %v576 = vunpack.c.l.b16 %v277
  %v577 = vunpack.c.h.b16 %v277
  %v578 = vunpack.c.l.b16 %v278
  %v579 = vunpack.c.h.b16 %v278
  %v580 = vunpack.c.l.b16 %v279
  %v581 = vunpack.c.h.b16 %v279
  %v582 = vunpack.c.l.b16 %v280
  %v583 = vunpack.c.h.b16 %v280
  %v584 = vunpack.c.l.b16 %v281
  %v585 = vunpack.c.h.b16 %v281
  %v586 = vunpack.c.l.b16 %v282
  %v587 = vunpack.c.h.b16 %v282
  %v588 = vunpack.c.l.b16 %v283
  %v589 = vunpack.c.h.b16 %v283
  %v590 = vunpack.c.l.b16 %v284
  %v591 = vunpack.c.h.b16 %v284
  %v592 = vunpack.c.l.b16 %v285
  %v593 = vunpack.c.h.b16 %v285
  %v594 = vunpack.c.l.b16 %v286
  %v595 = vunpack.c.h.b16 %v286
  %v596 = vunpack.c.l.b16 %v287
  %v597 = vunpack.c.h.b16 %v287
  %v598 = vunpack.c.l.b16 %v288
  %v599 = vunpack.c.h.b16 %v288
  %v600 = vunpack.c.l.b16 %v289
  %v601 = vunpack.c.h.b16 %v289
  %v602 = vunpack.c.l.b16 %v290
  %v603 = vunpack.c.h.b16 %v290
  %v604 = vunpack.c.l.b16 %v291
  %v605 = vunpack.c.h.b16 %v291
  %v606 = vunpack.c.l.b16 %v292
  %v607 = vunpack.c.h.b16 %v292
  %v608 = vunpack.c.l.b16 %v293
  %v609 = vunpack.c.h.b16 %v293
  %v610 = vunpack.c.l.b16 %v294
  %v611 = vunpack.c.h.b16 %v294
  %v612 = vunpack.c.l.b16 %v295
  %v613 = vunpack.c.h.b16 %v295
  %v614 = vunpack.c.l.b16 %v296
  %v615 = vunpack.c.h.b16 %v296
  %v616 = vunpack.c.l.b16 %v297
  %v617 = vunpack.c.h.b16 %v297
  %v618 = vunpack.c.l.b16 %v298
  %v619 = vunpack.c.h.b16 %v298
  %v620 = vunpack.c.l.b16 %v299
  %v621 = vunpack.c.h.b16 %v299
  %v622 = vunpack.c.l.b16 %v300
  %v623 = vunpack.c.h.b16 %v300
  %v624 = vunpack.c.l.b16 %v301
  %v625 = vunpack.c.h.b16 %v301
  %v626 = vunpack.c.l.b16 %v302
  %v627 = vunpack.c.h.b16 %v302
  %v628 = vunpack.c.l.b16 %v303
  %v629 = vunpack.c.h.b16 %v303
  %v630 = vunpack.c.l.b16 %v304
  %v631 = vunpack.c.h.b16 %v304
  %v632 = vunpack.c.l.b16 %v305
  %v633 = vunpack.c.h.b16 %v305
  %v634 = vunpack.c.l.b16 %v306
  %v635 = vunpack.c.h.b16 %v306
  %v636 = vunpack.c.l.b16 %v307
  %v637 = vunpack.c.h.b16 %v307
  %v638 = vunpack.c.l.b16 %v308
  %v639 = vunpack.c.h.b16 %v308
  %v640 = vunpack.c.l.b16 %v309
  %v641 = vunpack.c.h.b16 %v309
  %v642 = vunpack.c.l.b16 %v310
  %v643 = vunpack.c.h.b16 %v310
  %v644 = vunpack.c.l.b16 %v311
  %v645 = vunpack.c.h.b16 %v311
  %v646 = vunpack.c.l.b16 %v312
  %v647 = vunpack.c.h.b16 %v312
  %v648 = vunpack.c.l.b16 %v313
  %v649 = vunpack.c.h.b16 %v313
  %v650 = vunpack.c.l.b16 %v314
  %v651 = vunpack.c.h.b16 %v314
  %v652 = vunpack.c.l.b16 %v315
  %v653 = vunpack.c.h.b16 %v315
  %v654 = vunpack.c.l.b16 %v316
  %v655 = vunpack.c.h.b16 %v316
  %v656 = vunpack.c.l.b16 %v317
  %v657 = vunpack.c.h.b16 %v317
  %v658 = vunpack.c.l.b16 %v318
  %v659 = vunpack.c.h.b16 %v318
  %v660 = vunpack.c.l.b16 %v319
  %v661 = vunpack.c.h.b16 %v319
  %v662 = vunpack.c.l.b16 %v320
  %v663 = vunpack.c.h.b16 %v320
  %v664 = vunpack.c.l.b16 %v321
  %v665 = vunpack.c.h.b16 %v321
  %v666 = vunpack.c.l.b16 %v322
  %v667 = vunpack.c.h.b16 %v322
  %v668 = vunpack.c.l.b16 %v323
  %v669 = vunpack.c.h.b16 %v323
  %v670 = vunpack.c.l.b16 %v324
  %v671 = vunpack.c.h.b16 %v324
  %v672 = vunpack.c.l.b16 %v325
  %v673 = vunpack.c.h.b16 %v325
  %v674 = vunpack.c.l.b16 %v326
  %v675 = vunpack.c.h.b16 %v326
  %v676 = vunpack.c.l.b16 %v327
  %v677 = vunpack.c.h.b16 %v327
  %v678 = vunpack.c.l.b16 %v328
  %v679 = vunpack.c.h.b16 %v328
  %v680 = vunpack.c.l.b16 %v329
  %v681 = vunpack.c.h.b16 %v329
  %v682 = vunpack.c.l.b16 %v330
  %v683 = vunpack.c.h.b16 %v330
  %v684 = vunpack.c.l.b16 %v331
  %v685 = vunpack.c.h.b16 %v331
  %v686 = vunpack.c.l.b16 %v332
  %v687 = vunpack.c.h.b16 %v332
  %v688 = vunpack.c.l.b16 %v333
  %v689 = vunpack.c.h.b16 %v333
  %v690 = vunpack.c.l.b16 %v334
  %v691 = vunpack.c.h.b16 %v334
  %v692 = vunpack.c.l.b16 %v335
  %v693 = vunpack.c.h.b16 %v335
  %v694 = vunpack.c.l.b16 %v336
  %v695 = vunpack.c.h.b16 %v336
  %v696 = vunpack.c.l.b16 %v337
  %v697 = vunpack.c.h.b16 %v337
  %v698 = vunpack.c.l.b16 %v338
  %v699 = vunpack.c.h.b16 %v338
  %v700 = vunpack.c.l.b16 %v339
  %v701 = vunpack.c.h.b16 %v339
  %v702 = vunpack.c.l.b16 %v340
  %v703 = vunpack.c.h.b16 %v340
  %v704 = vunpack.c.l.b16 %v341
  %v705 = vunpack.c.h.b16 %v341
  %v706 = vunpack.c.l.b16 %v342
  %v707 = vunpack.c.h.b16 %v342
  %v708 = vunpack.c.l.b16 %v343
  %v709 = vunpack.c.h.b16 %v343
  %v710 = vunpack.c.l.b16 %v344
  %v711 = vunpack.c.h.b16 %v344
  %v712 = vunpack.c.l.b16 %v345
  %v713 = vunpack.c.h.b16 %v345
  %v714 = vunpack.c.l.b16 %v346
  %v715 = vunpack.c.h.b16 %v346
  %v716 = vunpack.c.l.b16 %v347
  %v717 = vunpack.c.h.b16 %v347
  %v718 = vunpack.c.l.b16 %v348
  %v719 = vunpack.c.h.b16 %v348
  %v720 = vunpack.c.l.b16 %v349
  %v721 = vunpack.c.h.b16 %v349
  %v722 = vunpack.c.l.b16 %v350
  %v723 = vunpack.c.h.b16 %v350
  %v724 = vunpack.c.l.b16 %v351
  %v725 = vunpack.c.h.b16 %v351
  %v726 = vunpack.c.l.b16 %v352
  %v727 = vunpack.c.h.b16 %v352
  %v728 = vunpack.c.l.b16 %v353
  %v729 = vunpack.c.h.b16 %v353
  %v730 = vunpack.c.l.b16 %v354
  %v731 = vunpack.c.h.b16 %v354
  %v732 = vunpack.c.l.b16 %v355
  %v733 = vunpack.c.h.b16 %v355
  %v734 = vunpack.c.l.b16 %v356
  %v735 = vunpack.c.h.b16 %v356
  %v736 = vunpack.c.l.b16 %v357
  %v737 = vunpack.c.h.b16 %v357
  %v738 = vunpack.c.l.b16 %v358
  %v739 = vunpack.c.h.b16 %v358
  %v740 = vunpack.c.l.b16 %v359
  %v741 = vunpack.c.h.b16 %v359
  %v742 = vunpack.c.l.b16 %v360
  %v743 = vunpack.c.h.b16 %v360
  %v744 = vunpack.c.l.b16 %v361
  %v745 = vunpack.c.h.b16 %v361
  %v746 = vunpack.c.l.b16 %v362
  %v747 = vunpack.c.h.b16 %v362
  %v748 = vunpack.c.l.b16 %v363
  %v749 = vunpack.c.h.b16 %v363
  %v750 = vunpack.c.l.b16 %v364
  %v751 = vunpack.c.h.b16 %v364
  %v752 = vunpack.c.l.b16 %v365
  %v753 = vunpack.c.h.b16 %v365
  %v754 = vunpack.c.l.b16 %v366
  %v755 = vunpack.c.h.b16 %v366
  %v756 = vunpack.c.l.b16 %v367
  %v757 = vunpack.c.h.b16 %v367
  %v758 = vunpack.c.l.b16 %v368
  %v759 = vunpack.c.h.b16 %v368
  %v760 = vunpack.c.l.b16 %v369
  %v761 = vunpack.c.h.b16 %v369
  %v762 = vpack.c.b16 %v508, %v506
  %v763 = vpack.c.b16 %v509, %v507
  %v764 = vpack.c.b16 %v512, %v510
  %v765 = vpack.c.b16 %v513, %v511
  %v766 = vpack.c.b16 %v516, %v514
  %v767 = vpack.c.b16 %v517, %v515
  %v768 = vpack.c.b16 %v520, %v518
  %v769 = vpack.c.b16 %v521, %v519
  %v770 = vpack.c.b16 %v524, %v522
  %v771 = vpack.c.b16 %v525, %v523
  %v772 = vpack.c.b16 %v528, %v526
  %v773 = vpack.c.b16 %v529, %v527
  %v774 = vpack.c.b16 %v532, %v530
  %v775 = vpack.c.b16 %v533, %v531
  %v776 = vpack.c.b16 %v536, %v534
  %v777 = vpack.c.b16 %v537, %v535
  %v778 = vpack.c.b16 %v540, %v538
  %v779 = vpack.c.b16 %v541, %v539
  %v780 = vpack.c.b16 %v544, %v542
  %v781 = vpack.c.b16 %v545, %v543
  %v782 = vpack.c.b16 %v548, %v546
  %v783 = vpack.c.b16 %v549, %v547
  %v784 = vpack.c.b16 %v552, %v550
  %v785 = vpack.c.b16 %v553, %v551
  %v786 = vpack.c.b16 %v556, %v554
  %v787 = vpack.c.b16 %v557, %v555
  %v788 = vpack.c.b16 %v560, %v558
  %v789 = vpack.c.b16 %v561, %v559
  %v790 = vpack.c.b16 %v564, %v562
  %v791 = vpack.c.b16 %v565, %v563
  %v792 = vpack.c.b16 %v568, %v566
  %v793 = vpack.c.b16 %v569, %v567
  %v794 = vpack.c.b16 %v572, %v570
  %v795 = vpack.c.b16 %v573, %v571
  %v796 = vpack.c.b16 %v576, %v574
  %v797 = vpack.c.b16 %v577, %v575
  %v798 = vpack.c.b16 %v580, %v578
  %v799 = vpack.c.b16 %v581, %v579
  %v800 = vpack.c.b16 %v584, %v582
  %v801 = vpack.c.b16 %v585, %v583
  %v802 = vpack.c.b16 %v588, %v586
  %v803 = vpack.c.b16 %v589, %v587
  %v804 = vpack.c.b16 %v592, %v590
  %v805 = vpack.c.b16 %v593, %v591
  %v806 = vpack.c.b16 %v596, %v594
  %v807 = vpack.c.b16 %v597, %v595
  %v808 = vpack.c.b16 %v600, %v598
  %v809 = vpack.c.b16 %v601, %v599
  %v810 = vpack.c.b16 %v604, %v602
  %v811 = vpack.c.b16 %v605, %v603
  %v812 = vpack.c.b16 %v608, %v606
  %v813 = vpack.c.b16 %v609, %v607
  %v814 = vpack.c.b16 %v612, %v610
  %v815 = vpack.c.b16 %v613, %v611
  %v816 = vpack.c.b16 %v616, %v614
  %v817 = vpack.c.b16 %v617, %v615
  %v818 = vpack.c.b16 %v620, %v618
  %v819 = vpack.c.b16 %v621, %v619
  %v820 = vpack.c.b16 %v624, %v622
  %v821 = vpack.c.b16 %v625, %v623
  %v822 = vpack.c.b16 %v628, %v626
  %v823 = vpack.c.b16 %v629, %v627
  %v824 = vpack.c.b16 %v632, %v630
  %v825 = vpack.c.b16 %v633, %v631
  %v826 = vpack.c.b16 %v636, %v634
  %v827 = vpack.c.b16 %v637, %v635
  %v828 = vpack.c.b16 %v640, %v638
  %v829 = vpack.c.b16 %v641, %v639
  %v830 = vpack.c.b16 %v644, %v642
  %v831 = vpack.c.b16 %v645, %v643
  %v832 = vpack.c.b16 %v648, %v646
  %v833 = vpack.c.b16 %v649, %v647
  %v834 = vpack.c.b16 %v652, %v650
  %v835 = vpack.c.b16 %v653, %v651
  %v836 = vpack.c.b16 %v656, %v654
  %v837 = vpack.c.b16 %v657, %v655
  %v838 = vpack.c.b16 %v660, %v658
  %v839 = vpack.c.b16 %v661, %v659
  %v840 = vpack.c.b16 %v664, %v662
  %v841 = vpack.c.b16 %v665, %v663
  %v842 = vpack.c.b16 %v668, %v666
  %v843 = vpack.c.b16 %v669, %v667
  %v844 = vpack.c.b16 %v672, %v670
  %v845 = vpack.c.b16 %v673, %v671
  %v846 = vpack.c.b16 %v676, %v674
  %v847 = vpack.c.b16 %v677, %v675
  %v848 = vpack.c.b16 %v680, %v678
  %v849 = vpack.c.b16 %v681, %v679
  %v850 = vpack.c.b16 %v684, %v682
  %v851 = vpack.c.b16 %v685, %v683
  %v852 = vpack.c.b16 %v688, %v686
  %v853 = vpack.c.b16 %v689, %v687
  %v854 = vpack.c.b16 %v692, %v690
  %v855 = vpack.c.b16 %v693, %v691
  %v856 = vpack.c.b16 %v696, %v694
  %v857 = vpack.c.b16 %v697, %v695
  %v858 = vpack.c.b16 %v700, %v698
  %v859 = vpack.c.b16 %v701, %v699
  %v860 = vpack.c.b16 %v704, %v702
  %v861 = vpack.c.b16 %v705, %v703
  %v862 = vpack.c.b16 %v708, %v706
  %v863 = vpack.c.b16 %v709, %v707
  %v864 = vpack.c.b16 %v712, %v710
  %v865 = vpack.c.b16 %v713, %v711
  %v866 = vpack.c.b16 %v716, %v714
  %v867 = vpack.c.b16 %v717, %v715
  %v868 = vpack.c.b16 %v720, %v718
  %v869 = vpack.c.b16 %v721, %v719
  %v870 = vpack.c.b16 %v724, %v722
  %v871 = vpack.c.b16 %v725, %v723
  %v872 = vpack.c.b16 %v728, %v726
  %v873 = vpack.c.b16 %v729, %v727
  %v874 = vpack.c.b16 %v732, %v730
  %v875 = vpack.c.b16 %v733, %v731
  %v876 = vpack.c.b16 %v736, %v734
  %v877 = vpack.c.b16 %v737, %v735
  %v878 = vpack.c.b16 %v740, %v738
  %v879 = vpack.c.b16 %v741, %v739
  %v880 = vpack.c.b16 %v744, %v742
  %v881 = vpack.c.b16 %v745, %v743
  %v882 = vpack.c.b16 %v748, %v746
  %v883 = vpack.c.b16 %v749, %v747
  %v884 = vpack.c.b16 %v752, %v750
  %v885 = vpack.c.b16 %v753, %v751
  %v886 = vpack.c.b16 %v756, %v754
  %v887 = vpack.c.b16 %v757, %v755
  %v888 = vpack.c.b16 %v760, %v758
  %v889 = vpack.c.b16 %v761, %v759
  %v1050 = vunpack.c.l.b16 %v112
  %v1051 = vunpack.c.l.b16 %v113
  %v1052 = vunpack.c.l.b16 %v114
  %v1053 = vunpack.c.l.b16 %v115
  %v1054 = vunpack.c.l.b16 %v116
  %v1055 = vunpack.c.l.b16 %v117
  %v1056 = vunpack.c.l.b16 %v118
  %v1057 = vunpack.c.l.b16 %v119
  %v1058 = vunpack.c.l.b16 %v120
  %v1059 = vunpack.c.l.b16 %v121
  %v1060 = vunpack.c.l.b16 %v122
  %v1061 = vunpack.c.l.b16 %v123
  %v1062 = vunpack.c.l.b16 %v124
  %v1063 = vunpack.c.l.b16 %v125
  %v1064 = vunpack.c.l.b16 %v126
  %v1065 = vunpack.c.l.b16 %v127
  %v1066 = vunpack.c.l.b16 %v128
  %v1067 = vunpack.c.l.b16 %v129
  %v1068 = vunpack.c.l.b16 %v130
  %v1069 = vunpack.c.l.b16 %v131
  %v1070 = vunpack.c.l.b16 %v132
  %v1071 = vunpack.c.l.b16 %v133
  %v1072 = vunpack.c.l.b16 %v134
  %v1073 = vunpack.c.l.b16 %v135
  %v1074 = vunpack.c.l.b16 %v136
  %v1075 = vunpack.c.l.b16 %v137
  %v1076 = vunpack.c.l.b16 %v138
  %v1077 = vunpack.c.l.b16 %v139
  %v1078 = vunpack.c.l.b16 %v140
  %v1079 = vunpack.c.l.b16 %v141
  %v1080 = vunpack.c.l.b16 %v142
  %v1081 = vunpack.c.l.b16 %v143
  %v1082 = vpack.c.b16 %v1051, %v1050
  %v1083 = vpack.c.b16 %v1053, %v1052
  %v1084 = vpack.c.b16 %v1055, %v1054
  %v1085 = vpack.c.b16 %v1057, %v1056
  %v1086 = vpack.c.b16 %v1059, %v1058
  %v1087 = vpack.c.b16 %v1061, %v1060
  %v1088 = vpack.c.b16 %v1063, %v1062
  %v1089 = vpack.c.b16 %v1065, %v1064
  %v1090 = vpack.c.b16 %v1067, %v1066
  %v1091 = vpack.c.b16 %v1069, %v1068
  %v1092 = vpack.c.b16 %v1071, %v1070
  %v1093 = vpack.c.b16 %v1073, %v1072
  %v1094 = vpack.c.b16 %v1075, %v1074
  %v1095 = vpack.c.b16 %v1077, %v1076
  %v1096 = vpack.c.b16 %v1079, %v1078
  %v1097 = vpack.c.b16 %v1081, %v1080
  %1114 = vmatprep.subr.bf16.mxu0 0
  %1115 = vmatpush1.bf16.msra.mxu0 %v1082
  %1116 = vmatprep.subr.bf16.mxu0 0
  %1117 = vmatpush1.bf16.msra.mxu0 %v1083
  %1118 = vmatprep.subr.bf16.mxu0 0
  %1119 = vmatpush1.bf16.msra.mxu0 %v1084
  %1120 = vmatprep.subr.bf16.mxu0 0
  %1121 = vmatpush1.bf16.msra.mxu0 %v1085
  %1122 = vmatprep.subr.bf16.mxu0 0
  %1123 = vmatpush1.bf16.msra.mxu0 %v1086
  %1124 = vmatprep.subr.bf16.mxu0 0
  %1125 = vmatpush1.bf16.msra.mxu0 %v1087
  %1126 = vmatprep.subr.bf16.mxu0 0
  %1127 = vmatpush1.bf16.msra.mxu0 %v1088
  %1128 = vmatprep.subr.bf16.mxu0 0
  %1129 = vmatpush1.bf16.msra.mxu0 %v1089
  %1130 = vmatprep.subr.bf16.mxu0 0
  %1131 = vmatpush1.bf16.msra.mxu0 %v1090
  %1132 = vmatprep.subr.bf16.mxu0 0
  %1133 = vmatpush1.bf16.msra.mxu0 %v1091
  %1134 = vmatprep.subr.bf16.mxu0 0
  %1135 = vmatpush1.bf16.msra.mxu0 %v1092
  %1136 = vmatprep.subr.bf16.mxu0 0
  %1137 = vmatpush1.bf16.msra.mxu0 %v1093
  %1138 = vmatprep.subr.bf16.mxu0 0
  %1139 = vmatpush1.bf16.msra.mxu0 %v1094
  %1140 = vmatprep.subr.bf16.mxu0 0
  %1141 = vmatpush1.bf16.msra.mxu0 %v1095
  %1142 = vmatprep.subr.bf16.mxu0 0
  %1143 = vmatpush1.bf16.msra.mxu0 %v1096
  %1144 = vmatprep.subr.bf16.mxu0 0
  %1145 = vmatpush1.bf16.msra.mxu0 %v1097
  %1146 = vmatprep.mubr.bf16.mxu0 %v763
  %1147 = vmatmul.mubr.bf16.gmra.mrb[0].mxu0 %v762
  %v1148 = vpop.f32.mrb[0].mxu0
  %v1149 = vadd.f32 0.0, %v1148
  %v1150 = vpop.f32.mrb[0].mxu0
  %v1151 = vpop.f32.mrb[0].mxu0
  %v1152 = vadd.f32 0.0, %v1151
  %v1153 = vpop.f32.mrb[0].mxu0
  %1154 = vmatprep.mubr.bf16.mxu0 %v765
  %1155 = vmatmul.mubr.bf16.gmra.mrb[0].mxu0 %v764
  %v1156 = vpop.f32.mrb[0].mxu0
  %v1157 = vadd.f32 0.0, %v1156
  %v1158 = vpop.f32.mrb[0].mxu0
  %v1159 = vpop.f32.mrb[0].mxu0
  %v1160 = vadd.f32 0.0, %v1159
  %v1161 = vpop.f32.mrb[0].mxu0
  %1162 = vmatprep.mubr.bf16.mxu0 %v767
  %1163 = vmatmul.mubr.bf16.gmra.mrb[0].mxu0 %v766
  %v1164 = vpop.f32.mrb[0].mxu0
  %v1165 = vadd.f32 0.0, %v1164
  %v1166 = vpop.f32.mrb[0].mxu0
  %v1167 = vpop.f32.mrb[0].mxu0
  %v1168 = vadd.f32 0.0, %v1167
  %v1169 = vpop.f32.mrb[0].mxu0
  %1170 = vmatprep.mubr.bf16.mxu0 %v769
  %1171 = vmatmul.mubr.bf16.gmra.mrb[0].mxu0 %v768
  %v1172 = vpop.f32.mrb[0].mxu0
  %v1173 = vadd.f32 0.0, %v1172
  %v1174 = vpop.f32.mrb[0].mxu0
  %v1175 = vpop.f32.mrb[0].mxu0
  %v1176 = vadd.f32 0.0, %v1175
  %v1177 = vpop.f32.mrb[0].mxu0
  %1178 = vmatprep.mubr.bf16.mxu0 %v771
  %1179 = vmatmul.mubr.bf16.gmra.mrb[0].mxu0 %v770
  %v1180 = vpop.f32.mrb[0].mxu0
  %v1181 = vadd.f32 0.0, %v1180
  %v1182 = vpop.f32.mrb[0].mxu0
  %v1183 = vpop.f32.mrb[0].mxu0
  %v1184 = vadd.f32 0.0, %v1183
  %v1185 = vpop.f32.mrb[0].mxu0
  %1186 = vmatprep.mubr.bf16.mxu0 %v773
  %1187 = vmatmul.mubr.bf16.gmra.mrb[0].mxu0 %v772
  %v1188 = vpop.f32.mrb[0].mxu0
  %v1189 = vadd.f32 0.0, %v1188
  %v1190 = vpop.f32.mrb[0].mxu0
  %v1191 = vpop.f32.mrb[0].mxu0
  %v1192 = vadd.f32 0.0, %v1191
  %v1193 = vpop.f32.mrb[0].mxu0
  %1194 = vmatprep.mubr.bf16.mxu0 %v775
  %1195 = vmatmul.mubr.bf16.gmra.mrb[0].mxu0 %v774
  %v1196 = vpop.f32.mrb[0].mxu0
  %v1197 = vadd.f32 0.0, %v1196
  %v1198 = vpop.f32.mrb[0].mxu0
  %v1199 = vpop.f32.mrb[0].mxu0
  %v1200 = vadd.f32 0.0, %v1199
  %v1201 = vpop.f32.mrb[0].mxu0
  %1202 = vmatprep.mubr.bf16.mxu0 %v777
  %1203 = vmatmul.mubr.bf16.gmra.mrb[0].mxu0 %v776
  %v1204 = vpop.f32.mrb[0].mxu0
  %v1205 = vadd.f32 0.0, %v1204
  %v1206 = vpop.f32.mrb[0].mxu0
  %v1207 = vpop.f32.mrb[0].mxu0
  %v1208 = vadd.f32 0.0, %v1207
  %v1209 = vpop.f32.mrb[0].mxu0
  %1210 = vmatprep.mubr.bf16.mxu0 %v779
  %1211 = vmatmul.mubr.bf16.gmra.mrb[0].mxu0 %v778
  %v1212 = vpop.f32.mrb[0].mxu0
  %v1213 = vadd.f32 0.0, %v1212
  %v1214 = vpop.f32.mrb[0].mxu0
  %v1215 = vpop.f32.mrb[0].mxu0
  %v1216 = vadd.f32 0.0, %v1215
  %v1217 = vpop.f32.mrb[0].mxu0
  %1218 = vmatprep.mubr.bf16.mxu0 %v781
  %1219 = vmatmul.mubr.bf16.gmra.mrb[0].mxu0 %v780
  %v1220 = vpop.f32.mrb[0].mxu0
  %v1221 = vadd.f32 0.0, %v1220
  %v1222 = vpop.f32.mrb[0].mxu0
  %v1223 = vpop.f32.mrb[0].mxu0
  %v1224 = vadd.f32 0.0, %v1223
  %v1225 = vpop.f32.mrb[0].mxu0
  %1226 = vmatprep.mubr.bf16.mxu0 %v783
  %1227 = vmatmul.mubr.bf16.gmra.mrb[0].mxu0 %v782
  %v1228 = vpop.f32.mrb[0].mxu0
  %v1229 = vadd.f32 0.0, %v1228
  %v1230 = vpop.f32.mrb[0].mxu0
  %v1231 = vpop.f32.mrb[0].mxu0
  %v1232 = vadd.f32 0.0, %v1231
  %v1233 = vpop.f32.mrb[0].mxu0
  %1234 = vmatprep.mubr.bf16.mxu0 %v785
  %1235 = vmatmul.mubr.bf16.gmra.mrb[0].mxu0 %v784
  %v1236 = vpop.f32.mrb[0].mxu0
  %v1237 = vadd.f32 0.0, %v1236
  %v1238 = vpop.f32.mrb[0].mxu0
  %v1239 = vpop.f32.mrb[0].mxu0
  %v1240 = vadd.f32 0.0, %v1239
  %v1241 = vpop.f32.mrb[0].mxu0
  %1242 = vmatprep.mubr.bf16.mxu0 %v787
  %1243 = vmatmul.mubr.bf16.gmra.mrb[0].mxu0 %v786
  %v1244 = vpop.f32.mrb[0].mxu0
  %v1245 = vadd.f32 0.0, %v1244
  %v1246 = vpop.f32.mrb[0].mxu0
  %v1247 = vpop.f32.mrb[0].mxu0
  %v1248 = vadd.f32 0.0, %v1247
  %v1249 = vpop.f32.mrb[0].mxu0
  %1250 = vmatprep.mubr.bf16.mxu0 %v789
  %1251 = vmatmul.mubr.bf16.gmra.mrb[0].mxu0 %v788
  %v1252 = vpop.f32.mrb[0].mxu0
  %v1253 = vadd.f32 0.0, %v1252
  %v1254 = vpop.f32.mrb[0].mxu0
  %v1255 = vpop.f32.mrb[0].mxu0
  %v1256 = vadd.f32 0.0, %v1255
  %v1257 = vpop.f32.mrb[0].mxu0
  %1258 = vmatprep.mubr.bf16.mxu0 %v791
  %1259 = vmatmul.mubr.bf16.gmra.mrb[0].mxu0 %v790
  %v1260 = vpop.f32.mrb[0].mxu0
  %v1261 = vadd.f32 0.0, %v1260
  %v1262 = vpop.f32.mrb[0].mxu0
  %v1263 = vpop.f32.mrb[0].mxu0
  %v1264 = vadd.f32 0.0, %v1263
  %v1265 = vpop.f32.mrb[0].mxu0
  %1266 = vmatprep.mubr.bf16.mxu0 %v793
  %1267 = vmatmul.mubr.bf16.gmra.mrb[0].mxu0 %v792
  %v1268 = vpop.f32.mrb[0].mxu0
  %v1269 = vadd.f32 0.0, %v1268
  %v1270 = vpop.f32.mrb[0].mxu0
  %v1271 = vpop.f32.mrb[0].mxu0
  %v1272 = vadd.f32 0.0, %v1271
  %v1273 = vpop.f32.mrb[0].mxu0
  %1274 = vmatprep.mubr.bf16.mxu0 %v795
  %1275 = vmatmul.mubr.bf16.gmra.mrb[0].mxu0 %v794
  %v1276 = vpop.f32.mrb[0].mxu0
  %v1277 = vadd.f32 0.0, %v1276
  %v1278 = vpop.f32.mrb[0].mxu0
  %v1279 = vpop.f32.mrb[0].mxu0
  %v1280 = vadd.f32 0.0, %v1279
  %v1281 = vpop.f32.mrb[0].mxu0
  %1282 = vmatprep.mubr.bf16.mxu0 %v797
  %1283 = vmatmul.mubr.bf16.gmra.mrb[0].mxu0 %v796
  %v1284 = vpop.f32.mrb[0].mxu0
  %v1285 = vadd.f32 0.0, %v1284
  %v1286 = vpop.f32.mrb[0].mxu0
  %v1287 = vpop.f32.mrb[0].mxu0
  %v1288 = vadd.f32 0.0, %v1287
  %v1289 = vpop.f32.mrb[0].mxu0
  %1290 = vmatprep.mubr.bf16.mxu0 %v799
  %1291 = vmatmul.mubr.bf16.gmra.mrb[0].mxu0 %v798
  %v1292 = vpop.f32.mrb[0].mxu0
  %v1293 = vadd.f32 0.0, %v1292
  %v1294 = vpop.f32.mrb[0].mxu0
  %v1295 = vpop.f32.mrb[0].mxu0
  %v1296 = vadd.f32 0.0, %v1295
  %v1297 = vpop.f32.mrb[0].mxu0
  %1298 = vmatprep.mubr.bf16.mxu0 %v801
  %1299 = vmatmul.mubr.bf16.gmra.mrb[0].mxu0 %v800
  %v1300 = vpop.f32.mrb[0].mxu0
  %v1301 = vadd.f32 0.0, %v1300
  %v1302 = vpop.f32.mrb[0].mxu0
  %v1303 = vpop.f32.mrb[0].mxu0
  %v1304 = vadd.f32 0.0, %v1303
  %v1305 = vpop.f32.mrb[0].mxu0
  %1306 = vmatprep.mubr.bf16.mxu0 %v803
  %1307 = vmatmul.mubr.bf16.gmra.mrb[0].mxu0 %v802
  %v1308 = vpop.f32.mrb[0].mxu0
  %v1309 = vadd.f32 0.0, %v1308
  %v1310 = vpop.f32.mrb[0].mxu0
  %v1311 = vpop.f32.mrb[0].mxu0
  %v1312 = vadd.f32 0.0, %v1311
  %v1313 = vpop.f32.mrb[0].mxu0
  %1314 = vmatprep.mubr.bf16.mxu0 %v805
  %1315 = vmatmul.mubr.bf16.gmra.mrb[0].mxu0 %v804
  %v1316 = vpop.f32.mrb[0].mxu0
  %v1317 = vadd.f32 0.0, %v1316
  %v1318 = vpop.f32.mrb[0].mxu0
  %v1319 = vpop.f32.mrb[0].mxu0
  %v1320 = vadd.f32 0.0, %v1319
  %v1321 = vpop.f32.mrb[0].mxu0
  %1322 = vmatprep.mubr.bf16.mxu0 %v807
  %1323 = vmatmul.mubr.bf16.gmra.mrb[0].mxu0 %v806
  %v1324 = vpop.f32.mrb[0].mxu0
  %v1325 = vadd.f32 0.0, %v1324
  %v1326 = vpop.f32.mrb[0].mxu0
  %v1327 = vpop.f32.mrb[0].mxu0
  %v1328 = vadd.f32 0.0, %v1327
  %v1329 = vpop.f32.mrb[0].mxu0
  %1330 = vmatprep.mubr.bf16.mxu0 %v809
  %1331 = vmatmul.mubr.bf16.gmra.mrb[0].mxu0 %v808
  %v1332 = vpop.f32.mrb[0].mxu0
  %v1333 = vadd.f32 0.0, %v1332
  %v1334 = vpop.f32.mrb[0].mxu0
  %v1335 = vpop.f32.mrb[0].mxu0
  %v1336 = vadd.f32 0.0, %v1335
  %v1337 = vpop.f32.mrb[0].mxu0
  %1338 = vmatprep.mubr.bf16.mxu0 %v811
  %1339 = vmatmul.mubr.bf16.gmra.mrb[0].mxu0 %v810
  %v1340 = vpop.f32.mrb[0].mxu0
  %v1341 = vadd.f32 0.0, %v1340
  %v1342 = vpop.f32.mrb[0].mxu0
  %v1343 = vpop.f32.mrb[0].mxu0
  %v1344 = vadd.f32 0.0, %v1343
  %v1345 = vpop.f32.mrb[0].mxu0
  %1346 = vmatprep.mubr.bf16.mxu0 %v813
  %1347 = vmatmul.mubr.bf16.gmra.mrb[0].mxu0 %v812
  %v1348 = vpop.f32.mrb[0].mxu0
  %v1349 = vadd.f32 0.0, %v1348
  %v1350 = vpop.f32.mrb[0].mxu0
  %v1351 = vpop.f32.mrb[0].mxu0
  %v1352 = vadd.f32 0.0, %v1351
  %v1353 = vpop.f32.mrb[0].mxu0
  %1354 = vmatprep.mubr.bf16.mxu0 %v815
  %1355 = vmatmul.mubr.bf16.gmra.mrb[0].mxu0 %v814
  %v1356 = vpop.f32.mrb[0].mxu0
  %v1357 = vadd.f32 0.0, %v1356
  %v1358 = vpop.f32.mrb[0].mxu0
  %v1359 = vpop.f32.mrb[0].mxu0
  %v1360 = vadd.f32 0.0, %v1359
  %v1361 = vpop.f32.mrb[0].mxu0
  %1362 = vmatprep.mubr.bf16.mxu0 %v817
  %1363 = vmatmul.mubr.bf16.gmra.mrb[0].mxu0 %v816
  %v1364 = vpop.f32.mrb[0].mxu0
  %v1365 = vadd.f32 0.0, %v1364
  %v1366 = vpop.f32.mrb[0].mxu0
  %v1367 = vpop.f32.mrb[0].mxu0
  %v1368 = vadd.f32 0.0, %v1367
  %v1369 = vpop.f32.mrb[0].mxu0
  %1370 = vmatprep.mubr.bf16.mxu0 %v819
  %1371 = vmatmul.mubr.bf16.gmra.mrb[0].mxu0 %v818
  %v1372 = vpop.f32.mrb[0].mxu0
  %v1373 = vadd.f32 0.0, %v1372
  %v1374 = vpop.f32.mrb[0].mxu0
  %v1375 = vpop.f32.mrb[0].mxu0
  %v1376 = vadd.f32 0.0, %v1375
  %v1377 = vpop.f32.mrb[0].mxu0
  %1378 = vmatprep.mubr.bf16.mxu0 %v821
  %1379 = vmatmul.mubr.bf16.gmra.mrb[0].mxu0 %v820
  %v1380 = vpop.f32.mrb[0].mxu0
  %v1381 = vadd.f32 0.0, %v1380
  %v1382 = vpop.f32.mrb[0].mxu0
  %v1383 = vpop.f32.mrb[0].mxu0
  %v1384 = vadd.f32 0.0, %v1383
  %v1385 = vpop.f32.mrb[0].mxu0
  %1386 = vmatprep.mubr.bf16.mxu0 %v823
  %1387 = vmatmul.mubr.bf16.gmra.mrb[0].mxu0 %v822
  %v1388 = vpop.f32.mrb[0].mxu0
  %v1389 = vadd.f32 0.0, %v1388
  %v1390 = vpop.f32.mrb[0].mxu0
  %v1391 = vpop.f32.mrb[0].mxu0
  %v1392 = vadd.f32 0.0, %v1391
  %v1393 = vpop.f32.mrb[0].mxu0
  %1394 = vmatprep.mubr.bf16.mxu0 %v825
  %1395 = vmatmul.mubr.bf16.gmra.mrb[0].mxu0 %v824
  %v1396 = vpop.f32.mrb[0].mxu0
  %v1397 = vadd.f32 0.0, %v1396
  %v1398 = vpop.f32.mrb[0].mxu0
  %v1399 = vpop.f32.mrb[0].mxu0
  %v1400 = vadd.f32 0.0, %v1399
  %v1401 = vpop.f32.mrb[0].mxu0
  %1402 = vmatprep.mubr.bf16.mxu0 %v827
  %1403 = vmatmul.mubr.bf16.gmra.mrb[0].mxu0 %v826
  %v1404 = vpop.f32.mrb[0].mxu0
  %v1405 = vadd.f32 0.0, %v1404
  %v1406 = vpop.f32.mrb[0].mxu0
  %v1407 = vpop.f32.mrb[0].mxu0
  %v1408 = vadd.f32 0.0, %v1407
  %v1409 = vpop.f32.mrb[0].mxu0
  %1410 = vmatprep.mubr.bf16.mxu0 %v829
  %1411 = vmatmul.mubr.bf16.gmra.mrb[0].mxu0 %v828
  %v1412 = vpop.f32.mrb[0].mxu0
  %v1413 = vadd.f32 0.0, %v1412
  %v1414 = vpop.f32.mrb[0].mxu0
  %v1415 = vpop.f32.mrb[0].mxu0
  %v1416 = vadd.f32 0.0, %v1415
  %v1417 = vpop.f32.mrb[0].mxu0
  %1418 = vmatprep.mubr.bf16.mxu0 %v831
  %1419 = vmatmul.mubr.bf16.gmra.mrb[0].mxu0 %v830
  %v1420 = vpop.f32.mrb[0].mxu0
  %v1421 = vadd.f32 0.0, %v1420
  %v1422 = vpop.f32.mrb[0].mxu0
  %v1423 = vpop.f32.mrb[0].mxu0
  %v1424 = vadd.f32 0.0, %v1423
  %v1425 = vpop.f32.mrb[0].mxu0
  %1426 = vmatprep.mubr.bf16.mxu0 %v833
  %1427 = vmatmul.mubr.bf16.gmra.mrb[0].mxu0 %v832
  %v1428 = vpop.f32.mrb[0].mxu0
  %v1429 = vadd.f32 0.0, %v1428
  %v1430 = vpop.f32.mrb[0].mxu0
  %v1431 = vpop.f32.mrb[0].mxu0
  %v1432 = vadd.f32 0.0, %v1431
  %v1433 = vpop.f32.mrb[0].mxu0
  %1434 = vmatprep.mubr.bf16.mxu0 %v835
  %1435 = vmatmul.mubr.bf16.gmra.mrb[0].mxu0 %v834
  %v1436 = vpop.f32.mrb[0].mxu0
  %v1437 = vadd.f32 0.0, %v1436
  %v1438 = vpop.f32.mrb[0].mxu0
  %v1439 = vpop.f32.mrb[0].mxu0
  %v1440 = vadd.f32 0.0, %v1439
  %v1441 = vpop.f32.mrb[0].mxu0
  %1442 = vmatprep.mubr.bf16.mxu0 %v837
  %1443 = vmatmul.mubr.bf16.gmra.mrb[0].mxu0 %v836
  %v1444 = vpop.f32.mrb[0].mxu0
  %v1445 = vadd.f32 0.0, %v1444
  %v1446 = vpop.f32.mrb[0].mxu0
  %v1447 = vpop.f32.mrb[0].mxu0
  %v1448 = vadd.f32 0.0, %v1447
  %v1449 = vpop.f32.mrb[0].mxu0
  %1450 = vmatprep.mubr.bf16.mxu0 %v839
  %1451 = vmatmul.mubr.bf16.gmra.mrb[0].mxu0 %v838
  %v1452 = vpop.f32.mrb[0].mxu0
  %v1453 = vadd.f32 0.0, %v1452
  %v1454 = vpop.f32.mrb[0].mxu0
  %v1455 = vpop.f32.mrb[0].mxu0
  %v1456 = vadd.f32 0.0, %v1455
  %v1457 = vpop.f32.mrb[0].mxu0
  %1458 = vmatprep.mubr.bf16.mxu0 %v841
  %1459 = vmatmul.mubr.bf16.gmra.mrb[0].mxu0 %v840
  %v1460 = vpop.f32.mrb[0].mxu0
  %v1461 = vadd.f32 0.0, %v1460
  %v1462 = vpop.f32.mrb[0].mxu0
  %v1463 = vpop.f32.mrb[0].mxu0
  %v1464 = vadd.f32 0.0, %v1463
  %v1465 = vpop.f32.mrb[0].mxu0
  %1466 = vmatprep.mubr.bf16.mxu0 %v843
  %1467 = vmatmul.mubr.bf16.gmra.mrb[0].mxu0 %v842
  %v1468 = vpop.f32.mrb[0].mxu0
  %v1469 = vadd.f32 0.0, %v1468
  %v1470 = vpop.f32.mrb[0].mxu0
  %v1471 = vpop.f32.mrb[0].mxu0
  %v1472 = vadd.f32 0.0, %v1471
  %v1473 = vpop.f32.mrb[0].mxu0
  %1474 = vmatprep.mubr.bf16.mxu0 %v845
  %1475 = vmatmul.mubr.bf16.gmra.mrb[0].mxu0 %v844
  %v1476 = vpop.f32.mrb[0].mxu0
  %v1477 = vadd.f32 0.0, %v1476
  %v1478 = vpop.f32.mrb[0].mxu0
  %v1479 = vpop.f32.mrb[0].mxu0
  %v1480 = vadd.f32 0.0, %v1479
  %v1481 = vpop.f32.mrb[0].mxu0
  %1482 = vmatprep.mubr.bf16.mxu0 %v847
  %1483 = vmatmul.mubr.bf16.gmra.mrb[0].mxu0 %v846
  %v1484 = vpop.f32.mrb[0].mxu0
  %v1485 = vadd.f32 0.0, %v1484
  %v1486 = vpop.f32.mrb[0].mxu0
  %v1487 = vpop.f32.mrb[0].mxu0
  %v1488 = vadd.f32 0.0, %v1487
  %v1489 = vpop.f32.mrb[0].mxu0
  %1490 = vmatprep.mubr.bf16.mxu0 %v849
  %1491 = vmatmul.mubr.bf16.gmra.mrb[0].mxu0 %v848
  %v1492 = vpop.f32.mrb[0].mxu0
  %v1493 = vadd.f32 0.0, %v1492
  %v1494 = vpop.f32.mrb[0].mxu0
  %v1495 = vpop.f32.mrb[0].mxu0
  %v1496 = vadd.f32 0.0, %v1495
  %v1497 = vpop.f32.mrb[0].mxu0
  %1498 = vmatprep.mubr.bf16.mxu0 %v851
  %1499 = vmatmul.mubr.bf16.gmra.mrb[0].mxu0 %v850
  %v1500 = vpop.f32.mrb[0].mxu0
  %v1501 = vadd.f32 0.0, %v1500
  %v1502 = vpop.f32.mrb[0].mxu0
  %v1503 = vpop.f32.mrb[0].mxu0
  %v1504 = vadd.f32 0.0, %v1503
  %v1505 = vpop.f32.mrb[0].mxu0
  %1506 = vmatprep.mubr.bf16.mxu0 %v853
  %1507 = vmatmul.mubr.bf16.gmra.mrb[0].mxu0 %v852
  %v1508 = vpop.f32.mrb[0].mxu0
  %v1509 = vadd.f32 0.0, %v1508
  %v1510 = vpop.f32.mrb[0].mxu0
  %v1511 = vpop.f32.mrb[0].mxu0
  %v1512 = vadd.f32 0.0, %v1511
  %v1513 = vpop.f32.mrb[0].mxu0
  %1514 = vmatprep.mubr.bf16.mxu0 %v855
  %1515 = vmatmul.mubr.bf16.gmra.mrb[0].mxu0 %v854
  %v1516 = vpop.f32.mrb[0].mxu0
  %v1517 = vadd.f32 0.0, %v1516
  %v1518 = vpop.f32.mrb[0].mxu0
  %v1519 = vpop.f32.mrb[0].mxu0
  %v1520 = vadd.f32 0.0, %v1519
  %v1521 = vpop.f32.mrb[0].mxu0
  %1522 = vmatprep.mubr.bf16.mxu0 %v857
  %1523 = vmatmul.mubr.bf16.gmra.mrb[0].mxu0 %v856
  %v1524 = vpop.f32.mrb[0].mxu0
  %v1525 = vadd.f32 0.0, %v1524
  %v1526 = vpop.f32.mrb[0].mxu0
  %v1527 = vpop.f32.mrb[0].mxu0
  %v1528 = vadd.f32 0.0, %v1527
  %v1529 = vpop.f32.mrb[0].mxu0
  %1530 = vmatprep.mubr.bf16.mxu0 %v859
  %1531 = vmatmul.mubr.bf16.gmra.mrb[0].mxu0 %v858
  %v1532 = vpop.f32.mrb[0].mxu0
  %v1533 = vadd.f32 0.0, %v1532
  %v1534 = vpop.f32.mrb[0].mxu0
  %v1535 = vpop.f32.mrb[0].mxu0
  %v1536 = vadd.f32 0.0, %v1535
  %v1537 = vpop.f32.mrb[0].mxu0
  %1538 = vmatprep.mubr.bf16.mxu0 %v861
  %1539 = vmatmul.mubr.bf16.gmra.mrb[0].mxu0 %v860
  %v1540 = vpop.f32.mrb[0].mxu0
  %v1541 = vadd.f32 0.0, %v1540
  %v1542 = vpop.f32.mrb[0].mxu0
  %v1543 = vpop.f32.mrb[0].mxu0
  %v1544 = vadd.f32 0.0, %v1543
  %v1545 = vpop.f32.mrb[0].mxu0
  %1546 = vmatprep.mubr.bf16.mxu0 %v863
  %1547 = vmatmul.mubr.bf16.gmra.mrb[0].mxu0 %v862
  %v1548 = vpop.f32.mrb[0].mxu0
  %v1549 = vadd.f32 0.0, %v1548
  %v1550 = vpop.f32.mrb[0].mxu0
  %v1551 = vpop.f32.mrb[0].mxu0
  %v1552 = vadd.f32 0.0, %v1551
  %v1553 = vpop.f32.mrb[0].mxu0
  %1554 = vmatprep.mubr.bf16.mxu0 %v865
  %1555 = vmatmul.mubr.bf16.gmra.mrb[0].mxu0 %v864
  %v1556 = vpop.f32.mrb[0].mxu0
  %v1557 = vadd.f32 0.0, %v1556
  %v1558 = vpop.f32.mrb[0].mxu0
  %v1559 = vpop.f32.mrb[0].mxu0
  %v1560 = vadd.f32 0.0, %v1559
  %v1561 = vpop.f32.mrb[0].mxu0
  %1562 = vmatprep.mubr.bf16.mxu0 %v867
  %1563 = vmatmul.mubr.bf16.gmra.mrb[0].mxu0 %v866
  %v1564 = vpop.f32.mrb[0].mxu0
  %v1565 = vadd.f32 0.0, %v1564
  %v1566 = vpop.f32.mrb[0].mxu0
  %v1567 = vpop.f32.mrb[0].mxu0
  %v1568 = vadd.f32 0.0, %v1567
  %v1569 = vpop.f32.mrb[0].mxu0
  %1570 = vmatprep.mubr.bf16.mxu0 %v869
  %1571 = vmatmul.mubr.bf16.gmra.mrb[0].mxu0 %v868
  %v1572 = vpop.f32.mrb[0].mxu0
  %v1573 = vadd.f32 0.0, %v1572
  %v1574 = vpop.f32.mrb[0].mxu0
  %v1575 = vpop.f32.mrb[0].mxu0
  %v1576 = vadd.f32 0.0, %v1575
  %v1577 = vpop.f32.mrb[0].mxu0
  %1578 = vmatprep.mubr.bf16.mxu0 %v871
  %1579 = vmatmul.mubr.bf16.gmra.mrb[0].mxu0 %v870
  %v1580 = vpop.f32.mrb[0].mxu0
  %v1581 = vadd.f32 0.0, %v1580
  %v1582 = vpop.f32.mrb[0].mxu0
  %v1583 = vpop.f32.mrb[0].mxu0
  %v1584 = vadd.f32 0.0, %v1583
  %v1585 = vpop.f32.mrb[0].mxu0
  %1586 = vmatprep.mubr.bf16.mxu0 %v873
  %1587 = vmatmul.mubr.bf16.gmra.mrb[0].mxu0 %v872
  %v1588 = vpop.f32.mrb[0].mxu0
  %v1589 = vadd.f32 0.0, %v1588
  %v1590 = vpop.f32.mrb[0].mxu0
  %v1591 = vpop.f32.mrb[0].mxu0
  %v1592 = vadd.f32 0.0, %v1591
  %v1593 = vpop.f32.mrb[0].mxu0
  %1594 = vmatprep.mubr.bf16.mxu0 %v875
  %1595 = vmatmul.mubr.bf16.gmra.mrb[0].mxu0 %v874
  %v1596 = vpop.f32.mrb[0].mxu0
  %v1597 = vadd.f32 0.0, %v1596
  %v1598 = vpop.f32.mrb[0].mxu0
  %v1599 = vpop.f32.mrb[0].mxu0
  %v1600 = vadd.f32 0.0, %v1599
  %v1601 = vpop.f32.mrb[0].mxu0
  %1602 = vmatprep.mubr.bf16.mxu0 %v877
  %1603 = vmatmul.mubr.bf16.gmra.mrb[0].mxu0 %v876
  %v1604 = vpop.f32.mrb[0].mxu0
  %v1605 = vadd.f32 0.0, %v1604
  %v1606 = vpop.f32.mrb[0].mxu0
  %v1607 = vpop.f32.mrb[0].mxu0
  %v1608 = vadd.f32 0.0, %v1607
  %v1609 = vpop.f32.mrb[0].mxu0
  %1610 = vmatprep.mubr.bf16.mxu0 %v879
  %1611 = vmatmul.mubr.bf16.gmra.mrb[0].mxu0 %v878
  %v1612 = vpop.f32.mrb[0].mxu0
  %v1613 = vadd.f32 0.0, %v1612
  %v1614 = vpop.f32.mrb[0].mxu0
  %v1615 = vpop.f32.mrb[0].mxu0
  %v1616 = vadd.f32 0.0, %v1615
  %v1617 = vpop.f32.mrb[0].mxu0
  %1618 = vmatprep.mubr.bf16.mxu0 %v881
  %1619 = vmatmul.mubr.bf16.gmra.mrb[0].mxu0 %v880
  %v1620 = vpop.f32.mrb[0].mxu0
  %v1621 = vadd.f32 0.0, %v1620
  %v1622 = vpop.f32.mrb[0].mxu0
  %v1623 = vpop.f32.mrb[0].mxu0
  %v1624 = vadd.f32 0.0, %v1623
  %v1625 = vpop.f32.mrb[0].mxu0
  %1626 = vmatprep.mubr.bf16.mxu0 %v883
  %1627 = vmatmul.mubr.bf16.gmra.mrb[0].mxu0 %v882
  %v1628 = vpop.f32.mrb[0].mxu0
  %v1629 = vadd.f32 0.0, %v1628
  %v1630 = vpop.f32.mrb[0].mxu0
  %v1631 = vpop.f32.mrb[0].mxu0
  %v1632 = vadd.f32 0.0, %v1631
  %v1633 = vpop.f32.mrb[0].mxu0
  %1634 = vmatprep.mubr.bf16.mxu0 %v885
  %1635 = vmatmul.mubr.bf16.gmra.mrb[0].mxu0 %v884
  %v1636 = vpop.f32.mrb[0].mxu0
  %v1637 = vadd.f32 0.0, %v1636
  %v1638 = vpop.f32.mrb[0].mxu0
  %v1639 = vpop.f32.mrb[0].mxu0
  %v1640 = vadd.f32 0.0, %v1639
  %v1641 = vpop.f32.mrb[0].mxu0
  %1642 = vmatprep.mubr.bf16.mxu0 %v887
  %1643 = vmatmul.mubr.bf16.gmra.mrb[0].mxu0 %v886
  %v1644 = vpop.f32.mrb[0].mxu0
  %v1645 = vadd.f32 0.0, %v1644
  %v1646 = vpop.f32.mrb[0].mxu0
  %v1647 = vpop.f32.mrb[0].mxu0
  %v1648 = vadd.f32 0.0, %v1647
  %v1649 = vpop.f32.mrb[0].mxu0
  %1650 = vmatprep.mubr.bf16.mxu0 %v889
  %1651 = vmatmul.mubr.bf16.gmra.mrb[0].mxu0 %v888
  %v1652 = vpop.f32.mrb[0].mxu0
  %v1653 = vadd.f32 0.0, %v1652
  %v1654 = vpop.f32.mrb[0].mxu0
  %v1655 = vpop.f32.mrb[0].mxu0
  %v1656 = vadd.f32 0.0, %v1655
  %v1657 = vpop.f32.mrb[0].mxu0
  %1658 = vdwg.mxu0
  %vm1659 = vcmask 31744
  %1660 = vst.msk [vmem:[#allocation2] sm:$0xff] %vm1659, %v1149
  %1661 = vst.msk [vmem:[#allocation2 + $0x8] sm:$0xff] %vm1659, %v1152
  %1662 = vst.msk [vmem:[#allocation2 + $0x10] sm:$0xff] %vm1659, %v1157
  %1663 = vst.msk [vmem:[#allocation2 + $0x18] sm:$0xff] %vm1659, %v1160
  %1664 = vst.msk [vmem:[#allocation2 + $0x20] sm:$0xff] %vm1659, %v1165
  %1665 = vst.msk [vmem:[#allocation2 + $0x28] sm:$0xff] %vm1659, %v1168
  %1666 = vst.msk [vmem:[#allocation2 + $0x30] sm:$0xff] %vm1659, %v1173
  %1667 = vst.msk [vmem:[#allocation2 + $0x38] sm:$0xff] %vm1659, %v1176
  %1668 = vst.msk [vmem:[#allocation2 + $0x40] sm:$0xff] %vm1659, %v1181
  %1669 = vst.msk [vmem:[#allocation2 + $0x48] sm:$0xff] %vm1659, %v1184
  %1670 = vst.msk [vmem:[#allocation2 + $0x50] sm:$0xff] %vm1659, %v1189
  %1671 = vst.msk [vmem:[#allocation2 + $0x58] sm:$0xff] %vm1659, %v1192
  %1672 = vst.msk [vmem:[#allocation2 + $0x60] sm:$0xff] %vm1659, %v1197
  %1673 = vst.msk [vmem:[#allocation2 + $0x68] sm:$0xff] %vm1659, %v1200
  %1674 = vst.msk [vmem:[#allocation2 + $0x70] sm:$0xff] %vm1659, %v1205
  %1675 = vst.msk [vmem:[#allocation2 + $0x78] sm:$0xff] %vm1659, %v1208
  %1676 = vst.msk [vmem:[#allocation2 + $0x80] sm:$0xff] %vm1659, %v1213
  %1677 = vst.msk [vmem:[#allocation2 + $0x88] sm:$0xff] %vm1659, %v1216
  %1678 = vst.msk [vmem:[#allocation2 + $0x90] sm:$0xff] %vm1659, %v1221
  %1679 = vst.msk [vmem:[#allocation2 + $0x98] sm:$0xff] %vm1659, %v1224
  %1680 = vst.msk [vmem:[#allocation2 + $0xa0] sm:$0xff] %vm1659, %v1229
  %1681 = vst.msk [vmem:[#allocation2 + $0xa8] sm:$0xff] %vm1659, %v1232
  %1682 = vst.msk [vmem:[#allocation2 + $0xb0] sm:$0xff] %vm1659, %v1237
  %1683 = vst.msk [vmem:[#allocation2 + $0xb8] sm:$0xff] %vm1659, %v1240
  %1684 = vst.msk [vmem:[#allocation2 + $0xc0] sm:$0xff] %vm1659, %v1245
  %1685 = vst.msk [vmem:[#allocation2 + $0xc8] sm:$0xff] %vm1659, %v1248
  %1686 = vst.msk [vmem:[#allocation2 + $0xd0] sm:$0xff] %vm1659, %v1253
  %1687 = vst.msk [vmem:[#allocation2 + $0xd8] sm:$0xff] %vm1659, %v1256
  %1688 = vst.msk [vmem:[#allocation2 + $0xe0] sm:$0xff] %vm1659, %v1261
  %1689 = vst.msk [vmem:[#allocation2 + $0xe8] sm:$0xff] %vm1659, %v1264
  %1690 = vst.msk [vmem:[#allocation2 + $0xf0] sm:$0xff] %vm1659, %v1269
  %1691 = vst.msk [vmem:[#allocation2 + $0xf8] sm:$0xff] %vm1659, %v1272
  %1692 = vst.msk [vmem:[#allocation2 + $0x100] sm:$0xff] %vm1659, %v1277
  %1693 = vst.msk [vmem:[#allocation2 + $0x108] sm:$0xff] %vm1659, %v1280
  %1694 = vst.msk [vmem:[#allocation2 + $0x110] sm:$0xff] %vm1659, %v1285
  %1695 = vst.msk [vmem:[#allocation2 + $0x118] sm:$0xff] %vm1659, %v1288
  %1696 = vst.msk [vmem:[#allocation2 + $0x120] sm:$0xff] %vm1659, %v1293
  %1697 = vst.msk [vmem:[#allocation2 + $0x128] sm:$0xff] %vm1659, %v1296
  %1698 = vst.msk [vmem:[#allocation2 + $0x130] sm:$0xff] %vm1659, %v1301
  %1699 = vst.msk [vmem:[#allocation2 + $0x138] sm:$0xff] %vm1659, %v1304
  %1700 = vst.msk [vmem:[#allocation2 + $0x140] sm:$0xff] %vm1659, %v1309
  %1701 = vst.msk [vmem:[#allocation2 + $0x148] sm:$0xff] %vm1659, %v1312
  %1702 = vst.msk [vmem:[#allocation2 + $0x150] sm:$0xff] %vm1659, %v1317
  %1703 = vst.msk [vmem:[#allocation2 + $0x158] sm:$0xff] %vm1659, %v1320
  %1704 = vst.msk [vmem:[#allocation2 + $0x160] sm:$0xff] %vm1659, %v1325
  %1705 = vst.msk [vmem:[#allocation2 + $0x168] sm:$0xff] %vm1659, %v1328
  %1706 = vst.msk [vmem:[#allocation2 + $0x170] sm:$0xff] %vm1659, %v1333
  %1707 = vst.msk [vmem:[#allocation2 + $0x178] sm:$0xff] %vm1659, %v1336
  %1708 = vst.msk [vmem:[#allocation2 + $0x180] sm:$0xff] %vm1659, %v1341
  %1709 = vst.msk [vmem:[#allocation2 + $0x188] sm:$0xff] %vm1659, %v1344
  %1710 = vst.msk [vmem:[#allocation2 + $0x190] sm:$0xff] %vm1659, %v1349
  %1711 = vst.msk [vmem:[#allocation2 + $0x198] sm:$0xff] %vm1659, %v1352
  %1712 = vst.msk [vmem:[#allocation2 + $0x1a0] sm:$0xff] %vm1659, %v1357
  %1713 = vst.msk [vmem:[#allocation2 + $0x1a8] sm:$0xff] %vm1659, %v1360
  %1714 = vst.msk [vmem:[#allocation2 + $0x1b0] sm:$0xff] %vm1659, %v1365
  %1715 = vst.msk [vmem:[#allocation2 + $0x1b8] sm:$0xff] %vm1659, %v1368
  %1716 = vst.msk [vmem:[#allocation2 + $0x1c0] sm:$0xff] %vm1659, %v1373
  %1717 = vst.msk [vmem:[#allocation2 + $0x1c8] sm:$0xff] %vm1659, %v1376
  %1718 = vst.msk [vmem:[#allocation2 + $0x1d0] sm:$0xff] %vm1659, %v1381
  %1719 = vst.msk [vmem:[#allocation2 + $0x1d8] sm:$0xff] %vm1659, %v1384
  %1720 = vst.msk [vmem:[#allocation2 + $0x1e0] sm:$0xff] %vm1659, %v1389
  %1721 = vst.msk [vmem:[#allocation2 + $0x1e8] sm:$0xff] %vm1659, %v1392
  %1722 = vst.msk [vmem:[#allocation2 + $0x1f0] sm:$0xff] %vm1659, %v1397
  %1723 = vst.msk [vmem:[#allocation2 + $0x1f8] sm:$0xff] %vm1659, %v1400
  %1724 = vst.msk [vmem:[#allocation2 + $0x200] sm:$0xff] %vm1659, %v1405
  %1725 = vst.msk [vmem:[#allocation2 + $0x208] sm:$0xff] %vm1659, %v1408
  %1726 = vst.msk [vmem:[#allocation2 + $0x210] sm:$0xff] %vm1659, %v1413
  %1727 = vst.msk [vmem:[#allocation2 + $0x218] sm:$0xff] %vm1659, %v1416
  %1728 = vst.msk [vmem:[#allocation2 + $0x220] sm:$0xff] %vm1659, %v1421
  %1729 = vst.msk [vmem:[#allocation2 + $0x228] sm:$0xff] %vm1659, %v1424
  %1730 = vst.msk [vmem:[#allocation2 + $0x230] sm:$0xff] %vm1659, %v1429
  %1731 = vst.msk [vmem:[#allocation2 + $0x238] sm:$0xff] %vm1659, %v1432
  %1732 = vst.msk [vmem:[#allocation2 + $0x240] sm:$0xff] %vm1659, %v1437
  %1733 = vst.msk [vmem:[#allocation2 + $0x248] sm:$0xff] %vm1659, %v1440
  %1734 = vst.msk [vmem:[#allocation2 + $0x250] sm:$0xff] %vm1659, %v1445
  %1735 = vst.msk [vmem:[#allocation2 + $0x258] sm:$0xff] %vm1659, %v1448
  %1736 = vst.msk [vmem:[#allocation2 + $0x260] sm:$0xff] %vm1659, %v1453
  %1737 = vst.msk [vmem:[#allocation2 + $0x268] sm:$0xff] %vm1659, %v1456
  %1738 = vst.msk [vmem:[#allocation2 + $0x270] sm:$0xff] %vm1659, %v1461
  %1739 = vst.msk [vmem:[#allocation2 + $0x278] sm:$0xff] %vm1659, %v1464
  %1740 = vst.msk [vmem:[#allocation2 + $0x280] sm:$0xff] %vm1659, %v1469
  %1741 = vst.msk [vmem:[#allocation2 + $0x288] sm:$0xff] %vm1659, %v1472
  %1742 = vst.msk [vmem:[#allocation2 + $0x290] sm:$0xff] %vm1659, %v1477
  %1743 = vst.msk [vmem:[#allocation2 + $0x298] sm:$0xff] %vm1659, %v1480
  %1744 = vst.msk [vmem:[#allocation2 + $0x2a0] sm:$0xff] %vm1659, %v1485
  %1745 = vst.msk [vmem:[#allocation2 + $0x2a8] sm:$0xff] %vm1659, %v1488
  %1746 = vst.msk [vmem:[#allocation2 + $0x2b0] sm:$0xff] %vm1659, %v1493
  %1747 = vst.msk [vmem:[#allocation2 + $0x2b8] sm:$0xff] %vm1659, %v1496
  %1748 = vst.msk [vmem:[#allocation2 + $0x2c0] sm:$0xff] %vm1659, %v1501
  %1749 = vst.msk [vmem:[#allocation2 + $0x2c8] sm:$0xff] %vm1659, %v1504
  %1750 = vst.msk [vmem:[#allocation2 + $0x2d0] sm:$0xff] %vm1659, %v1509
  %1751 = vst.msk [vmem:[#allocation2 + $0x2d8] sm:$0xff] %vm1659, %v1512
  %1752 = vst.msk [vmem:[#allocation2 + $0x2e0] sm:$0xff] %vm1659, %v1517
  %1753 = vst.msk [vmem:[#allocation2 + $0x2e8] sm:$0xff] %vm1659, %v1520
  %1754 = vst.msk [vmem:[#allocation2 + $0x2f0] sm:$0xff] %vm1659, %v1525
  %1755 = vst.msk [vmem:[#allocation2 + $0x2f8] sm:$0xff] %vm1659, %v1528
  %1756 = vst.msk [vmem:[#allocation2 + $0x300] sm:$0xff] %vm1659, %v1533
  %1757 = vst.msk [vmem:[#allocation2 + $0x308] sm:$0xff] %vm1659, %v1536
  %1758 = vst.msk [vmem:[#allocation2 + $0x310] sm:$0xff] %vm1659, %v1541
  %1759 = vst.msk [vmem:[#allocation2 + $0x318] sm:$0xff] %vm1659, %v1544
  %1760 = vst.msk [vmem:[#allocation2 + $0x320] sm:$0xff] %vm1659, %v1549
  %1761 = vst.msk [vmem:[#allocation2 + $0x328] sm:$0xff] %vm1659, %v1552
  %1762 = vst.msk [vmem:[#allocation2 + $0x330] sm:$0xff] %vm1659, %v1557
  %1763 = vst.msk [vmem:[#allocation2 + $0x338] sm:$0xff] %vm1659, %v1560
  %1764 = vst.msk [vmem:[#allocation2 + $0x340] sm:$0xff] %vm1659, %v1565
  %1765 = vst.msk [vmem:[#allocation2 + $0x348] sm:$0xff] %vm1659, %v1568
  %1766 = vst.msk [vmem:[#allocation2 + $0x350] sm:$0xff] %vm1659, %v1573
  %1767 = vst.msk [vmem:[#allocation2 + $0x358] sm:$0xff] %vm1659, %v1576
  %1768 = vst.msk [vmem:[#allocation2 + $0x360] sm:$0xff] %vm1659, %v1581
  %1769 = vst.msk [vmem:[#allocation2 + $0x368] sm:$0xff] %vm1659, %v1584
  %1770 = vst.msk [vmem:[#allocation2 + $0x370] sm:$0xff] %vm1659, %v1589
  %1771 = vst.msk [vmem:[#allocation2 + $0x378] sm:$0xff] %vm1659, %v1592
  %1772 = vst.msk [vmem:[#allocation2 + $0x380] sm:$0xff] %vm1659, %v1597
  %1773 = vst.msk [vmem:[#allocation2 + $0x388] sm:$0xff] %vm1659, %v1600
  %1774 = vst.msk [vmem:[#allocation2 + $0x390] sm:$0xff] %vm1659, %v1605
  %1775 = vst.msk [vmem:[#allocation2 + $0x398] sm:$0xff] %vm1659, %v1608
  %1776 = vst.msk [vmem:[#allocation2 + $0x3a0] sm:$0xff] %vm1659, %v1613
  %1777 = vst.msk [vmem:[#allocation2 + $0x3a8] sm:$0xff] %vm1659, %v1616
  %1778 = vst.msk [vmem:[#allocation2 + $0x3b0] sm:$0xff] %vm1659, %v1621
  %1779 = vst.msk [vmem:[#allocation2 + $0x3b8] sm:$0xff] %vm1659, %v1624
  %1780 = vst.msk [vmem:[#allocation2 + $0x3c0] sm:$0xff] %vm1659, %v1629
  %1781 = vst.msk [vmem:[#allocation2 + $0x3c8] sm:$0xff] %vm1659, %v1632
  %1782 = vst.msk [vmem:[#allocation2 + $0x3d0] sm:$0xff] %vm1659, %v1637
  %1783 = vst.msk [vmem:[#allocation2 + $0x3d8] sm:$0xff] %vm1659, %v1640
  %1784 = vst.msk [vmem:[#allocation2 + $0x3e0] sm:$0xff] %vm1659, %v1645
  %1785 = vst.msk [vmem:[#allocation2 + $0x3e8] sm:$0xff] %vm1659, %v1648
  %1786 = vst.msk [vmem:[#allocation2 + $0x3f0] sm:$0xff] %vm1659, %v1653
  %1787 = vst.msk [vmem:[#allocation2 + $0x3f8] sm:$0xff] %vm1659, %v1656
  %v1788 = vld [vmem:[#allocation2] sm:$0xff]
  %v1789 = vld [vmem:[#allocation2 + $0x8] sm:$0xff]
  %v1790 = vld [vmem:[#allocation2 + $0x10] sm:$0xff]
  %v1791 = vld [vmem:[#allocation2 + $0x18] sm:$0xff]
  %v1792 = vld [vmem:[#allocation2 + $0x20] sm:$0xff]
  %v1793 = vld [vmem:[#allocation2 + $0x28] sm:$0xff]
  %v1794 = vld [vmem:[#allocation2 + $0x30] sm:$0xff]
  %v1795 = vld [vmem:[#allocation2 + $0x38] sm:$0xff]
  %1796 = vst.msk [vmem:[#allocation3] sm:$0xff] %vm1659, %v1788
  %1797 = vst.msk [vmem:[#allocation3 + $0x8] sm:$0xff] %vm1659, %v1789
  %1798 = vst.msk [vmem:[#allocation3 + $0x10] sm:$0xff] %vm1659, %v1790
  %1799 = vst.msk [vmem:[#allocation3 + $0x18] sm:$0xff] %vm1659, %v1791
  %1800 = vst.msk [vmem:[#allocation3 + $0x20] sm:$0xff] %vm1659, %v1792
  %1801 = vst.msk [vmem:[#allocation3 + $0x28] sm:$0xff] %vm1659, %v1793
  %1802 = vst.msk [vmem:[#allocation3 + $0x30] sm:$0xff] %vm1659, %v1794
  %1803 = vst.msk [vmem:[#allocation3 + $0x38] sm:$0xff] %vm1659, %v1795
  %v1804 = vld [vmem:[#allocation2 + $0x40] sm:$0xff]
  %v1805 = vld [vmem:[#allocation2 + $0x48] sm:$0xff]
  %v1806 = vld [vmem:[#allocation2 + $0x50] sm:$0xff]
  %v1807 = vld [vmem:[#allocation2 + $0x58] sm:$0xff]
  %v1808 = vld [vmem:[#allocation2 + $0x60] sm:$0xff]
  %v1809 = vld [vmem:[#allocation2 + $0x68] sm:$0xff]
  %v1810 = vld [vmem:[#allocation2 + $0x70] sm:$0xff]
  %v1811 = vld [vmem:[#allocation2 + $0x78] sm:$0xff]
  %1820 = vrot.lane.b32.xlu0 %v1804, 4
  %v1821 = vpop.permute.xlu0 %1820
  %1822 = vrot.lane.b32.xlu0 %v1805, 4
  %v1823 = vpop.permute.xlu0 %1822
  %1824 = vrot.lane.b32.xlu0 %v1806, 4
  %v1825 = vpop.permute.xlu0 %1824
  %1826 = vrot.lane.b32.xlu0 %v1807, 4
  %v1827 = vpop.permute.xlu0 %1826
  %1828 = vrot.lane.b32.xlu0 %v1808, 4
  %v1829 = vpop.permute.xlu0 %1828
  %1830 = vrot.lane.b32.xlu0 %v1809, 4
  %v1831 = vpop.permute.xlu0 %1830
  %1832 = vrot.lane.b32.xlu0 %v1810, 4
  %v1833 = vpop.permute.xlu0 %1832
  %1834 = vrot.lane.b32.xlu0 %v1811, 4
  %v1835 = vpop.permute.xlu0 %1834
  %vm1844 = vcmask 64544
  %1845 = vst.msk [vmem:[#allocation3] sm:$0xff] %vm1844, %v1821
  %1846 = vst.msk [vmem:[#allocation3 + $0x8] sm:$0xff] %vm1844, %v1823
  %1847 = vst.msk [vmem:[#allocation3 + $0x10] sm:$0xff] %vm1844, %v1825
  %1848 = vst.msk [vmem:[#allocation3 + $0x18] sm:$0xff] %vm1844, %v1827
  %1849 = vst.msk [vmem:[#allocation3 + $0x20] sm:$0xff] %vm1844, %v1829
  %1850 = vst.msk [vmem:[#allocation3 + $0x28] sm:$0xff] %vm1844, %v1831
  %1851 = vst.msk [vmem:[#allocation3 + $0x30] sm:$0xff] %vm1844, %v1833
  %1852 = vst.msk [vmem:[#allocation3 + $0x38] sm:$0xff] %vm1844, %v1835
  %v1853 = vld [vmem:[#allocation2 + $0x80] sm:$0xff]
  %v1854 = vld [vmem:[#allocation2 + $0x88] sm:$0xff]
  %v1855 = vld [vmem:[#allocation2 + $0x90] sm:$0xff]
  %v1856 = vld [vmem:[#allocation2 + $0x98] sm:$0xff]
  %v1857 = vld [vmem:[#allocation2 + $0xa0] sm:$0xff]
  %v1858 = vld [vmem:[#allocation2 + $0xa8] sm:$0xff]
  %v1859 = vld [vmem:[#allocation2 + $0xb0] sm:$0xff]
  %v1860 = vld [vmem:[#allocation2 + $0xb8] sm:$0xff]
  %1869 = vrot.lane.b32.xlu0 %v1853, 8
  %v1870 = vpop.permute.xlu0 %1869
  %1871 = vrot.lane.b32.xlu0 %v1854, 8
  %v1872 = vpop.permute.xlu0 %1871
  %1873 = vrot.lane.b32.xlu0 %v1855, 8
  %v1874 = vpop.permute.xlu0 %1873
  %1875 = vrot.lane.b32.xlu0 %v1856, 8
  %v1876 = vpop.permute.xlu0 %1875
  %1877 = vrot.lane.b32.xlu0 %v1857, 8
  %v1878 = vpop.permute.xlu0 %1877
  %1879 = vrot.lane.b32.xlu0 %v1858, 8
  %v1880 = vpop.permute.xlu0 %1879
  %1881 = vrot.lane.b32.xlu0 %v1859, 8
  %v1882 = vpop.permute.xlu0 %1881
  %1883 = vrot.lane.b32.xlu0 %v1860, 8
  %v1884 = vpop.permute.xlu0 %1883
  %vm1893 = vcmask 97344
  %1894 = vst.msk [vmem:[#allocation3] sm:$0xff] %vm1893, %v1870
  %1895 = vst.msk [vmem:[#allocation3 + $0x8] sm:$0xff] %vm1893, %v1872
  %1896 = vst.msk [vmem:[#allocation3 + $0x10] sm:$0xff] %vm1893, %v1874
  %1897 = vst.msk [vmem:[#allocation3 + $0x18] sm:$0xff] %vm1893, %v1876
  %1898 = vst.msk [vmem:[#allocation3 + $0x20] sm:$0xff] %vm1893, %v1878
  %1899 = vst.msk [vmem:[#allocation3 + $0x28] sm:$0xff] %vm1893, %v1880
  %1900 = vst.msk [vmem:[#allocation3 + $0x30] sm:$0xff] %vm1893, %v1882
  %1901 = vst.msk [vmem:[#allocation3 + $0x38] sm:$0xff] %vm1893, %v1884
  %v1902 = vld [vmem:[#allocation2 + $0xc0] sm:$0xff]
  %v1903 = vld [vmem:[#allocation2 + $0xc8] sm:$0xff]
  %v1904 = vld [vmem:[#allocation2 + $0xd0] sm:$0xff]
  %v1905 = vld [vmem:[#allocation2 + $0xd8] sm:$0xff]
  %v1906 = vld [vmem:[#allocation2 + $0xe0] sm:$0xff]
  %v1907 = vld [vmem:[#allocation2 + $0xe8] sm:$0xff]
  %v1908 = vld [vmem:[#allocation2 + $0xf0] sm:$0xff]
  %v1909 = vld [vmem:[#allocation2 + $0xf8] sm:$0xff]
  %1918 = vrot.lane.b32.xlu0 %v1902, 12
  %v1919 = vpop.permute.xlu0 %1918
  %1920 = vrot.lane.b32.xlu0 %v1903, 12
  %v1921 = vpop.permute.xlu0 %1920
  %1922 = vrot.lane.b32.xlu0 %v1904, 12
  %v1923 = vpop.permute.xlu0 %1922
  %1924 = vrot.lane.b32.xlu0 %v1905, 12
  %v1925 = vpop.permute.xlu0 %1924
  %1926 = vrot.lane.b32.xlu0 %v1906, 12
  %v1927 = vpop.permute.xlu0 %1926
  %1928 = vrot.lane.b32.xlu0 %v1907, 12
  %v1929 = vpop.permute.xlu0 %1928
  %1930 = vrot.lane.b32.xlu0 %v1908, 12
  %v1931 = vpop.permute.xlu0 %1930
  %1932 = vrot.lane.b32.xlu0 %v1909, 12
  %v1933 = vpop.permute.xlu0 %1932
  %vm1942 = vcmask 130144
  %1943 = vst.msk [vmem:[#allocation3] sm:$0xff] %vm1942, %v1919
  %1944 = vst.msk [vmem:[#allocation3 + $0x8] sm:$0xff] %vm1942, %v1921
  %1945 = vst.msk [vmem:[#allocation3 + $0x10] sm:$0xff] %vm1942, %v1923
  %1946 = vst.msk [vmem:[#allocation3 + $0x18] sm:$0xff] %vm1942, %v1925
  %1947 = vst.msk [vmem:[#allocation3 + $0x20] sm:$0xff] %vm1942, %v1927
  %1948 = vst.msk [vmem:[#allocation3 + $0x28] sm:$0xff] %vm1942, %v1929
  %1949 = vst.msk [vmem:[#allocation3 + $0x30] sm:$0xff] %vm1942, %v1931
  %1950 = vst.msk [vmem:[#allocation3 + $0x38] sm:$0xff] %vm1942, %v1933
  %v1951 = vld [vmem:[#allocation2 + $0x100] sm:$0xff]
  %v1952 = vld [vmem:[#allocation2 + $0x108] sm:$0xff]
  %v1953 = vld [vmem:[#allocation2 + $0x110] sm:$0xff]
  %v1954 = vld [vmem:[#allocation2 + $0x118] sm:$0xff]
  %v1955 = vld [vmem:[#allocation2 + $0x120] sm:$0xff]
  %v1956 = vld [vmem:[#allocation2 + $0x128] sm:$0xff]
  %v1957 = vld [vmem:[#allocation2 + $0x130] sm:$0xff]
  %v1958 = vld [vmem:[#allocation2 + $0x138] sm:$0xff]
  %1967 = vrot.lane.b32.xlu0 %v1951, 16
  %v1968 = vpop.permute.xlu0 %1967
  %1969 = vrot.lane.b32.xlu0 %v1952, 16
  %v1970 = vpop.permute.xlu0 %1969
  %1971 = vrot.lane.b32.xlu0 %v1953, 16
  %v1972 = vpop.permute.xlu0 %1971
  %1973 = vrot.lane.b32.xlu0 %v1954, 16
  %v1974 = vpop.permute.xlu0 %1973
  %1975 = vrot.lane.b32.xlu0 %v1955, 16
  %v1976 = vpop.permute.xlu0 %1975
  %1977 = vrot.lane.b32.xlu0 %v1956, 16
  %v1978 = vpop.permute.xlu0 %1977
  %1979 = vrot.lane.b32.xlu0 %v1957, 16
  %v1980 = vpop.permute.xlu0 %1979
  %1981 = vrot.lane.b32.xlu0 %v1958, 16
  %v1982 = vpop.permute.xlu0 %1981
  %vm1991 = vcmask 162944
  %1992 = vst.msk [vmem:[#allocation3] sm:$0xff] %vm1991, %v1968
  %1993 = vst.msk [vmem:[#allocation3 + $0x8] sm:$0xff] %vm1991, %v1970
  %1994 = vst.msk [vmem:[#allocation3 + $0x10] sm:$0xff] %vm1991, %v1972
  %1995 = vst.msk [vmem:[#allocation3 + $0x18] sm:$0xff] %vm1991, %v1974
  %1996 = vst.msk [vmem:[#allocation3 + $0x20] sm:$0xff] %vm1991, %v1976
  %1997 = vst.msk [vmem:[#allocation3 + $0x28] sm:$0xff] %vm1991, %v1978
  %1998 = vst.msk [vmem:[#allocation3 + $0x30] sm:$0xff] %vm1991, %v1980
  %1999 = vst.msk [vmem:[#allocation3 + $0x38] sm:$0xff] %vm1991, %v1982
  %v2000 = vld [vmem:[#allocation2 + $0x140] sm:$0xff]
  %v2001 = vld [vmem:[#allocation2 + $0x148] sm:$0xff]
  %v2002 = vld [vmem:[#allocation2 + $0x150] sm:$0xff]
  %v2003 = vld [vmem:[#allocation2 + $0x158] sm:$0xff]
  %v2004 = vld [vmem:[#allocation2 + $0x160] sm:$0xff]
  %v2005 = vld [vmem:[#allocation2 + $0x168] sm:$0xff]
  %v2006 = vld [vmem:[#allocation2 + $0x170] sm:$0xff]
  %v2007 = vld [vmem:[#allocation2 + $0x178] sm:$0xff]
  %2016 = vrot.lane.b32.xlu0 %v2000, 20
  %v2017 = vpop.permute.xlu0 %2016
  %2018 = vrot.lane.b32.xlu0 %v2001, 20
  %v2019 = vpop.permute.xlu0 %2018
  %2020 = vrot.lane.b32.xlu0 %v2002, 20
  %v2021 = vpop.permute.xlu0 %2020
  %2022 = vrot.lane.b32.xlu0 %v2003, 20
  %v2023 = vpop.permute.xlu0 %2022
  %2024 = vrot.lane.b32.xlu0 %v2004, 20
  %v2025 = vpop.permute.xlu0 %2024
  %2026 = vrot.lane.b32.xlu0 %v2005, 20
  %v2027 = vpop.permute.xlu0 %2026
  %2028 = vrot.lane.b32.xlu0 %v2006, 20
  %v2029 = vpop.permute.xlu0 %2028
  %2030 = vrot.lane.b32.xlu0 %v2007, 20
  %v2031 = vpop.permute.xlu0 %2030
  %vm2040 = vcmask 195744
  %2041 = vst.msk [vmem:[#allocation3] sm:$0xff] %vm2040, %v2017
  %2042 = vst.msk [vmem:[#allocation3 + $0x8] sm:$0xff] %vm2040, %v2019
  %2043 = vst.msk [vmem:[#allocation3 + $0x10] sm:$0xff] %vm2040, %v2021
  %2044 = vst.msk [vmem:[#allocation3 + $0x18] sm:$0xff] %vm2040, %v2023
  %2045 = vst.msk [vmem:[#allocation3 + $0x20] sm:$0xff] %vm2040, %v2025
  %2046 = vst.msk [vmem:[#allocation3 + $0x28] sm:$0xff] %vm2040, %v2027
  %2047 = vst.msk [vmem:[#allocation3 + $0x30] sm:$0xff] %vm2040, %v2029
  %2048 = vst.msk [vmem:[#allocation3 + $0x38] sm:$0xff] %vm2040, %v2031
  %v2049 = vld [vmem:[#allocation2 + $0x180] sm:$0xff]
  %v2050 = vld [vmem:[#allocation2 + $0x188] sm:$0xff]
  %v2051 = vld [vmem:[#allocation2 + $0x190] sm:$0xff]
  %v2052 = vld [vmem:[#allocation2 + $0x198] sm:$0xff]
  %v2053 = vld [vmem:[#allocation2 + $0x1a0] sm:$0xff]
  %v2054 = vld [vmem:[#allocation2 + $0x1a8] sm:$0xff]
  %v2055 = vld [vmem:[#allocation2 + $0x1b0] sm:$0xff]
  %v2056 = vld [vmem:[#allocation2 + $0x1b8] sm:$0xff]
  %2065 = vrot.lane.b32.xlu0 %v2049, 24
  %v2066 = vpop.permute.xlu0 %2065
  %2067 = vrot.lane.b32.xlu0 %v2050, 24
  %v2068 = vpop.permute.xlu0 %2067
  %2069 = vrot.lane.b32.xlu0 %v2051, 24
  %v2070 = vpop.permute.xlu0 %2069
  %2071 = vrot.lane.b32.xlu0 %v2052, 24
  %v2072 = vpop.permute.xlu0 %2071
  %2073 = vrot.lane.b32.xlu0 %v2053, 24
  %v2074 = vpop.permute.xlu0 %2073
  %2075 = vrot.lane.b32.xlu0 %v2054, 24
  %v2076 = vpop.permute.xlu0 %2075
  %2077 = vrot.lane.b32.xlu0 %v2055, 24
  %v2078 = vpop.permute.xlu0 %2077
  %2079 = vrot.lane.b32.xlu0 %v2056, 24
  %v2080 = vpop.permute.xlu0 %2079
  %vm2089 = vcmask 228544
  %2090 = vst.msk [vmem:[#allocation3] sm:$0xff] %vm2089, %v2066
  %2091 = vst.msk [vmem:[#allocation3 + $0x8] sm:$0xff] %vm2089, %v2068
  %2092 = vst.msk [vmem:[#allocation3 + $0x10] sm:$0xff] %vm2089, %v2070
  %2093 = vst.msk [vmem:[#allocation3 + $0x18] sm:$0xff] %vm2089, %v2072
  %2094 = vst.msk [vmem:[#allocation3 + $0x20] sm:$0xff] %vm2089, %v2074
  %2095 = vst.msk [vmem:[#allocation3 + $0x28] sm:$0xff] %vm2089, %v2076
  %2096 = vst.msk [vmem:[#allocation3 + $0x30] sm:$0xff] %vm2089, %v2078
  %2097 = vst.msk [vmem:[#allocation3 + $0x38] sm:$0xff] %vm2089, %v2080
  %v2098 = vld [vmem:[#allocation2 + $0x1c0] sm:$0xff]
  %v2099 = vld [vmem:[#allocation2 + $0x1c8] sm:$0xff]
  %v2100 = vld [vmem:[#allocation2 + $0x1d0] sm:$0xff]
  %v2101 = vld [vmem:[#allocation2 + $0x1d8] sm:$0xff]
  %v2102 = vld [vmem:[#allocation2 + $0x1e0] sm:$0xff]
  %v2103 = vld [vmem:[#allocation2 + $0x1e8] sm:$0xff]
  %v2104 = vld [vmem:[#allocation2 + $0x1f0] sm:$0xff]
  %v2105 = vld [vmem:[#allocation2 + $0x1f8] sm:$0xff]
  %2114 = vrot.lane.b32.xlu0 %v2098, 28
  %v2115 = vpop.permute.xlu0 %2114
  %2116 = vrot.lane.b32.xlu0 %v2099, 28
  %v2117 = vpop.permute.xlu0 %2116
  %2118 = vrot.lane.b32.xlu0 %v2100, 28
  %v2119 = vpop.permute.xlu0 %2118
  %2120 = vrot.lane.b32.xlu0 %v2101, 28
  %v2121 = vpop.permute.xlu0 %2120
  %2122 = vrot.lane.b32.xlu0 %v2102, 28
  %v2123 = vpop.permute.xlu0 %2122
  %2124 = vrot.lane.b32.xlu0 %v2103, 28
  %v2125 = vpop.permute.xlu0 %2124
  %2126 = vrot.lane.b32.xlu0 %v2104, 28
  %v2127 = vpop.permute.xlu0 %2126
  %2128 = vrot.lane.b32.xlu0 %v2105, 28
  %v2129 = vpop.permute.xlu0 %2128
  %vm2138 = vcmask 261344
  %2139 = vst.msk [vmem:[#allocation3] sm:$0xff] %vm2138, %v2115
  %2140 = vst.msk [vmem:[#allocation3 + $0x8] sm:$0xff] %vm2138, %v2117
  %2141 = vst.msk [vmem:[#allocation3 + $0x10] sm:$0xff] %vm2138, %v2119
  %2142 = vst.msk [vmem:[#allocation3 + $0x18] sm:$0xff] %vm2138, %v2121
  %2143 = vst.msk [vmem:[#allocation3 + $0x20] sm:$0xff] %vm2138, %v2123
  %2144 = vst.msk [vmem:[#allocation3 + $0x28] sm:$0xff] %vm2138, %v2125
  %2145 = vst.msk [vmem:[#allocation3 + $0x30] sm:$0xff] %vm2138, %v2127
  %2146 = vst.msk [vmem:[#allocation3 + $0x38] sm:$0xff] %vm2138, %v2129
  %v2147 = vld [vmem:[#allocation2 + $0x200] sm:$0xff]
  %v2148 = vld [vmem:[#allocation2 + $0x208] sm:$0xff]
  %v2149 = vld [vmem:[#allocation2 + $0x210] sm:$0xff]
  %v2150 = vld [vmem:[#allocation2 + $0x218] sm:$0xff]
  %v2151 = vld [vmem:[#allocation2 + $0x220] sm:$0xff]
  %v2152 = vld [vmem:[#allocation2 + $0x228] sm:$0xff]
  %v2153 = vld [vmem:[#allocation2 + $0x230] sm:$0xff]
  %v2154 = vld [vmem:[#allocation2 + $0x238] sm:$0xff]
  %2163 = vrot.lane.b32.xlu0 %v2147, 32
  %v2164 = vpop.permute.xlu0 %2163
  %2165 = vrot.lane.b32.xlu0 %v2148, 32
  %v2166 = vpop.permute.xlu0 %2165
  %2167 = vrot.lane.b32.xlu0 %v2149, 32
  %v2168 = vpop.permute.xlu0 %2167
  %2169 = vrot.lane.b32.xlu0 %v2150, 32
  %v2170 = vpop.permute.xlu0 %2169
  %2171 = vrot.lane.b32.xlu0 %v2151, 32
  %v2172 = vpop.permute.xlu0 %2171
  %2173 = vrot.lane.b32.xlu0 %v2152, 32
  %v2174 = vpop.permute.xlu0 %2173
  %2175 = vrot.lane.b32.xlu0 %v2153, 32
  %v2176 = vpop.permute.xlu0 %2175
  %2177 = vrot.lane.b32.xlu0 %v2154, 32
  %v2178 = vpop.permute.xlu0 %2177
  %vm2187 = vcmask 294144
  %2188 = vst.msk [vmem:[#allocation3] sm:$0xff] %vm2187, %v2164
  %2189 = vst.msk [vmem:[#allocation3 + $0x8] sm:$0xff] %vm2187, %v2166
  %2190 = vst.msk [vmem:[#allocation3 + $0x10] sm:$0xff] %vm2187, %v2168
  %2191 = vst.msk [vmem:[#allocation3 + $0x18] sm:$0xff] %vm2187, %v2170
  %2192 = vst.msk [vmem:[#allocation3 + $0x20] sm:$0xff] %vm2187, %v2172
  %2193 = vst.msk [vmem:[#allocation3 + $0x28] sm:$0xff] %vm2187, %v2174
  %2194 = vst.msk [vmem:[#allocation3 + $0x30] sm:$0xff] %vm2187, %v2176
  %2195 = vst.msk [vmem:[#allocation3 + $0x38] sm:$0xff] %vm2187, %v2178
  %v2196 = vld [vmem:[#allocation2 + $0x240] sm:$0xff]
  %v2197 = vld [vmem:[#allocation2 + $0x248] sm:$0xff]
  %v2198 = vld [vmem:[#allocation2 + $0x250] sm:$0xff]
  %v2199 = vld [vmem:[#allocation2 + $0x258] sm:$0xff]
  %v2200 = vld [vmem:[#allocation2 + $0x260] sm:$0xff]
  %v2201 = vld [vmem:[#allocation2 + $0x268] sm:$0xff]
  %v2202 = vld [vmem:[#allocation2 + $0x270] sm:$0xff]
  %v2203 = vld [vmem:[#allocation2 + $0x278] sm:$0xff]
  %2212 = vrot.lane.b32.xlu0 %v2196, 36
  %v2213 = vpop.permute.xlu0 %2212
  %2214 = vrot.lane.b32.xlu0 %v2197, 36
  %v2215 = vpop.permute.xlu0 %2214
  %2216 = vrot.lane.b32.xlu0 %v2198, 36
  %v2217 = vpop.permute.xlu0 %2216
  %2218 = vrot.lane.b32.xlu0 %v2199, 36
  %v2219 = vpop.permute.xlu0 %2218
  %2220 = vrot.lane.b32.xlu0 %v2200, 36
  %v2221 = vpop.permute.xlu0 %2220
  %2222 = vrot.lane.b32.xlu0 %v2201, 36
  %v2223 = vpop.permute.xlu0 %2222
  %2224 = vrot.lane.b32.xlu0 %v2202, 36
  %v2225 = vpop.permute.xlu0 %2224
  %2226 = vrot.lane.b32.xlu0 %v2203, 36
  %v2227 = vpop.permute.xlu0 %2226
  %vm2236 = vcmask 326944
  %2237 = vst.msk [vmem:[#allocation3] sm:$0xff] %vm2236, %v2213
  %2238 = vst.msk [vmem:[#allocation3 + $0x8] sm:$0xff] %vm2236, %v2215
  %2239 = vst.msk [vmem:[#allocation3 + $0x10] sm:$0xff] %vm2236, %v2217
  %2240 = vst.msk [vmem:[#allocation3 + $0x18] sm:$0xff] %vm2236, %v2219
  %2241 = vst.msk [vmem:[#allocation3 + $0x20] sm:$0xff] %vm2236, %v2221
  %2242 = vst.msk [vmem:[#allocation3 + $0x28] sm:$0xff] %vm2236, %v2223
  %2243 = vst.msk [vmem:[#allocation3 + $0x30] sm:$0xff] %vm2236, %v2225
  %2244 = vst.msk [vmem:[#allocation3 + $0x38] sm:$0xff] %vm2236, %v2227
  %v2245 = vld [vmem:[#allocation2 + $0x280] sm:$0xff]
  %v2246 = vld [vmem:[#allocation2 + $0x288] sm:$0xff]
  %v2247 = vld [vmem:[#allocation2 + $0x290] sm:$0xff]
  %v2248 = vld [vmem:[#allocation2 + $0x298] sm:$0xff]
  %v2249 = vld [vmem:[#allocation2 + $0x2a0] sm:$0xff]
  %v2250 = vld [vmem:[#allocation2 + $0x2a8] sm:$0xff]
  %v2251 = vld [vmem:[#allocation2 + $0x2b0] sm:$0xff]
  %v2252 = vld [vmem:[#allocation2 + $0x2b8] sm:$0xff]
  %2261 = vrot.lane.b32.xlu0 %v2245, 40
  %v2262 = vpop.permute.xlu0 %2261
  %2263 = vrot.lane.b32.xlu0 %v2246, 40
  %v2264 = vpop.permute.xlu0 %2263
  %2265 = vrot.lane.b32.xlu0 %v2247, 40
  %v2266 = vpop.permute.xlu0 %2265
  %2267 = vrot.lane.b32.xlu0 %v2248, 40
  %v2268 = vpop.permute.xlu0 %2267
  %2269 = vrot.lane.b32.xlu0 %v2249, 40
  %v2270 = vpop.permute.xlu0 %2269
  %2271 = vrot.lane.b32.xlu0 %v2250, 40
  %v2272 = vpop.permute.xlu0 %2271
  %2273 = vrot.lane.b32.xlu0 %v2251, 40
  %v2274 = vpop.permute.xlu0 %2273
  %2275 = vrot.lane.b32.xlu0 %v2252, 40
  %v2276 = vpop.permute.xlu0 %2275
  %vm2285 = vcmask 359744
  %2286 = vst.msk [vmem:[#allocation3] sm:$0xff] %vm2285, %v2262
  %2287 = vst.msk [vmem:[#allocation3 + $0x8] sm:$0xff] %vm2285, %v2264
  %2288 = vst.msk [vmem:[#allocation3 + $0x10] sm:$0xff] %vm2285, %v2266
  %2289 = vst.msk [vmem:[#allocation3 + $0x18] sm:$0xff] %vm2285, %v2268
  %2290 = vst.msk [vmem:[#allocation3 + $0x20] sm:$0xff] %vm2285, %v2270
  %2291 = vst.msk [vmem:[#allocation3 + $0x28] sm:$0xff] %vm2285, %v2272
  %2292 = vst.msk [vmem:[#allocation3 + $0x30] sm:$0xff] %vm2285, %v2274
  %2293 = vst.msk [vmem:[#allocation3 + $0x38] sm:$0xff] %vm2285, %v2276
  %v2294 = vld [vmem:[#allocation2 + $0x2c0] sm:$0xff]
  %v2295 = vld [vmem:[#allocation2 + $0x2c8] sm:$0xff]
  %v2296 = vld [vmem:[#allocation2 + $0x2d0] sm:$0xff]
  %v2297 = vld [vmem:[#allocation2 + $0x2d8] sm:$0xff]
  %v2298 = vld [vmem:[#allocation2 + $0x2e0] sm:$0xff]
  %v2299 = vld [vmem:[#allocation2 + $0x2e8] sm:$0xff]
  %v2300 = vld [vmem:[#allocation2 + $0x2f0] sm:$0xff]
  %v2301 = vld [vmem:[#allocation2 + $0x2f8] sm:$0xff]
  %2310 = vrot.lane.b32.xlu0 %v2294, 44
  %v2311 = vpop.permute.xlu0 %2310
  %2312 = vrot.lane.b32.xlu0 %v2295, 44
  %v2313 = vpop.permute.xlu0 %2312
  %2314 = vrot.lane.b32.xlu0 %v2296, 44
  %v2315 = vpop.permute.xlu0 %2314
  %2316 = vrot.lane.b32.xlu0 %v2297, 44
  %v2317 = vpop.permute.xlu0 %2316
  %2318 = vrot.lane.b32.xlu0 %v2298, 44
  %v2319 = vpop.permute.xlu0 %2318
  %2320 = vrot.lane.b32.xlu0 %v2299, 44
  %v2321 = vpop.permute.xlu0 %2320
  %2322 = vrot.lane.b32.xlu0 %v2300, 44
  %v2323 = vpop.permute.xlu0 %2322
  %2324 = vrot.lane.b32.xlu0 %v2301, 44
  %v2325 = vpop.permute.xlu0 %2324
  %vm2334 = vcmask 392544
  %2335 = vst.msk [vmem:[#allocation3] sm:$0xff] %vm2334, %v2311
  %2336 = vst.msk [vmem:[#allocation3 + $0x8] sm:$0xff] %vm2334, %v2313
  %2337 = vst.msk [vmem:[#allocation3 + $0x10] sm:$0xff] %vm2334, %v2315
  %2338 = vst.msk [vmem:[#allocation3 + $0x18] sm:$0xff] %vm2334, %v2317
  %2339 = vst.msk [vmem:[#allocation3 + $0x20] sm:$0xff] %vm2334, %v2319
  %2340 = vst.msk [vmem:[#allocation3 + $0x28] sm:$0xff] %vm2334, %v2321
  %2341 = vst.msk [vmem:[#allocation3 + $0x30] sm:$0xff] %vm2334, %v2323
  %2342 = vst.msk [vmem:[#allocation3 + $0x38] sm:$0xff] %vm2334, %v2325
  %v2343 = vld [vmem:[#allocation2 + $0x300] sm:$0xff]
  %v2344 = vld [vmem:[#allocation2 + $0x308] sm:$0xff]
  %v2345 = vld [vmem:[#allocation2 + $0x310] sm:$0xff]
  %v2346 = vld [vmem:[#allocation2 + $0x318] sm:$0xff]
  %v2347 = vld [vmem:[#allocation2 + $0x320] sm:$0xff]
  %v2348 = vld [vmem:[#allocation2 + $0x328] sm:$0xff]
  %v2349 = vld [vmem:[#allocation2 + $0x330] sm:$0xff]
  %v2350 = vld [vmem:[#allocation2 + $0x338] sm:$0xff]
  %2359 = vrot.lane.b32.xlu0 %v2343, 48
  %v2360 = vpop.permute.xlu0 %2359
  %2361 = vrot.lane.b32.xlu0 %v2344, 48
  %v2362 = vpop.permute.xlu0 %2361
  %2363 = vrot.lane.b32.xlu0 %v2345, 48
  %v2364 = vpop.permute.xlu0 %2363
  %2365 = vrot.lane.b32.xlu0 %v2346, 48
  %v2366 = vpop.permute.xlu0 %2365
  %2367 = vrot.lane.b32.xlu0 %v2347, 48
  %v2368 = vpop.permute.xlu0 %2367
  %2369 = vrot.lane.b32.xlu0 %v2348, 48
  %v2370 = vpop.permute.xlu0 %2369
  %2371 = vrot.lane.b32.xlu0 %v2349, 48
  %v2372 = vpop.permute.xlu0 %2371
  %2373 = vrot.lane.b32.xlu0 %v2350, 48
  %v2374 = vpop.permute.xlu0 %2373
  %vm2383 = vcmask 425344
  %2384 = vst.msk [vmem:[#allocation3] sm:$0xff] %vm2383, %v2360
  %2385 = vst.msk [vmem:[#allocation3 + $0x8] sm:$0xff] %vm2383, %v2362
  %2386 = vst.msk [vmem:[#allocation3 + $0x10] sm:$0xff] %vm2383, %v2364
  %2387 = vst.msk [vmem:[#allocation3 + $0x18] sm:$0xff] %vm2383, %v2366
  %2388 = vst.msk [vmem:[#allocation3 + $0x20] sm:$0xff] %vm2383, %v2368
  %2389 = vst.msk [vmem:[#allocation3 + $0x28] sm:$0xff] %vm2383, %v2370
  %2390 = vst.msk [vmem:[#allocation3 + $0x30] sm:$0xff] %vm2383, %v2372
  %2391 = vst.msk [vmem:[#allocation3 + $0x38] sm:$0xff] %vm2383, %v2374
  %v2392 = vld [vmem:[#allocation2 + $0x340] sm:$0xff]
  %v2393 = vld [vmem:[#allocation2 + $0x348] sm:$0xff]
  %v2394 = vld [vmem:[#allocation2 + $0x350] sm:$0xff]
  %v2395 = vld [vmem:[#allocation2 + $0x358] sm:$0xff]
  %v2396 = vld [vmem:[#allocation2 + $0x360] sm:$0xff]
  %v2397 = vld [vmem:[#allocation2 + $0x368] sm:$0xff]
  %v2398 = vld [vmem:[#allocation2 + $0x370] sm:$0xff]
  %v2399 = vld [vmem:[#allocation2 + $0x378] sm:$0xff]
  %2408 = vrot.lane.b32.xlu0 %v2392, 52
  %v2409 = vpop.permute.xlu0 %2408
  %2410 = vrot.lane.b32.xlu0 %v2393, 52
  %v2411 = vpop.permute.xlu0 %2410
  %2412 = vrot.lane.b32.xlu0 %v2394, 52
  %v2413 = vpop.permute.xlu0 %2412
  %2414 = vrot.lane.b32.xlu0 %v2395, 52
  %v2415 = vpop.permute.xlu0 %2414
  %2416 = vrot.lane.b32.xlu0 %v2396, 52
  %v2417 = vpop.permute.xlu0 %2416
  %2418 = vrot.lane.b32.xlu0 %v2397, 52
  %v2419 = vpop.permute.xlu0 %2418
  %2420 = vrot.lane.b32.xlu0 %v2398, 52
  %v2421 = vpop.permute.xlu0 %2420
  %2422 = vrot.lane.b32.xlu0 %v2399, 52
  %v2423 = vpop.permute.xlu0 %2422
  %vm2432 = vcmask 458144
  %2433 = vst.msk [vmem:[#allocation3] sm:$0xff] %vm2432, %v2409
  %2434 = vst.msk [vmem:[#allocation3 + $0x8] sm:$0xff] %vm2432, %v2411
  %2435 = vst.msk [vmem:[#allocation3 + $0x10] sm:$0xff] %vm2432, %v2413
  %2436 = vst.msk [vmem:[#allocation3 + $0x18] sm:$0xff] %vm2432, %v2415
  %2437 = vst.msk [vmem:[#allocation3 + $0x20] sm:$0xff] %vm2432, %v2417
  %2438 = vst.msk [vmem:[#allocation3 + $0x28] sm:$0xff] %vm2432, %v2419
  %2439 = vst.msk [vmem:[#allocation3 + $0x30] sm:$0xff] %vm2432, %v2421
  %2440 = vst.msk [vmem:[#allocation3 + $0x38] sm:$0xff] %vm2432, %v2423
  %v2441 = vld [vmem:[#allocation2 + $0x380] sm:$0xff]
  %v2442 = vld [vmem:[#allocation2 + $0x388] sm:$0xff]
  %v2443 = vld [vmem:[#allocation2 + $0x390] sm:$0xff]
  %v2444 = vld [vmem:[#allocation2 + $0x398] sm:$0xff]
  %v2445 = vld [vmem:[#allocation2 + $0x3a0] sm:$0xff]
  %v2446 = vld [vmem:[#allocation2 + $0x3a8] sm:$0xff]
  %v2447 = vld [vmem:[#allocation2 + $0x3b0] sm:$0xff]
  %v2448 = vld [vmem:[#allocation2 + $0x3b8] sm:$0xff]
  %2457 = vrot.lane.b32.xlu0 %v2441, 56
  %v2458 = vpop.permute.xlu0 %2457
  %2459 = vrot.lane.b32.xlu0 %v2442, 56
  %v2460 = vpop.permute.xlu0 %2459
  %2461 = vrot.lane.b32.xlu0 %v2443, 56
  %v2462 = vpop.permute.xlu0 %2461
  %2463 = vrot.lane.b32.xlu0 %v2444, 56
  %v2464 = vpop.permute.xlu0 %2463
  %2465 = vrot.lane.b32.xlu0 %v2445, 56
  %v2466 = vpop.permute.xlu0 %2465
  %2467 = vrot.lane.b32.xlu0 %v2446, 56
  %v2468 = vpop.permute.xlu0 %2467
  %2469 = vrot.lane.b32.xlu0 %v2447, 56
  %v2470 = vpop.permute.xlu0 %2469
  %2471 = vrot.lane.b32.xlu0 %v2448, 56
  %v2472 = vpop.permute.xlu0 %2471
  %vm2481 = vcmask 490944
  %2482 = vst.msk [vmem:[#allocation3] sm:$0xff] %vm2481, %v2458
  %2483 = vst.msk [vmem:[#allocation3 + $0x8] sm:$0xff] %vm2481, %v2460
  %2484 = vst.msk [vmem:[#allocation3 + $0x10] sm:$0xff] %vm2481, %v2462
  %2485 = vst.msk [vmem:[#allocation3 + $0x18] sm:$0xff] %vm2481, %v2464
  %2486 = vst.msk [vmem:[#allocation3 + $0x20] sm:$0xff] %vm2481, %v2466
  %2487 = vst.msk [vmem:[#allocation3 + $0x28] sm:$0xff] %vm2481, %v2468
  %2488 = vst.msk [vmem:[#allocation3 + $0x30] sm:$0xff] %vm2481, %v2470
  %2489 = vst.msk [vmem:[#allocation3 + $0x38] sm:$0xff] %vm2481, %v2472
  %v2490 = vld [vmem:[#allocation2 + $0x3c0] sm:$0xff]
  %v2491 = vld [vmem:[#allocation2 + $0x3c8] sm:$0xff]
  %v2492 = vld [vmem:[#allocation2 + $0x3d0] sm:$0xff]
  %v2493 = vld [vmem:[#allocation2 + $0x3d8] sm:$0xff]
  %v2494 = vld [vmem:[#allocation2 + $0x3e0] sm:$0xff]
  %v2495 = vld [vmem:[#allocation2 + $0x3e8] sm:$0xff]
  %v2496 = vld [vmem:[#allocation2 + $0x3f0] sm:$0xff]
  %v2497 = vld [vmem:[#allocation2 + $0x3f8] sm:$0xff]
  %2506 = vrot.lane.b32.xlu0 %v2490, 60
  %v2507 = vpop.permute.xlu0 %2506
  %2508 = vrot.lane.b32.xlu0 %v2491, 60
  %v2509 = vpop.permute.xlu0 %2508
  %2510 = vrot.lane.b32.xlu0 %v2492, 60
  %v2511 = vpop.permute.xlu0 %2510
  %2512 = vrot.lane.b32.xlu0 %v2493, 60
  %v2513 = vpop.permute.xlu0 %2512
  %2514 = vrot.lane.b32.xlu0 %v2494, 60
  %v2515 = vpop.permute.xlu0 %2514
  %2516 = vrot.lane.b32.xlu0 %v2495, 60
  %v2517 = vpop.permute.xlu0 %2516
  %2518 = vrot.lane.b32.xlu0 %v2496, 60
  %v2519 = vpop.permute.xlu0 %2518
  %2520 = vrot.lane.b32.xlu0 %v2497, 60
  %v2521 = vpop.permute.xlu0 %2520
  %vm2530 = vcmask 523744
  %2531 = vst.msk [vmem:[#allocation3] sm:$0xff] %vm2530, %v2507
  %2532 = vst.msk [vmem:[#allocation3 + $0x8] sm:$0xff] %vm2530, %v2509
  %2533 = vst.msk [vmem:[#allocation3 + $0x10] sm:$0xff] %vm2530, %v2511
  %2534 = vst.msk [vmem:[#allocation3 + $0x18] sm:$0xff] %vm2530, %v2513
  %2535 = vst.msk [vmem:[#allocation3 + $0x20] sm:$0xff] %vm2530, %v2515
  %2536 = vst.msk [vmem:[#allocation3 + $0x28] sm:$0xff] %vm2530, %v2517
  %2537 = vst.msk [vmem:[#allocation3 + $0x30] sm:$0xff] %vm2530, %v2519
  %2538 = vst.msk [vmem:[#allocation3 + $0x38] sm:$0xff] %vm2530, %v2521
  %v2539 = vld [vmem:[#allocation3] sm:$0xff]
  %v2540 = vld [vmem:[#allocation3 + $0x8] sm:$0xff]
  %v2541 = vld [vmem:[#allocation3 + $0x10] sm:$0xff]
  %v2542 = vld [vmem:[#allocation3 + $0x18] sm:$0xff]
  %v2543 = vld [vmem:[#allocation3 + $0x20] sm:$0xff]
  %v2544 = vld [vmem:[#allocation3 + $0x28] sm:$0xff]
  %v2545 = vld [vmem:[#allocation3 + $0x30] sm:$0xff]
  %v2546 = vld [vmem:[#allocation3 + $0x38] sm:$0xff]
  %v2547 = vpack.c.bf16 %v2540, %v2539
  %v2548 = vpack.c.bf16 %v2542, %v2541
  %v2549 = vpack.c.bf16 %v2544, %v2543
  %v2550 = vpack.c.bf16 %v2546, %v2545
  %v2559 = vunpack.c.l.b16 %v370
  %v2560 = vunpack.c.l.b16 %v371
  %v2561 = vunpack.c.l.b16 %v372
  %v2562 = vunpack.c.l.b16 %v373
  %v2563 = vunpack.c.l.b16 %v374
  %v2564 = vunpack.c.l.b16 %v375
  %v2565 = vunpack.c.l.b16 %v376
  %v2566 = vunpack.c.l.b16 %v377
  %v2567 = vpack.c.b16 %v2560, %v2559
  %v2568 = vpack.c.b16 %v2562, %v2561
  %v2569 = vpack.c.b16 %v2564, %v2563
  %v2570 = vpack.c.b16 %v2566, %v2565
  %vm2575 = vcmask 523264
  %v2577 = vsel %vm2575, %v2547, 0
  %v2580 = vsel %vm2575, %v2548, 0
  %v2583 = vsel %vm2575, %v2549, 0
  %v2586 = vsel %vm2575, %v2550, 0
  %2588 = vmatprep.subr.bf16.mxu0 0
  %2589 = vmatpush1.bf16.msra.mxu0 %v2567
  %2590 = vmatprep.subr.bf16.mxu0 0
  %2591 = vmatpush1.bf16.msra.mxu0 %v2568
  %2592 = vmatprep.subr.bf16.mxu0 0
  %2593 = vmatpush1.bf16.msra.mxu0 %v2569
  %2594 = vmatprep.subr.bf16.mxu0 0
  %2595 = vmatpush1.bf16.msra.mxu0 %v2570
  %2596 = vmatprep.subr.bf16.mxu0 0
  %2597 = vmatpush1.bf16.msra.mxu0 0
  %2598 = vmatprep.subr.bf16.mxu0 0
  %2599 = vmatpush1.bf16.msra.mxu0 0
  %2600 = vmatprep.subr.bf16.mxu0 0
  %2601 = vmatpush1.bf16.msra.mxu0 0
  %2602 = vmatprep.subr.bf16.mxu0 0
  %2603 = vmatpush1.bf16.msra.mxu0 0
  %2604 = vmatprep.subr.bf16.mxu0 0
  %2605 = vmatpush1.bf16.msra.mxu0 0
  %2606 = vmatprep.subr.bf16.mxu0 0
  %2607 = vmatpush1.bf16.msra.mxu0 0
  %2608 = vmatprep.subr.bf16.mxu0 0
  %2609 = vmatpush1.bf16.msra.mxu0 0
  %2610 = vmatprep.subr.bf16.mxu0 0
  %2611 = vmatpush1.bf16.msra.mxu0 0
  %2612 = vmatprep.subr.bf16.mxu0 0
  %2613 = vmatpush1.bf16.msra.mxu0 0
  %2614 = vmatprep.subr.bf16.mxu0 0
  %2615 = vmatpush1.bf16.msra.mxu0 0
  %2616 = vmatprep.subr.bf16.mxu0 0
  %2617 = vmatpush1.bf16.msra.mxu0 0
  %2618 = vmatprep.subr.bf16.mxu0 0
  %2619 = vmatpush1.bf16.msra.mxu0 0
  %2620 = vmatprep.mubr.bf16.mxu0 0
  %2621 = vmatmul.mubr.bf16.gmra.mrb[0].mxu0 %v2577
  %v2622 = vpop.f32.mrb[0].mxu0
  %v2623 = vadd.f32 0.0, %v2622
  %v2624 = vpop.f32.mrb[0].mxu0
  %v2625 = vpop.f32.mrb[0].mxu0
  %v2626 = vadd.f32 0.0, %v2625
  %v2627 = vpop.f32.mrb[0].mxu0
  %2628 = vmatprep.mubr.bf16.mxu0 0
  %2629 = vmatmul.mubr.bf16.gmra.mrb[0].mxu0 %v2580
  %v2630 = vpop.f32.mrb[0].mxu0
  %v2631 = vadd.f32 0.0, %v2630
  %v2632 = vpop.f32.mrb[0].mxu0
  %v2633 = vpop.f32.mrb[0].mxu0
  %v2634 = vadd.f32 0.0, %v2633
  %v2635 = vpop.f32.mrb[0].mxu0
  %2636 = vmatprep.mubr.bf16.mxu0 0
  %2637 = vmatmul.mubr.bf16.gmra.mrb[0].mxu0 %v2583
  %v2638 = vpop.f32.mrb[0].mxu0
  %v2639 = vadd.f32 0.0, %v2638
  %v2640 = vpop.f32.mrb[0].mxu0
  %v2641 = vpop.f32.mrb[0].mxu0
  %v2642 = vadd.f32 0.0, %v2641
  %v2643 = vpop.f32.mrb[0].mxu0
  %2644 = vmatprep.mubr.bf16.mxu0 0
  %2645 = vmatmul.mubr.bf16.gmra.mrb[0].mxu0 %v2586
  %v2646 = vpop.f32.mrb[0].mxu0
  %v2647 = vadd.f32 0.0, %v2646
  %v2648 = vpop.f32.mrb[0].mxu0
  %v2649 = vpop.f32.mrb[0].mxu0
  %v2650 = vadd.f32 0.0, %v2649
  %v2651 = vpop.f32.mrb[0].mxu0
  %2652 = vdwg.mxu0
  %vm2653 = vcmask 130048
  %2654 = vst.msk [vmem:[#allocation4] sm:$0xff] %vm2653, %v2623
  %2655 = vst.msk [vmem:[#allocation4 + $0x8] sm:$0xff] %vm2653, %v2626
  %2656 = vst.msk [vmem:[#allocation4 + $0x10] sm:$0xff] %vm2653, %v2631
  %2657 = vst.msk [vmem:[#allocation4 + $0x18] sm:$0xff] %vm2653, %v2634
  %2658 = vst.msk [vmem:[#allocation4 + $0x20] sm:$0xff] %vm2653, %v2639
  %2659 = vst.msk [vmem:[#allocation4 + $0x28] sm:$0xff] %vm2653, %v2642
  %2660 = vst.msk [vmem:[#allocation4 + $0x30] sm:$0xff] %vm2653, %v2647
  %2661 = vst.msk [vmem:[#allocation4 + $0x38] sm:$0xff] %vm2653, %v2650
  %v2694 = vunpack.c.l.b16 %v210
  %v2695 = vunpack.c.l.b16 %v211
  %v2696 = vunpack.c.l.b16 %v212
  %v2697 = vunpack.c.l.b16 %v213
  %v2698 = vunpack.c.l.b16 %v214
  %v2699 = vunpack.c.l.b16 %v215
  %v2700 = vunpack.c.l.b16 %v216
  %v2701 = vunpack.c.l.b16 %v217
  %v2702 = vunpack.c.l.b16 %v218
  %v2703 = vunpack.c.l.b16 %v219
  %v2704 = vunpack.c.l.b16 %v220
  %v2705 = vunpack.c.l.b16 %v221
  %v2706 = vunpack.c.l.b16 %v222
  %v2707 = vunpack.c.l.b16 %v223
  %v2708 = vunpack.c.l.b16 %v224
  %v2709 = vunpack.c.l.b16 %v225
  %v2710 = vunpack.c.l.b16 %v226
  %v2711 = vunpack.c.l.b16 %v227
  %v2712 = vunpack.c.l.b16 %v228
  %v2713 = vunpack.c.l.b16 %v229
  %v2714 = vunpack.c.l.b16 %v230
  %v2715 = vunpack.c.l.b16 %v231
  %v2716 = vunpack.c.l.b16 %v232
  %v2717 = vunpack.c.l.b16 %v233
  %v2718 = vunpack.c.l.b16 %v234
  %v2719 = vunpack.c.l.b16 %v235
  %v2720 = vunpack.c.l.b16 %v236
  %v2721 = vunpack.c.l.b16 %v237
  %v2722 = vunpack.c.l.b16 %v238
  %v2723 = vunpack.c.l.b16 %v239
  %v2724 = vunpack.c.l.b16 %v240
  %v2725 = vunpack.c.l.b16 %v241
  %v2726 = vpack.c.b16 %v2695, %v2694
  %v2727 = vpack.c.b16 %v2697, %v2696
  %v2728 = vpack.c.b16 %v2699, %v2698
  %v2729 = vpack.c.b16 %v2701, %v2700
  %v2730 = vpack.c.b16 %v2703, %v2702
  %v2731 = vpack.c.b16 %v2705, %v2704
  %v2732 = vpack.c.b16 %v2707, %v2706
  %v2733 = vpack.c.b16 %v2709, %v2708
  %v2734 = vpack.c.b16 %v2711, %v2710
  %v2735 = vpack.c.b16 %v2713, %v2712
  %v2736 = vpack.c.b16 %v2715, %v2714
  %v2737 = vpack.c.b16 %v2717, %v2716
  %v2738 = vpack.c.b16 %v2719, %v2718
  %v2739 = vpack.c.b16 %v2721, %v2720
  %v2740 = vpack.c.b16 %v2723, %v2722
  %v2741 = vpack.c.b16 %v2725, %v2724
  %2758 = vmatprep.subr.bf16.mxu0 0
  %2759 = vmatpush1.bf16.msra.mxu0 %v2726
  %2760 = vmatprep.subr.bf16.mxu0 0
  %2761 = vmatpush1.bf16.msra.mxu0 %v2727
  %2762 = vmatprep.subr.bf16.mxu0 0
  %2763 = vmatpush1.bf16.msra.mxu0 %v2728
  %2764 = vmatprep.subr.bf16.mxu0 0
  %2765 = vmatpush1.bf16.msra.mxu0 %v2729
  %2766 = vmatprep.subr.bf16.mxu0 0
  %2767 = vmatpush1.bf16.msra.mxu0 %v2730
  %2768 = vmatprep.subr.bf16.mxu0 0
  %2769 = vmatpush1.bf16.msra.mxu0 %v2731
  %2770 = vmatprep.subr.bf16.mxu0 0
  %2771 = vmatpush1.bf16.msra.mxu0 %v2732
  %2772 = vmatprep.subr.bf16.mxu0 0
  %2773 = vmatpush1.bf16.msra.mxu0 %v2733
  %2774 = vmatprep.subr.bf16.mxu0 0
  %2775 = vmatpush1.bf16.msra.mxu0 %v2734
  %2776 = vmatprep.subr.bf16.mxu0 0
  %2777 = vmatpush1.bf16.msra.mxu0 %v2735
  %2778 = vmatprep.subr.bf16.mxu0 0
  %2779 = vmatpush1.bf16.msra.mxu0 %v2736
  %2780 = vmatprep.subr.bf16.mxu0 0
  %2781 = vmatpush1.bf16.msra.mxu0 %v2737
  %2782 = vmatprep.subr.bf16.mxu0 0
  %2783 = vmatpush1.bf16.msra.mxu0 %v2738
  %2784 = vmatprep.subr.bf16.mxu0 0
  %2785 = vmatpush1.bf16.msra.mxu0 %v2739
  %2786 = vmatprep.subr.bf16.mxu0 0
  %2787 = vmatpush1.bf16.msra.mxu0 %v2740
  %2788 = vmatprep.subr.bf16.mxu0 0
  %2789 = vmatpush1.bf16.msra.mxu0 %v2741
  %2790 = vmatprep.mubr.bf16.mxu0 %v763
  %2791 = vmatmul.mubr.bf16.gmra.mrb[0].mxu0 %v762
  %v2792 = vpop.f32.mrb[0].mxu0
  %v2793 = vadd.f32 0.0, %v2792
  %v2794 = vpop.f32.mrb[0].mxu0
  %v2795 = vpop.f32.mrb[0].mxu0
  %v2796 = vadd.f32 0.0, %v2795
  %v2797 = vpop.f32.mrb[0].mxu0
  %2798 = vmatprep.mubr.bf16.mxu0 %v765
  %2799 = vmatmul.mubr.bf16.gmra.mrb[0].mxu0 %v764
  %v2800 = vpop.f32.mrb[0].mxu0
  %v2801 = vadd.f32 0.0, %v2800
  %v2802 = vpop.f32.mrb[0].mxu0
  %v2803 = vpop.f32.mrb[0].mxu0
  %v2804 = vadd.f32 0.0, %v2803
  %v2805 = vpop.f32.mrb[0].mxu0
  %2806 = vmatprep.mubr.bf16.mxu0 %v767
  %2807 = vmatmul.mubr.bf16.gmra.mrb[0].mxu0 %v766
  %v2808 = vpop.f32.mrb[0].mxu0
  %v2809 = vadd.f32 0.0, %v2808
  %v2810 = vpop.f32.mrb[0].mxu0
  %v2811 = vpop.f32.mrb[0].mxu0
  %v2812 = vadd.f32 0.0, %v2811
  %v2813 = vpop.f32.mrb[0].mxu0
  %2814 = vmatprep.mubr.bf16.mxu0 %v769
  %2815 = vmatmul.mubr.bf16.gmra.mrb[0].mxu0 %v768
  %v2816 = vpop.f32.mrb[0].mxu0
  %v2817 = vadd.f32 0.0, %v2816
  %v2818 = vpop.f32.mrb[0].mxu0
  %v2819 = vpop.f32.mrb[0].mxu0
  %v2820 = vadd.f32 0.0, %v2819
  %v2821 = vpop.f32.mrb[0].mxu0
  %2822 = vmatprep.mubr.bf16.mxu0 %v771
  %2823 = vmatmul.mubr.bf16.gmra.mrb[0].mxu0 %v770
  %v2824 = vpop.f32.mrb[0].mxu0
  %v2825 = vadd.f32 0.0, %v2824
  %v2826 = vpop.f32.mrb[0].mxu0
  %v2827 = vpop.f32.mrb[0].mxu0
  %v2828 = vadd.f32 0.0, %v2827
  %v2829 = vpop.f32.mrb[0].mxu0
  %2830 = vmatprep.mubr.bf16.mxu0 %v773
  %2831 = vmatmul.mubr.bf16.gmra.mrb[0].mxu0 %v772
  %v2832 = vpop.f32.mrb[0].mxu0
  %v2833 = vadd.f32 0.0, %v2832
  %v2834 = vpop.f32.mrb[0].mxu0
  %v2835 = vpop.f32.mrb[0].mxu0
  %v2836 = vadd.f32 0.0, %v2835
  %v2837 = vpop.f32.mrb[0].mxu0
  %2838 = vmatprep.mubr.bf16.mxu0 %v775
  %2839 = vmatmul.mubr.bf16.gmra.mrb[0].mxu0 %v774
  %v2840 = vpop.f32.mrb[0].mxu0
  %v2841 = vadd.f32 0.0, %v2840
  %v2842 = vpop.f32.mrb[0].mxu0
  %v2843 = vpop.f32.mrb[0].mxu0
  %v2844 = vadd.f32 0.0, %v2843
  %v2845 = vpop.f32.mrb[0].mxu0
  %2846 = vmatprep.mubr.bf16.mxu0 %v777
  %2847 = vmatmul.mubr.bf16.gmra.mrb[0].mxu0 %v776
  %v2848 = vpop.f32.mrb[0].mxu0
  %v2849 = vadd.f32 0.0, %v2848
  %v2850 = vpop.f32.mrb[0].mxu0
  %v2851 = vpop.f32.mrb[0].mxu0
  %v2852 = vadd.f32 0.0, %v2851
  %v2853 = vpop.f32.mrb[0].mxu0
  %2854 = vmatprep.mubr.bf16.mxu0 %v779
  %2855 = vmatmul.mubr.bf16.gmra.mrb[0].mxu0 %v778
  %v2856 = vpop.f32.mrb[0].mxu0
  %v2857 = vadd.f32 0.0, %v2856
  %v2858 = vpop.f32.mrb[0].mxu0
  %v2859 = vpop.f32.mrb[0].mxu0
  %v2860 = vadd.f32 0.0, %v2859
  %v2861 = vpop.f32.mrb[0].mxu0
  %2862 = vmatprep.mubr.bf16.mxu0 %v781
  %2863 = vmatmul.mubr.bf16.gmra.mrb[0].mxu0 %v780
  %v2864 = vpop.f32.mrb[0].mxu0
  %v2865 = vadd.f32 0.0, %v2864
  %v2866 = vpop.f32.mrb[0].mxu0
  %v2867 = vpop.f32.mrb[0].mxu0
  %v2868 = vadd.f32 0.0, %v2867
  %v2869 = vpop.f32.mrb[0].mxu0
  %2870 = vmatprep.mubr.bf16.mxu0 %v783
  %2871 = vmatmul.mubr.bf16.gmra.mrb[0].mxu0 %v782
  %v2872 = vpop.f32.mrb[0].mxu0
  %v2873 = vadd.f32 0.0, %v2872
  %v2874 = vpop.f32.mrb[0].mxu0
  %v2875 = vpop.f32.mrb[0].mxu0
  %v2876 = vadd.f32 0.0, %v2875
  %v2877 = vpop.f32.mrb[0].mxu0
  %2878 = vmatprep.mubr.bf16.mxu0 %v785
  %2879 = vmatmul.mubr.bf16.gmra.mrb[0].mxu0 %v784
  %v2880 = vpop.f32.mrb[0].mxu0
  %v2881 = vadd.f32 0.0, %v2880
  %v2882 = vpop.f32.mrb[0].mxu0
  %v2883 = vpop.f32.mrb[0].mxu0
  %v2884 = vadd.f32 0.0, %v2883
  %v2885 = vpop.f32.mrb[0].mxu0
  %2886 = vmatprep.mubr.bf16.mxu0 %v787
  %2887 = vmatmul.mubr.bf16.gmra.mrb[0].mxu0 %v786
  %v2888 = vpop.f32.mrb[0].mxu0
  %v2889 = vadd.f32 0.0, %v2888
  %v2890 = vpop.f32.mrb[0].mxu0
  %v2891 = vpop.f32.mrb[0].mxu0
  %v2892 = vadd.f32 0.0, %v2891
  %v2893 = vpop.f32.mrb[0].mxu0
  %2894 = vmatprep.mubr.bf16.mxu0 %v789
  %2895 = vmatmul.mubr.bf16.gmra.mrb[0].mxu0 %v788
  %v2896 = vpop.f32.mrb[0].mxu0
  %v2897 = vadd.f32 0.0, %v2896
  %v2898 = vpop.f32.mrb[0].mxu0
  %v2899 = vpop.f32.mrb[0].mxu0
  %v2900 = vadd.f32 0.0, %v2899
  %v2901 = vpop.f32.mrb[0].mxu0
  %2902 = vmatprep.mubr.bf16.mxu0 %v791
  %2903 = vmatmul.mubr.bf16.gmra.mrb[0].mxu0 %v790
  %v2904 = vpop.f32.mrb[0].mxu0
  %v2905 = vadd.f32 0.0, %v2904
  %v2906 = vpop.f32.mrb[0].mxu0
  %v2907 = vpop.f32.mrb[0].mxu0
  %v2908 = vadd.f32 0.0, %v2907
  %v2909 = vpop.f32.mrb[0].mxu0
  %2910 = vmatprep.mubr.bf16.mxu0 %v793
  %2911 = vmatmul.mubr.bf16.gmra.mrb[0].mxu0 %v792
  %v2912 = vpop.f32.mrb[0].mxu0
  %v2913 = vadd.f32 0.0, %v2912
  %v2914 = vpop.f32.mrb[0].mxu0
  %v2915 = vpop.f32.mrb[0].mxu0
  %v2916 = vadd.f32 0.0, %v2915
  %v2917 = vpop.f32.mrb[0].mxu0
  %2918 = vmatprep.mubr.bf16.mxu0 %v795
  %2919 = vmatmul.mubr.bf16.gmra.mrb[0].mxu0 %v794
  %v2920 = vpop.f32.mrb[0].mxu0
  %v2921 = vadd.f32 0.0, %v2920
  %v2922 = vpop.f32.mrb[0].mxu0
  %v2923 = vpop.f32.mrb[0].mxu0
  %v2924 = vadd.f32 0.0, %v2923
  %v2925 = vpop.f32.mrb[0].mxu0
  %2926 = vmatprep.mubr.bf16.mxu0 %v797
  %2927 = vmatmul.mubr.bf16.gmra.mrb[0].mxu0 %v796
  %v2928 = vpop.f32.mrb[0].mxu0
  %v2929 = vadd.f32 0.0, %v2928
  %v2930 = vpop.f32.mrb[0].mxu0
  %v2931 = vpop.f32.mrb[0].mxu0
  %v2932 = vadd.f32 0.0, %v2931
  %v2933 = vpop.f32.mrb[0].mxu0
  %2934 = vmatprep.mubr.bf16.mxu0 %v799
  %2935 = vmatmul.mubr.bf16.gmra.mrb[0].mxu0 %v798
  %v2936 = vpop.f32.mrb[0].mxu0
  %v2937 = vadd.f32 0.0, %v2936
  %v2938 = vpop.f32.mrb[0].mxu0
  %v2939 = vpop.f32.mrb[0].mxu0
  %v2940 = vadd.f32 0.0, %v2939
  %v2941 = vpop.f32.mrb[0].mxu0
  %2942 = vmatprep.mubr.bf16.mxu0 %v801
  %2943 = vmatmul.mubr.bf16.gmra.mrb[0].mxu0 %v800
  %v2944 = vpop.f32.mrb[0].mxu0
  %v2945 = vadd.f32 0.0, %v2944
  %v2946 = vpop.f32.mrb[0].mxu0
  %v2947 = vpop.f32.mrb[0].mxu0
  %v2948 = vadd.f32 0.0, %v2947
  %v2949 = vpop.f32.mrb[0].mxu0
  %2950 = vmatprep.mubr.bf16.mxu0 %v803
  %2951 = vmatmul.mubr.bf16.gmra.mrb[0].mxu0 %v802
  %v2952 = vpop.f32.mrb[0].mxu0
  %v2953 = vadd.f32 0.0, %v2952
  %v2954 = vpop.f32.mrb[0].mxu0
  %v2955 = vpop.f32.mrb[0].mxu0
  %v2956 = vadd.f32 0.0, %v2955
  %v2957 = vpop.f32.mrb[0].mxu0
  %2958 = vmatprep.mubr.bf16.mxu0 %v805
  %2959 = vmatmul.mubr.bf16.gmra.mrb[0].mxu0 %v804
  %v2960 = vpop.f32.mrb[0].mxu0
  %v2961 = vadd.f32 0.0, %v2960
  %v2962 = vpop.f32.mrb[0].mxu0
  %v2963 = vpop.f32.mrb[0].mxu0
  %v2964 = vadd.f32 0.0, %v2963
  %v2965 = vpop.f32.mrb[0].mxu0
  %2966 = vmatprep.mubr.bf16.mxu0 %v807
  %2967 = vmatmul.mubr.bf16.gmra.mrb[0].mxu0 %v806
  %v2968 = vpop.f32.mrb[0].mxu0
  %v2969 = vadd.f32 0.0, %v2968
  %v2970 = vpop.f32.mrb[0].mxu0
  %v2971 = vpop.f32.mrb[0].mxu0
  %v2972 = vadd.f32 0.0, %v2971
  %v2973 = vpop.f32.mrb[0].mxu0
  %2974 = vmatprep.mubr.bf16.mxu0 %v809
  %2975 = vmatmul.mubr.bf16.gmra.mrb[0].mxu0 %v808
  %v2976 = vpop.f32.mrb[0].mxu0
  %v2977 = vadd.f32 0.0, %v2976
  %v2978 = vpop.f32.mrb[0].mxu0
  %v2979 = vpop.f32.mrb[0].mxu0
  %v2980 = vadd.f32 0.0, %v2979
  %v2981 = vpop.f32.mrb[0].mxu0
  %2982 = vmatprep.mubr.bf16.mxu0 %v811
  %2983 = vmatmul.mubr.bf16.gmra.mrb[0].mxu0 %v810
  %v2984 = vpop.f32.mrb[0].mxu0
  %v2985 = vadd.f32 0.0, %v2984
  %v2986 = vpop.f32.mrb[0].mxu0
  %v2987 = vpop.f32.mrb[0].mxu0
  %v2988 = vadd.f32 0.0, %v2987
  %v2989 = vpop.f32.mrb[0].mxu0
  %2990 = vmatprep.mubr.bf16.mxu0 %v813
  %2991 = vmatmul.mubr.bf16.gmra.mrb[0].mxu0 %v812
  %v2992 = vpop.f32.mrb[0].mxu0
  %v2993 = vadd.f32 0.0, %v2992
  %v2994 = vpop.f32.mrb[0].mxu0
  %v2995 = vpop.f32.mrb[0].mxu0
  %v2996 = vadd.f32 0.0, %v2995
  %v2997 = vpop.f32.mrb[0].mxu0
  %2998 = vmatprep.mubr.bf16.mxu0 %v815
  %2999 = vmatmul.mubr.bf16.gmra.mrb[0].mxu0 %v814
  %v3000 = vpop.f32.mrb[0].mxu0
  %v3001 = vadd.f32 0.0, %v3000
  %v3002 = vpop.f32.mrb[0].mxu0
  %v3003 = vpop.f32.mrb[0].mxu0
  %v3004 = vadd.f32 0.0, %v3003
  %v3005 = vpop.f32.mrb[0].mxu0
  %3006 = vmatprep.mubr.bf16.mxu0 %v817
  %3007 = vmatmul.mubr.bf16.gmra.mrb[0].mxu0 %v816
  %v3008 = vpop.f32.mrb[0].mxu0
  %v3009 = vadd.f32 0.0, %v3008
  %v3010 = vpop.f32.mrb[0].mxu0
  %v3011 = vpop.f32.mrb[0].mxu0
  %v3012 = vadd.f32 0.0, %v3011
  %v3013 = vpop.f32.mrb[0].mxu0
  %3014 = vmatprep.mubr.bf16.mxu0 %v819
  %3015 = vmatmul.mubr.bf16.gmra.mrb[0].mxu0 %v818
  %v3016 = vpop.f32.mrb[0].mxu0
  %v3017 = vadd.f32 0.0, %v3016
  %v3018 = vpop.f32.mrb[0].mxu0
  %v3019 = vpop.f32.mrb[0].mxu0
  %v3020 = vadd.f32 0.0, %v3019
  %v3021 = vpop.f32.mrb[0].mxu0
  %3022 = vmatprep.mubr.bf16.mxu0 %v821
  %3023 = vmatmul.mubr.bf16.gmra.mrb[0].mxu0 %v820
  %v3024 = vpop.f32.mrb[0].mxu0
  %v3025 = vadd.f32 0.0, %v3024
  %v3026 = vpop.f32.mrb[0].mxu0
  %v3027 = vpop.f32.mrb[0].mxu0
  %v3028 = vadd.f32 0.0, %v3027
  %v3029 = vpop.f32.mrb[0].mxu0
  %3030 = vmatprep.mubr.bf16.mxu0 %v823
  %3031 = vmatmul.mubr.bf16.gmra.mrb[0].mxu0 %v822
  %v3032 = vpop.f32.mrb[0].mxu0
  %v3033 = vadd.f32 0.0, %v3032
  %v3034 = vpop.f32.mrb[0].mxu0
  %v3035 = vpop.f32.mrb[0].mxu0
  %v3036 = vadd.f32 0.0, %v3035
  %v3037 = vpop.f32.mrb[0].mxu0
  %3038 = vmatprep.mubr.bf16.mxu0 %v825
  %3039 = vmatmul.mubr.bf16.gmra.mrb[0].mxu0 %v824
  %v3040 = vpop.f32.mrb[0].mxu0
  %v3041 = vadd.f32 0.0, %v3040
  %v3042 = vpop.f32.mrb[0].mxu0
  %v3043 = vpop.f32.mrb[0].mxu0
  %v3044 = vadd.f32 0.0, %v3043
  %v3045 = vpop.f32.mrb[0].mxu0
  %3046 = vmatprep.mubr.bf16.mxu0 %v827
  %3047 = vmatmul.mubr.bf16.gmra.mrb[0].mxu0 %v826
  %v3048 = vpop.f32.mrb[0].mxu0
  %v3049 = vadd.f32 0.0, %v3048
  %v3050 = vpop.f32.mrb[0].mxu0
  %v3051 = vpop.f32.mrb[0].mxu0
  %v3052 = vadd.f32 0.0, %v3051
  %v3053 = vpop.f32.mrb[0].mxu0
  %3054 = vmatprep.mubr.bf16.mxu0 %v829
  %3055 = vmatmul.mubr.bf16.gmra.mrb[0].mxu0 %v828
  %v3056 = vpop.f32.mrb[0].mxu0
  %v3057 = vadd.f32 0.0, %v3056
  %v3058 = vpop.f32.mrb[0].mxu0
  %v3059 = vpop.f32.mrb[0].mxu0
  %v3060 = vadd.f32 0.0, %v3059
  %v3061 = vpop.f32.mrb[0].mxu0
  %3062 = vmatprep.mubr.bf16.mxu0 %v831
  %3063 = vmatmul.mubr.bf16.gmra.mrb[0].mxu0 %v830
  %v3064 = vpop.f32.mrb[0].mxu0
  %v3065 = vadd.f32 0.0, %v3064
  %v3066 = vpop.f32.mrb[0].mxu0
  %v3067 = vpop.f32.mrb[0].mxu0
  %v3068 = vadd.f32 0.0, %v3067
  %v3069 = vpop.f32.mrb[0].mxu0
  %3070 = vmatprep.mubr.bf16.mxu0 %v833
  %3071 = vmatmul.mubr.bf16.gmra.mrb[0].mxu0 %v832
  %v3072 = vpop.f32.mrb[0].mxu0
  %v3073 = vadd.f32 0.0, %v3072
  %v3074 = vpop.f32.mrb[0].mxu0
  %v3075 = vpop.f32.mrb[0].mxu0
  %v3076 = vadd.f32 0.0, %v3075
  %v3077 = vpop.f32.mrb[0].mxu0
  %3078 = vmatprep.mubr.bf16.mxu0 %v835
  %3079 = vmatmul.mubr.bf16.gmra.mrb[0].mxu0 %v834
  %v3080 = vpop.f32.mrb[0].mxu0
  %v3081 = vadd.f32 0.0, %v3080
  %v3082 = vpop.f32.mrb[0].mxu0
  %v3083 = vpop.f32.mrb[0].mxu0
  %v3084 = vadd.f32 0.0, %v3083
  %v3085 = vpop.f32.mrb[0].mxu0
  %3086 = vmatprep.mubr.bf16.mxu0 %v837
  %3087 = vmatmul.mubr.bf16.gmra.mrb[0].mxu0 %v836
  %v3088 = vpop.f32.mrb[0].mxu0
  %v3089 = vadd.f32 0.0, %v3088
  %v3090 = vpop.f32.mrb[0].mxu0
  %v3091 = vpop.f32.mrb[0].mxu0
  %v3092 = vadd.f32 0.0, %v3091
  %v3093 = vpop.f32.mrb[0].mxu0
  %3094 = vmatprep.mubr.bf16.mxu0 %v839
  %3095 = vmatmul.mubr.bf16.gmra.mrb[0].mxu0 %v838
  %v3096 = vpop.f32.mrb[0].mxu0
  %v3097 = vadd.f32 0.0, %v3096
  %v3098 = vpop.f32.mrb[0].mxu0
  %v3099 = vpop.f32.mrb[0].mxu0
  %v3100 = vadd.f32 0.0, %v3099
  %v3101 = vpop.f32.mrb[0].mxu0
  %3102 = vmatprep.mubr.bf16.mxu0 %v841
  %3103 = vmatmul.mubr.bf16.gmra.mrb[0].mxu0 %v840
  %v3104 = vpop.f32.mrb[0].mxu0
  %v3105 = vadd.f32 0.0, %v3104
  %v3106 = vpop.f32.mrb[0].mxu0
  %v3107 = vpop.f32.mrb[0].mxu0
  %v3108 = vadd.f32 0.0, %v3107
  %v3109 = vpop.f32.mrb[0].mxu0
  %3110 = vmatprep.mubr.bf16.mxu0 %v843
  %3111 = vmatmul.mubr.bf16.gmra.mrb[0].mxu0 %v842
  %v3112 = vpop.f32.mrb[0].mxu0
  %v3113 = vadd.f32 0.0, %v3112
  %v3114 = vpop.f32.mrb[0].mxu0
  %v3115 = vpop.f32.mrb[0].mxu0
  %v3116 = vadd.f32 0.0, %v3115
  %v3117 = vpop.f32.mrb[0].mxu0
  %3118 = vmatprep.mubr.bf16.mxu0 %v845
  %3119 = vmatmul.mubr.bf16.gmra.mrb[0].mxu0 %v844
  %v3120 = vpop.f32.mrb[0].mxu0
  %v3121 = vadd.f32 0.0, %v3120
  %v3122 = vpop.f32.mrb[0].mxu0
  %v3123 = vpop.f32.mrb[0].mxu0
  %v3124 = vadd.f32 0.0, %v3123
  %v3125 = vpop.f32.mrb[0].mxu0
  %3126 = vmatprep.mubr.bf16.mxu0 %v847
  %3127 = vmatmul.mubr.bf16.gmra.mrb[0].mxu0 %v846
  %v3128 = vpop.f32.mrb[0].mxu0
  %v3129 = vadd.f32 0.0, %v3128
  %v3130 = vpop.f32.mrb[0].mxu0
  %v3131 = vpop.f32.mrb[0].mxu0
  %v3132 = vadd.f32 0.0, %v3131
  %v3133 = vpop.f32.mrb[0].mxu0
  %3134 = vmatprep.mubr.bf16.mxu0 %v849
  %3135 = vmatmul.mubr.bf16.gmra.mrb[0].mxu0 %v848
  %v3136 = vpop.f32.mrb[0].mxu0
  %v3137 = vadd.f32 0.0, %v3136
  %v3138 = vpop.f32.mrb[0].mxu0
  %v3139 = vpop.f32.mrb[0].mxu0
  %v3140 = vadd.f32 0.0, %v3139
  %v3141 = vpop.f32.mrb[0].mxu0
  %3142 = vmatprep.mubr.bf16.mxu0 %v851
  %3143 = vmatmul.mubr.bf16.gmra.mrb[0].mxu0 %v850
  %v3144 = vpop.f32.mrb[0].mxu0
  %v3145 = vadd.f32 0.0, %v3144
  %v3146 = vpop.f32.mrb[0].mxu0
  %v3147 = vpop.f32.mrb[0].mxu0
  %v3148 = vadd.f32 0.0, %v3147
  %v3149 = vpop.f32.mrb[0].mxu0
  %3150 = vmatprep.mubr.bf16.mxu0 %v853
  %3151 = vmatmul.mubr.bf16.gmra.mrb[0].mxu0 %v852
  %v3152 = vpop.f32.mrb[0].mxu0
  %v3153 = vadd.f32 0.0, %v3152
  %v3154 = vpop.f32.mrb[0].mxu0
  %v3155 = vpop.f32.mrb[0].mxu0
  %v3156 = vadd.f32 0.0, %v3155
  %v3157 = vpop.f32.mrb[0].mxu0
  %3158 = vmatprep.mubr.bf16.mxu0 %v855
  %3159 = vmatmul.mubr.bf16.gmra.mrb[0].mxu0 %v854
  %v3160 = vpop.f32.mrb[0].mxu0
  %v3161 = vadd.f32 0.0, %v3160
  %v3162 = vpop.f32.mrb[0].mxu0
  %v3163 = vpop.f32.mrb[0].mxu0
  %v3164 = vadd.f32 0.0, %v3163
  %v3165 = vpop.f32.mrb[0].mxu0
  %3166 = vmatprep.mubr.bf16.mxu0 %v857
  %3167 = vmatmul.mubr.bf16.gmra.mrb[0].mxu0 %v856
  %v3168 = vpop.f32.mrb[0].mxu0
  %v3169 = vadd.f32 0.0, %v3168
  %v3170 = vpop.f32.mrb[0].mxu0
  %v3171 = vpop.f32.mrb[0].mxu0
  %v3172 = vadd.f32 0.0, %v3171
  %v3173 = vpop.f32.mrb[0].mxu0
  %3174 = vmatprep.mubr.bf16.mxu0 %v859
  %3175 = vmatmul.mubr.bf16.gmra.mrb[0].mxu0 %v858
  %v3176 = vpop.f32.mrb[0].mxu0
  %v3177 = vadd.f32 0.0, %v3176
  %v3178 = vpop.f32.mrb[0].mxu0
  %v3179 = vpop.f32.mrb[0].mxu0
  %v3180 = vadd.f32 0.0, %v3179
  %v3181 = vpop.f32.mrb[0].mxu0
  %3182 = vmatprep.mubr.bf16.mxu0 %v861
  %3183 = vmatmul.mubr.bf16.gmra.mrb[0].mxu0 %v860
  %v3184 = vpop.f32.mrb[0].mxu0
  %v3185 = vadd.f32 0.0, %v3184
  %v3186 = vpop.f32.mrb[0].mxu0
  %v3187 = vpop.f32.mrb[0].mxu0
  %v3188 = vadd.f32 0.0, %v3187
  %v3189 = vpop.f32.mrb[0].mxu0
  %3190 = vmatprep.mubr.bf16.mxu0 %v863
  %3191 = vmatmul.mubr.bf16.gmra.mrb[0].mxu0 %v862
  %v3192 = vpop.f32.mrb[0].mxu0
  %v3193 = vadd.f32 0.0, %v3192
  %v3194 = vpop.f32.mrb[0].mxu0
  %v3195 = vpop.f32.mrb[0].mxu0
  %v3196 = vadd.f32 0.0, %v3195
  %v3197 = vpop.f32.mrb[0].mxu0
  %3198 = vmatprep.mubr.bf16.mxu0 %v865
  %3199 = vmatmul.mubr.bf16.gmra.mrb[0].mxu0 %v864
  %v3200 = vpop.f32.mrb[0].mxu0
  %v3201 = vadd.f32 0.0, %v3200
  %v3202 = vpop.f32.mrb[0].mxu0
  %v3203 = vpop.f32.mrb[0].mxu0
  %v3204 = vadd.f32 0.0, %v3203
  %v3205 = vpop.f32.mrb[0].mxu0
  %3206 = vmatprep.mubr.bf16.mxu0 %v867
  %3207 = vmatmul.mubr.bf16.gmra.mrb[0].mxu0 %v866
  %v3208 = vpop.f32.mrb[0].mxu0
  %v3209 = vadd.f32 0.0, %v3208
  %v3210 = vpop.f32.mrb[0].mxu0
  %v3211 = vpop.f32.mrb[0].mxu0
  %v3212 = vadd.f32 0.0, %v3211
  %v3213 = vpop.f32.mrb[0].mxu0
  %3214 = vmatprep.mubr.bf16.mxu0 %v869
  %3215 = vmatmul.mubr.bf16.gmra.mrb[0].mxu0 %v868
  %v3216 = vpop.f32.mrb[0].mxu0
  %v3217 = vadd.f32 0.0, %v3216
  %v3218 = vpop.f32.mrb[0].mxu0
  %v3219 = vpop.f32.mrb[0].mxu0
  %v3220 = vadd.f32 0.0, %v3219
  %v3221 = vpop.f32.mrb[0].mxu0
  %3222 = vmatprep.mubr.bf16.mxu0 %v871
  %3223 = vmatmul.mubr.bf16.gmra.mrb[0].mxu0 %v870
  %v3224 = vpop.f32.mrb[0].mxu0
  %v3225 = vadd.f32 0.0, %v3224
  %v3226 = vpop.f32.mrb[0].mxu0
  %v3227 = vpop.f32.mrb[0].mxu0
  %v3228 = vadd.f32 0.0, %v3227
  %v3229 = vpop.f32.mrb[0].mxu0
  %3230 = vmatprep.mubr.bf16.mxu0 %v873
  %3231 = vmatmul.mubr.bf16.gmra.mrb[0].mxu0 %v872
  %v3232 = vpop.f32.mrb[0].mxu0
  %v3233 = vadd.f32 0.0, %v3232
  %v3234 = vpop.f32.mrb[0].mxu0
  %v3235 = vpop.f32.mrb[0].mxu0
  %v3236 = vadd.f32 0.0, %v3235
  %v3237 = vpop.f32.mrb[0].mxu0
  %3238 = vmatprep.mubr.bf16.mxu0 %v875
  %3239 = vmatmul.mubr.bf16.gmra.mrb[0].mxu0 %v874
  %v3240 = vpop.f32.mrb[0].mxu0
  %v3241 = vadd.f32 0.0, %v3240
  %v3242 = vpop.f32.mrb[0].mxu0
  %v3243 = vpop.f32.mrb[0].mxu0
  %v3244 = vadd.f32 0.0, %v3243
  %v3245 = vpop.f32.mrb[0].mxu0
  %3246 = vmatprep.mubr.bf16.mxu0 %v877
  %3247 = vmatmul.mubr.bf16.gmra.mrb[0].mxu0 %v876
  %v3248 = vpop.f32.mrb[0].mxu0
  %v3249 = vadd.f32 0.0, %v3248
  %v3250 = vpop.f32.mrb[0].mxu0
  %v3251 = vpop.f32.mrb[0].mxu0
  %v3252 = vadd.f32 0.0, %v3251
  %v3253 = vpop.f32.mrb[0].mxu0
  %3254 = vmatprep.mubr.bf16.mxu0 %v879
  %3255 = vmatmul.mubr.bf16.gmra.mrb[0].mxu0 %v878
  %v3256 = vpop.f32.mrb[0].mxu0
  %v3257 = vadd.f32 0.0, %v3256
  %v3258 = vpop.f32.mrb[0].mxu0
  %v3259 = vpop.f32.mrb[0].mxu0
  %v3260 = vadd.f32 0.0, %v3259
  %v3261 = vpop.f32.mrb[0].mxu0
  %3262 = vmatprep.mubr.bf16.mxu0 %v881
  %3263 = vmatmul.mubr.bf16.gmra.mrb[0].mxu0 %v880
  %v3264 = vpop.f32.mrb[0].mxu0
  %v3265 = vadd.f32 0.0, %v3264
  %v3266 = vpop.f32.mrb[0].mxu0
  %v3267 = vpop.f32.mrb[0].mxu0
  %v3268 = vadd.f32 0.0, %v3267
  %v3269 = vpop.f32.mrb[0].mxu0
  %3270 = vmatprep.mubr.bf16.mxu0 %v883
  %3271 = vmatmul.mubr.bf16.gmra.mrb[0].mxu0 %v882
  %v3272 = vpop.f32.mrb[0].mxu0
  %v3273 = vadd.f32 0.0, %v3272
  %v3274 = vpop.f32.mrb[0].mxu0
  %v3275 = vpop.f32.mrb[0].mxu0
  %v3276 = vadd.f32 0.0, %v3275
  %v3277 = vpop.f32.mrb[0].mxu0
  %3278 = vmatprep.mubr.bf16.mxu0 %v885
  %3279 = vmatmul.mubr.bf16.gmra.mrb[0].mxu0 %v884
  %v3280 = vpop.f32.mrb[0].mxu0
  %v3281 = vadd.f32 0.0, %v3280
  %v3282 = vpop.f32.mrb[0].mxu0
  %v3283 = vpop.f32.mrb[0].mxu0
  %v3284 = vadd.f32 0.0, %v3283
  %v3285 = vpop.f32.mrb[0].mxu0
  %3286 = vmatprep.mubr.bf16.mxu0 %v887
  %3287 = vmatmul.mubr.bf16.gmra.mrb[0].mxu0 %v886
  %v3288 = vpop.f32.mrb[0].mxu0
  %v3289 = vadd.f32 0.0, %v3288
  %v3290 = vpop.f32.mrb[0].mxu0
  %v3291 = vpop.f32.mrb[0].mxu0
  %v3292 = vadd.f32 0.0, %v3291
  %v3293 = vpop.f32.mrb[0].mxu0
  %3294 = vmatprep.mubr.bf16.mxu0 %v889
  %3295 = vmatmul.mubr.bf16.gmra.mrb[0].mxu0 %v888
  %v3296 = vpop.f32.mrb[0].mxu0
  %v3297 = vadd.f32 0.0, %v3296
  %v3298 = vpop.f32.mrb[0].mxu0
  %v3299 = vpop.f32.mrb[0].mxu0
  %v3300 = vadd.f32 0.0, %v3299
  %v3301 = vpop.f32.mrb[0].mxu0
  %3302 = vdwg.mxu0
  %3303 = vst.msk [vmem:[#allocation2] sm:$0xff] %vm1659, %v2793
  %3304 = vst.msk [vmem:[#allocation2 + $0x8] sm:$0xff] %vm1659, %v2796
  %3305 = vst.msk [vmem:[#allocation2 + $0x10] sm:$0xff] %vm1659, %v2801
  %3306 = vst.msk [vmem:[#allocation2 + $0x18] sm:$0xff] %vm1659, %v2804
  %3307 = vst.msk [vmem:[#allocation2 + $0x20] sm:$0xff] %vm1659, %v2809
  %3308 = vst.msk [vmem:[#allocation2 + $0x28] sm:$0xff] %vm1659, %v2812
  %3309 = vst.msk [vmem:[#allocation2 + $0x30] sm:$0xff] %vm1659, %v2817
  %3310 = vst.msk [vmem:[#allocation2 + $0x38] sm:$0xff] %vm1659, %v2820
  %3311 = vst.msk [vmem:[#allocation2 + $0x40] sm:$0xff] %vm1659, %v2825
  %3312 = vst.msk [vmem:[#allocation2 + $0x48] sm:$0xff] %vm1659, %v2828
  %3313 = vst.msk [vmem:[#allocation2 + $0x50] sm:$0xff] %vm1659, %v2833
  %3314 = vst.msk [vmem:[#allocation2 + $0x58] sm:$0xff] %vm1659, %v2836
  %3315 = vst.msk [vmem:[#allocation2 + $0x60] sm:$0xff] %vm1659, %v2841
  %3316 = vst.msk [vmem:[#allocation2 + $0x68] sm:$0xff] %vm1659, %v2844
  %3317 = vst.msk [vmem:[#allocation2 + $0x70] sm:$0xff] %vm1659, %v2849
  %3318 = vst.msk [vmem:[#allocation2 + $0x78] sm:$0xff] %vm1659, %v2852
  %3319 = vst.msk [vmem:[#allocation2 + $0x80] sm:$0xff] %vm1659, %v2857
  %3320 = vst.msk [vmem:[#allocation2 + $0x88] sm:$0xff] %vm1659, %v2860
  %3321 = vst.msk [vmem:[#allocation2 + $0x90] sm:$0xff] %vm1659, %v2865
  %3322 = vst.msk [vmem:[#allocation2 + $0x98] sm:$0xff] %vm1659, %v2868
  %3323 = vst.msk [vmem:[#allocation2 + $0xa0] sm:$0xff] %vm1659, %v2873
  %3324 = vst.msk [vmem:[#allocation2 + $0xa8] sm:$0xff] %vm1659, %v2876
  %3325 = vst.msk [vmem:[#allocation2 + $0xb0] sm:$0xff] %vm1659, %v2881
  %3326 = vst.msk [vmem:[#allocation2 + $0xb8] sm:$0xff] %vm1659, %v2884
  %3327 = vst.msk [vmem:[#allocation2 + $0xc0] sm:$0xff] %vm1659, %v2889
  %3328 = vst.msk [vmem:[#allocation2 + $0xc8] sm:$0xff] %vm1659, %v2892
  %3329 = vst.msk [vmem:[#allocation2 + $0xd0] sm:$0xff] %vm1659, %v2897
  %3330 = vst.msk [vmem:[#allocation2 + $0xd8] sm:$0xff] %vm1659, %v2900
  %3331 = vst.msk [vmem:[#allocation2 + $0xe0] sm:$0xff] %vm1659, %v2905
  %3332 = vst.msk [vmem:[#allocation2 + $0xe8] sm:$0xff] %vm1659, %v2908
  %3333 = vst.msk [vmem:[#allocation2 + $0xf0] sm:$0xff] %vm1659, %v2913
  %3334 = vst.msk [vmem:[#allocation2 + $0xf8] sm:$0xff] %vm1659, %v2916
  %3335 = vst.msk [vmem:[#allocation2 + $0x100] sm:$0xff] %vm1659, %v2921
  %3336 = vst.msk [vmem:[#allocation2 + $0x108] sm:$0xff] %vm1659, %v2924
  %3337 = vst.msk [vmem:[#allocation2 + $0x110] sm:$0xff] %vm1659, %v2929
  %3338 = vst.msk [vmem:[#allocation2 + $0x118] sm:$0xff] %vm1659, %v2932
  %3339 = vst.msk [vmem:[#allocation2 + $0x120] sm:$0xff] %vm1659, %v2937
  %3340 = vst.msk [vmem:[#allocation2 + $0x128] sm:$0xff] %vm1659, %v2940
  %3341 = vst.msk [vmem:[#allocation2 + $0x130] sm:$0xff] %vm1659, %v2945
  %3342 = vst.msk [vmem:[#allocation2 + $0x138] sm:$0xff] %vm1659, %v2948
  %3343 = vst.msk [vmem:[#allocation2 + $0x140] sm:$0xff] %vm1659, %v2953
  %3344 = vst.msk [vmem:[#allocation2 + $0x148] sm:$0xff] %vm1659, %v2956
  %3345 = vst.msk [vmem:[#allocation2 + $0x150] sm:$0xff] %vm1659, %v2961
  %3346 = vst.msk [vmem:[#allocation2 + $0x158] sm:$0xff] %vm1659, %v2964
  %3347 = vst.msk [vmem:[#allocation2 + $0x160] sm:$0xff] %vm1659, %v2969
  %3348 = vst.msk [vmem:[#allocation2 + $0x168] sm:$0xff] %vm1659, %v2972
  %3349 = vst.msk [vmem:[#allocation2 + $0x170] sm:$0xff] %vm1659, %v2977
  %3350 = vst.msk [vmem:[#allocation2 + $0x178] sm:$0xff] %vm1659, %v2980
  %3351 = vst.msk [vmem:[#allocation2 + $0x180] sm:$0xff] %vm1659, %v2985
  %3352 = vst.msk [vmem:[#allocation2 + $0x188] sm:$0xff] %vm1659, %v2988
  %3353 = vst.msk [vmem:[#allocation2 + $0x190] sm:$0xff] %vm1659, %v2993
  %3354 = vst.msk [vmem:[#allocation2 + $0x198] sm:$0xff] %vm1659, %v2996
  %3355 = vst.msk [vmem:[#allocation2 + $0x1a0] sm:$0xff] %vm1659, %v3001
  %3356 = vst.msk [vmem:[#allocation2 + $0x1a8] sm:$0xff] %vm1659, %v3004
  %3357 = vst.msk [vmem:[#allocation2 + $0x1b0] sm:$0xff] %vm1659, %v3009
  %3358 = vst.msk [vmem:[#allocation2 + $0x1b8] sm:$0xff] %vm1659, %v3012
  %3359 = vst.msk [vmem:[#allocation2 + $0x1c0] sm:$0xff] %vm1659, %v3017
  %3360 = vst.msk [vmem:[#allocation2 + $0x1c8] sm:$0xff] %vm1659, %v3020
  %3361 = vst.msk [vmem:[#allocation2 + $0x1d0] sm:$0xff] %vm1659, %v3025
  %3362 = vst.msk [vmem:[#allocation2 + $0x1d8] sm:$0xff] %vm1659, %v3028
  %3363 = vst.msk [vmem:[#allocation2 + $0x1e0] sm:$0xff] %vm1659, %v3033
  %3364 = vst.msk [vmem:[#allocation2 + $0x1e8] sm:$0xff] %vm1659, %v3036
  %3365 = vst.msk [vmem:[#allocation2 + $0x1f0] sm:$0xff] %vm1659, %v3041
  %3366 = vst.msk [vmem:[#allocation2 + $0x1f8] sm:$0xff] %vm1659, %v3044
  %3367 = vst.msk [vmem:[#allocation2 + $0x200] sm:$0xff] %vm1659, %v3049
  %3368 = vst.msk [vmem:[#allocation2 + $0x208] sm:$0xff] %vm1659, %v3052
  %3369 = vst.msk [vmem:[#allocation2 + $0x210] sm:$0xff] %vm1659, %v3057
  %3370 = vst.msk [vmem:[#allocation2 + $0x218] sm:$0xff] %vm1659, %v3060
  %3371 = vst.msk [vmem:[#allocation2 + $0x220] sm:$0xff] %vm1659, %v3065
  %3372 = vst.msk [vmem:[#allocation2 + $0x228] sm:$0xff] %vm1659, %v3068
  %3373 = vst.msk [vmem:[#allocation2 + $0x230] sm:$0xff] %vm1659, %v3073
  %3374 = vst.msk [vmem:[#allocation2 + $0x238] sm:$0xff] %vm1659, %v3076
  %3375 = vst.msk [vmem:[#allocation2 + $0x240] sm:$0xff] %vm1659, %v3081
  %3376 = vst.msk [vmem:[#allocation2 + $0x248] sm:$0xff] %vm1659, %v3084
  %3377 = vst.msk [vmem:[#allocation2 + $0x250] sm:$0xff] %vm1659, %v3089
  %3378 = vst.msk [vmem:[#allocation2 + $0x258] sm:$0xff] %vm1659, %v3092
  %3379 = vst.msk [vmem:[#allocation2 + $0x260] sm:$0xff] %vm1659, %v3097
  %3380 = vst.msk [vmem:[#allocation2 + $0x268] sm:$0xff] %vm1659, %v3100
  %3381 = vst.msk [vmem:[#allocation2 + $0x270] sm:$0xff] %vm1659, %v3105
  %3382 = vst.msk [vmem:[#allocation2 + $0x278] sm:$0xff] %vm1659, %v3108
  %3383 = vst.msk [vmem:[#allocation2 + $0x280] sm:$0xff] %vm1659, %v3113
  %3384 = vst.msk [vmem:[#allocation2 + $0x288] sm:$0xff] %vm1659, %v3116
  %3385 = vst.msk [vmem:[#allocation2 + $0x290] sm:$0xff] %vm1659, %v3121
  %3386 = vst.msk [vmem:[#allocation2 + $0x298] sm:$0xff] %vm1659, %v3124
  %3387 = vst.msk [vmem:[#allocation2 + $0x2a0] sm:$0xff] %vm1659, %v3129
  %3388 = vst.msk [vmem:[#allocation2 + $0x2a8] sm:$0xff] %vm1659, %v3132
  %3389 = vst.msk [vmem:[#allocation2 + $0x2b0] sm:$0xff] %vm1659, %v3137
  %3390 = vst.msk [vmem:[#allocation2 + $0x2b8] sm:$0xff] %vm1659, %v3140
  %3391 = vst.msk [vmem:[#allocation2 + $0x2c0] sm:$0xff] %vm1659, %v3145
  %3392 = vst.msk [vmem:[#allocation2 + $0x2c8] sm:$0xff] %vm1659, %v3148
  %3393 = vst.msk [vmem:[#allocation2 + $0x2d0] sm:$0xff] %vm1659, %v3153
  %3394 = vst.msk [vmem:[#allocation2 + $0x2d8] sm:$0xff] %vm1659, %v3156
  %3395 = vst.msk [vmem:[#allocation2 + $0x2e0] sm:$0xff] %vm1659, %v3161
  %3396 = vst.msk [vmem:[#allocation2 + $0x2e8] sm:$0xff] %vm1659, %v3164
  %3397 = vst.msk [vmem:[#allocation2 + $0x2f0] sm:$0xff] %vm1659, %v3169
  %3398 = vst.msk [vmem:[#allocation2 + $0x2f8] sm:$0xff] %vm1659, %v3172
  %3399 = vst.msk [vmem:[#allocation2 + $0x300] sm:$0xff] %vm1659, %v3177
  %3400 = vst.msk [vmem:[#allocation2 + $0x308] sm:$0xff] %vm1659, %v3180
  %3401 = vst.msk [vmem:[#allocation2 + $0x310] sm:$0xff] %vm1659, %v3185
  %3402 = vst.msk [vmem:[#allocation2 + $0x318] sm:$0xff] %vm1659, %v3188
  %3403 = vst.msk [vmem:[#allocation2 + $0x320] sm:$0xff] %vm1659, %v3193
  %3404 = vst.msk [vmem:[#allocation2 + $0x328] sm:$0xff] %vm1659, %v3196
  %3405 = vst.msk [vmem:[#allocation2 + $0x330] sm:$0xff] %vm1659, %v3201
  %3406 = vst.msk [vmem:[#allocation2 + $0x338] sm:$0xff] %vm1659, %v3204
  %3407 = vst.msk [vmem:[#allocation2 + $0x340] sm:$0xff] %vm1659, %v3209
  %3408 = vst.msk [vmem:[#allocation2 + $0x348] sm:$0xff] %vm1659, %v3212
  %3409 = vst.msk [vmem:[#allocation2 + $0x350] sm:$0xff] %vm1659, %v3217
  %3410 = vst.msk [vmem:[#allocation2 + $0x358] sm:$0xff] %vm1659, %v3220
  %3411 = vst.msk [vmem:[#allocation2 + $0x360] sm:$0xff] %vm1659, %v3225
  %3412 = vst.msk [vmem:[#allocation2 + $0x368] sm:$0xff] %vm1659, %v3228
  %3413 = vst.msk [vmem:[#allocation2 + $0x370] sm:$0xff] %vm1659, %v3233
  %3414 = vst.msk [vmem:[#allocation2 + $0x378] sm:$0xff] %vm1659, %v3236
  %3415 = vst.msk [vmem:[#allocation2 + $0x380] sm:$0xff] %vm1659, %v3241
  %3416 = vst.msk [vmem:[#allocation2 + $0x388] sm:$0xff] %vm1659, %v3244
  %3417 = vst.msk [vmem:[#allocation2 + $0x390] sm:$0xff] %vm1659, %v3249
  %3418 = vst.msk [vmem:[#allocation2 + $0x398] sm:$0xff] %vm1659, %v3252
  %3419 = vst.msk [vmem:[#allocation2 + $0x3a0] sm:$0xff] %vm1659, %v3257
  %3420 = vst.msk [vmem:[#allocation2 + $0x3a8] sm:$0xff] %vm1659, %v3260
  %3421 = vst.msk [vmem:[#allocation2 + $0x3b0] sm:$0xff] %vm1659, %v3265
  %3422 = vst.msk [vmem:[#allocation2 + $0x3b8] sm:$0xff] %vm1659, %v3268
  %3423 = vst.msk [vmem:[#allocation2 + $0x3c0] sm:$0xff] %vm1659, %v3273
  %3424 = vst.msk [vmem:[#allocation2 + $0x3c8] sm:$0xff] %vm1659, %v3276
  %3425 = vst.msk [vmem:[#allocation2 + $0x3d0] sm:$0xff] %vm1659, %v3281
  %3426 = vst.msk [vmem:[#allocation2 + $0x3d8] sm:$0xff] %vm1659, %v3284
  %3427 = vst.msk [vmem:[#allocation2 + $0x3e0] sm:$0xff] %vm1659, %v3289
  %3428 = vst.msk [vmem:[#allocation2 + $0x3e8] sm:$0xff] %vm1659, %v3292
  %3429 = vst.msk [vmem:[#allocation2 + $0x3f0] sm:$0xff] %vm1659, %v3297
  %3430 = vst.msk [vmem:[#allocation2 + $0x3f8] sm:$0xff] %vm1659, %v3300
  %v3431 = vld [vmem:[#allocation2] sm:$0xff]
  %v3432 = vld [vmem:[#allocation2 + $0x8] sm:$0xff]
  %v3433 = vld [vmem:[#allocation2 + $0x10] sm:$0xff]
  %v3434 = vld [vmem:[#allocation2 + $0x18] sm:$0xff]
  %v3435 = vld [vmem:[#allocation2 + $0x20] sm:$0xff]
  %v3436 = vld [vmem:[#allocation2 + $0x28] sm:$0xff]
  %v3437 = vld [vmem:[#allocation2 + $0x30] sm:$0xff]
  %v3438 = vld [vmem:[#allocation2 + $0x38] sm:$0xff]
  %3439 = vst.msk [vmem:[#allocation3] sm:$0xff] %vm1659, %v3431
  %3440 = vst.msk [vmem:[#allocation3 + $0x8] sm:$0xff] %vm1659, %v3432
  %3441 = vst.msk [vmem:[#allocation3 + $0x10] sm:$0xff] %vm1659, %v3433
  %3442 = vst.msk [vmem:[#allocation3 + $0x18] sm:$0xff] %vm1659, %v3434
  %3443 = vst.msk [vmem:[#allocation3 + $0x20] sm:$0xff] %vm1659, %v3435
  %3444 = vst.msk [vmem:[#allocation3 + $0x28] sm:$0xff] %vm1659, %v3436
  %3445 = vst.msk [vmem:[#allocation3 + $0x30] sm:$0xff] %vm1659, %v3437
  %3446 = vst.msk [vmem:[#allocation3 + $0x38] sm:$0xff] %vm1659, %v3438
  %v3447 = vld [vmem:[#allocation2 + $0x40] sm:$0xff]
  %v3448 = vld [vmem:[#allocation2 + $0x48] sm:$0xff]
  %v3449 = vld [vmem:[#allocation2 + $0x50] sm:$0xff]
  %v3450 = vld [vmem:[#allocation2 + $0x58] sm:$0xff]
  %v3451 = vld [vmem:[#allocation2 + $0x60] sm:$0xff]
  %v3452 = vld [vmem:[#allocation2 + $0x68] sm:$0xff]
  %v3453 = vld [vmem:[#allocation2 + $0x70] sm:$0xff]
  %v3454 = vld [vmem:[#allocation2 + $0x78] sm:$0xff]
  %3463 = vrot.lane.b32.xlu0 %v3447, 4
  %v3464 = vpop.permute.xlu0 %3463
  %3465 = vrot.lane.b32.xlu0 %v3448, 4
  %v3466 = vpop.permute.xlu0 %3465
  %3467 = vrot.lane.b32.xlu0 %v3449, 4
  %v3468 = vpop.permute.xlu0 %3467
  %3469 = vrot.lane.b32.xlu0 %v3450, 4
  %v3470 = vpop.permute.xlu0 %3469
  %3471 = vrot.lane.b32.xlu0 %v3451, 4
  %v3472 = vpop.permute.xlu0 %3471
  %3473 = vrot.lane.b32.xlu0 %v3452, 4
  %v3474 = vpop.permute.xlu0 %3473
  %3475 = vrot.lane.b32.xlu0 %v3453, 4
  %v3476 = vpop.permute.xlu0 %3475
  %3477 = vrot.lane.b32.xlu0 %v3454, 4
  %v3478 = vpop.permute.xlu0 %3477
  %3487 = vst.msk [vmem:[#allocation3] sm:$0xff] %vm1844, %v3464
  %3488 = vst.msk [vmem:[#allocation3 + $0x8] sm:$0xff] %vm1844, %v3466
  %3489 = vst.msk [vmem:[#allocation3 + $0x10] sm:$0xff] %vm1844, %v3468
  %3490 = vst.msk [vmem:[#allocation3 + $0x18] sm:$0xff] %vm1844, %v3470
  %3491 = vst.msk [vmem:[#allocation3 + $0x20] sm:$0xff] %vm1844, %v3472
  %3492 = vst.msk [vmem:[#allocation3 + $0x28] sm:$0xff] %vm1844, %v3474
  %3493 = vst.msk [vmem:[#allocation3 + $0x30] sm:$0xff] %vm1844, %v3476
  %3494 = vst.msk [vmem:[#allocation3 + $0x38] sm:$0xff] %vm1844, %v3478
  %v3495 = vld [vmem:[#allocation2 + $0x80] sm:$0xff]
  %v3496 = vld [vmem:[#allocation2 + $0x88] sm:$0xff]
  %v3497 = vld [vmem:[#allocation2 + $0x90] sm:$0xff]
  %v3498 = vld [vmem:[#allocation2 + $0x98] sm:$0xff]
  %v3499 = vld [vmem:[#allocation2 + $0xa0] sm:$0xff]
  %v3500 = vld [vmem:[#allocation2 + $0xa8] sm:$0xff]
  %v3501 = vld [vmem:[#allocation2 + $0xb0] sm:$0xff]
  %v3502 = vld [vmem:[#allocation2 + $0xb8] sm:$0xff]
  %3511 = vrot.lane.b32.xlu0 %v3495, 8
  %v3512 = vpop.permute.xlu0 %3511
  %3513 = vrot.lane.b32.xlu0 %v3496, 8
  %v3514 = vpop.permute.xlu0 %3513
  %3515 = vrot.lane.b32.xlu0 %v3497, 8
  %v3516 = vpop.permute.xlu0 %3515
  %3517 = vrot.lane.b32.xlu0 %v3498, 8
  %v3518 = vpop.permute.xlu0 %3517
  %3519 = vrot.lane.b32.xlu0 %v3499, 8
  %v3520 = vpop.permute.xlu0 %3519
  %3521 = vrot.lane.b32.xlu0 %v3500, 8
  %v3522 = vpop.permute.xlu0 %3521
  %3523 = vrot.lane.b32.xlu0 %v3501, 8
  %v3524 = vpop.permute.xlu0 %3523
  %3525 = vrot.lane.b32.xlu0 %v3502, 8
  %v3526 = vpop.permute.xlu0 %3525
  %3535 = vst.msk [vmem:[#allocation3] sm:$0xff] %vm1893, %v3512
  %3536 = vst.msk [vmem:[#allocation3 + $0x8] sm:$0xff] %vm1893, %v3514
  %3537 = vst.msk [vmem:[#allocation3 + $0x10] sm:$0xff] %vm1893, %v3516
  %3538 = vst.msk [vmem:[#allocation3 + $0x18] sm:$0xff] %vm1893, %v3518
  %3539 = vst.msk [vmem:[#allocation3 + $0x20] sm:$0xff] %vm1893, %v3520
  %3540 = vst.msk [vmem:[#allocation3 + $0x28] sm:$0xff] %vm1893, %v3522
  %3541 = vst.msk [vmem:[#allocation3 + $0x30] sm:$0xff] %vm1893, %v3524
  %3542 = vst.msk [vmem:[#allocation3 + $0x38] sm:$0xff] %vm1893, %v3526
  %v3543 = vld [vmem:[#allocation2 + $0xc0] sm:$0xff]
  %v3544 = vld [vmem:[#allocation2 + $0xc8] sm:$0xff]
  %v3545 = vld [vmem:[#allocation2 + $0xd0] sm:$0xff]
  %v3546 = vld [vmem:[#allocation2 + $0xd8] sm:$0xff]
  %v3547 = vld [vmem:[#allocation2 + $0xe0] sm:$0xff]
  %v3548 = vld [vmem:[#allocation2 + $0xe8] sm:$0xff]
  %v3549 = vld [vmem:[#allocation2 + $0xf0] sm:$0xff]
  %v3550 = vld [vmem:[#allocation2 + $0xf8] sm:$0xff]
  %3559 = vrot.lane.b32.xlu0 %v3543, 12
  %v3560 = vpop.permute.xlu0 %3559
  %3561 = vrot.lane.b32.xlu0 %v3544, 12
  %v3562 = vpop.permute.xlu0 %3561
  %3563 = vrot.lane.b32.xlu0 %v3545, 12
  %v3564 = vpop.permute.xlu0 %3563
  %3565 = vrot.lane.b32.xlu0 %v3546, 12
  %v3566 = vpop.permute.xlu0 %3565
  %3567 = vrot.lane.b32.xlu0 %v3547, 12
  %v3568 = vpop.permute.xlu0 %3567
  %3569 = vrot.lane.b32.xlu0 %v3548, 12
  %v3570 = vpop.permute.xlu0 %3569
  %3571 = vrot.lane.b32.xlu0 %v3549, 12
  %v3572 = vpop.permute.xlu0 %3571
  %3573 = vrot.lane.b32.xlu0 %v3550, 12
  %v3574 = vpop.permute.xlu0 %3573
  %3583 = vst.msk [vmem:[#allocation3] sm:$0xff] %vm1942, %v3560
  %3584 = vst.msk [vmem:[#allocation3 + $0x8] sm:$0xff] %vm1942, %v3562
  %3585 = vst.msk [vmem:[#allocation3 + $0x10] sm:$0xff] %vm1942, %v3564
  %3586 = vst.msk [vmem:[#allocation3 + $0x18] sm:$0xff] %vm1942, %v3566
  %3587 = vst.msk [vmem:[#allocation3 + $0x20] sm:$0xff] %vm1942, %v3568
  %3588 = vst.msk [vmem:[#allocation3 + $0x28] sm:$0xff] %vm1942, %v3570
  %3589 = vst.msk [vmem:[#allocation3 + $0x30] sm:$0xff] %vm1942, %v3572
  %3590 = vst.msk [vmem:[#allocation3 + $0x38] sm:$0xff] %vm1942, %v3574
  %v3591 = vld [vmem:[#allocation2 + $0x100] sm:$0xff]
  %v3592 = vld [vmem:[#allocation2 + $0x108] sm:$0xff]
  %v3593 = vld [vmem:[#allocation2 + $0x110] sm:$0xff]
  %v3594 = vld [vmem:[#allocation2 + $0x118] sm:$0xff]
  %v3595 = vld [vmem:[#allocation2 + $0x120] sm:$0xff]
  %v3596 = vld [vmem:[#allocation2 + $0x128] sm:$0xff]
  %v3597 = vld [vmem:[#allocation2 + $0x130] sm:$0xff]
  %v3598 = vld [vmem:[#allocation2 + $0x138] sm:$0xff]
  %3607 = vrot.lane.b32.xlu0 %v3591, 16
  %v3608 = vpop.permute.xlu0 %3607
  %3609 = vrot.lane.b32.xlu0 %v3592, 16
  %v3610 = vpop.permute.xlu0 %3609
  %3611 = vrot.lane.b32.xlu0 %v3593, 16
  %v3612 = vpop.permute.xlu0 %3611
  %3613 = vrot.lane.b32.xlu0 %v3594, 16
  %v3614 = vpop.permute.xlu0 %3613
  %3615 = vrot.lane.b32.xlu0 %v3595, 16
  %v3616 = vpop.permute.xlu0 %3615
  %3617 = vrot.lane.b32.xlu0 %v3596, 16
  %v3618 = vpop.permute.xlu0 %3617
  %3619 = vrot.lane.b32.xlu0 %v3597, 16
  %v3620 = vpop.permute.xlu0 %3619
  %3621 = vrot.lane.b32.xlu0 %v3598, 16
  %v3622 = vpop.permute.xlu0 %3621
  %3631 = vst.msk [vmem:[#allocation3] sm:$0xff] %vm1991, %v3608
  %3632 = vst.msk [vmem:[#allocation3 + $0x8] sm:$0xff] %vm1991, %v3610
  %3633 = vst.msk [vmem:[#allocation3 + $0x10] sm:$0xff] %vm1991, %v3612
  %3634 = vst.msk [vmem:[#allocation3 + $0x18] sm:$0xff] %vm1991, %v3614
  %3635 = vst.msk [vmem:[#allocation3 + $0x20] sm:$0xff] %vm1991, %v3616
  %3636 = vst.msk [vmem:[#allocation3 + $0x28] sm:$0xff] %vm1991, %v3618
  %3637 = vst.msk [vmem:[#allocation3 + $0x30] sm:$0xff] %vm1991, %v3620
  %3638 = vst.msk [vmem:[#allocation3 + $0x38] sm:$0xff] %vm1991, %v3622
  %v3639 = vld [vmem:[#allocation2 + $0x140] sm:$0xff]
  %v3640 = vld [vmem:[#allocation2 + $0x148] sm:$0xff]
  %v3641 = vld [vmem:[#allocation2 + $0x150] sm:$0xff]
  %v3642 = vld [vmem:[#allocation2 + $0x158] sm:$0xff]
  %v3643 = vld [vmem:[#allocation2 + $0x160] sm:$0xff]
  %v3644 = vld [vmem:[#allocation2 + $0x168] sm:$0xff]
  %v3645 = vld [vmem:[#allocation2 + $0x170] sm:$0xff]
  %v3646 = vld [vmem:[#allocation2 + $0x178] sm:$0xff]
  %3655 = vrot.lane.b32.xlu0 %v3639, 20
  %v3656 = vpop.permute.xlu0 %3655
  %3657 = vrot.lane.b32.xlu0 %v3640, 20
  %v3658 = vpop.permute.xlu0 %3657
  %3659 = vrot.lane.b32.xlu0 %v3641, 20
  %v3660 = vpop.permute.xlu0 %3659
  %3661 = vrot.lane.b32.xlu0 %v3642, 20
  %v3662 = vpop.permute.xlu0 %3661
  %3663 = vrot.lane.b32.xlu0 %v3643, 20
  %v3664 = vpop.permute.xlu0 %3663
  %3665 = vrot.lane.b32.xlu0 %v3644, 20
  %v3666 = vpop.permute.xlu0 %3665
  %3667 = vrot.lane.b32.xlu0 %v3645, 20
  %v3668 = vpop.permute.xlu0 %3667
  %3669 = vrot.lane.b32.xlu0 %v3646, 20
  %v3670 = vpop.permute.xlu0 %3669
  %3679 = vst.msk [vmem:[#allocation3] sm:$0xff] %vm2040, %v3656
  %3680 = vst.msk [vmem:[#allocation3 + $0x8] sm:$0xff] %vm2040, %v3658
  %3681 = vst.msk [vmem:[#allocation3 + $0x10] sm:$0xff] %vm2040, %v3660
  %3682 = vst.msk [vmem:[#allocation3 + $0x18] sm:$0xff] %vm2040, %v3662
  %3683 = vst.msk [vmem:[#allocation3 + $0x20] sm:$0xff] %vm2040, %v3664
  %3684 = vst.msk [vmem:[#allocation3 + $0x28] sm:$0xff] %vm2040, %v3666
  %3685 = vst.msk [vmem:[#allocation3 + $0x30] sm:$0xff] %vm2040, %v3668
  %3686 = vst.msk [vmem:[#allocation3 + $0x38] sm:$0xff] %vm2040, %v3670
  %v3687 = vld [vmem:[#allocation2 + $0x180] sm:$0xff]
  %v3688 = vld [vmem:[#allocation2 + $0x188] sm:$0xff]
  %v3689 = vld [vmem:[#allocation2 + $0x190] sm:$0xff]
  %v3690 = vld [vmem:[#allocation2 + $0x198] sm:$0xff]
  %v3691 = vld [vmem:[#allocation2 + $0x1a0] sm:$0xff]
  %v3692 = vld [vmem:[#allocation2 + $0x1a8] sm:$0xff]
  %v3693 = vld [vmem:[#allocation2 + $0x1b0] sm:$0xff]
  %v3694 = vld [vmem:[#allocation2 + $0x1b8] sm:$0xff]
  %3703 = vrot.lane.b32.xlu0 %v3687, 24
  %v3704 = vpop.permute.xlu0 %3703
  %3705 = vrot.lane.b32.xlu0 %v3688, 24
  %v3706 = vpop.permute.xlu0 %3705
  %3707 = vrot.lane.b32.xlu0 %v3689, 24
  %v3708 = vpop.permute.xlu0 %3707
  %3709 = vrot.lane.b32.xlu0 %v3690, 24
  %v3710 = vpop.permute.xlu0 %3709
  %3711 = vrot.lane.b32.xlu0 %v3691, 24
  %v3712 = vpop.permute.xlu0 %3711
  %3713 = vrot.lane.b32.xlu0 %v3692, 24
  %v3714 = vpop.permute.xlu0 %3713
  %3715 = vrot.lane.b32.xlu0 %v3693, 24
  %v3716 = vpop.permute.xlu0 %3715
  %3717 = vrot.lane.b32.xlu0 %v3694, 24
  %v3718 = vpop.permute.xlu0 %3717
  %3727 = vst.msk [vmem:[#allocation3] sm:$0xff] %vm2089, %v3704
  %3728 = vst.msk [vmem:[#allocation3 + $0x8] sm:$0xff] %vm2089, %v3706
  %3729 = vst.msk [vmem:[#allocation3 + $0x10] sm:$0xff] %vm2089, %v3708
  %3730 = vst.msk [vmem:[#allocation3 + $0x18] sm:$0xff] %vm2089, %v3710
  %3731 = vst.msk [vmem:[#allocation3 + $0x20] sm:$0xff] %vm2089, %v3712
  %3732 = vst.msk [vmem:[#allocation3 + $0x28] sm:$0xff] %vm2089, %v3714
  %3733 = vst.msk [vmem:[#allocation3 + $0x30] sm:$0xff] %vm2089, %v3716
  %3734 = vst.msk [vmem:[#allocation3 + $0x38] sm:$0xff] %vm2089, %v3718
  %v3735 = vld [vmem:[#allocation2 + $0x1c0] sm:$0xff]
  %v3736 = vld [vmem:[#allocation2 + $0x1c8] sm:$0xff]
  %v3737 = vld [vmem:[#allocation2 + $0x1d0] sm:$0xff]
  %v3738 = vld [vmem:[#allocation2 + $0x1d8] sm:$0xff]
  %v3739 = vld [vmem:[#allocation2 + $0x1e0] sm:$0xff]
  %v3740 = vld [vmem:[#allocation2 + $0x1e8] sm:$0xff]
  %v3741 = vld [vmem:[#allocation2 + $0x1f0] sm:$0xff]
  %v3742 = vld [vmem:[#allocation2 + $0x1f8] sm:$0xff]
  %3751 = vrot.lane.b32.xlu0 %v3735, 28
  %v3752 = vpop.permute.xlu0 %3751
  %3753 = vrot.lane.b32.xlu0 %v3736, 28
  %v3754 = vpop.permute.xlu0 %3753
  %3755 = vrot.lane.b32.xlu0 %v3737, 28
  %v3756 = vpop.permute.xlu0 %3755
  %3757 = vrot.lane.b32.xlu0 %v3738, 28
  %v3758 = vpop.permute.xlu0 %3757
  %3759 = vrot.lane.b32.xlu0 %v3739, 28
  %v3760 = vpop.permute.xlu0 %3759
  %3761 = vrot.lane.b32.xlu0 %v3740, 28
  %v3762 = vpop.permute.xlu0 %3761
  %3763 = vrot.lane.b32.xlu0 %v3741, 28
  %v3764 = vpop.permute.xlu0 %3763
  %3765 = vrot.lane.b32.xlu0 %v3742, 28
  %v3766 = vpop.permute.xlu0 %3765
  %3775 = vst.msk [vmem:[#allocation3] sm:$0xff] %vm2138, %v3752
  %3776 = vst.msk [vmem:[#allocation3 + $0x8] sm:$0xff] %vm2138, %v3754
  %3777 = vst.msk [vmem:[#allocation3 + $0x10] sm:$0xff] %vm2138, %v3756
  %3778 = vst.msk [vmem:[#allocation3 + $0x18] sm:$0xff] %vm2138, %v3758
  %3779 = vst.msk [vmem:[#allocation3 + $0x20] sm:$0xff] %vm2138, %v3760
  %3780 = vst.msk [vmem:[#allocation3 + $0x28] sm:$0xff] %vm2138, %v3762
  %3781 = vst.msk [vmem:[#allocation3 + $0x30] sm:$0xff] %vm2138, %v3764
  %3782 = vst.msk [vmem:[#allocation3 + $0x38] sm:$0xff] %vm2138, %v3766
  %v3783 = vld [vmem:[#allocation2 + $0x200] sm:$0xff]
  %v3784 = vld [vmem:[#allocation2 + $0x208] sm:$0xff]
  %v3785 = vld [vmem:[#allocation2 + $0x210] sm:$0xff]
  %v3786 = vld [vmem:[#allocation2 + $0x218] sm:$0xff]
  %v3787 = vld [vmem:[#allocation2 + $0x220] sm:$0xff]
  %v3788 = vld [vmem:[#allocation2 + $0x228] sm:$0xff]
  %v3789 = vld [vmem:[#allocation2 + $0x230] sm:$0xff]
  %v3790 = vld [vmem:[#allocation2 + $0x238] sm:$0xff]
  %3799 = vrot.lane.b32.xlu0 %v3783, 32
  %v3800 = vpop.permute.xlu0 %3799
  %3801 = vrot.lane.b32.xlu0 %v3784, 32
  %v3802 = vpop.permute.xlu0 %3801
  %3803 = vrot.lane.b32.xlu0 %v3785, 32
  %v3804 = vpop.permute.xlu0 %3803
  %3805 = vrot.lane.b32.xlu0 %v3786, 32
  %v3806 = vpop.permute.xlu0 %3805
  %3807 = vrot.lane.b32.xlu0 %v3787, 32
  %v3808 = vpop.permute.xlu0 %3807
  %3809 = vrot.lane.b32.xlu0 %v3788, 32
  %v3810 = vpop.permute.xlu0 %3809
  %3811 = vrot.lane.b32.xlu0 %v3789, 32
  %v3812 = vpop.permute.xlu0 %3811
  %3813 = vrot.lane.b32.xlu0 %v3790, 32
  %v3814 = vpop.permute.xlu0 %3813
  %3823 = vst.msk [vmem:[#allocation3] sm:$0xff] %vm2187, %v3800
  %3824 = vst.msk [vmem:[#allocation3 + $0x8] sm:$0xff] %vm2187, %v3802
  %3825 = vst.msk [vmem:[#allocation3 + $0x10] sm:$0xff] %vm2187, %v3804
  %3826 = vst.msk [vmem:[#allocation3 + $0x18] sm:$0xff] %vm2187, %v3806
  %3827 = vst.msk [vmem:[#allocation3 + $0x20] sm:$0xff] %vm2187, %v3808
  %3828 = vst.msk [vmem:[#allocation3 + $0x28] sm:$0xff] %vm2187, %v3810
  %3829 = vst.msk [vmem:[#allocation3 + $0x30] sm:$0xff] %vm2187, %v3812
  %3830 = vst.msk [vmem:[#allocation3 + $0x38] sm:$0xff] %vm2187, %v3814
  %v3831 = vld [vmem:[#allocation2 + $0x240] sm:$0xff]
  %v3832 = vld [vmem:[#allocation2 + $0x248] sm:$0xff]
  %v3833 = vld [vmem:[#allocation2 + $0x250] sm:$0xff]
  %v3834 = vld [vmem:[#allocation2 + $0x258] sm:$0xff]
  %v3835 = vld [vmem:[#allocation2 + $0x260] sm:$0xff]
  %v3836 = vld [vmem:[#allocation2 + $0x268] sm:$0xff]
  %v3837 = vld [vmem:[#allocation2 + $0x270] sm:$0xff]
  %v3838 = vld [vmem:[#allocation2 + $0x278] sm:$0xff]
  %3847 = vrot.lane.b32.xlu0 %v3831, 36
  %v3848 = vpop.permute.xlu0 %3847
  %3849 = vrot.lane.b32.xlu0 %v3832, 36
  %v3850 = vpop.permute.xlu0 %3849
  %3851 = vrot.lane.b32.xlu0 %v3833, 36
  %v3852 = vpop.permute.xlu0 %3851
  %3853 = vrot.lane.b32.xlu0 %v3834, 36
  %v3854 = vpop.permute.xlu0 %3853
  %3855 = vrot.lane.b32.xlu0 %v3835, 36
  %v3856 = vpop.permute.xlu0 %3855
  %3857 = vrot.lane.b32.xlu0 %v3836, 36
  %v3858 = vpop.permute.xlu0 %3857
  %3859 = vrot.lane.b32.xlu0 %v3837, 36
  %v3860 = vpop.permute.xlu0 %3859
  %3861 = vrot.lane.b32.xlu0 %v3838, 36
  %v3862 = vpop.permute.xlu0 %3861
  %3871 = vst.msk [vmem:[#allocation3] sm:$0xff] %vm2236, %v3848
  %3872 = vst.msk [vmem:[#allocation3 + $0x8] sm:$0xff] %vm2236, %v3850
  %3873 = vst.msk [vmem:[#allocation3 + $0x10] sm:$0xff] %vm2236, %v3852
  %3874 = vst.msk [vmem:[#allocation3 + $0x18] sm:$0xff] %vm2236, %v3854
  %3875 = vst.msk [vmem:[#allocation3 + $0x20] sm:$0xff] %vm2236, %v3856
  %3876 = vst.msk [vmem:[#allocation3 + $0x28] sm:$0xff] %vm2236, %v3858
  %3877 = vst.msk [vmem:[#allocation3 + $0x30] sm:$0xff] %vm2236, %v3860
  %3878 = vst.msk [vmem:[#allocation3 + $0x38] sm:$0xff] %vm2236, %v3862
  %v3879 = vld [vmem:[#allocation2 + $0x280] sm:$0xff]
  %v3880 = vld [vmem:[#allocation2 + $0x288] sm:$0xff]
  %v3881 = vld [vmem:[#allocation2 + $0x290] sm:$0xff]
  %v3882 = vld [vmem:[#allocation2 + $0x298] sm:$0xff]
  %v3883 = vld [vmem:[#allocation2 + $0x2a0] sm:$0xff]
  %v3884 = vld [vmem:[#allocation2 + $0x2a8] sm:$0xff]
  %v3885 = vld [vmem:[#allocation2 + $0x2b0] sm:$0xff]
  %v3886 = vld [vmem:[#allocation2 + $0x2b8] sm:$0xff]
  %3895 = vrot.lane.b32.xlu0 %v3879, 40
  %v3896 = vpop.permute.xlu0 %3895
  %3897 = vrot.lane.b32.xlu0 %v3880, 40
  %v3898 = vpop.permute.xlu0 %3897
  %3899 = vrot.lane.b32.xlu0 %v3881, 40
  %v3900 = vpop.permute.xlu0 %3899
  %3901 = vrot.lane.b32.xlu0 %v3882, 40
  %v3902 = vpop.permute.xlu0 %3901
  %3903 = vrot.lane.b32.xlu0 %v3883, 40
  %v3904 = vpop.permute.xlu0 %3903
  %3905 = vrot.lane.b32.xlu0 %v3884, 40
  %v3906 = vpop.permute.xlu0 %3905
  %3907 = vrot.lane.b32.xlu0 %v3885, 40
  %v3908 = vpop.permute.xlu0 %3907
  %3909 = vrot.lane.b32.xlu0 %v3886, 40
  %v3910 = vpop.permute.xlu0 %3909
  %3919 = vst.msk [vmem:[#allocation3] sm:$0xff] %vm2285, %v3896
  %3920 = vst.msk [vmem:[#allocation3 + $0x8] sm:$0xff] %vm2285, %v3898
  %3921 = vst.msk [vmem:[#allocation3 + $0x10] sm:$0xff] %vm2285, %v3900
  %3922 = vst.msk [vmem:[#allocation3 + $0x18] sm:$0xff] %vm2285, %v3902
  %3923 = vst.msk [vmem:[#allocation3 + $0x20] sm:$0xff] %vm2285, %v3904
  %3924 = vst.msk [vmem:[#allocation3 + $0x28] sm:$0xff] %vm2285, %v3906
  %3925 = vst.msk [vmem:[#allocation3 + $0x30] sm:$0xff] %vm2285, %v3908
  %3926 = vst.msk [vmem:[#allocation3 + $0x38] sm:$0xff] %vm2285, %v3910
  %v3927 = vld [vmem:[#allocation2 + $0x2c0] sm:$0xff]
  %v3928 = vld [vmem:[#allocation2 + $0x2c8] sm:$0xff]
  %v3929 = vld [vmem:[#allocation2 + $0x2d0] sm:$0xff]
  %v3930 = vld [vmem:[#allocation2 + $0x2d8] sm:$0xff]
  %v3931 = vld [vmem:[#allocation2 + $0x2e0] sm:$0xff]
  %v3932 = vld [vmem:[#allocation2 + $0x2e8] sm:$0xff]
  %v3933 = vld [vmem:[#allocation2 + $0x2f0] sm:$0xff]
  %v3934 = vld [vmem:[#allocation2 + $0x2f8] sm:$0xff]
  %3943 = vrot.lane.b32.xlu0 %v3927, 44
  %v3944 = vpop.permute.xlu0 %3943
  %3945 = vrot.lane.b32.xlu0 %v3928, 44
  %v3946 = vpop.permute.xlu0 %3945
  %3947 = vrot.lane.b32.xlu0 %v3929, 44
  %v3948 = vpop.permute.xlu0 %3947
  %3949 = vrot.lane.b32.xlu0 %v3930, 44
  %v3950 = vpop.permute.xlu0 %3949
  %3951 = vrot.lane.b32.xlu0 %v3931, 44
  %v3952 = vpop.permute.xlu0 %3951
  %3953 = vrot.lane.b32.xlu0 %v3932, 44
  %v3954 = vpop.permute.xlu0 %3953
  %3955 = vrot.lane.b32.xlu0 %v3933, 44
  %v3956 = vpop.permute.xlu0 %3955
  %3957 = vrot.lane.b32.xlu0 %v3934, 44
  %v3958 = vpop.permute.xlu0 %3957
  %3967 = vst.msk [vmem:[#allocation3] sm:$0xff] %vm2334, %v3944
  %3968 = vst.msk [vmem:[#allocation3 + $0x8] sm:$0xff] %vm2334, %v3946
  %3969 = vst.msk [vmem:[#allocation3 + $0x10] sm:$0xff] %vm2334, %v3948
  %3970 = vst.msk [vmem:[#allocation3 + $0x18] sm:$0xff] %vm2334, %v3950
  %3971 = vst.msk [vmem:[#allocation3 + $0x20] sm:$0xff] %vm2334, %v3952
  %3972 = vst.msk [vmem:[#allocation3 + $0x28] sm:$0xff] %vm2334, %v3954
  %3973 = vst.msk [vmem:[#allocation3 + $0x30] sm:$0xff] %vm2334, %v3956
  %3974 = vst.msk [vmem:[#allocation3 + $0x38] sm:$0xff] %vm2334, %v3958
  %v3975 = vld [vmem:[#allocation2 + $0x300] sm:$0xff]
  %v3976 = vld [vmem:[#allocation2 + $0x308] sm:$0xff]
  %v3977 = vld [vmem:[#allocation2 + $0x310] sm:$0xff]
  %v3978 = vld [vmem:[#allocation2 + $0x318] sm:$0xff]
  %v3979 = vld [vmem:[#allocation2 + $0x320] sm:$0xff]
  %v3980 = vld [vmem:[#allocation2 + $0x328] sm:$0xff]
  %v3981 = vld [vmem:[#allocation2 + $0x330] sm:$0xff]
  %v3982 = vld [vmem:[#allocation2 + $0x338] sm:$0xff]
  %3991 = vrot.lane.b32.xlu0 %v3975, 48
  %v3992 = vpop.permute.xlu0 %3991
  %3993 = vrot.lane.b32.xlu0 %v3976, 48
  %v3994 = vpop.permute.xlu0 %3993
  %3995 = vrot.lane.b32.xlu0 %v3977, 48
  %v3996 = vpop.permute.xlu0 %3995
  %3997 = vrot.lane.b32.xlu0 %v3978, 48
  %v3998 = vpop.permute.xlu0 %3997
  %3999 = vrot.lane.b32.xlu0 %v3979, 48
  %v4000 = vpop.permute.xlu0 %3999
  %4001 = vrot.lane.b32.xlu0 %v3980, 48
  %v4002 = vpop.permute.xlu0 %4001
  %4003 = vrot.lane.b32.xlu0 %v3981, 48
  %v4004 = vpop.permute.xlu0 %4003
  %4005 = vrot.lane.b32.xlu0 %v3982, 48
  %v4006 = vpop.permute.xlu0 %4005
  %4015 = vst.msk [vmem:[#allocation3] sm:$0xff] %vm2383, %v3992
  %4016 = vst.msk [vmem:[#allocation3 + $0x8] sm:$0xff] %vm2383, %v3994
  %4017 = vst.msk [vmem:[#allocation3 + $0x10] sm:$0xff] %vm2383, %v3996
  %4018 = vst.msk [vmem:[#allocation3 + $0x18] sm:$0xff] %vm2383, %v3998
  %4019 = vst.msk [vmem:[#allocation3 + $0x20] sm:$0xff] %vm2383, %v4000
  %4020 = vst.msk [vmem:[#allocation3 + $0x28] sm:$0xff] %vm2383, %v4002
  %4021 = vst.msk [vmem:[#allocation3 + $0x30] sm:$0xff] %vm2383, %v4004
  %4022 = vst.msk [vmem:[#allocation3 + $0x38] sm:$0xff] %vm2383, %v4006
  %v4023 = vld [vmem:[#allocation2 + $0x340] sm:$0xff]
  %v4024 = vld [vmem:[#allocation2 + $0x348] sm:$0xff]
  %v4025 = vld [vmem:[#allocation2 + $0x350] sm:$0xff]
  %v4026 = vld [vmem:[#allocation2 + $0x358] sm:$0xff]
  %v4027 = vld [vmem:[#allocation2 + $0x360] sm:$0xff]
  %v4028 = vld [vmem:[#allocation2 + $0x368] sm:$0xff]
  %v4029 = vld [vmem:[#allocation2 + $0x370] sm:$0xff]
  %v4030 = vld [vmem:[#allocation2 + $0x378] sm:$0xff]
  %4039 = vrot.lane.b32.xlu0 %v4023, 52
  %v4040 = vpop.permute.xlu0 %4039
  %4041 = vrot.lane.b32.xlu0 %v4024, 52
  %v4042 = vpop.permute.xlu0 %4041
  %4043 = vrot.lane.b32.xlu0 %v4025, 52
  %v4044 = vpop.permute.xlu0 %4043
  %4045 = vrot.lane.b32.xlu0 %v4026, 52
  %v4046 = vpop.permute.xlu0 %4045
  %4047 = vrot.lane.b32.xlu0 %v4027, 52
  %v4048 = vpop.permute.xlu0 %4047
  %4049 = vrot.lane.b32.xlu0 %v4028, 52
  %v4050 = vpop.permute.xlu0 %4049
  %4051 = vrot.lane.b32.xlu0 %v4029, 52
  %v4052 = vpop.permute.xlu0 %4051
  %4053 = vrot.lane.b32.xlu0 %v4030, 52
  %v4054 = vpop.permute.xlu0 %4053
  %4063 = vst.msk [vmem:[#allocation3] sm:$0xff] %vm2432, %v4040
  %4064 = vst.msk [vmem:[#allocation3 + $0x8] sm:$0xff] %vm2432, %v4042
  %4065 = vst.msk [vmem:[#allocation3 + $0x10] sm:$0xff] %vm2432, %v4044
  %4066 = vst.msk [vmem:[#allocation3 + $0x18] sm:$0xff] %vm2432, %v4046
  %4067 = vst.msk [vmem:[#allocation3 + $0x20] sm:$0xff] %vm2432, %v4048
  %4068 = vst.msk [vmem:[#allocation3 + $0x28] sm:$0xff] %vm2432, %v4050
  %4069 = vst.msk [vmem:[#allocation3 + $0x30] sm:$0xff] %vm2432, %v4052
  %4070 = vst.msk [vmem:[#allocation3 + $0x38] sm:$0xff] %vm2432, %v4054
  %v4071 = vld [vmem:[#allocation2 + $0x380] sm:$0xff]
  %v4072 = vld [vmem:[#allocation2 + $0x388] sm:$0xff]
  %v4073 = vld [vmem:[#allocation2 + $0x390] sm:$0xff]
  %v4074 = vld [vmem:[#allocation2 + $0x398] sm:$0xff]
  %v4075 = vld [vmem:[#allocation2 + $0x3a0] sm:$0xff]
  %v4076 = vld [vmem:[#allocation2 + $0x3a8] sm:$0xff]
  %v4077 = vld [vmem:[#allocation2 + $0x3b0] sm:$0xff]
  %v4078 = vld [vmem:[#allocation2 + $0x3b8] sm:$0xff]
  %4087 = vrot.lane.b32.xlu0 %v4071, 56
  %v4088 = vpop.permute.xlu0 %4087
  %4089 = vrot.lane.b32.xlu0 %v4072, 56
  %v4090 = vpop.permute.xlu0 %4089
  %4091 = vrot.lane.b32.xlu0 %v4073, 56
  %v4092 = vpop.permute.xlu0 %4091
  %4093 = vrot.lane.b32.xlu0 %v4074, 56
  %v4094 = vpop.permute.xlu0 %4093
  %4095 = vrot.lane.b32.xlu0 %v4075, 56
  %v4096 = vpop.permute.xlu0 %4095
  %4097 = vrot.lane.b32.xlu0 %v4076, 56
  %v4098 = vpop.permute.xlu0 %4097
  %4099 = vrot.lane.b32.xlu0 %v4077, 56
  %v4100 = vpop.permute.xlu0 %4099
  %4101 = vrot.lane.b32.xlu0 %v4078, 56
  %v4102 = vpop.permute.xlu0 %4101
  %4111 = vst.msk [vmem:[#allocation3] sm:$0xff] %vm2481, %v4088
  %4112 = vst.msk [vmem:[#allocation3 + $0x8] sm:$0xff] %vm2481, %v4090
  %4113 = vst.msk [vmem:[#allocation3 + $0x10] sm:$0xff] %vm2481, %v4092
  %4114 = vst.msk [vmem:[#allocation3 + $0x18] sm:$0xff] %vm2481, %v4094
  %4115 = vst.msk [vmem:[#allocation3 + $0x20] sm:$0xff] %vm2481, %v4096
  %4116 = vst.msk [vmem:[#allocation3 + $0x28] sm:$0xff] %vm2481, %v4098
  %4117 = vst.msk [vmem:[#allocation3 + $0x30] sm:$0xff] %vm2481, %v4100
  %4118 = vst.msk [vmem:[#allocation3 + $0x38] sm:$0xff] %vm2481, %v4102
  %v4119 = vld [vmem:[#allocation2 + $0x3c0] sm:$0xff]
  %v4120 = vld [vmem:[#allocation2 + $0x3c8] sm:$0xff]
  %v4121 = vld [vmem:[#allocation2 + $0x3d0] sm:$0xff]
  %v4122 = vld [vmem:[#allocation2 + $0x3d8] sm:$0xff]
  %v4123 = vld [vmem:[#allocation2 + $0x3e0] sm:$0xff]
  %v4124 = vld [vmem:[#allocation2 + $0x3e8] sm:$0xff]
  %v4125 = vld [vmem:[#allocation2 + $0x3f0] sm:$0xff]
  %v4126 = vld [vmem:[#allocation2 + $0x3f8] sm:$0xff]
  %4135 = vrot.lane.b32.xlu0 %v4119, 60
  %v4136 = vpop.permute.xlu0 %4135
  %4137 = vrot.lane.b32.xlu0 %v4120, 60
  %v4138 = vpop.permute.xlu0 %4137
  %4139 = vrot.lane.b32.xlu0 %v4121, 60
  %v4140 = vpop.permute.xlu0 %4139
  %4141 = vrot.lane.b32.xlu0 %v4122, 60
  %v4142 = vpop.permute.xlu0 %4141
  %4143 = vrot.lane.b32.xlu0 %v4123, 60
  %v4144 = vpop.permute.xlu0 %4143
  %4145 = vrot.lane.b32.xlu0 %v4124, 60
  %v4146 = vpop.permute.xlu0 %4145
  %4147 = vrot.lane.b32.xlu0 %v4125, 60
  %v4148 = vpop.permute.xlu0 %4147
  %4149 = vrot.lane.b32.xlu0 %v4126, 60
  %v4150 = vpop.permute.xlu0 %4149
  %4159 = vst.msk [vmem:[#allocation3] sm:$0xff] %vm2530, %v4136
  %4160 = vst.msk [vmem:[#allocation3 + $0x8] sm:$0xff] %vm2530, %v4138
  %4161 = vst.msk [vmem:[#allocation3 + $0x10] sm:$0xff] %vm2530, %v4140
  %4162 = vst.msk [vmem:[#allocation3 + $0x18] sm:$0xff] %vm2530, %v4142
  %4163 = vst.msk [vmem:[#allocation3 + $0x20] sm:$0xff] %vm2530, %v4144
  %4164 = vst.msk [vmem:[#allocation3 + $0x28] sm:$0xff] %vm2530, %v4146
  %4165 = vst.msk [vmem:[#allocation3 + $0x30] sm:$0xff] %vm2530, %v4148
  %4166 = vst.msk [vmem:[#allocation3 + $0x38] sm:$0xff] %vm2530, %v4150
  %v4167 = vld [vmem:[#allocation3] sm:$0xff]
  %v4168 = vld [vmem:[#allocation3 + $0x8] sm:$0xff]
  %v4169 = vld [vmem:[#allocation3 + $0x10] sm:$0xff]
  %v4170 = vld [vmem:[#allocation3 + $0x18] sm:$0xff]
  %v4171 = vld [vmem:[#allocation3 + $0x20] sm:$0xff]
  %v4172 = vld [vmem:[#allocation3 + $0x28] sm:$0xff]
  %v4173 = vld [vmem:[#allocation3 + $0x30] sm:$0xff]
  %v4174 = vld [vmem:[#allocation3 + $0x38] sm:$0xff]
  %v4175 = vpack.c.bf16 %v4168, %v4167
  %v4176 = vpack.c.bf16 %v4170, %v4169
  %v4177 = vpack.c.bf16 %v4172, %v4171
  %v4178 = vpack.c.bf16 %v4174, %v4173
  %v4180 = vsel %vm2575, %v4175, 0
  %v4183 = vsel %vm2575, %v4176, 0
  %v4186 = vsel %vm2575, %v4177, 0
  %v4189 = vsel %vm2575, %v4178, 0
  %4191 = vmatprep.subr.bf16.mxu0 0
  %4192 = vmatpush1.bf16.msra.mxu0 %v2567
  %4193 = vmatprep.subr.bf16.mxu0 0
  %4194 = vmatpush1.bf16.msra.mxu0 %v2568
  %4195 = vmatprep.subr.bf16.mxu0 0
  %4196 = vmatpush1.bf16.msra.mxu0 %v2569
  %4197 = vmatprep.subr.bf16.mxu0 0
  %4198 = vmatpush1.bf16.msra.mxu0 %v2570
  %4199 = vmatprep.subr.bf16.mxu0 0
  %4200 = vmatpush1.bf16.msra.mxu0 0
  %4201 = vmatprep.subr.bf16.mxu0 0
  %4202 = vmatpush1.bf16.msra.mxu0 0
  %4203 = vmatprep.subr.bf16.mxu0 0
  %4204 = vmatpush1.bf16.msra.mxu0 0
  %4205 = vmatprep.subr.bf16.mxu0 0
  %4206 = vmatpush1.bf16.msra.mxu0 0
  %4207 = vmatprep.subr.bf16.mxu0 0
  %4208 = vmatpush1.bf16.msra.mxu0 0
  %4209 = vmatprep.subr.bf16.mxu0 0
  %4210 = vmatpush1.bf16.msra.mxu0 0
  %4211 = vmatprep.subr.bf16.mxu0 0
  %4212 = vmatpush1.bf16.msra.mxu0 0
  %4213 = vmatprep.subr.bf16.mxu0 0
  %4214 = vmatpush1.bf16.msra.mxu0 0
  %4215 = vmatprep.subr.bf16.mxu0 0
  %4216 = vmatpush1.bf16.msra.mxu0 0
  %4217 = vmatprep.subr.bf16.mxu0 0
  %4218 = vmatpush1.bf16.msra.mxu0 0
  %4219 = vmatprep.subr.bf16.mxu0 0
  %4220 = vmatpush1.bf16.msra.mxu0 0
  %4221 = vmatprep.subr.bf16.mxu0 0
  %4222 = vmatpush1.bf16.msra.mxu0 0
  %4223 = vmatprep.mubr.bf16.mxu0 0
  %4224 = vmatmul.mubr.bf16.gmra.mrb[0].mxu0 %v4180
  %v4225 = vpop.f32.mrb[0].mxu0
  %v4226 = vadd.f32 0.0, %v4225
  %v4227 = vpop.f32.mrb[0].mxu0
  %v4228 = vpop.f32.mrb[0].mxu0
  %v4229 = vadd.f32 0.0, %v4228
  %v4230 = vpop.f32.mrb[0].mxu0
  %4231 = vmatprep.mubr.bf16.mxu0 0
  %4232 = vmatmul.mubr.bf16.gmra.mrb[0].mxu0 %v4183
  %v4233 = vpop.f32.mrb[0].mxu0
  %v4234 = vadd.f32 0.0, %v4233
  %v4235 = vpop.f32.mrb[0].mxu0
  %v4236 = vpop.f32.mrb[0].mxu0
  %v4237 = vadd.f32 0.0, %v4236
  %v4238 = vpop.f32.mrb[0].mxu0
  %4239 = vmatprep.mubr.bf16.mxu0 0
  %4240 = vmatmul.mubr.bf16.gmra.mrb[0].mxu0 %v4186
  %v4241 = vpop.f32.mrb[0].mxu0
  %v4242 = vadd.f32 0.0, %v4241
  %v4243 = vpop.f32.mrb[0].mxu0
  %v4244 = vpop.f32.mrb[0].mxu0
  %v4245 = vadd.f32 0.0, %v4244
  %v4246 = vpop.f32.mrb[0].mxu0
  %4247 = vmatprep.mubr.bf16.mxu0 0
  %4248 = vmatmul.mubr.bf16.gmra.mrb[0].mxu0 %v4189
  %v4249 = vpop.f32.mrb[0].mxu0
  %v4250 = vadd.f32 0.0, %v4249
  %v4251 = vpop.f32.mrb[0].mxu0
  %v4252 = vpop.f32.mrb[0].mxu0
  %v4253 = vadd.f32 0.0, %v4252
  %v4254 = vpop.f32.mrb[0].mxu0
  %4255 = vdwg.mxu0
  %4256 = vst.msk [vmem:[#allocation4 + $0x40] sm:$0xff] %vm2653, %v4226
  %4257 = vst.msk [vmem:[#allocation4 + $0x48] sm:$0xff] %vm2653, %v4229
  %4258 = vst.msk [vmem:[#allocation4 + $0x50] sm:$0xff] %vm2653, %v4234
  %4259 = vst.msk [vmem:[#allocation4 + $0x58] sm:$0xff] %vm2653, %v4237
  %4260 = vst.msk [vmem:[#allocation4 + $0x60] sm:$0xff] %vm2653, %v4242
  %4261 = vst.msk [vmem:[#allocation4 + $0x68] sm:$0xff] %vm2653, %v4245
  %4262 = vst.msk [vmem:[#allocation4 + $0x70] sm:$0xff] %vm2653, %v4250
  %4263 = vst.msk [vmem:[#allocation4 + $0x78] sm:$0xff] %vm2653, %v4253
  %v4264 = vld [vmem:[#allocation4] sm:$0xff]
  %v4265 = vld [vmem:[#allocation4 + $0x8] sm:$0xff]
  %v4266 = vld [vmem:[#allocation4 + $0x10] sm:$0xff]
  %v4267 = vld [vmem:[#allocation4 + $0x18] sm:$0xff]
  %v4268 = vld [vmem:[#allocation4 + $0x20] sm:$0xff]
  %v4269 = vld [vmem:[#allocation4 + $0x28] sm:$0xff]
  %v4270 = vld [vmem:[#allocation4 + $0x30] sm:$0xff]
  %v4271 = vld [vmem:[#allocation4 + $0x38] sm:$0xff]
  %v4272 = vld [vmem:[#allocation4 + $0x40] sm:$0xff]
  %v4273 = vld [vmem:[#allocation4 + $0x48] sm:$0xff]
  %v4274 = vld [vmem:[#allocation4 + $0x50] sm:$0xff]
  %v4275 = vld [vmem:[#allocation4 + $0x58] sm:$0xff]
  %v4276 = vld [vmem:[#allocation4 + $0x60] sm:$0xff]
  %v4277 = vld [vmem:[#allocation4 + $0x68] sm:$0xff]
  %v4278 = vld [vmem:[#allocation4 + $0x70] sm:$0xff]
  %v4279 = vld [vmem:[#allocation4 + $0x78] sm:$0xff]
  %v4280 = vld [vmem:[%s4] sm:$0x3]
  %v4281 = vlaneseq
  %v4282 = vshrl.u32 %v4281, 7
  %v4283 = vsub.s32 0, %v4282
  %v4284 = vrot.slane %v4280, %v4283
  %v4285 = vmul.f32 %v4264, %v4284
  %v4286 = vmul.f32 %v4265, %v4284
  %v4287 = vmul.f32 %v4266, %v4284
  %v4288 = vmul.f32 %v4267, %v4284
  %v4289 = vmul.f32 %v4268, %v4284
  %v4290 = vmul.f32 %v4269, %v4284
  %v4291 = vmul.f32 %v4270, %v4284
  %v4292 = vmul.f32 %v4271, %v4284
  %v4293 = vmul.f32 %v4272, %v4284
  %v4294 = vmul.f32 %v4273, %v4284
  %v4295 = vmul.f32 %v4274, %v4284
  %v4296 = vmul.f32 %v4275, %v4284
  %v4297 = vmul.f32 %v4276, %v4284
  %v4298 = vmul.f32 %v4277, %v4284
  %v4299 = vmul.f32 %v4278, %v4284
  %v4300 = vmul.f32 %v4279, %v4284
  %v4301 = vlaneseq
  %v4302 = vshrl.u32 %v4301, 7
  %v4303 = vsub.s32 1, %v4302
  %v4304 = vrot.slane %v4280, %v4303
  %v4305 = vadd.f32 %v4285, %v4304
  %v4306 = vadd.f32 %v4286, %v4304
  %v4307 = vadd.f32 %v4287, %v4304
  %v4308 = vadd.f32 %v4288, %v4304
  %v4309 = vadd.f32 %v4289, %v4304
  %v4310 = vadd.f32 %v4290, %v4304
  %v4311 = vadd.f32 %v4291, %v4304
  %v4312 = vadd.f32 %v4292, %v4304
  %v4313 = vadd.f32 %v4293, %v4304
  %v4314 = vadd.f32 %v4294, %v4304
  %v4315 = vadd.f32 %v4295, %v4304
  %v4316 = vadd.f32 %v4296, %v4304
  %v4317 = vadd.f32 %v4297, %v4304
  %v4318 = vadd.f32 %v4298, %v4304
  %v4319 = vadd.f32 %v4299, %v4304
  %v4320 = vadd.f32 %v4300, %v4304
  %vm4321 = vcmp.gt.f32.partialorder %v4305, 0.0
  %vm4322 = vcmp.gt.f32.partialorder %v4306, 0.0
  %vm4323 = vcmp.gt.f32.partialorder %v4307, 0.0
  %vm4324 = vcmp.gt.f32.partialorder %v4308, 0.0
  %vm4325 = vcmp.gt.f32.partialorder %v4309, 0.0
  %vm4326 = vcmp.gt.f32.partialorder %v4310, 0.0
  %vm4327 = vcmp.gt.f32.partialorder %v4311, 0.0
  %vm4328 = vcmp.gt.f32.partialorder %v4312, 0.0
  %vm4329 = vcmp.gt.f32.partialorder %v4313, 0.0
  %vm4330 = vcmp.gt.f32.partialorder %v4314, 0.0
  %vm4331 = vcmp.gt.f32.partialorder %v4315, 0.0
  %vm4332 = vcmp.gt.f32.partialorder %v4316, 0.0
  %vm4333 = vcmp.gt.f32.partialorder %v4317, 0.0
  %vm4334 = vcmp.gt.f32.partialorder %v4318, 0.0
  %vm4335 = vcmp.gt.f32.partialorder %v4319, 0.0
  %vm4336 = vcmp.gt.f32.partialorder %v4320, 0.0
  %v4337 = vmul.f32 %v4305, 0.2
  %v4338 = vmul.f32 %v4306, 0.2
  %v4339 = vmul.f32 %v4307, 0.2
  %v4340 = vmul.f32 %v4308, 0.2
  %v4341 = vmul.f32 %v4309, 0.2
  %v4342 = vmul.f32 %v4310, 0.2
  %v4343 = vmul.f32 %v4311, 0.2
  %v4344 = vmul.f32 %v4312, 0.2
  %v4345 = vmul.f32 %v4313, 0.2
  %v4346 = vmul.f32 %v4314, 0.2
  %v4347 = vmul.f32 %v4315, 0.2
  %v4348 = vmul.f32 %v4316, 0.2
  %v4349 = vmul.f32 %v4317, 0.2
  %v4350 = vmul.f32 %v4318, 0.2
  %v4351 = vmul.f32 %v4319, 0.2
  %v4352 = vmul.f32 %v4320, 0.2
  %v4353 = vsel %vm4321, %v4305, %v4337
  %v4354 = vsel %vm4322, %v4306, %v4338
  %v4355 = vsel %vm4323, %v4307, %v4339
  %v4356 = vsel %vm4324, %v4308, %v4340
  %v4357 = vsel %vm4325, %v4309, %v4341
  %v4358 = vsel %vm4326, %v4310, %v4342
  %v4359 = vsel %vm4327, %v4311, %v4343
  %v4360 = vsel %vm4328, %v4312, %v4344
  %v4361 = vsel %vm4329, %v4313, %v4345
  %v4362 = vsel %vm4330, %v4314, %v4346
  %v4363 = vsel %vm4331, %v4315, %v4347
  %v4364 = vsel %vm4332, %v4316, %v4348
  %v4365 = vsel %vm4333, %v4317, %v4349
  %v4366 = vsel %vm4334, %v4318, %v4350
  %v4367 = vsel %vm4335, %v4319, %v4351
  %v4368 = vsel %vm4336, %v4320, %v4352
  %4369 = vst.msk [vmem:[#allocation4] sm:$0xff] %vm2653, %v4353
  %4370 = vst.msk [vmem:[#allocation4 + $0x8] sm:$0xff] %vm2653, %v4354
  %4371 = vst.msk [vmem:[#allocation4 + $0x10] sm:$0xff] %vm2653, %v4355
  %4372 = vst.msk [vmem:[#allocation4 + $0x18] sm:$0xff] %vm2653, %v4356
  %4373 = vst.msk [vmem:[#allocation4 + $0x20] sm:$0xff] %vm2653, %v4357
  %4374 = vst.msk [vmem:[#allocation4 + $0x28] sm:$0xff] %vm2653, %v4358
  %4375 = vst.msk [vmem:[#allocation4 + $0x30] sm:$0xff] %vm2653, %v4359
  %4376 = vst.msk [vmem:[#allocation4 + $0x38] sm:$0xff] %vm2653, %v4360
  %4377 = vst.msk [vmem:[#allocation4 + $0x40] sm:$0xff] %vm2653, %v4361
  %4378 = vst.msk [vmem:[#allocation4 + $0x48] sm:$0xff] %vm2653, %v4362
  %4379 = vst.msk [vmem:[#allocation4 + $0x50] sm:$0xff] %vm2653, %v4363
  %4380 = vst.msk [vmem:[#allocation4 + $0x58] sm:$0xff] %vm2653, %v4364
  %4381 = vst.msk [vmem:[#allocation4 + $0x60] sm:$0xff] %vm2653, %v4365
  %4382 = vst.msk [vmem:[#allocation4 + $0x68] sm:$0xff] %vm2653, %v4366
  %4383 = vst.msk [vmem:[#allocation4 + $0x70] sm:$0xff] %vm2653, %v4367
  %4384 = vst.msk [vmem:[#allocation4 + $0x78] sm:$0xff] %vm2653, %v4368
  %v4385 = vld [vmem:[#allocation4] sm:$0xff]
  %v4386 = vld [vmem:[#allocation4 + $0x8] sm:$0xff]
  %v4387 = vld [vmem:[#allocation4 + $0x10] sm:$0xff]
  %v4388 = vld [vmem:[#allocation4 + $0x18] sm:$0xff]
  %v4389 = vld [vmem:[#allocation4 + $0x20] sm:$0xff]
  %v4390 = vld [vmem:[#allocation4 + $0x28] sm:$0xff]
  %v4391 = vld [vmem:[#allocation4 + $0x30] sm:$0xff]
  %v4392 = vld [vmem:[#allocation4 + $0x38] sm:$0xff]
  %v4393 = vpack.c.bf16 %v4386, %v4385
  %v4394 = vpack.c.bf16 %v4388, %v4387
  %v4395 = vpack.c.bf16 %v4390, %v4389
  %v4396 = vpack.c.bf16 %v4392, %v4391
  %v4397 = vld [vmem:[#allocation4 + $0x40] sm:$0xff]
  %v4398 = vld [vmem:[#allocation4 + $0x48] sm:$0xff]
  %v4399 = vld [vmem:[#allocation4 + $0x50] sm:$0xff]
  %v4400 = vld [vmem:[#allocation4 + $0x58] sm:$0xff]
  %v4401 = vld [vmem:[#allocation4 + $0x60] sm:$0xff]
  %v4402 = vld [vmem:[#allocation4 + $0x68] sm:$0xff]
  %v4403 = vld [vmem:[#allocation4 + $0x70] sm:$0xff]
  %v4404 = vld [vmem:[#allocation4 + $0x78] sm:$0xff]
  %v4405 = vpack.c.bf16 %v4398, %v4397
  %v4406 = vpack.c.bf16 %v4400, %v4399
  %v4407 = vpack.c.bf16 %v4402, %v4401
  %v4408 = vpack.c.bf16 %v4404, %v4403
  %v4409 = vld [vmem:[%s5] sm:$0xf]
  %v4410 = vld [vmem:[%s5 + $0x4] sm:$0xf]
  %v4411 = vld [vmem:[%s5 + $0x8] sm:$0xf]
  %v4412 = vld [vmem:[%s5 + $0xc] sm:$0xf]
  %v4413 = vld [vmem:[%s5 + $0x10] sm:$0xf]
  %v4414 = vld [vmem:[%s5 + $0x14] sm:$0xf]
  %v4415 = vld [vmem:[%s5 + $0x18] sm:$0xf]
  %v4416 = vld [vmem:[%s5 + $0x1c] sm:$0xf]
  %v4417 = vld [vmem:[%s5 + $0x20] sm:$0xf]
  %v4418 = vld [vmem:[%s5 + $0x24] sm:$0xf]
  %v4419 = vld [vmem:[%s5 + $0x28] sm:$0xf]
  %v4420 = vld [vmem:[%s5 + $0x2c] sm:$0xf]
  %v4421 = vld [vmem:[%s5 + $0x30] sm:$0xf]
  %v4422 = vld [vmem:[%s5 + $0x34] sm:$0xf]
  %v4423 = vld [vmem:[%s5 + $0x38] sm:$0xf]
  %v4424 = vld [vmem:[%s5 + $0x3c] sm:$0xf]
  %v4425 = vld [vmem:[%s5 + $0x40] sm:$0xf]
  %v4426 = vld [vmem:[%s5 + $0x44] sm:$0xf]
  %v4427 = vld [vmem:[%s5 + $0x48] sm:$0xf]
  %v4428 = vld [vmem:[%s5 + $0x4c] sm:$0xf]
  %v4429 = vld [vmem:[%s5 + $0x50] sm:$0xf]
  %v4430 = vld [vmem:[%s5 + $0x54] sm:$0xf]
  %v4431 = vld [vmem:[%s5 + $0x58] sm:$0xf]
  %v4432 = vld [vmem:[%s5 + $0x5c] sm:$0xf]
  %v4433 = vld [vmem:[%s5 + $0x60] sm:$0xf]
  %v4434 = vld [vmem:[%s5 + $0x64] sm:$0xf]
  %v4435 = vld [vmem:[%s5 + $0x68] sm:$0xf]
  %v4436 = vld [vmem:[%s5 + $0x6c] sm:$0xf]
  %v4437 = vld [vmem:[%s5 + $0x70] sm:$0xf]
  %v4438 = vld [vmem:[%s5 + $0x74] sm:$0xf]
  %v4439 = vld [vmem:[%s5 + $0x78] sm:$0xf]
  %v4440 = vld [vmem:[%s5 + $0x7c] sm:$0xf]
  %v4441 = vld [vmem:[%s6] sm:$0xf]
  %v4442 = vld [vmem:[%s6 + $0x4] sm:$0xf]
  %v4443 = vld [vmem:[%s6 + $0x8] sm:$0xf]
  %v4444 = vld [vmem:[%s6 + $0xc] sm:$0xf]
  %v4445 = vld [vmem:[%s6 + $0x10] sm:$0xf]
  %v4446 = vld [vmem:[%s6 + $0x14] sm:$0xf]
  %v4447 = vld [vmem:[%s6 + $0x18] sm:$0xf]
  %v4448 = vld [vmem:[%s6 + $0x1c] sm:$0xf]
  %v4449 = vld [vmem:[%s6 + $0x20] sm:$0xf]
  %v4450 = vld [vmem:[%s6 + $0x24] sm:$0xf]
  %v4451 = vld [vmem:[%s6 + $0x28] sm:$0xf]
  %v4452 = vld [vmem:[%s6 + $0x2c] sm:$0xf]
  %v4453 = vld [vmem:[%s6 + $0x30] sm:$0xf]
  %v4454 = vld [vmem:[%s6 + $0x34] sm:$0xf]
  %v4455 = vld [vmem:[%s6 + $0x38] sm:$0xf]
  %v4456 = vld [vmem:[%s6 + $0x3c] sm:$0xf]
  %v4457 = vld [vmem:[%s6 + $0x40] sm:$0xf]
  %v4458 = vld [vmem:[%s6 + $0x44] sm:$0xf]
  %v4459 = vld [vmem:[%s6 + $0x48] sm:$0xf]
  %v4460 = vld [vmem:[%s6 + $0x4c] sm:$0xf]
  %v4461 = vld [vmem:[%s6 + $0x50] sm:$0xf]
  %v4462 = vld [vmem:[%s6 + $0x54] sm:$0xf]
  %v4463 = vld [vmem:[%s6 + $0x58] sm:$0xf]
  %v4464 = vld [vmem:[%s6 + $0x5c] sm:$0xf]
  %v4465 = vld [vmem:[%s6 + $0x60] sm:$0xf]
  %v4466 = vld [vmem:[%s6 + $0x64] sm:$0xf]
  %v4467 = vld [vmem:[%s6 + $0x68] sm:$0xf]
  %v4468 = vld [vmem:[%s6 + $0x6c] sm:$0xf]
  %v4469 = vld [vmem:[%s6 + $0x70] sm:$0xf]
  %v4470 = vld [vmem:[%s6 + $0x74] sm:$0xf]
  %v4471 = vld [vmem:[%s6 + $0x78] sm:$0xf]
  %v4472 = vld [vmem:[%s6 + $0x7c] sm:$0xf]
  %v4505 = vunpack.c.l.b16 %v4409
  %v4506 = vunpack.c.l.b16 %v4410
  %v4507 = vunpack.c.l.b16 %v4411
  %v4508 = vunpack.c.l.b16 %v4412
  %v4509 = vunpack.c.l.b16 %v4413
  %v4510 = vunpack.c.l.b16 %v4414
  %v4511 = vunpack.c.l.b16 %v4415
  %v4512 = vunpack.c.l.b16 %v4416
  %v4513 = vunpack.c.l.b16 %v4417
  %v4514 = vunpack.c.l.b16 %v4418
  %v4515 = vunpack.c.l.b16 %v4419
  %v4516 = vunpack.c.l.b16 %v4420
  %v4517 = vunpack.c.l.b16 %v4421
  %v4518 = vunpack.c.l.b16 %v4422
  %v4519 = vunpack.c.l.b16 %v4423
  %v4520 = vunpack.c.l.b16 %v4424
  %v4521 = vunpack.c.l.b16 %v4425
  %v4522 = vunpack.c.l.b16 %v4426
  %v4523 = vunpack.c.l.b16 %v4427
  %v4524 = vunpack.c.l.b16 %v4428
  %v4525 = vunpack.c.l.b16 %v4429
  %v4526 = vunpack.c.l.b16 %v4430
  %v4527 = vunpack.c.l.b16 %v4431
  %v4528 = vunpack.c.l.b16 %v4432
  %v4529 = vunpack.c.l.b16 %v4433
  %v4530 = vunpack.c.l.b16 %v4434
  %v4531 = vunpack.c.l.b16 %v4435
  %v4532 = vunpack.c.l.b16 %v4436
  %v4533 = vunpack.c.l.b16 %v4437
  %v4534 = vunpack.c.l.b16 %v4438
  %v4535 = vunpack.c.l.b16 %v4439
  %v4536 = vunpack.c.l.b16 %v4440
  %v4537 = vpack.c.b16 %v4506, %v4505
  %v4538 = vpack.c.b16 %v4508, %v4507
  %v4539 = vpack.c.b16 %v4510, %v4509
  %v4540 = vpack.c.b16 %v4512, %v4511
  %v4541 = vpack.c.b16 %v4514, %v4513
  %v4542 = vpack.c.b16 %v4516, %v4515
  %v4543 = vpack.c.b16 %v4518, %v4517
  %v4544 = vpack.c.b16 %v4520, %v4519
  %v4545 = vpack.c.b16 %v4522, %v4521
  %v4546 = vpack.c.b16 %v4524, %v4523
  %v4547 = vpack.c.b16 %v4526, %v4525
  %v4548 = vpack.c.b16 %v4528, %v4527
  %v4549 = vpack.c.b16 %v4530, %v4529
  %v4550 = vpack.c.b16 %v4532, %v4531
  %v4551 = vpack.c.b16 %v4534, %v4533
  %v4552 = vpack.c.b16 %v4536, %v4535
  %v4554 = vsel %vm2575, %v4537, 0
  %v4557 = vsel %vm2575, %v4538, 0
  %v4560 = vsel %vm2575, %v4539, 0
  %v4563 = vsel %vm2575, %v4540, 0
  %v4566 = vsel %vm2575, %v4541, 0
  %v4569 = vsel %vm2575, %v4542, 0
  %v4572 = vsel %vm2575, %v4543, 0
  %v4575 = vsel %vm2575, %v4544, 0
  %v4578 = vsel %vm2575, %v4545, 0
  %v4581 = vsel %vm2575, %v4546, 0
  %v4584 = vsel %vm2575, %v4547, 0
  %v4587 = vsel %vm2575, %v4548, 0
  %v4590 = vsel %vm2575, %v4549, 0
  %v4593 = vsel %vm2575, %v4550, 0
  %v4596 = vsel %vm2575, %v4551, 0
  %v4599 = vsel %vm2575, %v4552, 0
  %4601 = vmatprep.subr.bf16.mxu0 0
  %4602 = vmatpush1.bf16.msra.mxu0 %v4393
  %4603 = vmatprep.subr.bf16.mxu0 0
  %4604 = vmatpush1.bf16.msra.mxu0 %v4394
  %4605 = vmatprep.subr.bf16.mxu0 0
  %4606 = vmatpush1.bf16.msra.mxu0 %v4395
  %4607 = vmatprep.subr.bf16.mxu0 0
  %4608 = vmatpush1.bf16.msra.mxu0 %v4396
  %4609 = vmatprep.subr.bf16.mxu0 0
  %4610 = vmatpush1.bf16.msra.mxu0 0
  %4611 = vmatprep.subr.bf16.mxu0 0
  %4612 = vmatpush1.bf16.msra.mxu0 0
  %4613 = vmatprep.subr.bf16.mxu0 0
  %4614 = vmatpush1.bf16.msra.mxu0 0
  %4615 = vmatprep.subr.bf16.mxu0 0
  %4616 = vmatpush1.bf16.msra.mxu0 0
  %4617 = vmatprep.subr.bf16.mxu0 0
  %4618 = vmatpush1.bf16.msra.mxu0 0
  %4619 = vmatprep.subr.bf16.mxu0 0
  %4620 = vmatpush1.bf16.msra.mxu0 0
  %4621 = vmatprep.subr.bf16.mxu0 0
  %4622 = vmatpush1.bf16.msra.mxu0 0
  %4623 = vmatprep.subr.bf16.mxu0 0
  %4624 = vmatpush1.bf16.msra.mxu0 0
  %4625 = vmatprep.subr.bf16.mxu0 0
  %4626 = vmatpush1.bf16.msra.mxu0 0
  %4627 = vmatprep.subr.bf16.mxu0 0
  %4628 = vmatpush1.bf16.msra.mxu0 0
  %4629 = vmatprep.subr.bf16.mxu0 0
  %4630 = vmatpush1.bf16.msra.mxu0 0
  %4631 = vmatprep.subr.bf16.mxu0 0
  %4632 = vmatpush1.bf16.msra.mxu0 0
  %4633 = vmatprep.mubr.bf16.mxu0 0
  %4634 = vmatmul.mubr.bf16.gmra.mrb[0].mxu0 %v4554
  %v4635 = vpop.f32.mrb[0].mxu0
  %v4636 = vadd.f32 0.0, %v4635
  %v4637 = vpop.f32.mrb[0].mxu0
  %v4638 = vpop.f32.mrb[0].mxu0
  %v4639 = vadd.f32 0.0, %v4638
  %v4640 = vpop.f32.mrb[0].mxu0
  %4641 = vmatprep.mubr.bf16.mxu0 0
  %4642 = vmatmul.mubr.bf16.gmra.mrb[0].mxu0 %v4557
  %v4643 = vpop.f32.mrb[0].mxu0
  %v4644 = vadd.f32 0.0, %v4643
  %v4645 = vpop.f32.mrb[0].mxu0
  %v4646 = vpop.f32.mrb[0].mxu0
  %v4647 = vadd.f32 0.0, %v4646
  %v4648 = vpop.f32.mrb[0].mxu0
  %4649 = vmatprep.mubr.bf16.mxu0 0
  %4650 = vmatmul.mubr.bf16.gmra.mrb[0].mxu0 %v4560
  %v4651 = vpop.f32.mrb[0].mxu0
  %v4652 = vadd.f32 0.0, %v4651
  %v4653 = vpop.f32.mrb[0].mxu0
  %v4654 = vpop.f32.mrb[0].mxu0
  %v4655 = vadd.f32 0.0, %v4654
  %v4656 = vpop.f32.mrb[0].mxu0
  %4657 = vmatprep.mubr.bf16.mxu0 0
  %4658 = vmatmul.mubr.bf16.gmra.mrb[0].mxu0 %v4563
  %v4659 = vpop.f32.mrb[0].mxu0
  %v4660 = vadd.f32 0.0, %v4659
  %v4661 = vpop.f32.mrb[0].mxu0
  %v4662 = vpop.f32.mrb[0].mxu0
  %v4663 = vadd.f32 0.0, %v4662
  %v4664 = vpop.f32.mrb[0].mxu0
  %4665 = vmatprep.mubr.bf16.mxu0 0
  %4666 = vmatmul.mubr.bf16.gmra.mrb[0].mxu0 %v4566
  %v4667 = vpop.f32.mrb[0].mxu0
  %v4668 = vadd.f32 0.0, %v4667
  %v4669 = vpop.f32.mrb[0].mxu0
  %v4670 = vpop.f32.mrb[0].mxu0
  %v4671 = vadd.f32 0.0, %v4670
  %v4672 = vpop.f32.mrb[0].mxu0
  %4673 = vmatprep.mubr.bf16.mxu0 0
  %4674 = vmatmul.mubr.bf16.gmra.mrb[0].mxu0 %v4569
  %v4675 = vpop.f32.mrb[0].mxu0
  %v4676 = vadd.f32 0.0, %v4675
  %v4677 = vpop.f32.mrb[0].mxu0
  %v4678 = vpop.f32.mrb[0].mxu0
  %v4679 = vadd.f32 0.0, %v4678
  %v4680 = vpop.f32.mrb[0].mxu0
  %4681 = vmatprep.mubr.bf16.mxu0 0
  %4682 = vmatmul.mubr.bf16.gmra.mrb[0].mxu0 %v4572
  %v4683 = vpop.f32.mrb[0].mxu0
  %v4684 = vadd.f32 0.0, %v4683
  %v4685 = vpop.f32.mrb[0].mxu0
  %v4686 = vpop.f32.mrb[0].mxu0
  %v4687 = vadd.f32 0.0, %v4686
  %v4688 = vpop.f32.mrb[0].mxu0
  %4689 = vmatprep.mubr.bf16.mxu0 0
  %4690 = vmatmul.mubr.bf16.gmra.mrb[0].mxu0 %v4575
  %v4691 = vpop.f32.mrb[0].mxu0
  %v4692 = vadd.f32 0.0, %v4691
  %v4693 = vpop.f32.mrb[0].mxu0
  %v4694 = vpop.f32.mrb[0].mxu0
  %v4695 = vadd.f32 0.0, %v4694
  %v4696 = vpop.f32.mrb[0].mxu0
  %4697 = vmatprep.mubr.bf16.mxu0 0
  %4698 = vmatmul.mubr.bf16.gmra.mrb[0].mxu0 %v4578
  %v4699 = vpop.f32.mrb[0].mxu0
  %v4700 = vadd.f32 0.0, %v4699
  %v4701 = vpop.f32.mrb[0].mxu0
  %v4702 = vpop.f32.mrb[0].mxu0
  %v4703 = vadd.f32 0.0, %v4702
  %v4704 = vpop.f32.mrb[0].mxu0
  %4705 = vmatprep.mubr.bf16.mxu0 0
  %4706 = vmatmul.mubr.bf16.gmra.mrb[0].mxu0 %v4581
  %v4707 = vpop.f32.mrb[0].mxu0
  %v4708 = vadd.f32 0.0, %v4707
  %v4709 = vpop.f32.mrb[0].mxu0
  %v4710 = vpop.f32.mrb[0].mxu0
  %v4711 = vadd.f32 0.0, %v4710
  %v4712 = vpop.f32.mrb[0].mxu0
  %4713 = vmatprep.mubr.bf16.mxu0 0
  %4714 = vmatmul.mubr.bf16.gmra.mrb[0].mxu0 %v4584
  %v4715 = vpop.f32.mrb[0].mxu0
  %v4716 = vadd.f32 0.0, %v4715
  %v4717 = vpop.f32.mrb[0].mxu0
  %v4718 = vpop.f32.mrb[0].mxu0
  %v4719 = vadd.f32 0.0, %v4718
  %v4720 = vpop.f32.mrb[0].mxu0
  %4721 = vmatprep.mubr.bf16.mxu0 0
  %4722 = vmatmul.mubr.bf16.gmra.mrb[0].mxu0 %v4587
  %v4723 = vpop.f32.mrb[0].mxu0
  %v4724 = vadd.f32 0.0, %v4723
  %v4725 = vpop.f32.mrb[0].mxu0
  %v4726 = vpop.f32.mrb[0].mxu0
  %v4727 = vadd.f32 0.0, %v4726
  %v4728 = vpop.f32.mrb[0].mxu0
  %4729 = vmatprep.mubr.bf16.mxu0 0
  %4730 = vmatmul.mubr.bf16.gmra.mrb[0].mxu0 %v4590
  %v4731 = vpop.f32.mrb[0].mxu0
  %v4732 = vadd.f32 0.0, %v4731
  %v4733 = vpop.f32.mrb[0].mxu0
  %v4734 = vpop.f32.mrb[0].mxu0
  %v4735 = vadd.f32 0.0, %v4734
  %v4736 = vpop.f32.mrb[0].mxu0
  %4737 = vmatprep.mubr.bf16.mxu0 0
  %4738 = vmatmul.mubr.bf16.gmra.mrb[0].mxu0 %v4593
  %v4739 = vpop.f32.mrb[0].mxu0
  %v4740 = vadd.f32 0.0, %v4739
  %v4741 = vpop.f32.mrb[0].mxu0
  %v4742 = vpop.f32.mrb[0].mxu0
  %v4743 = vadd.f32 0.0, %v4742
  %v4744 = vpop.f32.mrb[0].mxu0
  %4745 = vmatprep.mubr.bf16.mxu0 0
  %4746 = vmatmul.mubr.bf16.gmra.mrb[0].mxu0 %v4596
  %v4747 = vpop.f32.mrb[0].mxu0
  %v4748 = vadd.f32 0.0, %v4747
  %v4749 = vpop.f32.mrb[0].mxu0
  %v4750 = vpop.f32.mrb[0].mxu0
  %v4751 = vadd.f32 0.0, %v4750
  %v4752 = vpop.f32.mrb[0].mxu0
  %4753 = vmatprep.mubr.bf16.mxu0 0
  %4754 = vmatmul.mubr.bf16.gmra.mrb[0].mxu0 %v4599
  %v4755 = vpop.f32.mrb[0].mxu0
  %v4756 = vadd.f32 0.0, %v4755
  %v4757 = vpop.f32.mrb[0].mxu0
  %v4758 = vpop.f32.mrb[0].mxu0
  %v4759 = vadd.f32 0.0, %v4758
  %v4760 = vpop.f32.mrb[0].mxu0
  %4761 = vdwg.mxu0
  %4762 = vst.msk [vmem:[#allocation5] sm:$0xff] %vm2653, %v4636
  %4763 = vst.msk [vmem:[#allocation5 + $0x8] sm:$0xff] %vm2653, %v4639
  %4764 = vst.msk [vmem:[#allocation5 + $0x10] sm:$0xff] %vm2653, %v4644
  %4765 = vst.msk [vmem:[#allocation5 + $0x18] sm:$0xff] %vm2653, %v4647
  %4766 = vst.msk [vmem:[#allocation5 + $0x20] sm:$0xff] %vm2653, %v4652
  %4767 = vst.msk [vmem:[#allocation5 + $0x28] sm:$0xff] %vm2653, %v4655
  %4768 = vst.msk [vmem:[#allocation5 + $0x30] sm:$0xff] %vm2653, %v4660
  %4769 = vst.msk [vmem:[#allocation5 + $0x38] sm:$0xff] %vm2653, %v4663
  %4770 = vst.msk [vmem:[#allocation5 + $0x40] sm:$0xff] %vm2653, %v4668
  %4771 = vst.msk [vmem:[#allocation5 + $0x48] sm:$0xff] %vm2653, %v4671
  %4772 = vst.msk [vmem:[#allocation5 + $0x50] sm:$0xff] %vm2653, %v4676
  %4773 = vst.msk [vmem:[#allocation5 + $0x58] sm:$0xff] %vm2653, %v4679
  %4774 = vst.msk [vmem:[#allocation5 + $0x60] sm:$0xff] %vm2653, %v4684
  %4775 = vst.msk [vmem:[#allocation5 + $0x68] sm:$0xff] %vm2653, %v4687
  %4776 = vst.msk [vmem:[#allocation5 + $0x70] sm:$0xff] %vm2653, %v4692
  %4777 = vst.msk [vmem:[#allocation5 + $0x78] sm:$0xff] %vm2653, %v4695
  %4778 = vst.msk [vmem:[#allocation5 + $0x80] sm:$0xff] %vm2653, %v4700
  %4779 = vst.msk [vmem:[#allocation5 + $0x88] sm:$0xff] %vm2653, %v4703
  %4780 = vst.msk [vmem:[#allocation5 + $0x90] sm:$0xff] %vm2653, %v4708
  %4781 = vst.msk [vmem:[#allocation5 + $0x98] sm:$0xff] %vm2653, %v4711
  %4782 = vst.msk [vmem:[#allocation5 + $0xa0] sm:$0xff] %vm2653, %v4716
  %4783 = vst.msk [vmem:[#allocation5 + $0xa8] sm:$0xff] %vm2653, %v4719
  %4784 = vst.msk [vmem:[#allocation5 + $0xb0] sm:$0xff] %vm2653, %v4724
  %4785 = vst.msk [vmem:[#allocation5 + $0xb8] sm:$0xff] %vm2653, %v4727
  %4786 = vst.msk [vmem:[#allocation5 + $0xc0] sm:$0xff] %vm2653, %v4732
  %4787 = vst.msk [vmem:[#allocation5 + $0xc8] sm:$0xff] %vm2653, %v4735
  %4788 = vst.msk [vmem:[#allocation5 + $0xd0] sm:$0xff] %vm2653, %v4740
  %4789 = vst.msk [vmem:[#allocation5 + $0xd8] sm:$0xff] %vm2653, %v4743
  %4790 = vst.msk [vmem:[#allocation5 + $0xe0] sm:$0xff] %vm2653, %v4748
  %4791 = vst.msk [vmem:[#allocation5 + $0xe8] sm:$0xff] %vm2653, %v4751
  %4792 = vst.msk [vmem:[#allocation5 + $0xf0] sm:$0xff] %vm2653, %v4756
  %4793 = vst.msk [vmem:[#allocation5 + $0xf8] sm:$0xff] %vm2653, %v4759
  %v4794 = vld [vmem:[#allocation5] sm:$0xff]
  %v4795 = vld [vmem:[#allocation5 + $0x8] sm:$0xff]
  %4796 = vst.msk [vmem:[#allocation6] sm:$0xff] %vm2653, %v4794
  %4797 = vst.msk [vmem:[#allocation6 + $0x10] sm:$0xff] %vm2653, %v4795
  %v4798 = vld [vmem:[#allocation5 + $0x10] sm:$0xff]
  %v4799 = vld [vmem:[#allocation5 + $0x18] sm:$0xff]
  %4802 = vrot.lane.b32.xlu0 %v4798, 16
  %v4803 = vpop.permute.xlu0 %4802
  %4804 = vrot.lane.b32.xlu0 %v4799, 16
  %v4805 = vpop.permute.xlu0 %4804
  %vm4808 = vcmask 261248
  %4809 = vst.msk [vmem:[#allocation6] sm:$0xff] %vm4808, %v4803
  %4810 = vst.msk [vmem:[#allocation6 + $0x10] sm:$0xff] %vm4808, %v4805
  %v4811 = vld [vmem:[#allocation5 + $0x20] sm:$0xff]
  %v4812 = vld [vmem:[#allocation5 + $0x28] sm:$0xff]
  %4815 = vrot.lane.b32.xlu0 %v4811, 32
  %v4816 = vpop.permute.xlu0 %4815
  %4817 = vrot.lane.b32.xlu0 %v4812, 32
  %v4818 = vpop.permute.xlu0 %4817
  %vm4821 = vcmask 392448
  %4822 = vst.msk [vmem:[#allocation6] sm:$0xff] %vm4821, %v4816
  %4823 = vst.msk [vmem:[#allocation6 + $0x10] sm:$0xff] %vm4821, %v4818
  %v4824 = vld [vmem:[#allocation5 + $0x30] sm:$0xff]
  %v4825 = vld [vmem:[#allocation5 + $0x38] sm:$0xff]
  %4828 = vrot.lane.b32.xlu0 %v4824, 48
  %v4829 = vpop.permute.xlu0 %4828
  %4830 = vrot.lane.b32.xlu0 %v4825, 48
  %v4831 = vpop.permute.xlu0 %4830
  %vm4834 = vcmask 523648
  %4835 = vst.msk [vmem:[#allocation6] sm:$0xff] %vm4834, %v4829
  %4836 = vst.msk [vmem:[#allocation6 + $0x10] sm:$0xff] %vm4834, %v4831
  %v4837 = vld [vmem:[#allocation5 + $0x40] sm:$0xff]
  %v4838 = vld [vmem:[#allocation5 + $0x48] sm:$0xff]
  %4841 = vrot.lane.b32.xlu0 %v4837, 64
  %v4842 = vpop.permute.xlu0 %4841
  %4843 = vrot.lane.b32.xlu0 %v4838, 64
  %v4844 = vpop.permute.xlu0 %4843
  %vm4847 = vcmask 654848
  %4848 = vst.msk [vmem:[#allocation6] sm:$0xff] %vm4847, %v4842
  %4849 = vst.msk [vmem:[#allocation6 + $0x10] sm:$0xff] %vm4847, %v4844
  %v4850 = vld [vmem:[#allocation5 + $0x50] sm:$0xff]
  %v4851 = vld [vmem:[#allocation5 + $0x58] sm:$0xff]
  %4854 = vrot.lane.b32.xlu0 %v4850, 80
  %v4855 = vpop.permute.xlu0 %4854
  %4856 = vrot.lane.b32.xlu0 %v4851, 80
  %v4857 = vpop.permute.xlu0 %4856
  %vm4860 = vcmask 786048
  %4861 = vst.msk [vmem:[#allocation6] sm:$0xff] %vm4860, %v4855
  %4862 = vst.msk [vmem:[#allocation6 + $0x10] sm:$0xff] %vm4860, %v4857
  %v4863 = vld [vmem:[#allocation5 + $0x60] sm:$0xff]
  %v4864 = vld [vmem:[#allocation5 + $0x68] sm:$0xff]
  %4867 = vrot.lane.b32.xlu0 %v4863, 96
  %v4868 = vpop.permute.xlu0 %4867
  %4869 = vrot.lane.b32.xlu0 %v4864, 96
  %v4870 = vpop.permute.xlu0 %4869
  %vm4873 = vcmask 917248
  %4874 = vst.msk [vmem:[#allocation6] sm:$0xff] %vm4873, %v4868
  %4875 = vst.msk [vmem:[#allocation6 + $0x10] sm:$0xff] %vm4873, %v4870
  %v4876 = vld [vmem:[#allocation5 + $0x70] sm:$0xff]
  %v4877 = vld [vmem:[#allocation5 + $0x78] sm:$0xff]
  %4880 = vrot.lane.b32.xlu0 %v4876, 112
  %v4881 = vpop.permute.xlu0 %4880
  %4882 = vrot.lane.b32.xlu0 %v4877, 112
  %v4883 = vpop.permute.xlu0 %4882
  %vm4886 = vcmask 1048448
  %4887 = vst.msk [vmem:[#allocation6] sm:$0xff] %vm4886, %v4881
  %4888 = vst.msk [vmem:[#allocation6 + $0x10] sm:$0xff] %vm4886, %v4883
  %v4889 = vld [vmem:[#allocation5 + $0x80] sm:$0xff]
  %v4890 = vld [vmem:[#allocation5 + $0x88] sm:$0xff]
  %4891 = vst.msk [vmem:[#allocation6 + $0x8] sm:$0xff] %vm2653, %v4889
  %4892 = vst.msk [vmem:[#allocation6 + $0x18] sm:$0xff] %vm2653, %v4890
  %v4893 = vld [vmem:[#allocation5 + $0x90] sm:$0xff]
  %v4894 = vld [vmem:[#allocation5 + $0x98] sm:$0xff]
  %4897 = vrot.lane.b32.xlu0 %v4893, 16
  %v4898 = vpop.permute.xlu0 %4897
  %4899 = vrot.lane.b32.xlu0 %v4894, 16
  %v4900 = vpop.permute.xlu0 %4899
  %4903 = vst.msk [vmem:[#allocation6 + $0x8] sm:$0xff] %vm4808, %v4898
  %4904 = vst.msk [vmem:[#allocation6 + $0x18] sm:$0xff] %vm4808, %v4900
  %v4905 = vld [vmem:[#allocation5 + $0xa0] sm:$0xff]
  %v4906 = vld [vmem:[#allocation5 + $0xa8] sm:$0xff]
  %4909 = vrot.lane.b32.xlu0 %v4905, 32
  %v4910 = vpop.permute.xlu0 %4909
  %4911 = vrot.lane.b32.xlu0 %v4906, 32
  %v4912 = vpop.permute.xlu0 %4911
  %4915 = vst.msk [vmem:[#allocation6 + $0x8] sm:$0xff] %vm4821, %v4910
  %4916 = vst.msk [vmem:[#allocation6 + $0x18] sm:$0xff] %vm4821, %v4912
  %v4917 = vld [vmem:[#allocation5 + $0xb0] sm:$0xff]
  %v4918 = vld [vmem:[#allocation5 + $0xb8] sm:$0xff]
  %4921 = vrot.lane.b32.xlu0 %v4917, 48
  %v4922 = vpop.permute.xlu0 %4921
  %4923 = vrot.lane.b32.xlu0 %v4918, 48
  %v4924 = vpop.permute.xlu0 %4923
  %4927 = vst.msk [vmem:[#allocation6 + $0x8] sm:$0xff] %vm4834, %v4922
  %4928 = vst.msk [vmem:[#allocation6 + $0x18] sm:$0xff] %vm4834, %v4924
  %v4929 = vld [vmem:[#allocation5 + $0xc0] sm:$0xff]
  %v4930 = vld [vmem:[#allocation5 + $0xc8] sm:$0xff]
  %4933 = vrot.lane.b32.xlu0 %v4929, 64
  %v4934 = vpop.permute.xlu0 %4933
  %4935 = vrot.lane.b32.xlu0 %v4930, 64
  %v4936 = vpop.permute.xlu0 %4935
  %4939 = vst.msk [vmem:[#allocation6 + $0x8] sm:$0xff] %vm4847, %v4934
  %4940 = vst.msk [vmem:[#allocation6 + $0x18] sm:$0xff] %vm4847, %v4936
  %v4941 = vld [vmem:[#allocation5 + $0xd0] sm:$0xff]
  %v4942 = vld [vmem:[#allocation5 + $0xd8] sm:$0xff]
  %4945 = vrot.lane.b32.xlu0 %v4941, 80
  %v4946 = vpop.permute.xlu0 %4945
  %4947 = vrot.lane.b32.xlu0 %v4942, 80
  %v4948 = vpop.permute.xlu0 %4947
  %4951 = vst.msk [vmem:[#allocation6 + $0x8] sm:$0xff] %vm4860, %v4946
  %4952 = vst.msk [vmem:[#allocation6 + $0x18] sm:$0xff] %vm4860, %v4948
  %v4953 = vld [vmem:[#allocation5 + $0xe0] sm:$0xff]
  %v4954 = vld [vmem:[#allocation5 + $0xe8] sm:$0xff]
  %4957 = vrot.lane.b32.xlu0 %v4953, 96
  %v4958 = vpop.permute.xlu0 %4957
  %4959 = vrot.lane.b32.xlu0 %v4954, 96
  %v4960 = vpop.permute.xlu0 %4959
  %4963 = vst.msk [vmem:[#allocation6 + $0x8] sm:$0xff] %vm4873, %v4958
  %4964 = vst.msk [vmem:[#allocation6 + $0x18] sm:$0xff] %vm4873, %v4960
  %v4965 = vld [vmem:[#allocation5 + $0xf0] sm:$0xff]
  %v4966 = vld [vmem:[#allocation5 + $0xf8] sm:$0xff]
  %4969 = vrot.lane.b32.xlu0 %v4965, 112
  %v4970 = vpop.permute.xlu0 %4969
  %4971 = vrot.lane.b32.xlu0 %v4966, 112
  %v4972 = vpop.permute.xlu0 %4971
  %4975 = vst.msk [vmem:[#allocation6 + $0x8] sm:$0xff] %vm4886, %v4970
  %4976 = vst.msk [vmem:[#allocation6 + $0x18] sm:$0xff] %vm4886, %v4972
  %v4977 = vld [vmem:[#allocation6] sm:$0xff]
  %v4978 = vld [vmem:[#allocation6 + $0x8] sm:$0xff]
  %v4979 = vld [vmem:[#allocation6 + $0x10] sm:$0xff]
  %v4980 = vld [vmem:[#allocation6 + $0x18] sm:$0xff]
  %v4981 = vpack.c.bf16 %v4979, %v4977
  %v4982 = vpack.c.bf16 %v4980, %v4978
  %v5015 = vunpack.c.l.b16 %v4441
  %v5016 = vunpack.c.l.b16 %v4442
  %v5017 = vunpack.c.l.b16 %v4443
  %v5018 = vunpack.c.l.b16 %v4444
  %v5019 = vunpack.c.l.b16 %v4445
  %v5020 = vunpack.c.l.b16 %v4446
  %v5021 = vunpack.c.l.b16 %v4447
  %v5022 = vunpack.c.l.b16 %v4448
  %v5023 = vunpack.c.l.b16 %v4449
  %v5024 = vunpack.c.l.b16 %v4450
  %v5025 = vunpack.c.l.b16 %v4451
  %v5026 = vunpack.c.l.b16 %v4452
  %v5027 = vunpack.c.l.b16 %v4453
  %v5028 = vunpack.c.l.b16 %v4454
  %v5029 = vunpack.c.l.b16 %v4455
  %v5030 = vunpack.c.l.b16 %v4456
  %v5031 = vunpack.c.l.b16 %v4457
  %v5032 = vunpack.c.l.b16 %v4458
  %v5033 = vunpack.c.l.b16 %v4459
  %v5034 = vunpack.c.l.b16 %v4460
  %v5035 = vunpack.c.l.b16 %v4461
  %v5036 = vunpack.c.l.b16 %v4462
  %v5037 = vunpack.c.l.b16 %v4463
  %v5038 = vunpack.c.l.b16 %v4464
  %v5039 = vunpack.c.l.b16 %v4465
  %v5040 = vunpack.c.l.b16 %v4466
  %v5041 = vunpack.c.l.b16 %v4467
  %v5042 = vunpack.c.l.b16 %v4468
  %v5043 = vunpack.c.l.b16 %v4469
  %v5044 = vunpack.c.l.b16 %v4470
  %v5045 = vunpack.c.l.b16 %v4471
  %v5046 = vunpack.c.l.b16 %v4472
  %v5047 = vpack.c.b16 %v5016, %v5015
  %v5048 = vpack.c.b16 %v5018, %v5017
  %v5049 = vpack.c.b16 %v5020, %v5019
  %v5050 = vpack.c.b16 %v5022, %v5021
  %v5051 = vpack.c.b16 %v5024, %v5023
  %v5052 = vpack.c.b16 %v5026, %v5025
  %v5053 = vpack.c.b16 %v5028, %v5027
  %v5054 = vpack.c.b16 %v5030, %v5029
  %v5055 = vpack.c.b16 %v5032, %v5031
  %v5056 = vpack.c.b16 %v5034, %v5033
  %v5057 = vpack.c.b16 %v5036, %v5035
  %v5058 = vpack.c.b16 %v5038, %v5037
  %v5059 = vpack.c.b16 %v5040, %v5039
  %v5060 = vpack.c.b16 %v5042, %v5041
  %v5061 = vpack.c.b16 %v5044, %v5043
  %v5062 = vpack.c.b16 %v5046, %v5045
  %5079 = vmatprep.subr.bf16.mxu0 0
  %5080 = vmatpush1.bf16.msra.mxu0 %v5047
  %5081 = vmatprep.subr.bf16.mxu0 0
  %5082 = vmatpush1.bf16.msra.mxu0 %v5048
  %5083 = vmatprep.subr.bf16.mxu0 0
  %5084 = vmatpush1.bf16.msra.mxu0 %v5049
  %5085 = vmatprep.subr.bf16.mxu0 0
  %5086 = vmatpush1.bf16.msra.mxu0 %v5050
  %5087 = vmatprep.subr.bf16.mxu0 0
  %5088 = vmatpush1.bf16.msra.mxu0 %v5051
  %5089 = vmatprep.subr.bf16.mxu0 0
  %5090 = vmatpush1.bf16.msra.mxu0 %v5052
  %5091 = vmatprep.subr.bf16.mxu0 0
  %5092 = vmatpush1.bf16.msra.mxu0 %v5053
  %5093 = vmatprep.subr.bf16.mxu0 0
  %5094 = vmatpush1.bf16.msra.mxu0 %v5054
  %5095 = vmatprep.subr.bf16.mxu0 0
  %5096 = vmatpush1.bf16.msra.mxu0 %v5055
  %5097 = vmatprep.subr.bf16.mxu0 0
  %5098 = vmatpush1.bf16.msra.mxu0 %v5056
  %5099 = vmatprep.subr.bf16.mxu0 0
  %5100 = vmatpush1.bf16.msra.mxu0 %v5057
  %5101 = vmatprep.subr.bf16.mxu0 0
  %5102 = vmatpush1.bf16.msra.mxu0 %v5058
  %5103 = vmatprep.subr.bf16.mxu0 0
  %5104 = vmatpush1.bf16.msra.mxu0 %v5059
  %5105 = vmatprep.subr.bf16.mxu0 0
  %5106 = vmatpush1.bf16.msra.mxu0 %v5060
  %5107 = vmatprep.subr.bf16.mxu0 0
  %5108 = vmatpush1.bf16.msra.mxu0 %v5061
  %5109 = vmatprep.subr.bf16.mxu0 0
  %5110 = vmatpush1.bf16.msra.mxu0 %v5062
  %5111 = vmatprep.mubr.bf16.mxu0 %v4982
  %5112 = vmatmul.mubr.bf16.gmra.mrb[0].mxu0 %v4981
  %v5113 = vpop.f32.mrb[0].mxu0
  %v5114 = vadd.f32 0.0, %v5113
  %v5115 = vpop.f32.mrb[0].mxu0
  %v5116 = vpop.f32.mrb[0].mxu0
  %v5117 = vadd.f32 0.0, %v5116
  %v5118 = vpop.f32.mrb[0].mxu0
  %5119 = vdwg.mxu0
  %vm5120 = vcmask 261120
  %5121 = vst.msk [vmem:[#allocation7] sm:$0xff] %vm5120, %v5114
  %5122 = vst.msk [vmem:[#allocation7 + $0x8] sm:$0xff] %vm5120, %v5117
  %5123 = vmatprep.subr.bf16.mxu0 0
  %5124 = vmatpush1.bf16.msra.mxu0 %v4405
  %5125 = vmatprep.subr.bf16.mxu0 0
  %5126 = vmatpush1.bf16.msra.mxu0 %v4406
  %5127 = vmatprep.subr.bf16.mxu0 0
  %5128 = vmatpush1.bf16.msra.mxu0 %v4407
  %5129 = vmatprep.subr.bf16.mxu0 0
  %5130 = vmatpush1.bf16.msra.mxu0 %v4408
  %5131 = vmatprep.subr.bf16.mxu0 0
  %5132 = vmatpush1.bf16.msra.mxu0 0
  %5133 = vmatprep.subr.bf16.mxu0 0
  %5134 = vmatpush1.bf16.msra.mxu0 0
  %5135 = vmatprep.subr.bf16.mxu0 0
  %5136 = vmatpush1.bf16.msra.mxu0 0
  %5137 = vmatprep.subr.bf16.mxu0 0
  %5138 = vmatpush1.bf16.msra.mxu0 0
  %5139 = vmatprep.subr.bf16.mxu0 0
  %5140 = vmatpush1.bf16.msra.mxu0 0
  %5141 = vmatprep.subr.bf16.mxu0 0
  %5142 = vmatpush1.bf16.msra.mxu0 0
  %5143 = vmatprep.subr.bf16.mxu0 0
  %5144 = vmatpush1.bf16.msra.mxu0 0
  %5145 = vmatprep.subr.bf16.mxu0 0
  %5146 = vmatpush1.bf16.msra.mxu0 0
  %5147 = vmatprep.subr.bf16.mxu0 0
  %5148 = vmatpush1.bf16.msra.mxu0 0
  %5149 = vmatprep.subr.bf16.mxu0 0
  %5150 = vmatpush1.bf16.msra.mxu0 0
  %5151 = vmatprep.subr.bf16.mxu0 0
  %5152 = vmatpush1.bf16.msra.mxu0 0
  %5153 = vmatprep.subr.bf16.mxu0 0
  %5154 = vmatpush1.bf16.msra.mxu0 0
  %5155 = vmatprep.mubr.bf16.mxu0 0
  %5156 = vmatmul.mubr.bf16.gmra.mrb[0].mxu0 %v4554
  %v5157 = vpop.f32.mrb[0].mxu0
  %v5158 = vadd.f32 0.0, %v5157
  %v5159 = vpop.f32.mrb[0].mxu0
  %v5160 = vpop.f32.mrb[0].mxu0
  %v5161 = vadd.f32 0.0, %v5160
  %v5162 = vpop.f32.mrb[0].mxu0
  %5163 = vmatprep.mubr.bf16.mxu0 0
  %5164 = vmatmul.mubr.bf16.gmra.mrb[0].mxu0 %v4557
  %v5165 = vpop.f32.mrb[0].mxu0
  %v5166 = vadd.f32 0.0, %v5165
  %v5167 = vpop.f32.mrb[0].mxu0
  %v5168 = vpop.f32.mrb[0].mxu0
  %v5169 = vadd.f32 0.0, %v5168
  %v5170 = vpop.f32.mrb[0].mxu0
  %5171 = vmatprep.mubr.bf16.mxu0 0
  %5172 = vmatmul.mubr.bf16.gmra.mrb[0].mxu0 %v4560
  %v5173 = vpop.f32.mrb[0].mxu0
  %v5174 = vadd.f32 0.0, %v5173
  %v5175 = vpop.f32.mrb[0].mxu0
  %v5176 = vpop.f32.mrb[0].mxu0
  %v5177 = vadd.f32 0.0, %v5176
  %v5178 = vpop.f32.mrb[0].mxu0
  %5179 = vmatprep.mubr.bf16.mxu0 0
  %5180 = vmatmul.mubr.bf16.gmra.mrb[0].mxu0 %v4563
  %v5181 = vpop.f32.mrb[0].mxu0
  %v5182 = vadd.f32 0.0, %v5181
  %v5183 = vpop.f32.mrb[0].mxu0
  %v5184 = vpop.f32.mrb[0].mxu0
  %v5185 = vadd.f32 0.0, %v5184
  %v5186 = vpop.f32.mrb[0].mxu0
  %5187 = vmatprep.mubr.bf16.mxu0 0
  %5188 = vmatmul.mubr.bf16.gmra.mrb[0].mxu0 %v4566
  %v5189 = vpop.f32.mrb[0].mxu0
  %v5190 = vadd.f32 0.0, %v5189
  %v5191 = vpop.f32.mrb[0].mxu0
  %v5192 = vpop.f32.mrb[0].mxu0
  %v5193 = vadd.f32 0.0, %v5192
  %v5194 = vpop.f32.mrb[0].mxu0
  %5195 = vmatprep.mubr.bf16.mxu0 0
  %5196 = vmatmul.mubr.bf16.gmra.mrb[0].mxu0 %v4569
  %v5197 = vpop.f32.mrb[0].mxu0
  %v5198 = vadd.f32 0.0, %v5197
  %v5199 = vpop.f32.mrb[0].mxu0
  %v5200 = vpop.f32.mrb[0].mxu0
  %v5201 = vadd.f32 0.0, %v5200
  %v5202 = vpop.f32.mrb[0].mxu0
  %5203 = vmatprep.mubr.bf16.mxu0 0
  %5204 = vmatmul.mubr.bf16.gmra.mrb[0].mxu0 %v4572
  %v5205 = vpop.f32.mrb[0].mxu0
  %v5206 = vadd.f32 0.0, %v5205
  %v5207 = vpop.f32.mrb[0].mxu0
  %v5208 = vpop.f32.mrb[0].mxu0
  %v5209 = vadd.f32 0.0, %v5208
  %v5210 = vpop.f32.mrb[0].mxu0
  %5211 = vmatprep.mubr.bf16.mxu0 0
  %5212 = vmatmul.mubr.bf16.gmra.mrb[0].mxu0 %v4575
  %v5213 = vpop.f32.mrb[0].mxu0
  %v5214 = vadd.f32 0.0, %v5213
  %v5215 = vpop.f32.mrb[0].mxu0
  %v5216 = vpop.f32.mrb[0].mxu0
  %v5217 = vadd.f32 0.0, %v5216
  %v5218 = vpop.f32.mrb[0].mxu0
  %5219 = vmatprep.mubr.bf16.mxu0 0
  %5220 = vmatmul.mubr.bf16.gmra.mrb[0].mxu0 %v4578
  %v5221 = vpop.f32.mrb[0].mxu0
  %v5222 = vadd.f32 0.0, %v5221
  %v5223 = vpop.f32.mrb[0].mxu0
  %v5224 = vpop.f32.mrb[0].mxu0
  %v5225 = vadd.f32 0.0, %v5224
  %v5226 = vpop.f32.mrb[0].mxu0
  %5227 = vmatprep.mubr.bf16.mxu0 0
  %5228 = vmatmul.mubr.bf16.gmra.mrb[0].mxu0 %v4581
  %v5229 = vpop.f32.mrb[0].mxu0
  %v5230 = vadd.f32 0.0, %v5229
  %v5231 = vpop.f32.mrb[0].mxu0
  %v5232 = vpop.f32.mrb[0].mxu0
  %v5233 = vadd.f32 0.0, %v5232
  %v5234 = vpop.f32.mrb[0].mxu0
  %5235 = vmatprep.mubr.bf16.mxu0 0
  %5236 = vmatmul.mubr.bf16.gmra.mrb[0].mxu0 %v4584
  %v5237 = vpop.f32.mrb[0].mxu0
  %v5238 = vadd.f32 0.0, %v5237
  %v5239 = vpop.f32.mrb[0].mxu0
  %v5240 = vpop.f32.mrb[0].mxu0
  %v5241 = vadd.f32 0.0, %v5240
  %v5242 = vpop.f32.mrb[0].mxu0
  %5243 = vmatprep.mubr.bf16.mxu0 0
  %5244 = vmatmul.mubr.bf16.gmra.mrb[0].mxu0 %v4587
  %v5245 = vpop.f32.mrb[0].mxu0
  %v5246 = vadd.f32 0.0, %v5245
  %v5247 = vpop.f32.mrb[0].mxu0
  %v5248 = vpop.f32.mrb[0].mxu0
  %v5249 = vadd.f32 0.0, %v5248
  %v5250 = vpop.f32.mrb[0].mxu0
  %5251 = vmatprep.mubr.bf16.mxu0 0
  %5252 = vmatmul.mubr.bf16.gmra.mrb[0].mxu0 %v4590
  %v5253 = vpop.f32.mrb[0].mxu0
  %v5254 = vadd.f32 0.0, %v5253
  %v5255 = vpop.f32.mrb[0].mxu0
  %v5256 = vpop.f32.mrb[0].mxu0
  %v5257 = vadd.f32 0.0, %v5256
  %v5258 = vpop.f32.mrb[0].mxu0
  %5259 = vmatprep.mubr.bf16.mxu0 0
  %5260 = vmatmul.mubr.bf16.gmra.mrb[0].mxu0 %v4593
  %v5261 = vpop.f32.mrb[0].mxu0
  %v5262 = vadd.f32 0.0, %v5261
  %v5263 = vpop.f32.mrb[0].mxu0
  %v5264 = vpop.f32.mrb[0].mxu0
  %v5265 = vadd.f32 0.0, %v5264
  %v5266 = vpop.f32.mrb[0].mxu0
  %5267 = vmatprep.mubr.bf16.mxu0 0
  %5268 = vmatmul.mubr.bf16.gmra.mrb[0].mxu0 %v4596
  %v5269 = vpop.f32.mrb[0].mxu0
  %v5270 = vadd.f32 0.0, %v5269
  %v5271 = vpop.f32.mrb[0].mxu0
  %v5272 = vpop.f32.mrb[0].mxu0
  %v5273 = vadd.f32 0.0, %v5272
  %v5274 = vpop.f32.mrb[0].mxu0
  %5275 = vmatprep.mubr.bf16.mxu0 0
  %5276 = vmatmul.mubr.bf16.gmra.mrb[0].mxu0 %v4599
  %v5277 = vpop.f32.mrb[0].mxu0
  %v5278 = vadd.f32 0.0, %v5277
  %v5279 = vpop.f32.mrb[0].mxu0
  %v5280 = vpop.f32.mrb[0].mxu0
  %v5281 = vadd.f32 0.0, %v5280
  %v5282 = vpop.f32.mrb[0].mxu0
  %5283 = vdwg.mxu0
  %5284 = vst.msk [vmem:[#allocation5] sm:$0xff] %vm2653, %v5158
  %5285 = vst.msk [vmem:[#allocation5 + $0x8] sm:$0xff] %vm2653, %v5161
  %5286 = vst.msk [vmem:[#allocation5 + $0x10] sm:$0xff] %vm2653, %v5166
  %5287 = vst.msk [vmem:[#allocation5 + $0x18] sm:$0xff] %vm2653, %v5169
  %5288 = vst.msk [vmem:[#allocation5 + $0x20] sm:$0xff] %vm2653, %v5174
  %5289 = vst.msk [vmem:[#allocation5 + $0x28] sm:$0xff] %vm2653, %v5177
  %5290 = vst.msk [vmem:[#allocation5 + $0x30] sm:$0xff] %vm2653, %v5182
  %5291 = vst.msk [vmem:[#allocation5 + $0x38] sm:$0xff] %vm2653, %v5185
  %5292 = vst.msk [vmem:[#allocation5 + $0x40] sm:$0xff] %vm2653, %v5190
  %5293 = vst.msk [vmem:[#allocation5 + $0x48] sm:$0xff] %vm2653, %v5193
  %5294 = vst.msk [vmem:[#allocation5 + $0x50] sm:$0xff] %vm2653, %v5198
  %5295 = vst.msk [vmem:[#allocation5 + $0x58] sm:$0xff] %vm2653, %v5201
  %5296 = vst.msk [vmem:[#allocation5 + $0x60] sm:$0xff] %vm2653, %v5206
  %5297 = vst.msk [vmem:[#allocation5 + $0x68] sm:$0xff] %vm2653, %v5209
  %5298 = vst.msk [vmem:[#allocation5 + $0x70] sm:$0xff] %vm2653, %v5214
  %5299 = vst.msk [vmem:[#allocation5 + $0x78] sm:$0xff] %vm2653, %v5217
  %5300 = vst.msk [vmem:[#allocation5 + $0x80] sm:$0xff] %vm2653, %v5222
  %5301 = vst.msk [vmem:[#allocation5 + $0x88] sm:$0xff] %vm2653, %v5225
  %5302 = vst.msk [vmem:[#allocation5 + $0x90] sm:$0xff] %vm2653, %v5230
  %5303 = vst.msk [vmem:[#allocation5 + $0x98] sm:$0xff] %vm2653, %v5233
  %5304 = vst.msk [vmem:[#allocation5 + $0xa0] sm:$0xff] %vm2653, %v5238
  %5305 = vst.msk [vmem:[#allocation5 + $0xa8] sm:$0xff] %vm2653, %v5241
  %5306 = vst.msk [vmem:[#allocation5 + $0xb0] sm:$0xff] %vm2653, %v5246
  %5307 = vst.msk [vmem:[#allocation5 + $0xb8] sm:$0xff] %vm2653, %v5249
  %5308 = vst.msk [vmem:[#allocation5 + $0xc0] sm:$0xff] %vm2653, %v5254
  %5309 = vst.msk [vmem:[#allocation5 + $0xc8] sm:$0xff] %vm2653, %v5257
  %5310 = vst.msk [vmem:[#allocation5 + $0xd0] sm:$0xff] %vm2653, %v5262
  %5311 = vst.msk [vmem:[#allocation5 + $0xd8] sm:$0xff] %vm2653, %v5265
  %5312 = vst.msk [vmem:[#allocation5 + $0xe0] sm:$0xff] %vm2653, %v5270
  %5313 = vst.msk [vmem:[#allocation5 + $0xe8] sm:$0xff] %vm2653, %v5273
  %5314 = vst.msk [vmem:[#allocation5 + $0xf0] sm:$0xff] %vm2653, %v5278
  %5315 = vst.msk [vmem:[#allocation5 + $0xf8] sm:$0xff] %vm2653, %v5281
  %v5316 = vld [vmem:[#allocation5] sm:$0xff]
  %v5317 = vld [vmem:[#allocation5 + $0x8] sm:$0xff]
  %5318 = vst.msk [vmem:[#allocation6] sm:$0xff] %vm2653, %v5316
  %5319 = vst.msk [vmem:[#allocation6 + $0x10] sm:$0xff] %vm2653, %v5317
  %v5320 = vld [vmem:[#allocation5 + $0x10] sm:$0xff]
  %v5321 = vld [vmem:[#allocation5 + $0x18] sm:$0xff]
  %5324 = vrot.lane.b32.xlu0 %v5320, 16
  %v5325 = vpop.permute.xlu0 %5324
  %5326 = vrot.lane.b32.xlu0 %v5321, 16
  %v5327 = vpop.permute.xlu0 %5326
  %5330 = vst.msk [vmem:[#allocation6] sm:$0xff] %vm4808, %v5325
  %5331 = vst.msk [vmem:[#allocation6 + $0x10] sm:$0xff] %vm4808, %v5327
  %v5332 = vld [vmem:[#allocation5 + $0x20] sm:$0xff]
  %v5333 = vld [vmem:[#allocation5 + $0x28] sm:$0xff]
  %5336 = vrot.lane.b32.xlu0 %v5332, 32
  %v5337 = vpop.permute.xlu0 %5336
  %5338 = vrot.lane.b32.xlu0 %v5333, 32
  %v5339 = vpop.permute.xlu0 %5338
  %5342 = vst.msk [vmem:[#allocation6] sm:$0xff] %vm4821, %v5337
  %5343 = vst.msk [vmem:[#allocation6 + $0x10] sm:$0xff] %vm4821, %v5339
  %v5344 = vld [vmem:[#allocation5 + $0x30] sm:$0xff]
  %v5345 = vld [vmem:[#allocation5 + $0x38] sm:$0xff]
  %5348 = vrot.lane.b32.xlu0 %v5344, 48
  %v5349 = vpop.permute.xlu0 %5348
  %5350 = vrot.lane.b32.xlu0 %v5345, 48
  %v5351 = vpop.permute.xlu0 %5350
  %5354 = vst.msk [vmem:[#allocation6] sm:$0xff] %vm4834, %v5349
  %5355 = vst.msk [vmem:[#allocation6 + $0x10] sm:$0xff] %vm4834, %v5351
  %v5356 = vld [vmem:[#allocation5 + $0x40] sm:$0xff]
  %v5357 = vld [vmem:[#allocation5 + $0x48] sm:$0xff]
  %5360 = vrot.lane.b32.xlu0 %v5356, 64
  %v5361 = vpop.permute.xlu0 %5360
  %5362 = vrot.lane.b32.xlu0 %v5357, 64
  %v5363 = vpop.permute.xlu0 %5362
  %5366 = vst.msk [vmem:[#allocation6] sm:$0xff] %vm4847, %v5361
  %5367 = vst.msk [vmem:[#allocation6 + $0x10] sm:$0xff] %vm4847, %v5363
  %v5368 = vld [vmem:[#allocation5 + $0x50] sm:$0xff]
  %v5369 = vld [vmem:[#allocation5 + $0x58] sm:$0xff]
  %5372 = vrot.lane.b32.xlu0 %v5368, 80
  %v5373 = vpop.permute.xlu0 %5372
  %5374 = vrot.lane.b32.xlu0 %v5369, 80
  %v5375 = vpop.permute.xlu0 %5374
  %5378 = vst.msk [vmem:[#allocation6] sm:$0xff] %vm4860, %v5373
  %5379 = vst.msk [vmem:[#allocation6 + $0x10] sm:$0xff] %vm4860, %v5375
  %v5380 = vld [vmem:[#allocation5 + $0x60] sm:$0xff]
  %v5381 = vld [vmem:[#allocation5 + $0x68] sm:$0xff]
  %5384 = vrot.lane.b32.xlu0 %v5380, 96
  %v5385 = vpop.permute.xlu0 %5384
  %5386 = vrot.lane.b32.xlu0 %v5381, 96
  %v5387 = vpop.permute.xlu0 %5386
  %5390 = vst.msk [vmem:[#allocation6] sm:$0xff] %vm4873, %v5385
  %5391 = vst.msk [vmem:[#allocation6 + $0x10] sm:$0xff] %vm4873, %v5387
  %v5392 = vld [vmem:[#allocation5 + $0x70] sm:$0xff]
  %v5393 = vld [vmem:[#allocation5 + $0x78] sm:$0xff]
  %5396 = vrot.lane.b32.xlu0 %v5392, 112
  %v5397 = vpop.permute.xlu0 %5396
  %5398 = vrot.lane.b32.xlu0 %v5393, 112
  %v5399 = vpop.permute.xlu0 %5398
  %5402 = vst.msk [vmem:[#allocation6] sm:$0xff] %vm4886, %v5397
  %5403 = vst.msk [vmem:[#allocation6 + $0x10] sm:$0xff] %vm4886, %v5399
  %v5404 = vld [vmem:[#allocation5 + $0x80] sm:$0xff]
  %v5405 = vld [vmem:[#allocation5 + $0x88] sm:$0xff]
  %5406 = vst.msk [vmem:[#allocation6 + $0x8] sm:$0xff] %vm2653, %v5404
  %5407 = vst.msk [vmem:[#allocation6 + $0x18] sm:$0xff] %vm2653, %v5405
  %v5408 = vld [vmem:[#allocation5 + $0x90] sm:$0xff]
  %v5409 = vld [vmem:[#allocation5 + $0x98] sm:$0xff]
  %5412 = vrot.lane.b32.xlu0 %v5408, 16
  %v5413 = vpop.permute.xlu0 %5412
  %5414 = vrot.lane.b32.xlu0 %v5409, 16
  %v5415 = vpop.permute.xlu0 %5414
  %5418 = vst.msk [vmem:[#allocation6 + $0x8] sm:$0xff] %vm4808, %v5413
  %5419 = vst.msk [vmem:[#allocation6 + $0x18] sm:$0xff] %vm4808, %v5415
  %v5420 = vld [vmem:[#allocation5 + $0xa0] sm:$0xff]
  %v5421 = vld [vmem:[#allocation5 + $0xa8] sm:$0xff]
  %5424 = vrot.lane.b32.xlu0 %v5420, 32
  %v5425 = vpop.permute.xlu0 %5424
  %5426 = vrot.lane.b32.xlu0 %v5421, 32
  %v5427 = vpop.permute.xlu0 %5426
  %5430 = vst.msk [vmem:[#allocation6 + $0x8] sm:$0xff] %vm4821, %v5425
  %5431 = vst.msk [vmem:[#allocation6 + $0x18] sm:$0xff] %vm4821, %v5427
  %v5432 = vld [vmem:[#allocation5 + $0xb0] sm:$0xff]
  %v5433 = vld [vmem:[#allocation5 + $0xb8] sm:$0xff]
  %5436 = vrot.lane.b32.xlu0 %v5432, 48
  %v5437 = vpop.permute.xlu0 %5436
  %5438 = vrot.lane.b32.xlu0 %v5433, 48
  %v5439 = vpop.permute.xlu0 %5438
  %5442 = vst.msk [vmem:[#allocation6 + $0x8] sm:$0xff] %vm4834, %v5437
  %5443 = vst.msk [vmem:[#allocation6 + $0x18] sm:$0xff] %vm4834, %v5439
  %v5444 = vld [vmem:[#allocation5 + $0xc0] sm:$0xff]
  %v5445 = vld [vmem:[#allocation5 + $0xc8] sm:$0xff]
  %5448 = vrot.lane.b32.xlu0 %v5444, 64
  %v5449 = vpop.permute.xlu0 %5448
  %5450 = vrot.lane.b32.xlu0 %v5445, 64
  %v5451 = vpop.permute.xlu0 %5450
  %5454 = vst.msk [vmem:[#allocation6 + $0x8] sm:$0xff] %vm4847, %v5449
  %5455 = vst.msk [vmem:[#allocation6 + $0x18] sm:$0xff] %vm4847, %v5451
  %v5456 = vld [vmem:[#allocation5 + $0xd0] sm:$0xff]
  %v5457 = vld [vmem:[#allocation5 + $0xd8] sm:$0xff]
  %5460 = vrot.lane.b32.xlu0 %v5456, 80
  %v5461 = vpop.permute.xlu0 %5460
  %5462 = vrot.lane.b32.xlu0 %v5457, 80
  %v5463 = vpop.permute.xlu0 %5462
  %5466 = vst.msk [vmem:[#allocation6 + $0x8] sm:$0xff] %vm4860, %v5461
  %5467 = vst.msk [vmem:[#allocation6 + $0x18] sm:$0xff] %vm4860, %v5463
  %v5468 = vld [vmem:[#allocation5 + $0xe0] sm:$0xff]
  %v5469 = vld [vmem:[#allocation5 + $0xe8] sm:$0xff]
  %5472 = vrot.lane.b32.xlu0 %v5468, 96
  %v5473 = vpop.permute.xlu0 %5472
  %5474 = vrot.lane.b32.xlu0 %v5469, 96
  %v5475 = vpop.permute.xlu0 %5474
  %5478 = vst.msk [vmem:[#allocation6 + $0x8] sm:$0xff] %vm4873, %v5473
  %5479 = vst.msk [vmem:[#allocation6 + $0x18] sm:$0xff] %vm4873, %v5475
  %v5480 = vld [vmem:[#allocation5 + $0xf0] sm:$0xff]
  %v5481 = vld [vmem:[#allocation5 + $0xf8] sm:$0xff]
  %5484 = vrot.lane.b32.xlu0 %v5480, 112
  %v5485 = vpop.permute.xlu0 %5484
  %5486 = vrot.lane.b32.xlu0 %v5481, 112
  %v5487 = vpop.permute.xlu0 %5486
  %5490 = vst.msk [vmem:[#allocation6 + $0x8] sm:$0xff] %vm4886, %v5485
  %5491 = vst.msk [vmem:[#allocation6 + $0x18] sm:$0xff] %vm4886, %v5487
  %v5492 = vld [vmem:[#allocation6] sm:$0xff]
  %v5493 = vld [vmem:[#allocation6 + $0x8] sm:$0xff]
  %v5494 = vld [vmem:[#allocation6 + $0x10] sm:$0xff]
  %v5495 = vld [vmem:[#allocation6 + $0x18] sm:$0xff]
  %v5496 = vpack.c.bf16 %v5494, %v5492
  %v5497 = vpack.c.bf16 %v5495, %v5493
  %5498 = vmatprep.subr.bf16.mxu0 0
  %5499 = vmatpush1.bf16.msra.mxu0 %v5047
  %5500 = vmatprep.subr.bf16.mxu0 0
  %5501 = vmatpush1.bf16.msra.mxu0 %v5048
  %5502 = vmatprep.subr.bf16.mxu0 0
  %5503 = vmatpush1.bf16.msra.mxu0 %v5049
  %5504 = vmatprep.subr.bf16.mxu0 0
  %5505 = vmatpush1.bf16.msra.mxu0 %v5050
  %5506 = vmatprep.subr.bf16.mxu0 0
  %5507 = vmatpush1.bf16.msra.mxu0 %v5051
  %5508 = vmatprep.subr.bf16.mxu0 0
  %5509 = vmatpush1.bf16.msra.mxu0 %v5052
  %5510 = vmatprep.subr.bf16.mxu0 0
  %5511 = vmatpush1.bf16.msra.mxu0 %v5053
  %5512 = vmatprep.subr.bf16.mxu0 0
  %5513 = vmatpush1.bf16.msra.mxu0 %v5054
  %5514 = vmatprep.subr.bf16.mxu0 0
  %5515 = vmatpush1.bf16.msra.mxu0 %v5055
  %5516 = vmatprep.subr.bf16.mxu0 0
  %5517 = vmatpush1.bf16.msra.mxu0 %v5056
  %5518 = vmatprep.subr.bf16.mxu0 0
  %5519 = vmatpush1.bf16.msra.mxu0 %v5057
  %5520 = vmatprep.subr.bf16.mxu0 0
  %5521 = vmatpush1.bf16.msra.mxu0 %v5058
  %5522 = vmatprep.subr.bf16.mxu0 0
  %5523 = vmatpush1.bf16.msra.mxu0 %v5059
  %5524 = vmatprep.subr.bf16.mxu0 0
  %5525 = vmatpush1.bf16.msra.mxu0 %v5060
  %5526 = vmatprep.subr.bf16.mxu0 0
  %5527 = vmatpush1.bf16.msra.mxu0 %v5061
  %5528 = vmatprep.subr.bf16.mxu0 0
  %5529 = vmatpush1.bf16.msra.mxu0 %v5062
  %5530 = vmatprep.mubr.bf16.mxu0 %v5497
  %5531 = vmatmul.mubr.bf16.gmra.mrb[0].mxu0 %v5496
  %v5532 = vpop.f32.mrb[0].mxu0
  %v5533 = vadd.f32 0.0, %v5532
  %v5534 = vpop.f32.mrb[0].mxu0
  %v5535 = vpop.f32.mrb[0].mxu0
  %v5536 = vadd.f32 0.0, %v5535
  %v5537 = vpop.f32.mrb[0].mxu0
  %5538 = vdwg.mxu0
  %5539 = vst.msk [vmem:[#allocation7 + $0x10] sm:$0xff] %vm5120, %v5533
  %5540 = vst.msk [vmem:[#allocation7 + $0x18] sm:$0xff] %vm5120, %v5536
  %v5541 = vld [vmem:[#allocation7] sm:$0xff]
  %v5542 = vld [vmem:[#allocation7 + $0x8] sm:$0xff]
  %v5543 = vld [vmem:[#allocation7 + $0x10] sm:$0xff]
  %v5544 = vld [vmem:[#allocation7 + $0x18] sm:$0xff]
  %v5545 = vsel %vm5120, %v5541, 0.0
  %v5546 = vsel %vm5120, %v5542, 0.0
  %v5547 = vadd.f32 %v5545, %v5546
  %v5548 = vsel %vm5120, %v5543, 0.0
  %v5549 = vadd.f32 %v5547, %v5548
  %v5550 = vsel %vm5120, %v5544, 0.0
  %v5551 = vadd.f32 %v5549, %v5550
  %v5552 = vrot.slane %v5551, 4
  %v5553 = vadd.f32 %v5551, %v5552
  %v5554 = vrot.slane %v5553, 2
  %v5555 = vadd.f32 %v5553, %v5554
  %v5556 = vrot.slane %v5555, 1
  %v5557 = vadd.f32 %v5555, %v5556
  %v5558 = vrcp.pop 32.0
  %v5559 = vmul.f32 %v5557, %v5558
  %v5560 = vsub.f32 %v5541, %v5559
  %v5561 = vsub.f32 %v5542, %v5559
  %v5562 = vsub.f32 %v5543, %v5559
  %v5563 = vsub.f32 %v5544, %v5559
  %v5564 = vmul.f32 %v5560, %v5560
  %v5565 = vmul.f32 %v5561, %v5561
  %v5566 = vmul.f32 %v5562, %v5562
  %v5567 = vmul.f32 %v5563, %v5563
  %v5568 = vsel %vm5120, %v5564, 0.0
  %v5569 = vsel %vm5120, %v5565, 0.0
  %v5570 = vadd.f32 %v5568, %v5569
  %v5571 = vsel %vm5120, %v5566, 0.0
  %v5572 = vadd.f32 %v5570, %v5571
  %v5573 = vsel %vm5120, %v5567, 0.0
  %v5574 = vadd.f32 %v5572, %v5573
  %v5575 = vrot.slane %v5574, 4
  %v5576 = vadd.f32 %v5574, %v5575
  %v5577 = vrot.slane %v5576, 2
  %v5578 = vadd.f32 %v5576, %v5577
  %v5579 = vrot.slane %v5578, 1
  %v5580 = vadd.f32 %v5578, %v5579
  %v5581 = vmul.f32 %v5580, %v5558
  %v5582 = vadd.f32 %v5581, 1e-05
  %v5583 = vrsqrt.pop %v5582
  %v5584 = vmul.f32 %v5560, %v5583
  %v5585 = vmul.f32 %v5561, %v5583
  %v5586 = vmul.f32 %v5562, %v5583
  %v5587 = vmul.f32 %v5563, %v5583
  %v5588 = vld [vmem:[%s7] sm:$0x3]
  %v5589 = vlaneseq
  %v5590 = vshrl.u32 %v5589, 7
  %v5591 = vsub.s32 0, %v5590
  %v5592 = vrot.slane %v5588, %v5591
  %v5593 = vmul.f32 %v5584, %v5592
  %v5594 = vmul.f32 %v5585, %v5592
  %v5595 = vmul.f32 %v5586, %v5592
  %v5596 = vmul.f32 %v5587, %v5592
  %v5597 = vlaneseq
  %v5598 = vshrl.u32 %v5597, 7
  %v5599 = vsub.s32 1, %v5598
  %v5600 = vrot.slane %v5588, %v5599
  %v5601 = vadd.f32 %v5593, %v5600
  %v5602 = vadd.f32 %v5594, %v5600
  %v5603 = vadd.f32 %v5595, %v5600
  %v5604 = vadd.f32 %v5596, %v5600
  %vm5605 = vcmp.gt.f32.partialorder %v5601, 0.0
  %vm5606 = vcmp.gt.f32.partialorder %v5602, 0.0
  %vm5607 = vcmp.gt.f32.partialorder %v5603, 0.0
  %vm5608 = vcmp.gt.f32.partialorder %v5604, 0.0
  %v5609 = vmul.f32 %v5601, 0.2
  %v5610 = vmul.f32 %v5602, 0.2
  %v5611 = vmul.f32 %v5603, 0.2
  %v5612 = vmul.f32 %v5604, 0.2
  %v5613 = vsel %vm5605, %v5601, %v5609
  %v5614 = vsel %vm5606, %v5602, %v5610
  %v5615 = vsel %vm5607, %v5603, %v5611
  %v5616 = vsel %vm5608, %v5604, %v5612
  %5617 = vst.msk [vmem:[#allocation7] sm:$0xff] %vm5120, %v5613
  %5618 = vst.msk [vmem:[#allocation7 + $0x8] sm:$0xff] %vm5120, %v5614
  %5619 = vst.msk [vmem:[#allocation7 + $0x10] sm:$0xff] %vm5120, %v5615
  %5620 = vst.msk [vmem:[#allocation7 + $0x18] sm:$0xff] %vm5120, %v5616
  %v5621 = vld [vmem:[#allocation7] sm:$0xff]
  %v5622 = vld [vmem:[#allocation7 + $0x8] sm:$0xff]
  %v5623 = vpack.c.bf16 %v5622, %v5621
  %v5624 = vld [vmem:[#allocation7 + $0x10] sm:$0xff]
  %v5625 = vld [vmem:[#allocation7 + $0x18] sm:$0xff]
  %v5626 = vpack.c.bf16 %v5625, %v5624
  %v5627 = vld [vmem:[%s8] sm:$0xf]
  %v5628 = vld [vmem:[%s8 + $0x4] sm:$0xf]
  %v5629 = vld [vmem:[%s8 + $0x8] sm:$0xf]
  %v5630 = vld [vmem:[%s8 + $0xc] sm:$0xf]
  %v5631 = vld [vmem:[%s8 + $0x10] sm:$0xf]
  %v5632 = vld [vmem:[%s8 + $0x14] sm:$0xf]
  %v5633 = vld [vmem:[%s8 + $0x18] sm:$0xf]
  %v5634 = vld [vmem:[%s8 + $0x1c] sm:$0xf]
  %v5635 = vld [vmem:[%s9] sm:$0xf]
  %v5636 = vld [vmem:[%s9 + $0x4] sm:$0xf]
  %v5637 = vld [vmem:[%s9 + $0x8] sm:$0xf]
  %v5638 = vld [vmem:[%s9 + $0xc] sm:$0xf]
  %v5639 = vld [vmem:[%s9 + $0x10] sm:$0xf]
  %v5640 = vld [vmem:[%s9 + $0x14] sm:$0xf]
  %v5641 = vld [vmem:[%s9 + $0x18] sm:$0xf]
  %v5642 = vld [vmem:[%s9 + $0x1c] sm:$0xf]
  %v5643 = vld [vmem:[%s9 + $0x20] sm:$0xf]
  %v5644 = vld [vmem:[%s9 + $0x24] sm:$0xf]
  %v5645 = vld [vmem:[%s9 + $0x28] sm:$0xf]
  %v5646 = vld [vmem:[%s9 + $0x2c] sm:$0xf]
  %v5647 = vld [vmem:[%s9 + $0x30] sm:$0xf]
  %v5648 = vld [vmem:[%s9 + $0x34] sm:$0xf]
  %v5649 = vld [vmem:[%s9 + $0x38] sm:$0xf]
  %v5650 = vld [vmem:[%s9 + $0x3c] sm:$0xf]
  %v5651 = vld [vmem:[%s9 + $0x40] sm:$0xf]
  %v5652 = vld [vmem:[%s9 + $0x44] sm:$0xf]
  %v5653 = vld [vmem:[%s9 + $0x48] sm:$0xf]
  %v5654 = vld [vmem:[%s9 + $0x4c] sm:$0xf]
  %v5655 = vld [vmem:[%s9 + $0x50] sm:$0xf]
  %v5656 = vld [vmem:[%s9 + $0x54] sm:$0xf]
  %v5657 = vld [vmem:[%s9 + $0x58] sm:$0xf]
  %v5658 = vld [vmem:[%s9 + $0x5c] sm:$0xf]
  %v5659 = vld [vmem:[%s9 + $0x60] sm:$0xf]
  %v5660 = vld [vmem:[%s9 + $0x64] sm:$0xf]
  %v5661 = vld [vmem:[%s9 + $0x68] sm:$0xf]
  %v5662 = vld [vmem:[%s9 + $0x6c] sm:$0xf]
  %v5663 = vld [vmem:[%s9 + $0x70] sm:$0xf]
  %v5664 = vld [vmem:[%s9 + $0x74] sm:$0xf]
  %v5665 = vld [vmem:[%s9 + $0x78] sm:$0xf]
  %v5666 = vld [vmem:[%s9 + $0x7c] sm:$0xf]
  %v5667 = vld [vmem:[%s9 + $0x80] sm:$0xf]
  %v5668 = vld [vmem:[%s9 + $0x84] sm:$0xf]
  %v5669 = vld [vmem:[%s9 + $0x88] sm:$0xf]
  %v5670 = vld [vmem:[%s9 + $0x8c] sm:$0xf]
  %v5671 = vld [vmem:[%s9 + $0x90] sm:$0xf]
  %v5672 = vld [vmem:[%s9 + $0x94] sm:$0xf]
  %v5673 = vld [vmem:[%s9 + $0x98] sm:$0xf]
  %v5674 = vld [vmem:[%s9 + $0x9c] sm:$0xf]
  %v5675 = vld [vmem:[%s9 + $0xa0] sm:$0xf]
  %v5676 = vld [vmem:[%s9 + $0xa4] sm:$0xf]
  %v5677 = vld [vmem:[%s9 + $0xa8] sm:$0xf]
  %v5678 = vld [vmem:[%s9 + $0xac] sm:$0xf]
  %v5679 = vld [vmem:[%s9 + $0xb0] sm:$0xf]
  %v5680 = vld [vmem:[%s9 + $0xb4] sm:$0xf]
  %v5681 = vld [vmem:[%s9 + $0xb8] sm:$0xf]
  %v5682 = vld [vmem:[%s9 + $0xbc] sm:$0xf]
  %v5683 = vld [vmem:[%s9 + $0xc0] sm:$0xf]
  %v5684 = vld [vmem:[%s9 + $0xc4] sm:$0xf]
  %v5685 = vld [vmem:[%s9 + $0xc8] sm:$0xf]
  %v5686 = vld [vmem:[%s9 + $0xcc] sm:$0xf]
  %v5687 = vld [vmem:[%s9 + $0xd0] sm:$0xf]
  %v5688 = vld [vmem:[%s9 + $0xd4] sm:$0xf]
  %v5689 = vld [vmem:[%s9 + $0xd8] sm:$0xf]
  %v5690 = vld [vmem:[%s9 + $0xdc] sm:$0xf]
  %v5691 = vld [vmem:[%s9 + $0xe0] sm:$0xf]
  %v5692 = vld [vmem:[%s9 + $0xe4] sm:$0xf]
  %v5693 = vld [vmem:[%s9 + $0xe8] sm:$0xf]
  %v5694 = vld [vmem:[%s9 + $0xec] sm:$0xf]
  %v5695 = vld [vmem:[%s9 + $0xf0] sm:$0xf]
  %v5696 = vld [vmem:[%s9 + $0xf4] sm:$0xf]
  %v5697 = vld [vmem:[%s9 + $0xf8] sm:$0xf]
  %v5698 = vld [vmem:[%s9 + $0xfc] sm:$0xf]
  %v5707 = vunpack.c.l.b16 %v5627
  %v5708 = vunpack.c.l.b16 %v5628
  %v5709 = vunpack.c.l.b16 %v5629
  %v5710 = vunpack.c.l.b16 %v5630
  %v5711 = vunpack.c.l.b16 %v5631
  %v5712 = vunpack.c.l.b16 %v5632
  %v5713 = vunpack.c.l.b16 %v5633
  %v5714 = vunpack.c.l.b16 %v5634
  %v5715 = vpack.c.b16 %v5708, %v5707
  %v5716 = vpack.c.b16 %v5710, %v5709
  %v5717 = vpack.c.b16 %v5712, %v5711
  %v5718 = vpack.c.b16 %v5714, %v5713
  %v5720 = vsel %vm2653, %v5715, 0
  %v5723 = vsel %vm2653, %v5716, 0
  %v5726 = vsel %vm2653, %v5717, 0
  %v5729 = vsel %vm2653, %v5718, 0
  %5731 = vmatprep.subr.bf16.mxu0 0
  %5732 = vmatpush1.bf16.msra.mxu0 %v5623
  %5733 = vmatprep.subr.bf16.mxu0 0
  %5734 = vmatpush1.bf16.msra.mxu0 0
  %5735 = vmatprep.subr.bf16.mxu0 0
  %5736 = vmatpush1.bf16.msra.mxu0 0
  %5737 = vmatprep.subr.bf16.mxu0 0
  %5738 = vmatpush1.bf16.msra.mxu0 0
  %5739 = vmatprep.subr.bf16.mxu0 0
  %5740 = vmatpush1.bf16.msra.mxu0 0
  %5741 = vmatprep.subr.bf16.mxu0 0
  %5742 = vmatpush1.bf16.msra.mxu0 0
  %5743 = vmatprep.subr.bf16.mxu0 0
  %5744 = vmatpush1.bf16.msra.mxu0 0
  %5745 = vmatprep.subr.bf16.mxu0 0
  %5746 = vmatpush1.bf16.msra.mxu0 0
  %5747 = vmatprep.subr.bf16.mxu0 0
  %5748 = vmatpush1.bf16.msra.mxu0 0
  %5749 = vmatprep.subr.bf16.mxu0 0
  %5750 = vmatpush1.bf16.msra.mxu0 0
  %5751 = vmatprep.subr.bf16.mxu0 0
  %5752 = vmatpush1.bf16.msra.mxu0 0
  %5753 = vmatprep.subr.bf16.mxu0 0
  %5754 = vmatpush1.bf16.msra.mxu0 0
  %5755 = vmatprep.subr.bf16.mxu0 0
  %5756 = vmatpush1.bf16.msra.mxu0 0
  %5757 = vmatprep.subr.bf16.mxu0 0
  %5758 = vmatpush1.bf16.msra.mxu0 0
  %5759 = vmatprep.subr.bf16.mxu0 0
  %5760 = vmatpush1.bf16.msra.mxu0 0
  %5761 = vmatprep.subr.bf16.mxu0 0
  %5762 = vmatpush1.bf16.msra.mxu0 0
  %5763 = vmatprep.mubr.bf16.mxu0 0
  %5764 = vmatmul.mubr.bf16.gmra.mrb[0].mxu0 %v5720
  %v5765 = vpop.f32.mrb[0].mxu0
  %v5766 = vadd.f32 0.0, %v5765
  %v5767 = vpop.f32.mrb[0].mxu0
  %v5768 = vpop.f32.mrb[0].mxu0
  %v5769 = vadd.f32 0.0, %v5768
  %v5770 = vpop.f32.mrb[0].mxu0
  %5771 = vmatprep.mubr.bf16.mxu0 0
  %5772 = vmatmul.mubr.bf16.gmra.mrb[0].mxu0 %v5723
  %v5773 = vpop.f32.mrb[0].mxu0
  %v5774 = vadd.f32 0.0, %v5773
  %v5775 = vpop.f32.mrb[0].mxu0
  %v5776 = vpop.f32.mrb[0].mxu0
  %v5777 = vadd.f32 0.0, %v5776
  %v5778 = vpop.f32.mrb[0].mxu0
  %5779 = vmatprep.mubr.bf16.mxu0 0
  %5780 = vmatmul.mubr.bf16.gmra.mrb[0].mxu0 %v5726
  %v5781 = vpop.f32.mrb[0].mxu0
  %v5782 = vadd.f32 0.0, %v5781
  %v5783 = vpop.f32.mrb[0].mxu0
  %v5784 = vpop.f32.mrb[0].mxu0
  %v5785 = vadd.f32 0.0, %v5784
  %v5786 = vpop.f32.mrb[0].mxu0
  %5787 = vmatprep.mubr.bf16.mxu0 0
  %5788 = vmatmul.mubr.bf16.gmra.mrb[0].mxu0 %v5729
  %v5789 = vpop.f32.mrb[0].mxu0
  %v5790 = vadd.f32 0.0, %v5789
  %v5791 = vpop.f32.mrb[0].mxu0
  %v5792 = vpop.f32.mrb[0].mxu0
  %v5793 = vadd.f32 0.0, %v5792
  %v5794 = vpop.f32.mrb[0].mxu0
  %5795 = vdwg.mxu0
  %5796 = vst.msk [vmem:[#allocation8] sm:$0xff] %vm5120, %v5766
  %5797 = vst.msk [vmem:[#allocation8 + $0x8] sm:$0xff] %vm5120, %v5769
  %5798 = vst.msk [vmem:[#allocation8 + $0x10] sm:$0xff] %vm5120, %v5774
  %5799 = vst.msk [vmem:[#allocation8 + $0x18] sm:$0xff] %vm5120, %v5777
  %5800 = vst.msk [vmem:[#allocation8 + $0x20] sm:$0xff] %vm5120, %v5782
  %5801 = vst.msk [vmem:[#allocation8 + $0x28] sm:$0xff] %vm5120, %v5785
  %5802 = vst.msk [vmem:[#allocation8 + $0x30] sm:$0xff] %vm5120, %v5790
  %5803 = vst.msk [vmem:[#allocation8 + $0x38] sm:$0xff] %vm5120, %v5793
  %v5804 = vld [vmem:[#allocation8] sm:$0xf]
  %vm5805 = vcmask 257024
  %5806 = vst.msk [vmem:[#allocation9] sm:$0xf] %vm5805, %v5804
  %v5807 = vld [vmem:[#allocation8 + $0x4] sm:$0xf]
  %5809 = vrot.lane.b32.xlu0 %v5807, 32
  %v5810 = vpop.permute.xlu0 %5809
  %vm5812 = vcmask 519424
  %5813 = vst.msk [vmem:[#allocation9] sm:$0xf] %vm5812, %v5810
  %v5814 = vld [vmem:[#allocation8 + $0x8] sm:$0xf]
  %5816 = vrot.lane.b32.xlu0 %v5814, 64
  %v5817 = vpop.permute.xlu0 %5816
  %vm5819 = vcmask 781824
  %5820 = vst.msk [vmem:[#allocation9] sm:$0xf] %vm5819, %v5817
  %v5821 = vld [vmem:[#allocation8 + $0xc] sm:$0xf]
  %5823 = vrot.lane.b32.xlu0 %v5821, 96
  %v5824 = vpop.permute.xlu0 %5823
  %vm5826 = vcmask 1044224
  %5827 = vst.msk [vmem:[#allocation9] sm:$0xf] %vm5826, %v5824
  %v5828 = vld [vmem:[#allocation8 + $0x10] sm:$0xf]
  %5829 = vst.msk [vmem:[#allocation9 + $0x4] sm:$0xf] %vm5805, %v5828
  %v5830 = vld [vmem:[#allocation8 + $0x14] sm:$0xf]
  %5832 = vrot.lane.b32.xlu0 %v5830, 32
  %v5833 = vpop.permute.xlu0 %5832
  %5835 = vst.msk [vmem:[#allocation9 + $0x4] sm:$0xf] %vm5812, %v5833
  %v5836 = vld [vmem:[#allocation8 + $0x18] sm:$0xf]
  %5838 = vrot.lane.b32.xlu0 %v5836, 64
  %v5839 = vpop.permute.xlu0 %5838
  %5841 = vst.msk [vmem:[#allocation9 + $0x4] sm:$0xf] %vm5819, %v5839
  %v5842 = vld [vmem:[#allocation8 + $0x1c] sm:$0xf]
  %5844 = vrot.lane.b32.xlu0 %v5842, 96
  %v5845 = vpop.permute.xlu0 %5844
  %5847 = vst.msk [vmem:[#allocation9 + $0x4] sm:$0xf] %vm5826, %v5845
  %v5848 = vld [vmem:[#allocation8 + $0x20] sm:$0xf]
  %5849 = vst.msk [vmem:[#allocation9 + $0x8] sm:$0xf] %vm5805, %v5848
  %v5850 = vld [vmem:[#allocation8 + $0x24] sm:$0xf]
  %5852 = vrot.lane.b32.xlu0 %v5850, 32
  %v5853 = vpop.permute.xlu0 %5852
  %5855 = vst.msk [vmem:[#allocation9 + $0x8] sm:$0xf] %vm5812, %v5853
  %v5856 = vld [vmem:[#allocation8 + $0x28] sm:$0xf]
  %5858 = vrot.lane.b32.xlu0 %v5856, 64
  %v5859 = vpop.permute.xlu0 %5858
  %5861 = vst.msk [vmem:[#allocation9 + $0x8] sm:$0xf] %vm5819, %v5859
  %v5862 = vld [vmem:[#allocation8 + $0x2c] sm:$0xf]
  %5864 = vrot.lane.b32.xlu0 %v5862, 96
  %v5865 = vpop.permute.xlu0 %5864
  %5867 = vst.msk [vmem:[#allocation9 + $0x8] sm:$0xf] %vm5826, %v5865
  %v5868 = vld [vmem:[#allocation8 + $0x30] sm:$0xf]
  %5869 = vst.msk [vmem:[#allocation9 + $0xc] sm:$0xf] %vm5805, %v5868
  %v5870 = vld [vmem:[#allocation8 + $0x34] sm:$0xf]
  %5872 = vrot.lane.b32.xlu0 %v5870, 32
  %v5873 = vpop.permute.xlu0 %5872
  %5875 = vst.msk [vmem:[#allocation9 + $0xc] sm:$0xf] %vm5812, %v5873
  %v5876 = vld [vmem:[#allocation8 + $0x38] sm:$0xf]
  %5878 = vrot.lane.b32.xlu0 %v5876, 64
  %v5879 = vpop.permute.xlu0 %5878
  %5881 = vst.msk [vmem:[#allocation9 + $0xc] sm:$0xf] %vm5819, %v5879
  %v5882 = vld [vmem:[#allocation8 + $0x3c] sm:$0xf]
  %5884 = vrot.lane.b32.xlu0 %v5882, 96
  %v5885 = vpop.permute.xlu0 %5884
  %5887 = vst.msk [vmem:[#allocation9 + $0xc] sm:$0xf] %vm5826, %v5885
  %v5888 = vld [vmem:[#allocation9] sm:$0xff]
  %v5889 = vld [vmem:[#allocation9 + $0x8] sm:$0xff]
  %v5892 = vcombine.high %v5888, %v5888
  %v5893 = vcombine.high %v5889, %v5889
  %v5896 = vpack.c.bf16 %v5888, %v5888
  %v5897 = vpack.c.bf16 %v5892, %v5892
  %v5898 = vpack.c.bf16 %v5889, %v5889
  %v5899 = vpack.c.bf16 %v5893, %v5893
  %v5964 = vunpack.c.l.b16 %v5635
  %v5965 = vunpack.c.l.b16 %v5636
  %v5966 = vunpack.c.l.b16 %v5637
  %v5967 = vunpack.c.l.b16 %v5638
  %v5968 = vunpack.c.l.b16 %v5639
  %v5969 = vunpack.c.l.b16 %v5640
  %v5970 = vunpack.c.l.b16 %v5641
  %v5971 = vunpack.c.l.b16 %v5642
  %v5972 = vunpack.c.l.b16 %v5643
  %v5973 = vunpack.c.l.b16 %v5644
  %v5974 = vunpack.c.l.b16 %v5645
  %v5975 = vunpack.c.l.b16 %v5646
  %v5976 = vunpack.c.l.b16 %v5647
  %v5977 = vunpack.c.l.b16 %v5648
  %v5978 = vunpack.c.l.b16 %v5649
  %v5979 = vunpack.c.l.b16 %v5650
  %v5980 = vunpack.c.l.b16 %v5651
  %v5981 = vunpack.c.l.b16 %v5652
  %v5982 = vunpack.c.l.b16 %v5653
  %v5983 = vunpack.c.l.b16 %v5654
  %v5984 = vunpack.c.l.b16 %v5655
  %v5985 = vunpack.c.l.b16 %v5656
  %v5986 = vunpack.c.l.b16 %v5657
  %v5987 = vunpack.c.l.b16 %v5658
  %v5988 = vunpack.c.l.b16 %v5659
  %v5989 = vunpack.c.l.b16 %v5660
  %v5990 = vunpack.c.l.b16 %v5661
  %v5991 = vunpack.c.l.b16 %v5662
  %v5992 = vunpack.c.l.b16 %v5663
  %v5993 = vunpack.c.l.b16 %v5664
  %v5994 = vunpack.c.l.b16 %v5665
  %v5995 = vunpack.c.l.b16 %v5666
  %v5996 = vunpack.c.l.b16 %v5667
  %v5997 = vunpack.c.l.b16 %v5668
  %v5998 = vunpack.c.l.b16 %v5669
  %v5999 = vunpack.c.l.b16 %v5670
  %v6000 = vunpack.c.l.b16 %v5671
  %v6001 = vunpack.c.l.b16 %v5672
  %v6002 = vunpack.c.l.b16 %v5673
  %v6003 = vunpack.c.l.b16 %v5674
  %v6004 = vunpack.c.l.b16 %v5675
  %v6005 = vunpack.c.l.b16 %v5676
  %v6006 = vunpack.c.l.b16 %v5677
  %v6007 = vunpack.c.l.b16 %v5678
  %v6008 = vunpack.c.l.b16 %v5679
  %v6009 = vunpack.c.l.b16 %v5680
  %v6010 = vunpack.c.l.b16 %v5681
  %v6011 = vunpack.c.l.b16 %v5682
  %v6012 = vunpack.c.l.b16 %v5683
  %v6013 = vunpack.c.l.b16 %v5684
  %v6014 = vunpack.c.l.b16 %v5685
  %v6015 = vunpack.c.l.b16 %v5686
  %v6016 = vunpack.c.l.b16 %v5687
  %v6017 = vunpack.c.l.b16 %v5688
  %v6018 = vunpack.c.l.b16 %v5689
  %v6019 = vunpack.c.l.b16 %v5690
  %v6020 = vunpack.c.l.b16 %v5691
  %v6021 = vunpack.c.l.b16 %v5692
  %v6022 = vunpack.c.l.b16 %v5693
  %v6023 = vunpack.c.l.b16 %v5694
  %v6024 = vunpack.c.l.b16 %v5695
  %v6025 = vunpack.c.l.b16 %v5696
  %v6026 = vunpack.c.l.b16 %v5697
  %v6027 = vunpack.c.l.b16 %v5698
  %v6028 = vpack.c.b16 %v5965, %v5964
  %v6029 = vpack.c.b16 %v5967, %v5966
  %v6030 = vpack.c.b16 %v5969, %v5968
  %v6031 = vpack.c.b16 %v5971, %v5970
  %v6032 = vpack.c.b16 %v5973, %v5972
  %v6033 = vpack.c.b16 %v5975, %v5974
  %v6034 = vpack.c.b16 %v5977, %v5976
  %v6035 = vpack.c.b16 %v5979, %v5978
  %v6036 = vpack.c.b16 %v5981, %v5980
  %v6037 = vpack.c.b16 %v5983, %v5982
  %v6038 = vpack.c.b16 %v5985, %v5984
  %v6039 = vpack.c.b16 %v5987, %v5986
  %v6040 = vpack.c.b16 %v5989, %v5988
  %v6041 = vpack.c.b16 %v5991, %v5990
  %v6042 = vpack.c.b16 %v5993, %v5992
  %v6043 = vpack.c.b16 %v5995, %v5994
  %v6044 = vpack.c.b16 %v5997, %v5996
  %v6045 = vpack.c.b16 %v5999, %v5998
  %v6046 = vpack.c.b16 %v6001, %v6000
  %v6047 = vpack.c.b16 %v6003, %v6002
  %v6048 = vpack.c.b16 %v6005, %v6004
  %v6049 = vpack.c.b16 %v6007, %v6006
  %v6050 = vpack.c.b16 %v6009, %v6008
  %v6051 = vpack.c.b16 %v6011, %v6010
  %v6052 = vpack.c.b16 %v6013, %v6012
  %v6053 = vpack.c.b16 %v6015, %v6014
  %v6054 = vpack.c.b16 %v6017, %v6016
  %v6055 = vpack.c.b16 %v6019, %v6018
  %v6056 = vpack.c.b16 %v6021, %v6020
  %v6057 = vpack.c.b16 %v6023, %v6022
  %v6058 = vpack.c.b16 %v6025, %v6024
  %v6059 = vpack.c.b16 %v6027, %v6026
  %6092 = vmatprep.subr.bf16.mxu0 0
  %6093 = vmatpush1.bf16.msra.mxu0 %v6028
  %6094 = vmatprep.subr.bf16.mxu0 0
  %6095 = vmatpush1.bf16.msra.mxu0 %v6029
  %6096 = vmatprep.subr.bf16.mxu0 0
  %6097 = vmatpush1.bf16.msra.mxu0 %v6030
  %6098 = vmatprep.subr.bf16.mxu0 0
  %6099 = vmatpush1.bf16.msra.mxu0 %v6031
  %6100 = vmatprep.subr.bf16.mxu0 0
  %6101 = vmatpush1.bf16.msra.mxu0 %v6032
  %6102 = vmatprep.subr.bf16.mxu0 0
  %6103 = vmatpush1.bf16.msra.mxu0 %v6033
  %6104 = vmatprep.subr.bf16.mxu0 0
  %6105 = vmatpush1.bf16.msra.mxu0 %v6034
  %6106 = vmatprep.subr.bf16.mxu0 0
  %6107 = vmatpush1.bf16.msra.mxu0 %v6035
  %6108 = vmatprep.subr.bf16.mxu0 0
  %6109 = vmatpush1.bf16.msra.mxu0 %v6036
  %6110 = vmatprep.subr.bf16.mxu0 0
  %6111 = vmatpush1.bf16.msra.mxu0 %v6037
  %6112 = vmatprep.subr.bf16.mxu0 0
  %6113 = vmatpush1.bf16.msra.mxu0 %v6038
  %6114 = vmatprep.subr.bf16.mxu0 0
  %6115 = vmatpush1.bf16.msra.mxu0 %v6039
  %6116 = vmatprep.subr.bf16.mxu0 0
  %6117 = vmatpush1.bf16.msra.mxu0 %v6040
  %6118 = vmatprep.subr.bf16.mxu0 0
  %6119 = vmatpush1.bf16.msra.mxu0 %v6041
  %6120 = vmatprep.subr.bf16.mxu0 0
  %6121 = vmatpush1.bf16.msra.mxu0 %v6042
  %6122 = vmatprep.subr.bf16.mxu0 0
  %6123 = vmatpush1.bf16.msra.mxu0 %v6043
  %6124 = vmatprep.mubr.bf16.mxu0 %v5897
  %6125 = vmatmul.mubr.bf16.gmra.mrb[0].mxu0 %v5896
  %v6126 = vpop.f32.mrb[0].mxu0
  %v6127 = vadd.f32 0.0, %v6126
  %v6128 = vpop.f32.mrb[0].mxu0
  %v6129 = vpop.f32.mrb[0].mxu0
  %v6130 = vpop.f32.mrb[0].mxu0
  %6131 = vdwg.mxu0
  %6132 = vmatprep.subr.bf16.mxu0 0
  %6133 = vmatpush1.bf16.msra.mxu0 %v6044
  %6134 = vmatprep.subr.bf16.mxu0 0
  %6135 = vmatpush1.bf16.msra.mxu0 %v6045
  %6136 = vmatprep.subr.bf16.mxu0 0
  %6137 = vmatpush1.bf16.msra.mxu0 %v6046
  %6138 = vmatprep.subr.bf16.mxu0 0
  %6139 = vmatpush1.bf16.msra.mxu0 %v6047
  %6140 = vmatprep.subr.bf16.mxu0 0
  %6141 = vmatpush1.bf16.msra.mxu0 %v6048
  %6142 = vmatprep.subr.bf16.mxu0 0
  %6143 = vmatpush1.bf16.msra.mxu0 %v6049
  %6144 = vmatprep.subr.bf16.mxu0 0
  %6145 = vmatpush1.bf16.msra.mxu0 %v6050
  %6146 = vmatprep.subr.bf16.mxu0 0
  %6147 = vmatpush1.bf16.msra.mxu0 %v6051
  %6148 = vmatprep.subr.bf16.mxu0 0
  %6149 = vmatpush1.bf16.msra.mxu0 %v6052
  %6150 = vmatprep.subr.bf16.mxu0 0
  %6151 = vmatpush1.bf16.msra.mxu0 %v6053
  %6152 = vmatprep.subr.bf16.mxu0 0
  %6153 = vmatpush1.bf16.msra.mxu0 %v6054
  %6154 = vmatprep.subr.bf16.mxu0 0
  %6155 = vmatpush1.bf16.msra.mxu0 %v6055
  %6156 = vmatprep.subr.bf16.mxu0 0
  %6157 = vmatpush1.bf16.msra.mxu0 %v6056
  %6158 = vmatprep.subr.bf16.mxu0 0
  %6159 = vmatpush1.bf16.msra.mxu0 %v6057
  %6160 = vmatprep.subr.bf16.mxu0 0
  %6161 = vmatpush1.bf16.msra.mxu0 %v6058
  %6162 = vmatprep.subr.bf16.mxu0 0
  %6163 = vmatpush1.bf16.msra.mxu0 %v6059
  %6164 = vmatprep.mubr.bf16.mxu0 %v5899
  %6165 = vmatmul.mubr.bf16.gmra.mrb[0].mxu0 %v5898
  %v6166 = vpop.f32.mrb[0].mxu0
  %v6167 = vadd.f32 %v6127, %v6166
  %v6168 = vpop.f32.mrb[0].mxu0
  %v6169 = vpop.f32.mrb[0].mxu0
  %v6170 = vpop.f32.mrb[0].mxu0
  %6171 = vdwg.mxu0
  %vm6172 = vcmask 519168
  %6173 = vst.msk [vmem:[#allocation10] sm:$0xf] %vm6172, %v6167
  %6174 = vmatprep.subr.bf16.mxu0 0
  %6175 = vmatpush1.bf16.msra.mxu0 %v5626
  %6176 = vmatprep.subr.bf16.mxu0 0
  %6177 = vmatpush1.bf16.msra.mxu0 0
  %6178 = vmatprep.subr.bf16.mxu0 0
  %6179 = vmatpush1.bf16.msra.mxu0 0
  %6180 = vmatprep.subr.bf16.mxu0 0
  %6181 = vmatpush1.bf16.msra.mxu0 0
  %6182 = vmatprep.subr.bf16.mxu0 0
  %6183 = vmatpush1.bf16.msra.mxu0 0
  %6184 = vmatprep.subr.bf16.mxu0 0
  %6185 = vmatpush1.bf16.msra.mxu0 0
  %6186 = vmatprep.subr.bf16.mxu0 0
  %6187 = vmatpush1.bf16.msra.mxu0 0
  %6188 = vmatprep.subr.bf16.mxu0 0
  %6189 = vmatpush1.bf16.msra.mxu0 0
  %6190 = vmatprep.subr.bf16.mxu0 0
  %6191 = vmatpush1.bf16.msra.mxu0 0
  %6192 = vmatprep.subr.bf16.mxu0 0
  %6193 = vmatpush1.bf16.msra.mxu0 0
  %6194 = vmatprep.subr.bf16.mxu0 0
  %6195 = vmatpush1.bf16.msra.mxu0 0
  %6196 = vmatprep.subr.bf16.mxu0 0
  %6197 = vmatpush1.bf16.msra.mxu0 0
  %6198 = vmatprep.subr.bf16.mxu0 0
  %6199 = vmatpush1.bf16.msra.mxu0 0
  %6200 = vmatprep.subr.bf16.mxu0 0
  %6201 = vmatpush1.bf16.msra.mxu0 0
  %6202 = vmatprep.subr.bf16.mxu0 0
  %6203 = vmatpush1.bf16.msra.mxu0 0
  %6204 = vmatprep.subr.bf16.mxu0 0
  %6205 = vmatpush1.bf16.msra.mxu0 0
  %6206 = vmatprep.mubr.bf16.mxu0 0
  %6207 = vmatmul.mubr.bf16.gmra.mrb[0].mxu0 %v5720
  %v6208 = vpop.f32.mrb[0].mxu0
  %v6209 = vadd.f32 0.0, %v6208
  %v6210 = vpop.f32.mrb[0].mxu0
  %v6211 = vpop.f32.mrb[0].mxu0
  %v6212 = vadd.f32 0.0, %v6211
  %v6213 = vpop.f32.mrb[0].mxu0
  %6214 = vmatprep.mubr.bf16.mxu0 0
  %6215 = vmatmul.mubr.bf16.gmra.mrb[0].mxu0 %v5723
  %v6216 = vpop.f32.mrb[0].mxu0
  %v6217 = vadd.f32 0.0, %v6216
  %v6218 = vpop.f32.mrb[0].mxu0
  %v6219 = vpop.f32.mrb[0].mxu0
  %v6220 = vadd.f32 0.0, %v6219
  %v6221 = vpop.f32.mrb[0].mxu0
  %6222 = vmatprep.mubr.bf16.mxu0 0
  %6223 = vmatmul.mubr.bf16.gmra.mrb[0].mxu0 %v5726
  %v6224 = vpop.f32.mrb[0].mxu0
  %v6225 = vadd.f32 0.0, %v6224
  %v6226 = vpop.f32.mrb[0].mxu0
  %v6227 = vpop.f32.mrb[0].mxu0
  %v6228 = vadd.f32 0.0, %v6227
  %v6229 = vpop.f32.mrb[0].mxu0
  %6230 = vmatprep.mubr.bf16.mxu0 0
  %6231 = vmatmul.mubr.bf16.gmra.mrb[0].mxu0 %v5729
  %v6232 = vpop.f32.mrb[0].mxu0
  %v6233 = vadd.f32 0.0, %v6232
  %v6234 = vpop.f32.mrb[0].mxu0
  %v6235 = vpop.f32.mrb[0].mxu0
  %v6236 = vadd.f32 0.0, %v6235
  %v6237 = vpop.f32.mrb[0].mxu0
  %6238 = vdwg.mxu0
  %6239 = vst.msk [vmem:[#allocation8] sm:$0xff] %vm5120, %v6209
  %6240 = vst.msk [vmem:[#allocation8 + $0x8] sm:$0xff] %vm5120, %v6212
  %6241 = vst.msk [vmem:[#allocation8 + $0x10] sm:$0xff] %vm5120, %v6217
  %6242 = vst.msk [vmem:[#allocation8 + $0x18] sm:$0xff] %vm5120, %v6220
  %6243 = vst.msk [vmem:[#allocation8 + $0x20] sm:$0xff] %vm5120, %v6225
  %6244 = vst.msk [vmem:[#allocation8 + $0x28] sm:$0xff] %vm5120, %v6228
  %6245 = vst.msk [vmem:[#allocation8 + $0x30] sm:$0xff] %vm5120, %v6233
  %6246 = vst.msk [vmem:[#allocation8 + $0x38] sm:$0xff] %vm5120, %v6236
  %v6247 = vld [vmem:[#allocation8] sm:$0xf]
  %6248 = vst.msk [vmem:[#allocation9] sm:$0xf] %vm5805, %v6247
  %v6249 = vld [vmem:[#allocation8 + $0x4] sm:$0xf]
  %6251 = vrot.lane.b32.xlu0 %v6249, 32
  %v6252 = vpop.permute.xlu0 %6251
  %6254 = vst.msk [vmem:[#allocation9] sm:$0xf] %vm5812, %v6252
  %v6255 = vld [vmem:[#allocation8 + $0x8] sm:$0xf]
  %6257 = vrot.lane.b32.xlu0 %v6255, 64
  %v6258 = vpop.permute.xlu0 %6257
  %6260 = vst.msk [vmem:[#allocation9] sm:$0xf] %vm5819, %v6258
  %v6261 = vld [vmem:[#allocation8 + $0xc] sm:$0xf]
  %6263 = vrot.lane.b32.xlu0 %v6261, 96
  %v6264 = vpop.permute.xlu0 %6263
  %6266 = vst.msk [vmem:[#allocation9] sm:$0xf] %vm5826, %v6264
  %v6267 = vld [vmem:[#allocation8 + $0x10] sm:$0xf]
  %6268 = vst.msk [vmem:[#allocation9 + $0x4] sm:$0xf] %vm5805, %v6267
  %v6269 = vld [vmem:[#allocation8 + $0x14] sm:$0xf]
  %6271 = vrot.lane.b32.xlu0 %v6269, 32
  %v6272 = vpop.permute.xlu0 %6271
  %6274 = vst.msk [vmem:[#allocation9 + $0x4] sm:$0xf] %vm5812, %v6272
  %v6275 = vld [vmem:[#allocation8 + $0x18] sm:$0xf]
  %6277 = vrot.lane.b32.xlu0 %v6275, 64
  %v6278 = vpop.permute.xlu0 %6277
  %6280 = vst.msk [vmem:[#allocation9 + $0x4] sm:$0xf] %vm5819, %v6278
  %v6281 = vld [vmem:[#allocation8 + $0x1c] sm:$0xf]
  %6283 = vrot.lane.b32.xlu0 %v6281, 96
  %v6284 = vpop.permute.xlu0 %6283
  %6286 = vst.msk [vmem:[#allocation9 + $0x4] sm:$0xf] %vm5826, %v6284
  %v6287 = vld [vmem:[#allocation8 + $0x20] sm:$0xf]
  %6288 = vst.msk [vmem:[#allocation9 + $0x8] sm:$0xf] %vm5805, %v6287
  %v6289 = vld [vmem:[#allocation8 + $0x24] sm:$0xf]
  %6291 = vrot.lane.b32.xlu0 %v6289, 32
  %v6292 = vpop.permute.xlu0 %6291
  %6294 = vst.msk [vmem:[#allocation9 + $0x8] sm:$0xf] %vm5812, %v6292
  %v6295 = vld [vmem:[#allocation8 + $0x28] sm:$0xf]
  %6297 = vrot.lane.b32.xlu0 %v6295, 64
  %v6298 = vpop.permute.xlu0 %6297
  %6300 = vst.msk [vmem:[#allocation9 + $0x8] sm:$0xf] %vm5819, %v6298
  %v6301 = vld [vmem:[#allocation8 + $0x2c] sm:$0xf]
  %6303 = vrot.lane.b32.xlu0 %v6301, 96
  %v6304 = vpop.permute.xlu0 %6303
  %6306 = vst.msk [vmem:[#allocation9 + $0x8] sm:$0xf] %vm5826, %v6304
  %v6307 = vld [vmem:[#allocation8 + $0x30] sm:$0xf]
  %6308 = vst.msk [vmem:[#allocation9 + $0xc] sm:$0xf] %vm5805, %v6307
  %v6309 = vld [vmem:[#allocation8 + $0x34] sm:$0xf]
  %6311 = vrot.lane.b32.xlu0 %v6309, 32
  %v6312 = vpop.permute.xlu0 %6311
  %6314 = vst.msk [vmem:[#allocation9 + $0xc] sm:$0xf] %vm5812, %v6312
  %v6315 = vld [vmem:[#allocation8 + $0x38] sm:$0xf]
  %6317 = vrot.lane.b32.xlu0 %v6315, 64
  %v6318 = vpop.permute.xlu0 %6317
  %6320 = vst.msk [vmem:[#allocation9 + $0xc] sm:$0xf] %vm5819, %v6318
  %v6321 = vld [vmem:[#allocation8 + $0x3c] sm:$0xf]
  %6323 = vrot.lane.b32.xlu0 %v6321, 96
  %v6324 = vpop.permute.xlu0 %6323
  %6326 = vst.msk [vmem:[#allocation9 + $0xc] sm:$0xf] %vm5826, %v6324
  %v6327 = vld [vmem:[#allocation9] sm:$0xff]
  %v6328 = vld [vmem:[#allocation9 + $0x8] sm:$0xff]
  %v6331 = vcombine.high %v6327, %v6327
  %v6332 = vcombine.high %v6328, %v6328
  %v6335 = vpack.c.bf16 %v6327, %v6327
  %v6336 = vpack.c.bf16 %v6331, %v6331
  %v6337 = vpack.c.bf16 %v6328, %v6328
  %v6338 = vpack.c.bf16 %v6332, %v6332
  %6339 = vmatprep.subr.bf16.mxu0 0
  %6340 = vmatpush1.bf16.msra.mxu0 %v6028
  %6341 = vmatprep.subr.bf16.mxu0 0
  %6342 = vmatpush1.bf16.msra.mxu0 %v6029
  %6343 = vmatprep.subr.bf16.mxu0 0
  %6344 = vmatpush1.bf16.msra.mxu0 %v6030
  %6345 = vmatprep.subr.bf16.mxu0 0
  %6346 = vmatpush1.bf16.msra.mxu0 %v6031
  %6347 = vmatprep.subr.bf16.mxu0 0
  %6348 = vmatpush1.bf16.msra.mxu0 %v6032
  %6349 = vmatprep.subr.bf16.mxu0 0
  %6350 = vmatpush1.bf16.msra.mxu0 %v6033
  %6351 = vmatprep.subr.bf16.mxu0 0
  %6352 = vmatpush1.bf16.msra.mxu0 %v6034
  %6353 = vmatprep.subr.bf16.mxu0 0
  %6354 = vmatpush1.bf16.msra.mxu0 %v6035
  %6355 = vmatprep.subr.bf16.mxu0 0
  %6356 = vmatpush1.bf16.msra.mxu0 %v6036
  %6357 = vmatprep.subr.bf16.mxu0 0
  %6358 = vmatpush1.bf16.msra.mxu0 %v6037
  %6359 = vmatprep.subr.bf16.mxu0 0
  %6360 = vmatpush1.bf16.msra.mxu0 %v6038
  %6361 = vmatprep.subr.bf16.mxu0 0
  %6362 = vmatpush1.bf16.msra.mxu0 %v6039
  %6363 = vmatprep.subr.bf16.mxu0 0
  %6364 = vmatpush1.bf16.msra.mxu0 %v6040
  %6365 = vmatprep.subr.bf16.mxu0 0
  %6366 = vmatpush1.bf16.msra.mxu0 %v6041
  %6367 = vmatprep.subr.bf16.mxu0 0
  %6368 = vmatpush1.bf16.msra.mxu0 %v6042
  %6369 = vmatprep.subr.bf16.mxu0 0
  %6370 = vmatpush1.bf16.msra.mxu0 %v6043
  %6371 = vmatprep.mubr.bf16.mxu0 %v6336
  %6372 = vmatmul.mubr.bf16.gmra.mrb[0].mxu0 %v6335
  %v6373 = vpop.f32.mrb[0].mxu0
  %v6374 = vadd.f32 0.0, %v6373
  %v6375 = vpop.f32.mrb[0].mxu0
  %v6376 = vpop.f32.mrb[0].mxu0
  %v6377 = vpop.f32.mrb[0].mxu0
  %6378 = vdwg.mxu0
  %6379 = vmatprep.subr.bf16.mxu0 0
  %6380 = vmatpush1.bf16.msra.mxu0 %v6044
  %6381 = vmatprep.subr.bf16.mxu0 0
  %6382 = vmatpush1.bf16.msra.mxu0 %v6045
  %6383 = vmatprep.subr.bf16.mxu0 0
  %6384 = vmatpush1.bf16.msra.mxu0 %v6046
  %6385 = vmatprep.subr.bf16.mxu0 0
  %6386 = vmatpush1.bf16.msra.mxu0 %v6047
  %6387 = vmatprep.subr.bf16.mxu0 0
  %6388 = vmatpush1.bf16.msra.mxu0 %v6048
  %6389 = vmatprep.subr.bf16.mxu0 0
  %6390 = vmatpush1.bf16.msra.mxu0 %v6049
  %6391 = vmatprep.subr.bf16.mxu0 0
  %6392 = vmatpush1.bf16.msra.mxu0 %v6050
  %6393 = vmatprep.subr.bf16.mxu0 0
  %6394 = vmatpush1.bf16.msra.mxu0 %v6051
  %6395 = vmatprep.subr.bf16.mxu0 0
  %6396 = vmatpush1.bf16.msra.mxu0 %v6052
  %6397 = vmatprep.subr.bf16.mxu0 0
  %6398 = vmatpush1.bf16.msra.mxu0 %v6053
  %6399 = vmatprep.subr.bf16.mxu0 0
  %6400 = vmatpush1.bf16.msra.mxu0 %v6054
  %6401 = vmatprep.subr.bf16.mxu0 0
  %6402 = vmatpush1.bf16.msra.mxu0 %v6055
  %6403 = vmatprep.subr.bf16.mxu0 0
  %6404 = vmatpush1.bf16.msra.mxu0 %v6056
  %6405 = vmatprep.subr.bf16.mxu0 0
  %6406 = vmatpush1.bf16.msra.mxu0 %v6057
  %6407 = vmatprep.subr.bf16.mxu0 0
  %6408 = vmatpush1.bf16.msra.mxu0 %v6058
  %6409 = vmatprep.subr.bf16.mxu0 0
  %6410 = vmatpush1.bf16.msra.mxu0 %v6059
  %6411 = vmatprep.mubr.bf16.mxu0 %v6338
  %6412 = vmatmul.mubr.bf16.gmra.mrb[0].mxu0 %v6337
  %v6413 = vpop.f32.mrb[0].mxu0
  %v6414 = vadd.f32 %v6374, %v6413
  %v6415 = vpop.f32.mrb[0].mxu0
  %v6416 = vpop.f32.mrb[0].mxu0
  %v6417 = vpop.f32.mrb[0].mxu0
  %6418 = vdwg.mxu0
  %6419 = vst.msk [vmem:[#allocation10 + $0x4] sm:$0xf] %vm6172, %v6414
  %v6420 = vld [vmem:[#allocation10] sm:$0xff]
  %v6421 = vsel %vm2575, %v6420, 0.0
  %v6422 = vrot.slane %v6421, 4
  %v6423 = vadd.f32 %v6421, %v6422
  %v6424 = vrot.slane %v6423, 2
  %v6425 = vadd.f32 %v6423, %v6424
  %v6426 = vrot.slane %v6425, 1
  %v6427 = vadd.f32 %v6425, %v6426
  %v6428 = vrcp.pop 8.0
  %v6429 = vmul.f32 %v6427, %v6428
  %v6430 = vsub.f32 %v6420, %v6429
  %v6431 = vmul.f32 %v6430, %v6430
  %v6432 = vsel %vm2575, %v6431, 0.0
  %v6433 = vrot.slane %v6432, 4
  %v6434 = vadd.f32 %v6432, %v6433
  %v6435 = vrot.slane %v6434, 2
  %v6436 = vadd.f32 %v6434, %v6435
  %v6437 = vrot.slane %v6436, 1
  %v6438 = vadd.f32 %v6436, %v6437
  %v6439 = vmul.f32 %v6438, %v6428
  %v6440 = vadd.f32 %v6439, 1e-05
  %v6441 = vrsqrt.pop %v6440
  %v6442 = vmul.f32 %v6430, %v6441
  %v6443 = vld [vmem:[%s10] sm:$0x3]
  %v6444 = vlaneseq
  %v6445 = vshrl.u32 %v6444, 7
  %v6446 = vsub.s32 0, %v6445
  %v6447 = vrot.slane %v6443, %v6446
  %v6448 = vmul.f32 %v6442, %v6447
  %v6449 = vlaneseq
  %v6450 = vshrl.u32 %v6449, 7
  %v6451 = vsub.s32 1, %v6450
  %v6452 = vrot.slane %v6443, %v6451
  %v6453 = vadd.f32 %v6448, %v6452
  %vm6454 = vcmp.gt.f32.partialorder %v6453, 0.0
  %v6455 = vmul.f32 %v6453, 0.2
  %v6456 = vsel %vm6454, %v6453, %v6455
  %6457 = vst.msk [vmem:[#allocation10] sm:$0xff] %vm2575, %v6456
  %v6458 = vld [vmem:[#allocation10] sm:$0xf]
  %v6459 = vpack.c.bf16 %v6458, %v6458
  %v6460 = vld [vmem:[#allocation10 + $0x4] sm:$0xf]
  %v6461 = vpack.c.bf16 %v6460, %v6460
  %v6462 = vld [vmem:[%s11] sm:$0xf]
  %v6463 = vld [vmem:[%s11 + $0x4] sm:$0xf]
  %v6464 = vld [vmem:[%s12] sm:$0xf]
  %v6465 = vld [vmem:[%s12 + $0x4] sm:$0xf]
  %v6466 = vld [vmem:[%s12 + $0x8] sm:$0xf]
  %v6467 = vld [vmem:[%s12 + $0xc] sm:$0xf]
  %v6468 = vld [vmem:[%s12 + $0x10] sm:$0xf]
  %v6469 = vld [vmem:[%s12 + $0x14] sm:$0xf]
  %v6470 = vld [vmem:[%s12 + $0x18] sm:$0xf]
  %v6471 = vld [vmem:[%s12 + $0x1c] sm:$0xf]
  %v6472 = vld [vmem:[%s12 + $0x20] sm:$0xf]
  %v6473 = vld [vmem:[%s12 + $0x24] sm:$0xf]
  %v6474 = vld [vmem:[%s12 + $0x28] sm:$0xf]
  %v6475 = vld [vmem:[%s12 + $0x2c] sm:$0xf]
  %v6476 = vld [vmem:[%s12 + $0x30] sm:$0xf]
  %v6477 = vld [vmem:[%s12 + $0x34] sm:$0xf]
  %v6478 = vld [vmem:[%s12 + $0x38] sm:$0xf]
  %v6479 = vld [vmem:[%s12 + $0x3c] sm:$0xf]
  %v6480 = vld [vmem:[%s12 + $0x40] sm:$0xf]
  %v6481 = vld [vmem:[%s12 + $0x44] sm:$0xf]
  %v6482 = vld [vmem:[%s12 + $0x48] sm:$0xf]
  %v6483 = vld [vmem:[%s12 + $0x4c] sm:$0xf]
  %v6484 = vld [vmem:[%s12 + $0x50] sm:$0xf]
  %v6485 = vld [vmem:[%s12 + $0x54] sm:$0xf]
  %v6486 = vld [vmem:[%s12 + $0x58] sm:$0xf]
  %v6487 = vld [vmem:[%s12 + $0x5c] sm:$0xf]
  %v6488 = vld [vmem:[%s12 + $0x60] sm:$0xf]
  %v6489 = vld [vmem:[%s12 + $0x64] sm:$0xf]
  %v6490 = vld [vmem:[%s12 + $0x68] sm:$0xf]
  %v6491 = vld [vmem:[%s12 + $0x6c] sm:$0xf]
  %v6492 = vld [vmem:[%s12 + $0x70] sm:$0xf]
  %v6493 = vld [vmem:[%s12 + $0x74] sm:$0xf]
  %v6494 = vld [vmem:[%s12 + $0x78] sm:$0xf]
  %v6495 = vld [vmem:[%s12 + $0x7c] sm:$0xf]
  %v6496 = vld [vmem:[%s12 + $0x80] sm:$0xf]
  %v6497 = vld [vmem:[%s12 + $0x84] sm:$0xf]
  %v6498 = vld [vmem:[%s12 + $0x88] sm:$0xf]
  %v6499 = vld [vmem:[%s12 + $0x8c] sm:$0xf]
  %v6500 = vld [vmem:[%s12 + $0x90] sm:$0xf]
  %v6501 = vld [vmem:[%s12 + $0x94] sm:$0xf]
  %v6502 = vld [vmem:[%s12 + $0x98] sm:$0xf]
  %v6503 = vld [vmem:[%s12 + $0x9c] sm:$0xf]
  %v6504 = vld [vmem:[%s12 + $0xa0] sm:$0xf]
  %v6505 = vld [vmem:[%s12 + $0xa4] sm:$0xf]
  %v6506 = vld [vmem:[%s12 + $0xa8] sm:$0xf]
  %v6507 = vld [vmem:[%s12 + $0xac] sm:$0xf]
  %v6508 = vld [vmem:[%s12 + $0xb0] sm:$0xf]
  %v6509 = vld [vmem:[%s12 + $0xb4] sm:$0xf]
  %v6510 = vld [vmem:[%s12 + $0xb8] sm:$0xf]
  %v6511 = vld [vmem:[%s12 + $0xbc] sm:$0xf]
  %v6512 = vld [vmem:[%s12 + $0xc0] sm:$0xf]
  %v6513 = vld [vmem:[%s12 + $0xc4] sm:$0xf]
  %v6514 = vld [vmem:[%s12 + $0xc8] sm:$0xf]
  %v6515 = vld [vmem:[%s12 + $0xcc] sm:$0xf]
  %v6516 = vld [vmem:[%s12 + $0xd0] sm:$0xf]
  %v6517 = vld [vmem:[%s12 + $0xd4] sm:$0xf]
  %v6518 = vld [vmem:[%s12 + $0xd8] sm:$0xf]
  %v6519 = vld [vmem:[%s12 + $0xdc] sm:$0xf]
  %v6520 = vld [vmem:[%s12 + $0xe0] sm:$0xf]
  %v6521 = vld [vmem:[%s12 + $0xe4] sm:$0xf]
  %v6522 = vld [vmem:[%s12 + $0xe8] sm:$0xf]
  %v6523 = vld [vmem:[%s12 + $0xec] sm:$0xf]
  %v6524 = vld [vmem:[%s12 + $0xf0] sm:$0xf]
  %v6525 = vld [vmem:[%s12 + $0xf4] sm:$0xf]
  %v6526 = vld [vmem:[%s12 + $0xf8] sm:$0xf]
  %v6527 = vld [vmem:[%s12 + $0xfc] sm:$0xf]
  %v6528 = vld [vmem:[%s12 + $0x100] sm:$0xf]
  %v6529 = vld [vmem:[%s12 + $0x104] sm:$0xf]
  %v6530 = vld [vmem:[%s12 + $0x108] sm:$0xf]
  %v6531 = vld [vmem:[%s12 + $0x10c] sm:$0xf]
  %v6532 = vld [vmem:[%s12 + $0x110] sm:$0xf]
  %v6533 = vld [vmem:[%s12 + $0x114] sm:$0xf]
  %v6534 = vld [vmem:[%s12 + $0x118] sm:$0xf]
  %v6535 = vld [vmem:[%s12 + $0x11c] sm:$0xf]
  %v6536 = vld [vmem:[%s12 + $0x120] sm:$0xf]
  %v6537 = vld [vmem:[%s12 + $0x124] sm:$0xf]
  %v6538 = vld [vmem:[%s12 + $0x128] sm:$0xf]
  %v6539 = vld [vmem:[%s12 + $0x12c] sm:$0xf]
  %v6540 = vld [vmem:[%s12 + $0x130] sm:$0xf]
  %v6541 = vld [vmem:[%s12 + $0x134] sm:$0xf]
  %v6542 = vld [vmem:[%s12 + $0x138] sm:$0xf]
  %v6543 = vld [vmem:[%s12 + $0x13c] sm:$0xf]
  %v6544 = vld [vmem:[%s12 + $0x140] sm:$0xf]
  %v6545 = vld [vmem:[%s12 + $0x144] sm:$0xf]
  %v6546 = vld [vmem:[%s12 + $0x148] sm:$0xf]
  %v6547 = vld [vmem:[%s12 + $0x14c] sm:$0xf]
  %v6548 = vld [vmem:[%s12 + $0x150] sm:$0xf]
  %v6549 = vld [vmem:[%s12 + $0x154] sm:$0xf]
  %v6550 = vld [vmem:[%s12 + $0x158] sm:$0xf]
  %v6551 = vld [vmem:[%s12 + $0x15c] sm:$0xf]
  %v6552 = vld [vmem:[%s12 + $0x160] sm:$0xf]
  %v6553 = vld [vmem:[%s12 + $0x164] sm:$0xf]
  %v6554 = vld [vmem:[%s12 + $0x168] sm:$0xf]
  %v6555 = vld [vmem:[%s12 + $0x16c] sm:$0xf]
  %v6556 = vld [vmem:[%s12 + $0x170] sm:$0xf]
  %v6557 = vld [vmem:[%s12 + $0x174] sm:$0xf]
  %v6558 = vld [vmem:[%s12 + $0x178] sm:$0xf]
  %v6559 = vld [vmem:[%s12 + $0x17c] sm:$0xf]
  %v6560 = vld [vmem:[%s12 + $0x180] sm:$0xf]
  %v6561 = vld [vmem:[%s12 + $0x184] sm:$0xf]
  %v6562 = vld [vmem:[%s12 + $0x188] sm:$0xf]
  %v6563 = vld [vmem:[%s12 + $0x18c] sm:$0xf]
  %v6564 = vld [vmem:[%s12 + $0x190] sm:$0xf]
  %v6565 = vld [vmem:[%s12 + $0x194] sm:$0xf]
  %v6566 = vld [vmem:[%s12 + $0x198] sm:$0xf]
  %v6567 = vld [vmem:[%s12 + $0x19c] sm:$0xf]
  %v6568 = vld [vmem:[%s12 + $0x1a0] sm:$0xf]
  %v6569 = vld [vmem:[%s12 + $0x1a4] sm:$0xf]
  %v6570 = vld [vmem:[%s12 + $0x1a8] sm:$0xf]
  %v6571 = vld [vmem:[%s12 + $0x1ac] sm:$0xf]
  %v6572 = vld [vmem:[%s12 + $0x1b0] sm:$0xf]
  %v6573 = vld [vmem:[%s12 + $0x1b4] sm:$0xf]
  %v6574 = vld [vmem:[%s12 + $0x1b8] sm:$0xf]
  %v6575 = vld [vmem:[%s12 + $0x1bc] sm:$0xf]
  %v6576 = vld [vmem:[%s12 + $0x1c0] sm:$0xf]
  %v6577 = vld [vmem:[%s12 + $0x1c4] sm:$0xf]
  %v6578 = vld [vmem:[%s12 + $0x1c8] sm:$0xf]
  %v6579 = vld [vmem:[%s12 + $0x1cc] sm:$0xf]
  %v6580 = vld [vmem:[%s12 + $0x1d0] sm:$0xf]
  %v6581 = vld [vmem:[%s12 + $0x1d4] sm:$0xf]
  %v6582 = vld [vmem:[%s12 + $0x1d8] sm:$0xf]
  %v6583 = vld [vmem:[%s12 + $0x1dc] sm:$0xf]
  %v6584 = vld [vmem:[%s12 + $0x1e0] sm:$0xf]
  %v6585 = vld [vmem:[%s12 + $0x1e4] sm:$0xf]
  %v6586 = vld [vmem:[%s12 + $0x1e8] sm:$0xf]
  %v6587 = vld [vmem:[%s12 + $0x1ec] sm:$0xf]
  %v6588 = vld [vmem:[%s12 + $0x1f0] sm:$0xf]
  %v6589 = vld [vmem:[%s12 + $0x1f4] sm:$0xf]
  %v6590 = vld [vmem:[%s12 + $0x1f8] sm:$0xf]
  %v6591 = vld [vmem:[%s12 + $0x1fc] sm:$0xf]
  %v6594 = vunpack.c.l.b16 %v6462
  %v6595 = vunpack.c.l.b16 %v6463
  %v6596 = vpack.c.b16 %v6595, %v6594
  %v6598 = vsel %vm1659, %v6596, 0
  %vm6600 = vcmask 1041408
  %v6602 = vsel %vm6600, %v6459, 0
  %6604 = vmatprep.subr.bf16.mxu0 0
  %6605 = vmatpush1.bf16.msra.mxu0 %v6602
  %6606 = vmatprep.subr.bf16.mxu0 0
  %6607 = vmatpush1.bf16.msra.mxu0 0
  %6608 = vmatprep.subr.bf16.mxu0 0
  %6609 = vmatpush1.bf16.msra.mxu0 0
  %6610 = vmatprep.subr.bf16.mxu0 0
  %6611 = vmatpush1.bf16.msra.mxu0 0
  %6612 = vmatprep.subr.bf16.mxu0 0
  %6613 = vmatpush1.bf16.msra.mxu0 0
  %6614 = vmatprep.subr.bf16.mxu0 0
  %6615 = vmatpush1.bf16.msra.mxu0 0
  %6616 = vmatprep.subr.bf16.mxu0 0
  %6617 = vmatpush1.bf16.msra.mxu0 0
  %6618 = vmatprep.subr.bf16.mxu0 0
  %6619 = vmatpush1.bf16.msra.mxu0 0
  %6620 = vmatprep.subr.bf16.mxu0 0
  %6621 = vmatpush1.bf16.msra.mxu0 0
  %6622 = vmatprep.subr.bf16.mxu0 0
  %6623 = vmatpush1.bf16.msra.mxu0 0
  %6624 = vmatprep.subr.bf16.mxu0 0
  %6625 = vmatpush1.bf16.msra.mxu0 0
  %6626 = vmatprep.subr.bf16.mxu0 0
  %6627 = vmatpush1.bf16.msra.mxu0 0
  %6628 = vmatprep.subr.bf16.mxu0 0
  %6629 = vmatpush1.bf16.msra.mxu0 0
  %6630 = vmatprep.subr.bf16.mxu0 0
  %6631 = vmatpush1.bf16.msra.mxu0 0
  %6632 = vmatprep.subr.bf16.mxu0 0
  %6633 = vmatpush1.bf16.msra.mxu0 0
  %6634 = vmatprep.subr.bf16.mxu0 0
  %6635 = vmatpush1.bf16.msra.mxu0 0
  %6636 = vmatprep.mubr.bf16.mxu0 0
  %6637 = vmatmul.mubr.bf16.gmra.mrb[0].mxu0 %v6598
  %v6638 = vpop.f32.mrb[0].mxu0
  %v6639 = vadd.f32 0.0, %v6638
  %v6640 = vpop.f32.mrb[0].mxu0
  %v6641 = vpop.f32.mrb[0].mxu0
  %v6642 = vadd.f32 0.0, %v6641
  %v6643 = vpop.f32.mrb[0].mxu0
  %6644 = vdwg.mxu0
  %6645 = vst.msk [vmem:[#allocation11] sm:$0xff] %vm2575, %v6639
  %6646 = vst.msk [vmem:[#allocation11 + $0x8] sm:$0xff] %vm2575, %v6642
  %v6647 = vld [vmem:[#allocation11] sm:$0x1]
  %v6648 = vlaneseq
  %vm6649 = vcmp.ge.s32.totalorder %v6648, 0
  %vm6650 = vcmp.lt.s32.totalorder %v6648, 64
  %vm6651 = vmand %vm6649, %vm6650
  %6652 = vst.msk [vmem:[#allocation12] sm:$0x1] %vm6651, %v6647
  %v6653 = vld [vmem:[#allocation11 + $0x1] sm:$0x1]
  %v6656 = vunpack.c.l.s4 1966171168
  %v6657 = vunpack.c.0.s8 %v6656
  %v6658 = vlaneseq
  %v6659 = vshrl.u32 %v6658, 7
  %v6660 = vsub.s32 %v6657, %v6659
  %v6661 = vrot.slane %v6653, %v6660
  %v6663 = vunpack.c.l.s4 1966171168
  %v6664 = vunpack.c.0.s8 %v6663
  %v6665 = vlaneseq
  %v6666 = vshrl.u32 %v6665, 7
  %v6667 = vsub.s32 %v6664, %v6666
  %v6668 = vrot.slane %v6661, %v6667
  %6669 = vrot.lane.b32.xlu0 %v6668, 64
  %v6670 = vpop.permute.xlu0 %6669
  %vm6672 = vcmp.ge.s32.totalorder %v6648, 64
  %vm6673 = vcmp.lt.s32.totalorder %v6648, 128
  %vm6674 = vmand %vm6672, %vm6673
  %6675 = vst.msk [vmem:[#allocation12] sm:$0x1] %vm6674, %v6670
  %v6676 = vld [vmem:[#allocation11 + $0x2] sm:$0x1]
  %6677 = vst.msk [vmem:[#allocation12 + $0x1] sm:$0x1] %vm6651, %v6676
  %v6678 = vld [vmem:[#allocation11 + $0x3] sm:$0x1]
  %v6681 = vunpack.c.l.s4 1966171168
  %v6682 = vunpack.c.0.s8 %v6681
  %v6683 = vlaneseq
  %v6684 = vshrl.u32 %v6683, 7
  %v6685 = vsub.s32 %v6682, %v6684
  %v6686 = vrot.slane %v6678, %v6685
  %v6688 = vunpack.c.l.s4 1966171168
  %v6689 = vunpack.c.0.s8 %v6688
  %v6690 = vlaneseq
  %v6691 = vshrl.u32 %v6690, 7
  %v6692 = vsub.s32 %v6689, %v6691
  %v6693 = vrot.slane %v6686, %v6692
  %6694 = vrot.lane.b32.xlu0 %v6693, 64
  %v6695 = vpop.permute.xlu0 %6694
  %6697 = vst.msk [vmem:[#allocation12 + $0x1] sm:$0x1] %vm6674, %v6695
  %v6698 = vld [vmem:[#allocation11 + $0x4] sm:$0x1]
  %6699 = vst.msk [vmem:[#allocation12 + $0x2] sm:$0x1] %vm6651, %v6698
  %v6700 = vld [vmem:[#allocation11 + $0x5] sm:$0x1]
  %v6703 = vunpack.c.l.s4 1966171168
  %v6704 = vunpack.c.0.s8 %v6703
  %v6705 = vlaneseq
  %v6706 = vshrl.u32 %v6705, 7
  %v6707 = vsub.s32 %v6704, %v6706
  %v6708 = vrot.slane %v6700, %v6707
  %v6710 = vunpack.c.l.s4 1966171168
  %v6711 = vunpack.c.0.s8 %v6710
  %v6712 = vlaneseq
  %v6713 = vshrl.u32 %v6712, 7
  %v6714 = vsub.s32 %v6711, %v6713
  %v6715 = vrot.slane %v6708, %v6714
  %6716 = vrot.lane.b32.xlu0 %v6715, 64
  %v6717 = vpop.permute.xlu0 %6716
  %6719 = vst.msk [vmem:[#allocation12 + $0x2] sm:$0x1] %vm6674, %v6717
  %v6720 = vld [vmem:[#allocation11 + $0x6] sm:$0x1]
  %6721 = vst.msk [vmem:[#allocation12 + $0x3] sm:$0x1] %vm6651, %v6720
  %v6722 = vld [vmem:[#allocation11 + $0x7] sm:$0x1]
  %v6725 = vunpack.c.l.s4 1966171168
  %v6726 = vunpack.c.0.s8 %v6725
  %v6727 = vlaneseq
  %v6728 = vshrl.u32 %v6727, 7
  %v6729 = vsub.s32 %v6726, %v6728
  %v6730 = vrot.slane %v6722, %v6729
  %v6732 = vunpack.c.l.s4 1966171168
  %v6733 = vunpack.c.0.s8 %v6732
  %v6734 = vlaneseq
  %v6735 = vshrl.u32 %v6734, 7
  %v6736 = vsub.s32 %v6733, %v6735
  %v6737 = vrot.slane %v6730, %v6736
  %6738 = vrot.lane.b32.xlu0 %v6737, 64
  %v6739 = vpop.permute.xlu0 %6738
  %6741 = vst.msk [vmem:[#allocation12 + $0x3] sm:$0x1] %vm6674, %v6739
  %v6742 = vld [vmem:[#allocation11 + $0x8] sm:$0x1]
  %6743 = vst.msk [vmem:[#allocation12 + $0x4] sm:$0x1] %vm6651, %v6742
  %v6744 = vld [vmem:[#allocation11 + $0x9] sm:$0x1]
  %v6747 = vunpack.c.l.s4 1966171168
  %v6748 = vunpack.c.0.s8 %v6747
  %v6749 = vlaneseq
  %v6750 = vshrl.u32 %v6749, 7
  %v6751 = vsub.s32 %v6748, %v6750
  %v6752 = vrot.slane %v6744, %v6751
  %v6754 = vunpack.c.l.s4 1966171168
  %v6755 = vunpack.c.0.s8 %v6754
  %v6756 = vlaneseq
  %v6757 = vshrl.u32 %v6756, 7
  %v6758 = vsub.s32 %v6755, %v6757
  %v6759 = vrot.slane %v6752, %v6758
  %6760 = vrot.lane.b32.xlu0 %v6759, 64
  %v6761 = vpop.permute.xlu0 %6760
  %6763 = vst.msk [vmem:[#allocation12 + $0x4] sm:$0x1] %vm6674, %v6761
  %v6764 = vld [vmem:[#allocation11 + $0xa] sm:$0x1]
  %6765 = vst.msk [vmem:[#allocation12 + $0x5] sm:$0x1] %vm6651, %v6764
  %v6766 = vld [vmem:[#allocation11 + $0xb] sm:$0x1]
  %v6769 = vunpack.c.l.s4 1966171168
  %v6770 = vunpack.c.0.s8 %v6769
  %v6771 = vlaneseq
  %v6772 = vshrl.u32 %v6771, 7
  %v6773 = vsub.s32 %v6770, %v6772
  %v6774 = vrot.slane %v6766, %v6773
  %v6776 = vunpack.c.l.s4 1966171168
  %v6777 = vunpack.c.0.s8 %v6776
  %v6778 = vlaneseq
  %v6779 = vshrl.u32 %v6778, 7
  %v6780 = vsub.s32 %v6777, %v6779
  %v6781 = vrot.slane %v6774, %v6780
  %6782 = vrot.lane.b32.xlu0 %v6781, 64
  %v6783 = vpop.permute.xlu0 %6782
  %6785 = vst.msk [vmem:[#allocation12 + $0x5] sm:$0x1] %vm6674, %v6783
  %v6786 = vld [vmem:[#allocation11 + $0xc] sm:$0x1]
  %6787 = vst.msk [vmem:[#allocation12 + $0x6] sm:$0x1] %vm6651, %v6786
  %v6788 = vld [vmem:[#allocation11 + $0xd] sm:$0x1]
  %v6791 = vunpack.c.l.s4 1966171168
  %v6792 = vunpack.c.0.s8 %v6791
  %v6793 = vlaneseq
  %v6794 = vshrl.u32 %v6793, 7
  %v6795 = vsub.s32 %v6792, %v6794
  %v6796 = vrot.slane %v6788, %v6795
  %v6798 = vunpack.c.l.s4 1966171168
  %v6799 = vunpack.c.0.s8 %v6798
  %v6800 = vlaneseq
  %v6801 = vshrl.u32 %v6800, 7
  %v6802 = vsub.s32 %v6799, %v6801
  %v6803 = vrot.slane %v6796, %v6802
  %6804 = vrot.lane.b32.xlu0 %v6803, 64
  %v6805 = vpop.permute.xlu0 %6804
  %6807 = vst.msk [vmem:[#allocation12 + $0x6] sm:$0x1] %vm6674, %v6805
  %v6808 = vld [vmem:[#allocation11 + $0xe] sm:$0x1]
  %6809 = vst.msk [vmem:[#allocation12 + $0x7] sm:$0x1] %vm6651, %v6808
  %v6810 = vld [vmem:[#allocation11 + $0xf] sm:$0x1]
  %v6813 = vunpack.c.l.s4 1966171168
  %v6814 = vunpack.c.0.s8 %v6813
  %v6815 = vlaneseq
  %v6816 = vshrl.u32 %v6815, 7
  %v6817 = vsub.s32 %v6814, %v6816
  %v6818 = vrot.slane %v6810, %v6817
  %v6820 = vunpack.c.l.s4 1966171168
  %v6821 = vunpack.c.0.s8 %v6820
  %v6822 = vlaneseq
  %v6823 = vshrl.u32 %v6822, 7
  %v6824 = vsub.s32 %v6821, %v6823
  %v6825 = vrot.slane %v6818, %v6824
  %6826 = vrot.lane.b32.xlu0 %v6825, 64
  %v6827 = vpop.permute.xlu0 %6826
  %6829 = vst.msk [vmem:[#allocation12 + $0x7] sm:$0x1] %vm6674, %v6827
  %v6830 = vld [vmem:[#allocation12] sm:$0xff]
  %v6832 = vlaneseq
  %v6833 = vshrl.u32 %v6832, 7
  %v6834 = vsub.s32 0, %v6833
  %v6835 = vrot.slane %v6830, %v6834
  %v6836 = vlaneseq
  %v6837 = vshrl.u32 %v6836, 7
  %v6838 = vsub.s32 1, %v6837
  %v6839 = vrot.slane %v6830, %v6838
  %v6840 = vlaneseq
  %v6841 = vshrl.u32 %v6840, 7
  %v6842 = vsub.s32 2, %v6841
  %v6843 = vrot.slane %v6830, %v6842
  %v6844 = vlaneseq
  %v6845 = vshrl.u32 %v6844, 7
  %v6846 = vsub.s32 3, %v6845
  %v6847 = vrot.slane %v6830, %v6846
  %v6848 = vlaneseq
  %v6849 = vshrl.u32 %v6848, 7
  %v6850 = vsub.s32 4, %v6849
  %v6851 = vrot.slane %v6830, %v6850
  %v6852 = vlaneseq
  %v6853 = vshrl.u32 %v6852, 7
  %v6854 = vsub.s32 5, %v6853
  %v6855 = vrot.slane %v6830, %v6854
  %v6856 = vlaneseq
  %v6857 = vshrl.u32 %v6856, 7
  %v6858 = vsub.s32 6, %v6857
  %v6859 = vrot.slane %v6830, %v6858
  %v6860 = vlaneseq
  %v6861 = vshrl.u32 %v6860, 7
  %v6862 = vsub.s32 7, %v6861
  %v6863 = vrot.slane %v6830, %v6862
  %v6872 = vpack.c.bf16 %v6835, %v6835
  %v6873 = vpack.c.bf16 %v6839, %v6839
  %v6874 = vpack.c.bf16 %v6843, %v6843
  %v6875 = vpack.c.bf16 %v6847, %v6847
  %v6876 = vpack.c.bf16 %v6851, %v6851
  %v6877 = vpack.c.bf16 %v6855, %v6855
  %v6878 = vpack.c.bf16 %v6859, %v6859
  %v6879 = vpack.c.bf16 %v6863, %v6863
  %v7008 = vunpack.c.l.b16 %v6464
  %v7009 = vunpack.c.l.b16 %v6465
  %v7010 = vunpack.c.l.b16 %v6466
  %v7011 = vunpack.c.l.b16 %v6467
  %v7012 = vunpack.c.l.b16 %v6468
  %v7013 = vunpack.c.l.b16 %v6469
  %v7014 = vunpack.c.l.b16 %v6470
  %v7015 = vunpack.c.l.b16 %v6471
  %v7016 = vunpack.c.l.b16 %v6472
  %v7017 = vunpack.c.l.b16 %v6473
  %v7018 = vunpack.c.l.b16 %v6474
  %v7019 = vunpack.c.l.b16 %v6475
  %v7020 = vunpack.c.l.b16 %v6476
  %v7021 = vunpack.c.l.b16 %v6477
  %v7022 = vunpack.c.l.b16 %v6478
  %v7023 = vunpack.c.l.b16 %v6479
  %v7024 = vunpack.c.l.b16 %v6480
  %v7025 = vunpack.c.l.b16 %v6481
  %v7026 = vunpack.c.l.b16 %v6482
  %v7027 = vunpack.c.l.b16 %v6483
  %v7028 = vunpack.c.l.b16 %v6484
  %v7029 = vunpack.c.l.b16 %v6485
  %v7030 = vunpack.c.l.b16 %v6486
  %v7031 = vunpack.c.l.b16 %v6487
  %v7032 = vunpack.c.l.b16 %v6488
  %v7033 = vunpack.c.l.b16 %v6489
  %v7034 = vunpack.c.l.b16 %v6490
  %v7035 = vunpack.c.l.b16 %v6491
  %v7036 = vunpack.c.l.b16 %v6492
  %v7037 = vunpack.c.l.b16 %v6493
  %v7038 = vunpack.c.l.b16 %v6494
  %v7039 = vunpack.c.l.b16 %v6495
  %v7040 = vunpack.c.l.b16 %v6496
  %v7041 = vunpack.c.l.b16 %v6497
  %v7042 = vunpack.c.l.b16 %v6498
  %v7043 = vunpack.c.l.b16 %v6499
  %v7044 = vunpack.c.l.b16 %v6500
  %v7045 = vunpack.c.l.b16 %v6501
  %v7046 = vunpack.c.l.b16 %v6502
  %v7047 = vunpack.c.l.b16 %v6503
  %v7048 = vunpack.c.l.b16 %v6504
  %v7049 = vunpack.c.l.b16 %v6505
  %v7050 = vunpack.c.l.b16 %v6506
  %v7051 = vunpack.c.l.b16 %v6507
  %v7052 = vunpack.c.l.b16 %v6508
  %v7053 = vunpack.c.l.b16 %v6509
  %v7054 = vunpack.c.l.b16 %v6510
  %v7055 = vunpack.c.l.b16 %v6511
  %v7056 = vunpack.c.l.b16 %v6512
  %v7057 = vunpack.c.l.b16 %v6513
  %v7058 = vunpack.c.l.b16 %v6514
  %v7059 = vunpack.c.l.b16 %v6515
  %v7060 = vunpack.c.l.b16 %v6516
  %v7061 = vunpack.c.l.b16 %v6517
  %v7062 = vunpack.c.l.b16 %v6518
  %v7063 = vunpack.c.l.b16 %v6519
  %v7064 = vunpack.c.l.b16 %v6520
  %v7065 = vunpack.c.l.b16 %v6521
  %v7066 = vunpack.c.l.b16 %v6522
  %v7067 = vunpack.c.l.b16 %v6523
  %v7068 = vunpack.c.l.b16 %v6524
  %v7069 = vunpack.c.l.b16 %v6525
  %v7070 = vunpack.c.l.b16 %v6526
  %v7071 = vunpack.c.l.b16 %v6527
  %v7072 = vunpack.c.l.b16 %v6528
  %v7073 = vunpack.c.l.b16 %v6529
  %v7074 = vunpack.c.l.b16 %v6530
  %v7075 = vunpack.c.l.b16 %v6531
  %v7076 = vunpack.c.l.b16 %v6532
  %v7077 = vunpack.c.l.b16 %v6533
  %v7078 = vunpack.c.l.b16 %v6534
  %v7079 = vunpack.c.l.b16 %v6535
  %v7080 = vunpack.c.l.b16 %v6536
  %v7081 = vunpack.c.l.b16 %v6537
  %v7082 = vunpack.c.l.b16 %v6538
  %v7083 = vunpack.c.l.b16 %v6539
  %v7084 = vunpack.c.l.b16 %v6540
  %v7085 = vunpack.c.l.b16 %v6541
  %v7086 = vunpack.c.l.b16 %v6542
  %v7087 = vunpack.c.l.b16 %v6543
  %v7088 = vunpack.c.l.b16 %v6544
  %v7089 = vunpack.c.l.b16 %v6545
  %v7090 = vunpack.c.l.b16 %v6546
  %v7091 = vunpack.c.l.b16 %v6547
  %v7092 = vunpack.c.l.b16 %v6548
  %v7093 = vunpack.c.l.b16 %v6549
  %v7094 = vunpack.c.l.b16 %v6550
  %v7095 = vunpack.c.l.b16 %v6551
  %v7096 = vunpack.c.l.b16 %v6552
  %v7097 = vunpack.c.l.b16 %v6553
  %v7098 = vunpack.c.l.b16 %v6554
  %v7099 = vunpack.c.l.b16 %v6555
  %v7100 = vunpack.c.l.b16 %v6556
  %v7101 = vunpack.c.l.b16 %v6557
  %v7102 = vunpack.c.l.b16 %v6558
  %v7103 = vunpack.c.l.b16 %v6559
  %v7104 = vunpack.c.l.b16 %v6560
  %v7105 = vunpack.c.l.b16 %v6561
  %v7106 = vunpack.c.l.b16 %v6562
  %v7107 = vunpack.c.l.b16 %v6563
  %v7108 = vunpack.c.l.b16 %v6564
  %v7109 = vunpack.c.l.b16 %v6565
  %v7110 = vunpack.c.l.b16 %v6566
  %v7111 = vunpack.c.l.b16 %v6567
  %v7112 = vunpack.c.l.b16 %v6568
  %v7113 = vunpack.c.l.b16 %v6569
  %v7114 = vunpack.c.l.b16 %v6570
  %v7115 = vunpack.c.l.b16 %v6571
  %v7116 = vunpack.c.l.b16 %v6572
  %v7117 = vunpack.c.l.b16 %v6573
  %v7118 = vunpack.c.l.b16 %v6574
  %v7119 = vunpack.c.l.b16 %v6575
  %v7120 = vunpack.c.l.b16 %v6576
  %v7121 = vunpack.c.l.b16 %v6577
  %v7122 = vunpack.c.l.b16 %v6578
  %v7123 = vunpack.c.l.b16 %v6579
  %v7124 = vunpack.c.l.b16 %v6580
  %v7125 = vunpack.c.l.b16 %v6581
  %v7126 = vunpack.c.l.b16 %v6582
  %v7127 = vunpack.c.l.b16 %v6583
  %v7128 = vunpack.c.l.b16 %v6584
  %v7129 = vunpack.c.l.b16 %v6585
  %v7130 = vunpack.c.l.b16 %v6586
  %v7131 = vunpack.c.l.b16 %v6587
  %v7132 = vunpack.c.l.b16 %v6588
  %v7133 = vunpack.c.l.b16 %v6589
  %v7134 = vunpack.c.l.b16 %v6590
  %v7135 = vunpack.c.l.b16 %v6591
  %v7136 = vpack.c.b16 %v7009, %v7008
  %v7137 = vpack.c.b16 %v7011, %v7010
  %v7138 = vpack.c.b16 %v7013, %v7012
  %v7139 = vpack.c.b16 %v7015, %v7014
  %v7140 = vpack.c.b16 %v7017, %v7016
  %v7141 = vpack.c.b16 %v7019, %v7018
  %v7142 = vpack.c.b16 %v7021, %v7020
  %v7143 = vpack.c.b16 %v7023, %v7022
  %v7144 = vpack.c.b16 %v7025, %v7024
  %v7145 = vpack.c.b16 %v7027, %v7026
  %v7146 = vpack.c.b16 %v7029, %v7028
  %v7147 = vpack.c.b16 %v7031, %v7030
  %v7148 = vpack.c.b16 %v7033, %v7032
  %v7149 = vpack.c.b16 %v7035, %v7034
  %v7150 = vpack.c.b16 %v7037, %v7036
  %v7151 = vpack.c.b16 %v7039, %v7038
  %v7152 = vpack.c.b16 %v7041, %v7040
  %v7153 = vpack.c.b16 %v7043, %v7042
  %v7154 = vpack.c.b16 %v7045, %v7044
  %v7155 = vpack.c.b16 %v7047, %v7046
  %v7156 = vpack.c.b16 %v7049, %v7048
  %v7157 = vpack.c.b16 %v7051, %v7050
  %v7158 = vpack.c.b16 %v7053, %v7052
  %v7159 = vpack.c.b16 %v7055, %v7054
  %v7160 = vpack.c.b16 %v7057, %v7056
  %v7161 = vpack.c.b16 %v7059, %v7058
  %v7162 = vpack.c.b16 %v7061, %v7060
  %v7163 = vpack.c.b16 %v7063, %v7062
  %v7164 = vpack.c.b16 %v7065, %v7064
  %v7165 = vpack.c.b16 %v7067, %v7066
  %v7166 = vpack.c.b16 %v7069, %v7068
  %v7167 = vpack.c.b16 %v7071, %v7070
  %v7168 = vpack.c.b16 %v7073, %v7072
  %v7169 = vpack.c.b16 %v7075, %v7074
  %v7170 = vpack.c.b16 %v7077, %v7076
  %v7171 = vpack.c.b16 %v7079, %v7078
  %v7172 = vpack.c.b16 %v7081, %v7080
  %v7173 = vpack.c.b16 %v7083, %v7082
  %v7174 = vpack.c.b16 %v7085, %v7084
  %v7175 = vpack.c.b16 %v7087, %v7086
  %v7176 = vpack.c.b16 %v7089, %v7088
  %v7177 = vpack.c.b16 %v7091, %v7090
  %v7178 = vpack.c.b16 %v7093, %v7092
  %v7179 = vpack.c.b16 %v7095, %v7094
  %v7180 = vpack.c.b16 %v7097, %v7096
  %v7181 = vpack.c.b16 %v7099, %v7098
  %v7182 = vpack.c.b16 %v7101, %v7100
  %v7183 = vpack.c.b16 %v7103, %v7102
  %v7184 = vpack.c.b16 %v7105, %v7104
  %v7185 = vpack.c.b16 %v7107, %v7106
  %v7186 = vpack.c.b16 %v7109, %v7108
  %v7187 = vpack.c.b16 %v7111, %v7110
  %v7188 = vpack.c.b16 %v7113, %v7112
  %v7189 = vpack.c.b16 %v7115, %v7114
  %v7190 = vpack.c.b16 %v7117, %v7116
  %v7191 = vpack.c.b16 %v7119, %v7118
  %v7192 = vpack.c.b16 %v7121, %v7120
  %v7193 = vpack.c.b16 %v7123, %v7122
  %v7194 = vpack.c.b16 %v7125, %v7124
  %v7195 = vpack.c.b16 %v7127, %v7126
  %v7196 = vpack.c.b16 %v7129, %v7128
  %v7197 = vpack.c.b16 %v7131, %v7130
  %v7198 = vpack.c.b16 %v7133, %v7132
  %v7199 = vpack.c.b16 %v7135, %v7134
  %7264 = vmatprep.subr.bf16.mxu0 0
  %7265 = vmatpush1.bf16.msra.mxu0 %v7136
  %7266 = vmatprep.subr.bf16.mxu0 0
  %7267 = vmatpush1.bf16.msra.mxu0 %v7137
  %7268 = vmatprep.subr.bf16.mxu0 0
  %7269 = vmatpush1.bf16.msra.mxu0 %v7138
  %7270 = vmatprep.subr.bf16.mxu0 0
  %7271 = vmatpush1.bf16.msra.mxu0 %v7139
  %7272 = vmatprep.subr.bf16.mxu0 0
  %7273 = vmatpush1.bf16.msra.mxu0 %v7140
  %7274 = vmatprep.subr.bf16.mxu0 0
  %7275 = vmatpush1.bf16.msra.mxu0 %v7141
  %7276 = vmatprep.subr.bf16.mxu0 0
  %7277 = vmatpush1.bf16.msra.mxu0 %v7142
  %7278 = vmatprep.subr.bf16.mxu0 0
  %7279 = vmatpush1.bf16.msra.mxu0 %v7143
  %7280 = vmatprep.subr.bf16.mxu0 0
  %7281 = vmatpush1.bf16.msra.mxu0 %v7144
  %7282 = vmatprep.subr.bf16.mxu0 0
  %7283 = vmatpush1.bf16.msra.mxu0 %v7145
  %7284 = vmatprep.subr.bf16.mxu0 0
  %7285 = vmatpush1.bf16.msra.mxu0 %v7146
  %7286 = vmatprep.subr.bf16.mxu0 0
  %7287 = vmatpush1.bf16.msra.mxu0 %v7147
  %7288 = vmatprep.subr.bf16.mxu0 0
  %7289 = vmatpush1.bf16.msra.mxu0 %v7148
  %7290 = vmatprep.subr.bf16.mxu0 0
  %7291 = vmatpush1.bf16.msra.mxu0 %v7149
  %7292 = vmatprep.subr.bf16.mxu0 0
  %7293 = vmatpush1.bf16.msra.mxu0 %v7150
  %7294 = vmatprep.subr.bf16.mxu0 0
  %7295 = vmatpush1.bf16.msra.mxu0 %v7151
  %7296 = vmatprep.mubr.bf16.mxu0 %v6873
  %7297 = vmatmul.mubr.bf16.gmra.mrb[0].mxu0 %v6872
  %v7298 = vpop.f32.mrb[0].mxu0
  %v7299 = vadd.f32 0.0, %v7298
  %v7300 = vpop.f32.mrb[0].mxu0
  %v7301 = vpop.f32.mrb[0].mxu0
  %v7302 = vpop.f32.mrb[0].mxu0
  %7303 = vdwg.mxu0
  %7304 = vmatprep.subr.bf16.mxu0 0
  %7305 = vmatpush1.bf16.msra.mxu0 %v7152
  %7306 = vmatprep.subr.bf16.mxu0 0
  %7307 = vmatpush1.bf16.msra.mxu0 %v7153
  %7308 = vmatprep.subr.bf16.mxu0 0
  %7309 = vmatpush1.bf16.msra.mxu0 %v7154
  %7310 = vmatprep.subr.bf16.mxu0 0
  %7311 = vmatpush1.bf16.msra.mxu0 %v7155
  %7312 = vmatprep.subr.bf16.mxu0 0
  %7313 = vmatpush1.bf16.msra.mxu0 %v7156
  %7314 = vmatprep.subr.bf16.mxu0 0
  %7315 = vmatpush1.bf16.msra.mxu0 %v7157
  %7316 = vmatprep.subr.bf16.mxu0 0
  %7317 = vmatpush1.bf16.msra.mxu0 %v7158
  %7318 = vmatprep.subr.bf16.mxu0 0
  %7319 = vmatpush1.bf16.msra.mxu0 %v7159
  %7320 = vmatprep.subr.bf16.mxu0 0
  %7321 = vmatpush1.bf16.msra.mxu0 %v7160
  %7322 = vmatprep.subr.bf16.mxu0 0
  %7323 = vmatpush1.bf16.msra.mxu0 %v7161
  %7324 = vmatprep.subr.bf16.mxu0 0
  %7325 = vmatpush1.bf16.msra.mxu0 %v7162
  %7326 = vmatprep.subr.bf16.mxu0 0
  %7327 = vmatpush1.bf16.msra.mxu0 %v7163
  %7328 = vmatprep.subr.bf16.mxu0 0
  %7329 = vmatpush1.bf16.msra.mxu0 %v7164
  %7330 = vmatprep.subr.bf16.mxu0 0
  %7331 = vmatpush1.bf16.msra.mxu0 %v7165
  %7332 = vmatprep.subr.bf16.mxu0 0
  %7333 = vmatpush1.bf16.msra.mxu0 %v7166
  %7334 = vmatprep.subr.bf16.mxu0 0
  %7335 = vmatpush1.bf16.msra.mxu0 %v7167
  %7336 = vmatprep.mubr.bf16.mxu0 %v6875
  %7337 = vmatmul.mubr.bf16.gmra.mrb[0].mxu0 %v6874
  %v7338 = vpop.f32.mrb[0].mxu0
  %v7339 = vadd.f32 %v7299, %v7338
  %v7340 = vpop.f32.mrb[0].mxu0
  %v7341 = vpop.f32.mrb[0].mxu0
  %v7342 = vpop.f32.mrb[0].mxu0
  %7343 = vdwg.mxu0
  %7344 = vmatprep.subr.bf16.mxu0 0
  %7345 = vmatpush1.bf16.msra.mxu0 %v7168
  %7346 = vmatprep.subr.bf16.mxu0 0
  %7347 = vmatpush1.bf16.msra.mxu0 %v7169
  %7348 = vmatprep.subr.bf16.mxu0 0
  %7349 = vmatpush1.bf16.msra.mxu0 %v7170
  %7350 = vmatprep.subr.bf16.mxu0 0
  %7351 = vmatpush1.bf16.msra.mxu0 %v7171
  %7352 = vmatprep.subr.bf16.mxu0 0
  %7353 = vmatpush1.bf16.msra.mxu0 %v7172
  %7354 = vmatprep.subr.bf16.mxu0 0
  %7355 = vmatpush1.bf16.msra.mxu0 %v7173
  %7356 = vmatprep.subr.bf16.mxu0 0
  %7357 = vmatpush1.bf16.msra.mxu0 %v7174
  %7358 = vmatprep.subr.bf16.mxu0 0
  %7359 = vmatpush1.bf16.msra.mxu0 %v7175
  %7360 = vmatprep.subr.bf16.mxu0 0
  %7361 = vmatpush1.bf16.msra.mxu0 %v7176
  %7362 = vmatprep.subr.bf16.mxu0 0
  %7363 = vmatpush1.bf16.msra.mxu0 %v7177
  %7364 = vmatprep.subr.bf16.mxu0 0
  %7365 = vmatpush1.bf16.msra.mxu0 %v7178
  %7366 = vmatprep.subr.bf16.mxu0 0
  %7367 = vmatpush1.bf16.msra.mxu0 %v7179
  %7368 = vmatprep.subr.bf16.mxu0 0
  %7369 = vmatpush1.bf16.msra.mxu0 %v7180
  %7370 = vmatprep.subr.bf16.mxu0 0
  %7371 = vmatpush1.bf16.msra.mxu0 %v7181
  %7372 = vmatprep.subr.bf16.mxu0 0
  %7373 = vmatpush1.bf16.msra.mxu0 %v7182
  %7374 = vmatprep.subr.bf16.mxu0 0
  %7375 = vmatpush1.bf16.msra.mxu0 %v7183
  %7376 = vmatprep.mubr.bf16.mxu0 %v6877
  %7377 = vmatmul.mubr.bf16.gmra.mrb[0].mxu0 %v6876
  %v7378 = vpop.f32.mrb[0].mxu0
  %v7379 = vadd.f32 %v7339, %v7378
  %v7380 = vpop.f32.mrb[0].mxu0
  %v7381 = vpop.f32.mrb[0].mxu0
  %v7382 = vpop.f32.mrb[0].mxu0
  %7383 = vdwg.mxu0
  %7384 = vmatprep.subr.bf16.mxu0 0
  %7385 = vmatpush1.bf16.msra.mxu0 %v7184
  %7386 = vmatprep.subr.bf16.mxu0 0
  %7387 = vmatpush1.bf16.msra.mxu0 %v7185
  %7388 = vmatprep.subr.bf16.mxu0 0
  %7389 = vmatpush1.bf16.msra.mxu0 %v7186
  %7390 = vmatprep.subr.bf16.mxu0 0
  %7391 = vmatpush1.bf16.msra.mxu0 %v7187
  %7392 = vmatprep.subr.bf16.mxu0 0
  %7393 = vmatpush1.bf16.msra.mxu0 %v7188
  %7394 = vmatprep.subr.bf16.mxu0 0
  %7395 = vmatpush1.bf16.msra.mxu0 %v7189
  %7396 = vmatprep.subr.bf16.mxu0 0
  %7397 = vmatpush1.bf16.msra.mxu0 %v7190
  %7398 = vmatprep.subr.bf16.mxu0 0
  %7399 = vmatpush1.bf16.msra.mxu0 %v7191
  %7400 = vmatprep.subr.bf16.mxu0 0
  %7401 = vmatpush1.bf16.msra.mxu0 %v7192
  %7402 = vmatprep.subr.bf16.mxu0 0
  %7403 = vmatpush1.bf16.msra.mxu0 %v7193
  %7404 = vmatprep.subr.bf16.mxu0 0
  %7405 = vmatpush1.bf16.msra.mxu0 %v7194
  %7406 = vmatprep.subr.bf16.mxu0 0
  %7407 = vmatpush1.bf16.msra.mxu0 %v7195
  %7408 = vmatprep.subr.bf16.mxu0 0
  %7409 = vmatpush1.bf16.msra.mxu0 %v7196
  %7410 = vmatprep.subr.bf16.mxu0 0
  %7411 = vmatpush1.bf16.msra.mxu0 %v7197
  %7412 = vmatprep.subr.bf16.mxu0 0
  %7413 = vmatpush1.bf16.msra.mxu0 %v7198
  %7414 = vmatprep.subr.bf16.mxu0 0
  %7415 = vmatpush1.bf16.msra.mxu0 %v7199
  %7416 = vmatprep.mubr.bf16.mxu0 %v6879
  %7417 = vmatmul.mubr.bf16.gmra.mrb[0].mxu0 %v6878
  %v7418 = vpop.f32.mrb[0].mxu0
  %v7419 = vadd.f32 %v7379, %v7418
  %v7420 = vpop.f32.mrb[0].mxu0
  %v7421 = vpop.f32.mrb[0].mxu0
  %v7422 = vpop.f32.mrb[0].mxu0
  %7423 = vdwg.mxu0
  %vm7424 = vcmask 0
  %7425 = vst.msk [vmem:[#allocation13] sm:$0x1] %vm7424, %v7419
  %v7427 = vsel %vm6600, %v6461, 0
  %7429 = vmatprep.subr.bf16.mxu0 0
  %7430 = vmatpush1.bf16.msra.mxu0 %v7427
  %7431 = vmatprep.subr.bf16.mxu0 0
  %7432 = vmatpush1.bf16.msra.mxu0 0
  %7433 = vmatprep.subr.bf16.mxu0 0
  %7434 = vmatpush1.bf16.msra.mxu0 0
  %7435 = vmatprep.subr.bf16.mxu0 0
  %7436 = vmatpush1.bf16.msra.mxu0 0
  %7437 = vmatprep.subr.bf16.mxu0 0
  %7438 = vmatpush1.bf16.msra.mxu0 0
  %7439 = vmatprep.subr.bf16.mxu0 0
  %7440 = vmatpush1.bf16.msra.mxu0 0
  %7441 = vmatprep.subr.bf16.mxu0 0
  %7442 = vmatpush1.bf16.msra.mxu0 0
  %7443 = vmatprep.subr.bf16.mxu0 0
  %7444 = vmatpush1.bf16.msra.mxu0 0
  %7445 = vmatprep.subr.bf16.mxu0 0
  %7446 = vmatpush1.bf16.msra.mxu0 0
  %7447 = vmatprep.subr.bf16.mxu0 0
  %7448 = vmatpush1.bf16.msra.mxu0 0
  %7449 = vmatprep.subr.bf16.mxu0 0
  %7450 = vmatpush1.bf16.msra.mxu0 0
  %7451 = vmatprep.subr.bf16.mxu0 0
  %7452 = vmatpush1.bf16.msra.mxu0 0
  %7453 = vmatprep.subr.bf16.mxu0 0
  %7454 = vmatpush1.bf16.msra.mxu0 0
  %7455 = vmatprep.subr.bf16.mxu0 0
  %7456 = vmatpush1.bf16.msra.mxu0 0
  %7457 = vmatprep.subr.bf16.mxu0 0
  %7458 = vmatpush1.bf16.msra.mxu0 0
  %7459 = vmatprep.subr.bf16.mxu0 0
  %7460 = vmatpush1.bf16.msra.mxu0 0
  %7461 = vmatprep.mubr.bf16.mxu0 0
  %7462 = vmatmul.mubr.bf16.gmra.mrb[0].mxu0 %v6598
  %v7463 = vpop.f32.mrb[0].mxu0
  %v7464 = vadd.f32 0.0, %v7463
  %v7465 = vpop.f32.mrb[0].mxu0
  %v7466 = vpop.f32.mrb[0].mxu0
  %v7467 = vadd.f32 0.0, %v7466
  %v7468 = vpop.f32.mrb[0].mxu0
  %7469 = vdwg.mxu0
  %7470 = vst.msk [vmem:[#allocation11] sm:$0xff] %vm2575, %v7464
  %7471 = vst.msk [vmem:[#allocation11 + $0x8] sm:$0xff] %vm2575, %v7467
  %v7472 = vld [vmem:[#allocation11] sm:$0x1]
  %7473 = vst.msk [vmem:[#allocation12] sm:$0x1] %vm6651, %v7472
  %v7474 = vld [vmem:[#allocation11 + $0x1] sm:$0x1]
  %v7477 = vunpack.c.l.s4 1966171168
  %v7478 = vunpack.c.0.s8 %v7477
  %v7479 = vlaneseq
  %v7480 = vshrl.u32 %v7479, 7
  %v7481 = vsub.s32 %v7478, %v7480
  %v7482 = vrot.slane %v7474, %v7481
  %v7484 = vunpack.c.l.s4 1966171168
  %v7485 = vunpack.c.0.s8 %v7484
  %v7486 = vlaneseq
  %v7487 = vshrl.u32 %v7486, 7
  %v7488 = vsub.s32 %v7485, %v7487
  %v7489 = vrot.slane %v7482, %v7488
  %7490 = vrot.lane.b32.xlu0 %v7489, 64
  %v7491 = vpop.permute.xlu0 %7490
  %7493 = vst.msk [vmem:[#allocation12] sm:$0x1] %vm6674, %v7491
  %v7494 = vld [vmem:[#allocation11 + $0x2] sm:$0x1]
  %7495 = vst.msk [vmem:[#allocation12 + $0x1] sm:$0x1] %vm6651, %v7494
  %v7496 = vld [vmem:[#allocation11 + $0x3] sm:$0x1]
  %v7499 = vunpack.c.l.s4 1966171168
  %v7500 = vunpack.c.0.s8 %v7499
  %v7501 = vlaneseq
  %v7502 = vshrl.u32 %v7501, 7
  %v7503 = vsub.s32 %v7500, %v7502
  %v7504 = vrot.slane %v7496, %v7503
  %v7506 = vunpack.c.l.s4 1966171168
  %v7507 = vunpack.c.0.s8 %v7506
  %v7508 = vlaneseq
  %v7509 = vshrl.u32 %v7508, 7
  %v7510 = vsub.s32 %v7507, %v7509
  %v7511 = vrot.slane %v7504, %v7510
  %7512 = vrot.lane.b32.xlu0 %v7511, 64
  %v7513 = vpop.permute.xlu0 %7512
  %7515 = vst.msk [vmem:[#allocation12 + $0x1] sm:$0x1] %vm6674, %v7513
  %v7516 = vld [vmem:[#allocation11 + $0x4] sm:$0x1]
  %7517 = vst.msk [vmem:[#allocation12 + $0x2] sm:$0x1] %vm6651, %v7516
  %v7518 = vld [vmem:[#allocation11 + $0x5] sm:$0x1]
  %v7521 = vunpack.c.l.s4 1966171168
  %v7522 = vunpack.c.0.s8 %v7521
  %v7523 = vlaneseq
  %v7524 = vshrl.u32 %v7523, 7
  %v7525 = vsub.s32 %v7522, %v7524
  %v7526 = vrot.slane %v7518, %v7525
  %v7528 = vunpack.c.l.s4 1966171168
  %v7529 = vunpack.c.0.s8 %v7528
  %v7530 = vlaneseq
  %v7531 = vshrl.u32 %v7530, 7
  %v7532 = vsub.s32 %v7529, %v7531
  %v7533 = vrot.slane %v7526, %v7532
  %7534 = vrot.lane.b32.xlu0 %v7533, 64
  %v7535 = vpop.permute.xlu0 %7534
  %7537 = vst.msk [vmem:[#allocation12 + $0x2] sm:$0x1] %vm6674, %v7535
  %v7538 = vld [vmem:[#allocation11 + $0x6] sm:$0x1]
  %7539 = vst.msk [vmem:[#allocation12 + $0x3] sm:$0x1] %vm6651, %v7538
  %v7540 = vld [vmem:[#allocation11 + $0x7] sm:$0x1]
  %v7543 = vunpack.c.l.s4 1966171168
  %v7544 = vunpack.c.0.s8 %v7543
  %v7545 = vlaneseq
  %v7546 = vshrl.u32 %v7545, 7
  %v7547 = vsub.s32 %v7544, %v7546
  %v7548 = vrot.slane %v7540, %v7547
  %v7550 = vunpack.c.l.s4 1966171168
  %v7551 = vunpack.c.0.s8 %v7550
  %v7552 = vlaneseq
  %v7553 = vshrl.u32 %v7552, 7
  %v7554 = vsub.s32 %v7551, %v7553
  %v7555 = vrot.slane %v7548, %v7554
  %7556 = vrot.lane.b32.xlu0 %v7555, 64
  %v7557 = vpop.permute.xlu0 %7556
  %7559 = vst.msk [vmem:[#allocation12 + $0x3] sm:$0x1] %vm6674, %v7557
  %v7560 = vld [vmem:[#allocation11 + $0x8] sm:$0x1]
  %7561 = vst.msk [vmem:[#allocation12 + $0x4] sm:$0x1] %vm6651, %v7560
  %v7562 = vld [vmem:[#allocation11 + $0x9] sm:$0x1]
  %v7565 = vunpack.c.l.s4 1966171168
  %v7566 = vunpack.c.0.s8 %v7565
  %v7567 = vlaneseq
  %v7568 = vshrl.u32 %v7567, 7
  %v7569 = vsub.s32 %v7566, %v7568
  %v7570 = vrot.slane %v7562, %v7569
  %v7572 = vunpack.c.l.s4 1966171168
  %v7573 = vunpack.c.0.s8 %v7572
  %v7574 = vlaneseq
  %v7575 = vshrl.u32 %v7574, 7
  %v7576 = vsub.s32 %v7573, %v7575
  %v7577 = vrot.slane %v7570, %v7576
  %7578 = vrot.lane.b32.xlu0 %v7577, 64
  %v7579 = vpop.permute.xlu0 %7578
  %7581 = vst.msk [vmem:[#allocation12 + $0x4] sm:$0x1] %vm6674, %v7579
  %v7582 = vld [vmem:[#allocation11 + $0xa] sm:$0x1]
  %7583 = vst.msk [vmem:[#allocation12 + $0x5] sm:$0x1] %vm6651, %v7582
  %v7584 = vld [vmem:[#allocation11 + $0xb] sm:$0x1]
  %v7587 = vunpack.c.l.s4 1966171168
  %v7588 = vunpack.c.0.s8 %v7587
  %v7589 = vlaneseq
  %v7590 = vshrl.u32 %v7589, 7
  %v7591 = vsub.s32 %v7588, %v7590
  %v7592 = vrot.slane %v7584, %v7591
  %v7594 = vunpack.c.l.s4 1966171168
  %v7595 = vunpack.c.0.s8 %v7594
  %v7596 = vlaneseq
  %v7597 = vshrl.u32 %v7596, 7
  %v7598 = vsub.s32 %v7595, %v7597
  %v7599 = vrot.slane %v7592, %v7598
  %7600 = vrot.lane.b32.xlu0 %v7599, 64
  %v7601 = vpop.permute.xlu0 %7600
  %7603 = vst.msk [vmem:[#allocation12 + $0x5] sm:$0x1] %vm6674, %v7601
  %v7604 = vld [vmem:[#allocation11 + $0xc] sm:$0x1]
  %7605 = vst.msk [vmem:[#allocation12 + $0x6] sm:$0x1] %vm6651, %v7604
  %v7606 = vld [vmem:[#allocation11 + $0xd] sm:$0x1]
  %v7609 = vunpack.c.l.s4 1966171168
  %v7610 = vunpack.c.0.s8 %v7609
  %v7611 = vlaneseq
  %v7612 = vshrl.u32 %v7611, 7
  %v7613 = vsub.s32 %v7610, %v7612
  %v7614 = vrot.slane %v7606, %v7613
  %v7616 = vunpack.c.l.s4 1966171168
  %v7617 = vunpack.c.0.s8 %v7616
  %v7618 = vlaneseq
  %v7619 = vshrl.u32 %v7618, 7
  %v7620 = vsub.s32 %v7617, %v7619
  %v7621 = vrot.slane %v7614, %v7620
  %7622 = vrot.lane.b32.xlu0 %v7621, 64
  %v7623 = vpop.permute.xlu0 %7622
  %7625 = vst.msk [vmem:[#allocation12 + $0x6] sm:$0x1] %vm6674, %v7623
  %v7626 = vld [vmem:[#allocation11 + $0xe] sm:$0x1]
  %7627 = vst.msk [vmem:[#allocation12 + $0x7] sm:$0x1] %vm6651, %v7626
  %v7628 = vld [vmem:[#allocation11 + $0xf] sm:$0x1]
  %v7631 = vunpack.c.l.s4 1966171168
  %v7632 = vunpack.c.0.s8 %v7631
  %v7633 = vlaneseq
  %v7634 = vshrl.u32 %v7633, 7
  %v7635 = vsub.s32 %v7632, %v7634
  %v7636 = vrot.slane %v7628, %v7635
  %v7638 = vunpack.c.l.s4 1966171168
  %v7639 = vunpack.c.0.s8 %v7638
  %v7640 = vlaneseq
  %v7641 = vshrl.u32 %v7640, 7
  %v7642 = vsub.s32 %v7639, %v7641
  %v7643 = vrot.slane %v7636, %v7642
  %7644 = vrot.lane.b32.xlu0 %v7643, 64
  %v7645 = vpop.permute.xlu0 %7644
  %7647 = vst.msk [vmem:[#allocation12 + $0x7] sm:$0x1] %vm6674, %v7645
  %v7648 = vld [vmem:[#allocation12] sm:$0xff]
  %v7650 = vlaneseq
  %v7651 = vshrl.u32 %v7650, 7
  %v7652 = vsub.s32 0, %v7651
  %v7653 = vrot.slane %v7648, %v7652
  %v7654 = vlaneseq
  %v7655 = vshrl.u32 %v7654, 7
  %v7656 = vsub.s32 1, %v7655
  %v7657 = vrot.slane %v7648, %v7656
  %v7658 = vlaneseq
  %v7659 = vshrl.u32 %v7658, 7
  %v7660 = vsub.s32 2, %v7659
  %v7661 = vrot.slane %v7648, %v7660
  %v7662 = vlaneseq
  %v7663 = vshrl.u32 %v7662, 7
  %v7664 = vsub.s32 3, %v7663
  %v7665 = vrot.slane %v7648, %v7664
  %v7666 = vlaneseq
  %v7667 = vshrl.u32 %v7666, 7
  %v7668 = vsub.s32 4, %v7667
  %v7669 = vrot.slane %v7648, %v7668
  %v7670 = vlaneseq
  %v7671 = vshrl.u32 %v7670, 7
  %v7672 = vsub.s32 5, %v7671
  %v7673 = vrot.slane %v7648, %v7672
  %v7674 = vlaneseq
  %v7675 = vshrl.u32 %v7674, 7
  %v7676 = vsub.s32 6, %v7675
  %v7677 = vrot.slane %v7648, %v7676
  %v7678 = vlaneseq
  %v7679 = vshrl.u32 %v7678, 7
  %v7680 = vsub.s32 7, %v7679
  %v7681 = vrot.slane %v7648, %v7680
  %v7690 = vpack.c.bf16 %v7653, %v7653
  %v7691 = vpack.c.bf16 %v7657, %v7657
  %v7692 = vpack.c.bf16 %v7661, %v7661
  %v7693 = vpack.c.bf16 %v7665, %v7665
  %v7694 = vpack.c.bf16 %v7669, %v7669
  %v7695 = vpack.c.bf16 %v7673, %v7673
  %v7696 = vpack.c.bf16 %v7677, %v7677
  %v7697 = vpack.c.bf16 %v7681, %v7681
  %7698 = vmatprep.subr.bf16.mxu0 0
  %7699 = vmatpush1.bf16.msra.mxu0 %v7136
  %7700 = vmatprep.subr.bf16.mxu0 0
  %7701 = vmatpush1.bf16.msra.mxu0 %v7137
  %7702 = vmatprep.subr.bf16.mxu0 0
  %7703 = vmatpush1.bf16.msra.mxu0 %v7138
  %7704 = vmatprep.subr.bf16.mxu0 0
  %7705 = vmatpush1.bf16.msra.mxu0 %v7139
  %7706 = vmatprep.subr.bf16.mxu0 0
  %7707 = vmatpush1.bf16.msra.mxu0 %v7140
  %7708 = vmatprep.subr.bf16.mxu0 0
  %7709 = vmatpush1.bf16.msra.mxu0 %v7141
  %7710 = vmatprep.subr.bf16.mxu0 0
  %7711 = vmatpush1.bf16.msra.mxu0 %v7142
  %7712 = vmatprep.subr.bf16.mxu0 0
  %7713 = vmatpush1.bf16.msra.mxu0 %v7143
  %7714 = vmatprep.subr.bf16.mxu0 0
  %7715 = vmatpush1.bf16.msra.mxu0 %v7144
  %7716 = vmatprep.subr.bf16.mxu0 0
  %7717 = vmatpush1.bf16.msra.mxu0 %v7145
  %7718 = vmatprep.subr.bf16.mxu0 0
  %7719 = vmatpush1.bf16.msra.mxu0 %v7146
  %7720 = vmatprep.subr.bf16.mxu0 0
  %7721 = vmatpush1.bf16.msra.mxu0 %v7147
  %7722 = vmatprep.subr.bf16.mxu0 0
  %7723 = vmatpush1.bf16.msra.mxu0 %v7148
  %7724 = vmatprep.subr.bf16.mxu0 0
  %7725 = vmatpush1.bf16.msra.mxu0 %v7149
  %7726 = vmatprep.subr.bf16.mxu0 0
  %7727 = vmatpush1.bf16.msra.mxu0 %v7150
  %7728 = vmatprep.subr.bf16.mxu0 0
  %7729 = vmatpush1.bf16.msra.mxu0 %v7151
  %7730 = vmatprep.mubr.bf16.mxu0 %v7691
  %7731 = vmatmul.mubr.bf16.gmra.mrb[0].mxu0 %v7690
  %v7732 = vpop.f32.mrb[0].mxu0
  %v7733 = vadd.f32 0.0, %v7732
  %v7734 = vpop.f32.mrb[0].mxu0
  %v7735 = vpop.f32.mrb[0].mxu0
  %v7736 = vpop.f32.mrb[0].mxu0
  %7737 = vdwg.mxu0
  %7738 = vmatprep.subr.bf16.mxu0 0
  %7739 = vmatpush1.bf16.msra.mxu0 %v7152
  %7740 = vmatprep.subr.bf16.mxu0 0
  %7741 = vmatpush1.bf16.msra.mxu0 %v7153
  %7742 = vmatprep.subr.bf16.mxu0 0
  %7743 = vmatpush1.bf16.msra.mxu0 %v7154
  %7744 = vmatprep.subr.bf16.mxu0 0
  %7745 = vmatpush1.bf16.msra.mxu0 %v7155
  %7746 = vmatprep.subr.bf16.mxu0 0
  %7747 = vmatpush1.bf16.msra.mxu0 %v7156
  %7748 = vmatprep.subr.bf16.mxu0 0
  %7749 = vmatpush1.bf16.msra.mxu0 %v7157
  %7750 = vmatprep.subr.bf16.mxu0 0
  %7751 = vmatpush1.bf16.msra.mxu0 %v7158
  %7752 = vmatprep.subr.bf16.mxu0 0
  %7753 = vmatpush1.bf16.msra.mxu0 %v7159
  %7754 = vmatprep.subr.bf16.mxu0 0
  %7755 = vmatpush1.bf16.msra.mxu0 %v7160
  %7756 = vmatprep.subr.bf16.mxu0 0
  %7757 = vmatpush1.bf16.msra.mxu0 %v7161
  %7758 = vmatprep.subr.bf16.mxu0 0
  %7759 = vmatpush1.bf16.msra.mxu0 %v7162
  %7760 = vmatprep.subr.bf16.mxu0 0
  %7761 = vmatpush1.bf16.msra.mxu0 %v7163
  %7762 = vmatprep.subr.bf16.mxu0 0
  %7763 = vmatpush1.bf16.msra.mxu0 %v7164
  %7764 = vmatprep.subr.bf16.mxu0 0
  %7765 = vmatpush1.bf16.msra.mxu0 %v7165
  %7766 = vmatprep.subr.bf16.mxu0 0
  %7767 = vmatpush1.bf16.msra.mxu0 %v7166
  %7768 = vmatprep.subr.bf16.mxu0 0
  %7769 = vmatpush1.bf16.msra.mxu0 %v7167
  %7770 = vmatprep.mubr.bf16.mxu0 %v7693
  %7771 = vmatmul.mubr.bf16.gmra.mrb[0].mxu0 %v7692
  %v7772 = vpop.f32.mrb[0].mxu0
  %v7773 = vadd.f32 %v7733, %v7772
  %v7774 = vpop.f32.mrb[0].mxu0
  %v7775 = vpop.f32.mrb[0].mxu0
  %v7776 = vpop.f32.mrb[0].mxu0
  %7777 = vdwg.mxu0
  %7778 = vmatprep.subr.bf16.mxu0 0
  %7779 = vmatpush1.bf16.msra.mxu0 %v7168
  %7780 = vmatprep.subr.bf16.mxu0 0
  %7781 = vmatpush1.bf16.msra.mxu0 %v7169
  %7782 = vmatprep.subr.bf16.mxu0 0
  %7783 = vmatpush1.bf16.msra.mxu0 %v7170
  %7784 = vmatprep.subr.bf16.mxu0 0
  %7785 = vmatpush1.bf16.msra.mxu0 %v7171
  %7786 = vmatprep.subr.bf16.mxu0 0
  %7787 = vmatpush1.bf16.msra.mxu0 %v7172
  %7788 = vmatprep.subr.bf16.mxu0 0
  %7789 = vmatpush1.bf16.msra.mxu0 %v7173
  %7790 = vmatprep.subr.bf16.mxu0 0
  %7791 = vmatpush1.bf16.msra.mxu0 %v7174
  %7792 = vmatprep.subr.bf16.mxu0 0
  %7793 = vmatpush1.bf16.msra.mxu0 %v7175
  %7794 = vmatprep.subr.bf16.mxu0 0
  %7795 = vmatpush1.bf16.msra.mxu0 %v7176
  %7796 = vmatprep.subr.bf16.mxu0 0
  %7797 = vmatpush1.bf16.msra.mxu0 %v7177
  %7798 = vmatprep.subr.bf16.mxu0 0
  %7799 = vmatpush1.bf16.msra.mxu0 %v7178
  %7800 = vmatprep.subr.bf16.mxu0 0
  %7801 = vmatpush1.bf16.msra.mxu0 %v7179
  %7802 = vmatprep.subr.bf16.mxu0 0
  %7803 = vmatpush1.bf16.msra.mxu0 %v7180
  %7804 = vmatprep.subr.bf16.mxu0 0
  %7805 = vmatpush1.bf16.msra.mxu0 %v7181
  %7806 = vmatprep.subr.bf16.mxu0 0
  %7807 = vmatpush1.bf16.msra.mxu0 %v7182
  %7808 = vmatprep.subr.bf16.mxu0 0
  %7809 = vmatpush1.bf16.msra.mxu0 %v7183
  %7810 = vmatprep.mubr.bf16.mxu0 %v7695
  %7811 = vmatmul.mubr.bf16.gmra.mrb[0].mxu0 %v7694
  %v7812 = vpop.f32.mrb[0].mxu0
  %v7813 = vadd.f32 %v7773, %v7812
  %v7814 = vpop.f32.mrb[0].mxu0
  %v7815 = vpop.f32.mrb[0].mxu0
  %v7816 = vpop.f32.mrb[0].mxu0
  %7817 = vdwg.mxu0
  %7818 = vmatprep.subr.bf16.mxu0 0
  %7819 = vmatpush1.bf16.msra.mxu0 %v7184
  %7820 = vmatprep.subr.bf16.mxu0 0
  %7821 = vmatpush1.bf16.msra.mxu0 %v7185
  %7822 = vmatprep.subr.bf16.mxu0 0
  %7823 = vmatpush1.bf16.msra.mxu0 %v7186
  %7824 = vmatprep.subr.bf16.mxu0 0
  %7825 = vmatpush1.bf16.msra.mxu0 %v7187
  %7826 = vmatprep.subr.bf16.mxu0 0
  %7827 = vmatpush1.bf16.msra.mxu0 %v7188
  %7828 = vmatprep.subr.bf16.mxu0 0
  %7829 = vmatpush1.bf16.msra.mxu0 %v7189
  %7830 = vmatprep.subr.bf16.mxu0 0
  %7831 = vmatpush1.bf16.msra.mxu0 %v7190
  %7832 = vmatprep.subr.bf16.mxu0 0
  %7833 = vmatpush1.bf16.msra.mxu0 %v7191
  %7834 = vmatprep.subr.bf16.mxu0 0
  %7835 = vmatpush1.bf16.msra.mxu0 %v7192
  %7836 = vmatprep.subr.bf16.mxu0 0
  %7837 = vmatpush1.bf16.msra.mxu0 %v7193
  %7838 = vmatprep.subr.bf16.mxu0 0
  %7839 = vmatpush1.bf16.msra.mxu0 %v7194
  %7840 = vmatprep.subr.bf16.mxu0 0
  %7841 = vmatpush1.bf16.msra.mxu0 %v7195
  %7842 = vmatprep.subr.bf16.mxu0 0
  %7843 = vmatpush1.bf16.msra.mxu0 %v7196
  %7844 = vmatprep.subr.bf16.mxu0 0
  %7845 = vmatpush1.bf16.msra.mxu0 %v7197
  %7846 = vmatprep.subr.bf16.mxu0 0
  %7847 = vmatpush1.bf16.msra.mxu0 %v7198
  %7848 = vmatprep.subr.bf16.mxu0 0
  %7849 = vmatpush1.bf16.msra.mxu0 %v7199
  %7850 = vmatprep.mubr.bf16.mxu0 %v7697
  %7851 = vmatmul.mubr.bf16.gmra.mrb[0].mxu0 %v7696
  %v7852 = vpop.f32.mrb[0].mxu0
  %v7853 = vadd.f32 %v7813, %v7852
  %v7854 = vpop.f32.mrb[0].mxu0
  %v7855 = vpop.f32.mrb[0].mxu0
  %v7856 = vpop.f32.mrb[0].mxu0
  %7857 = vdwg.mxu0
  %7858 = vst.msk [vmem:[#allocation13 + $0x1] sm:$0x1] %vm7424, %v7853
  %v7859 = vld [vmem:[#allocation13] sm:$0x3]
  %v7860 = vld [vmem:[%s13] sm:$0x3]
  %v7861 = vlaneseq
  %v7862 = vshrl.u32 %v7861, 7
  %v7863 = vsub.s32 0, %v7862
  %v7864 = vrot.slane %v7860, %v7863
  %v7865 = vmul.f32 %v7859, %v7864
  %v7866 = vlaneseq
  %v7867 = vshrl.u32 %v7866, 7
  %v7868 = vsub.s32 1, %v7867
  %v7869 = vrot.slane %v7860, %v7868
  %v7870 = vadd.f32 %v7865, %v7869
  %v7871 = vsub.f32 0.0, %v7870
  %v7872 = vmul.f32 %v7871, 1.442695
  %v7873 = vpow.pop %v7872
  %v7874 = vadd.f32 %v7873, 1.0
  %v7875 = vrcp.pop %v7874
  %v7876 = vmul.f32 1.0, %v7875
  %vm7877 = vcmask 1024
  %7878 = vst.msk [vmem:[%s14] sm:$0x3] %vm7877, %v7876
  // Predicated region
  $region58: #{forward.1} parent=0 // pred_check
    _
  $region59: #{forward.1} parent=0 // pred_check_branch
    %7880 = sbr.rel (0) target = $region61
  $region60: #{forward.1} parent=0 // pred_region
    _
  $region61: #{forward.1} parent=0 // pred_fallthru
    _
  // Predicated region
  $region62: #{forward.1} parent=0 // pred_check
    _
  $region63: #{forward.1} parent=0 // pred_check_branch
    %7882 = sbr.rel (0) target = $region65
  $region64: #{forward.1} parent=0 // pred_region
    _
  $region65: #{forward.1} parent=0 // pred_fallthru
    _

</llo_original>
